<compile_context>
chip_gen: v7x
topology: tpu7x:2x2x1
jax: 0.10.0
libtpu: 0.0.40
codegen_flags: <defaults>
</compile_context>

<pallas_src>
import functools

import jax
import jax.numpy as jnp
from jax.experimental import pallas as pl
from jax.experimental.pallas import tpu as pltpu


def _round_up(v, m):
    return (v + m - 1) // m * m


# --------------------------------------------------------------------------- #
# Fused UnetBlock kernel (one batch element per grid step)
# --------------------------------------------------------------------------- #
def _unet_block_kernel(H, W, Wp, base,
                       up_ref, x_ref, p_ref, wt_ref, wx_ref,
                       w1_ref, w2_ref, off_ref, mask_ref,
                       out_ref, buf_a, buf_b):
    f32 = jnp.float32
    H2, W2 = 2 * H, 2 * W
    L = H2 * Wp                       # rows of the Wp-strided flat activation
    C = w1_ref.shape[2]               # n_out
    C2 = wx_ref.shape[1]              # n_out // 2
    SZ = buf_a.shape[0]

    # Zero only the halo rows (they are never overwritten by the per-step
    # stores below).  Doing this every step is tiny (~2*(base+Wp) rows) and
    # stays correct even when the "parallel" batch axis is split across
    # TensorCores (each core has its own scratch instance).
    top, bot = base, SZ - (base + L)
    buf_a[pl.ds(0, top), :] = jnp.zeros((top, C), buf_a.dtype)
    buf_b[pl.ds(0, top), :] = jnp.zeros((top, C), buf_b.dtype)
    buf_a[pl.ds(base + L, bot), :] = jnp.zeros((bot, C), buf_a.dtype)
    buf_b[pl.ds(base + L, bot), :] = jnp.zeros((bot, C), buf_b.dtype)

    mask = mask_ref[...]              # (L, 1) 0/1 validity of the Wp layout

    # ---- tr_conv: ConvTranspose2d(k=2, s=2); all 4 phases in ONE matmul -----
    u_all = jnp.dot(up_ref[0], wt_ref[...],
                    preferred_element_type=f32)                  # (H*W, 4*C2)
    o_up = off_ref[0:1, 0:C2]
    phases = [jnp.maximum(u_all[:, k * C2:(k + 1) * C2] + o_up, 0.0)
              .astype(buf_a.dtype) for k in range(4)]

    # ---- x_conv: 1x1 conv computed directly in the Wp-padded flat layout ----
    xa = jnp.dot(x_ref[0], wx_ref[...], preferred_element_type=f32)  # (L, C2)
    xa = jnp.maximum(xa + off_ref[0:1, C2:C], 0.0) * mask
    buf_a[pl.ds(base, L), C2:C] = xa.astype(buf_a.dtype)             # 1 store

    # ---- sub-pixel column interleave of the 4 tr_conv phases ----------------
    # One tiny constant (2*Wp, 4*W) 0/1 matmul per row pair (replaces the old
    # quadratic permutation matmul); pad columns come out as exact zeros.
    p_mat = p_ref[...]
    for i in range(H):   # TODO(synk): switch to lax.fori_loop for large H.
        s = jnp.concatenate([ph[i * W:(i + 1) * W, :] for ph in phases],
                            axis=0)                               # (4*W, C2)
        pair = jnp.dot(p_mat, s, preferred_element_type=f32)      # (2*Wp, C2)
        buf_a[pl.ds(base + 2 * i * Wp, 2 * Wp), 0:C2] = pair.astype(buf_a.dtype)

    # ---- conv_block_1: 3x3 conv as 3 bf16 matmuls of K = 3*C, + BN + ReLU ---
    acc = None
    for kh in range(3):
        row0 = base + (kh - 1) * Wp
        lhs = jnp.concatenate([buf_a[pl.ds(row0 - 1, L), :],
                               buf_a[pl.ds(row0, L), :],
                               buf_a[pl.ds(row0 + 1, L), :]], axis=1)
        term = jnp.dot(lhs, w1_ref[kh], preferred_element_type=f32)
        acc = term if acc is None else acc + term
    act1 = jnp.maximum(acc + off_ref[1:2, :], 0.0) * mask
    buf_b[pl.ds(base, L), :] = act1.astype(buf_b.dtype)              # 1 store

    # ---- conv_block_2: same structure ---------------------------------------
    acc = None
    for kh in range(3):
        row0 = base + (kh - 1) * Wp
        lhs = jnp.concatenate([buf_b[pl.ds(row0 - 1, L), :],
                               buf_b[pl.ds(row0, L), :],
                               buf_b[pl.ds(row0 + 1, L), :]], axis=1)
        term = jnp.dot(lhs, w2_ref[kh], preferred_element_type=f32)
        acc = term if acc is None else acc + term
    # One big aligned store; pad columns are stripped by the wrapper slice.
    out_ref[0, :, :] = jnp.maximum(acc + off_ref[2:3, :], 0.0)


def unet_block_forward(up_p, x_p, params, eps=1e-5):
    """NHWC UnetBlock forward (upsample=False, eval mode).

    up_p: (N, H, W, up_in); x_p: (N, 2H, 2W, x_in) -> (N, 2H, 2W, n_out).
    """
    N, H, W, up_in = up_p.shape
    _, H2, W2, x_in = x_p.shape
    assert H2 == 2 * H and W2 == 2 * W, "x_p must be 2x the spatial size of up_p"

    wt, bt = params["tr_conv"]        # (up_in, C2, 2, 2), (C2,)   [PyTorch layout]
    wx, bx = params["x_conv"]         # (C2, x_in, 1, 1), (C2,)
    w1, b1 = params["conv1"]          # (C, C, 3, 3), (C,)
    w2, b2 = params["conv2"]          # (C, C, 3, 3), (C,)
    C2 = wt.shape[1]
    C = w1.shape[0]
    assert C == 2 * C2

    # Fold each BatchNorm (eval: running stats) + the preceding conv bias into
    # a per-channel scale / offset; the scale is then folded into the weights.
    def bn_affine(bn):
        s = bn["gamma"] * jax.lax.rsqrt(bn["var"] + eps)
        return s, bn["beta"] - bn["mean"] * s

    s_cat, o_cat = bn_affine(params["norm"])
    s_up, o_up = s_cat[:C2], o_cat[:C2] + bt * s_cat[:C2]
    s_x, o_x = s_cat[C2:], o_cat[C2:] + bx * s_cat[C2:]
    s1, o1 = bn_affine(params["bn1"])
    o1 = o1 + b1 * s1
    s2, o2 = bn_affine(params["bn2"])
    o2 = o2 + b2 * s2

    # Scale-folded weight layouts:
    #  * wt_big:  (up_in, 4*C2), column (kh*2+kw)*C2 + co  -> one fused matmul
    #  * wx_mat:  (x_in, C2)
    #  * w1/w2:   (3, 3*C, C) bf16, row kw*C + ci per kh   -> K = 3*C matmuls
    wt_big = (jnp.transpose(wt, (0, 2, 3, 1)) * s_up).reshape(up_in, 4 * C2)
    wx_mat = jnp.transpose(wx[:, :, 0, 0], (1, 0)) * s_x
    w1_mat = (jnp.transpose(w1, (2, 3, 1, 0)) * s1).reshape(3, 3 * C, C)
    w2_mat = (jnp.transpose(w2, (2, 3, 1, 0)) * s2).reshape(3, 3 * C, C)
    offs = jnp.stack([jnp.concatenate([o_up, o_x]), o1, o2],
                     axis=0).astype(jnp.float32)                  # (3, C)

    # Flat padded-activation geometry (row stride Wp, pixel (0,0) at `base`).
    Wp = _round_up(W2 + 2, 8)
    base = Wp + 8
    L = H2 * Wp
    SZ = _round_up(base + L + Wp + 1, 8)

    # Constant sub-pixel interleave matrix for ONE row pair: maps the 4 stacked
    # phase rows (4*W, C2) onto the two Wp-padded output rows (2*Wp, C2).
    r = jnp.arange(2 * Wp)
    kh_idx, c_idx = r // Wp, r % Wp
    src = (kh_idx * 2 + c_idx % 2) * W + c_idx // 2
    p_pair = ((jnp.arange(4 * W)[None, :] == src[:, None]) &
              (c_idx < W2)[:, None]).astype(jnp.bfloat16)

    # 0/1 column-validity mask of the Wp-strided layout, precomputed host-side.
    mask = ((jnp.arange(L) % Wp) < W2).astype(jnp.float32)[:, None]  # (L, 1)

    up_flat = up_p.reshape(N, H * W, up_in).astype(jnp.float32)
    x_pad = jnp.pad(x_p, ((0, 0), (0, 0), (0, Wp - W2), (0, 0)))
    x_pad = x_pad.reshape(N, L, x_in).astype(jnp.float32)

    flops = N * (2 * H * W * up_in * 4 * C2            # tr_conv
                 + 2 * L * x_in * C2                   # x_conv
                 + 2 * H * (2 * Wp) * (4 * W) * C2     # sub-pixel interleave
                 + 2 * 2 * 3 * L * (3 * C) * C)        # two 3x3 convs
    bytes_acc = (N * (H * W * up_in + L * x_in + L * C) * 4
                 + (wt_big.size + wx_mat.size + offs.size + mask.size) * 4
                 + (w1_mat.size + w2_mat.size + p_pair.size) * 2)

    kernel = functools.partial(_unet_block_kernel, H, W, Wp, base)
    out = pl.pallas_call(
        kernel,
        out_shape=jax.ShapeDtypeStruct((N, L, C), jnp.float32),
        grid=(N,),
        in_specs=[
            pl.BlockSpec((1, H * W, up_in), lambda n: (n, 0, 0)),
            pl.BlockSpec((1, L, x_in), lambda n: (n, 0, 0)),
            pl.BlockSpec((2 * Wp, 4 * W), lambda n: (0, 0)),
            pl.BlockSpec((up_in, 4 * C2), lambda n: (0, 0)),
            pl.BlockSpec((x_in, C2), lambda n: (0, 0)),
            pl.BlockSpec((3, 3 * C, C), lambda n: (0, 0, 0)),
            pl.BlockSpec((3, 3 * C, C), lambda n: (0, 0, 0)),
            pl.BlockSpec((3, C), lambda n: (0, 0)),
            pl.BlockSpec((L, 1), lambda n: (0, 0)),
        ],
        out_specs=pl.BlockSpec((1, L, C), lambda n: (n, 0, 0)),
        scratch_shapes=[pltpu.VMEM((SZ, C), jnp.bfloat16),
                        pltpu.VMEM((SZ, C), jnp.bfloat16)],
        compiler_params=pltpu.CompilerParams(
            dimension_semantics=("parallel",),
            vmem_limit_bytes=64 * 1024 * 1024),
        cost_estimate=pl.CostEstimate(flops=flops, transcendentals=0,
                                      bytes_accessed=bytes_acc),
    )(up_flat, x_pad, p_pair, wt_big.astype(jnp.float32),
      wx_mat.astype(jnp.float32), w1_mat.astype(jnp.bfloat16),
      w2_mat.astype(jnp.bfloat16), offs, mask)

    # Strip the Wp - W2 pad columns with a cheap XLA slice.
    return out.reshape(N, H2, Wp, C)[:, :, :W2, :]


# --------------------------------------------------------------------------- #
# Pure-XLA NHWC reference (mirrors the PyTorch forward in eval mode)
# --------------------------------------------------------------------------- #
def unet_block_reference(up_p, x_p, params, eps=1e-5):
    wt, bt = params["tr_conv"]
    wx, bx = params["x_conv"]
    w1, b1 = params["conv1"]
    w2, b2 = params["conv2"]
    N, H, W, _ = up_p.shape
    hi = jax.lax.Precision.HIGHEST

    u = jnp.einsum("nhwc,cokl->nhkwlo", up_p, wt, precision=hi)
    u = u.reshape(N, 2 * H, 2 * W, -1) + bt
    xv = jnp.einsum("nhwc,oc->nhwo", x_p, wx[:, :, 0, 0], precision=hi) + bx
    cat = jnp.concatenate([u, xv], axis=-1)

    def bn(v, p):
        s = p["gamma"] / jnp.sqrt(p["var"] + eps)
        return (v - p["mean"]) * s + p["beta"]

    def conv3x3(v, w, b):
        vp = jnp.pad(v, ((0, 0), (1, 1), (1, 1), (0, 0)))
        Hh, Ww = v.shape[1], v.shape[2]
        acc = 0.0
        for kh in range(3):
            for kw in range(3):
                acc = acc + jnp.einsum(
                    "nhwc,oc->nhwo", vp[:, kh:kh + Hh, kw:kw + Ww, :],
                    w[:, :, kh, kw], precision=hi)
        return acc + b

    a = jax.nn.relu(bn(cat, params["norm"]))
    a = jax.nn.relu(bn(conv3x3(a, w1, b1), params["bn1"]))
    a = jax.nn.relu(bn(conv3x3(a, w2, b2), params["bn2"]))
    return a


# --------------------------------------------------------------------------- #
# Deterministic parameter init (PyTorch-native weight layouts)
# --------------------------------------------------------------------------- #
def init_params(key, up_in, x_in, n_out):
    c2 = n_out // 2
    ks = jax.random.split(key, 11)

    def conv_w(k, shape, fan_in):
        return jax.random.normal(k, shape, jnp.float32) / jnp.sqrt(float(fan_in))

    def bn_params(k):
        k1, k2, k3, k4 = jax.random.split(k, 4)
        return {"gamma": 1.0 + 0.05 * jax.random.normal(k1, (n_out,), jnp.float32),
                "beta": 0.05 * jax.random.normal(k2, (n_out,), jnp.float32),
                "mean": 0.1 * jax.random.normal(k3, (n_out,), jnp.float32),
                "var": 1.0 + 0.1 * jax.random.uniform(k4, (n_out,), jnp.float32)}

    return {
        "tr_conv": (conv_w(ks[0], (up_in, c2, 2, 2), up_in * 4),
                    0.05 * jax.random.normal(ks[1], (c2,), jnp.float32)),
        "x_conv": (conv_w(ks[2], (c2, x_in, 1, 1), x_in),
                   0.05 * jax.random.normal(ks[3], (c2,), jnp.float32)),
        "norm": bn_params(ks[4]),
        "conv1": (conv_w(ks[5], (n_out, n_out, 3, 3), n_out * 9),
                  0.05 * jax.random.normal(ks[6], (n_out,), jnp.float32)),
        "bn1": bn_params(ks[7]),
        "conv2": (conv_w(ks[8], (n_out, n_out, 3, 3), n_out * 9),
                  0.05 * jax.random.normal(ks[9], (n_out,), jnp.float32)),
        "bn2": bn_params(ks[10]),
    }


if __name__ == "__main__":
    key = jax.random.PRNGKey(0)
    kp, ku, kx = jax.random.split(key, 3)

    N, H, W = 2, 8, 8
    up_in, x_in, n_out = 64, 32, 64
    params = init_params(kp, up_in, x_in, n_out)

    # NHWC inputs (PyTorch NCHW equivalents: up_p (2,64,8,8), x_p (2,32,16,16))
    up_p = jax.random.normal(ku, (N, H, W, up_in), jnp.float32)
    x_p = jax.random.normal(kx, (N, 2 * H, 2 * W, x_in), jnp.float32)

    out = jax.jit(unet_block_forward)(up_p, x_p, params)
    out = jax.block_until_ready(out)
    assert out.shape == (N, 2 * H, 2 * W, n_out)
    assert bool(jnp.all(jnp.isfinite(out)))

    ref = unet_block_reference(up_p, x_p, params)
    err = float(jnp.max(jnp.abs(out - ref)))
    # Tolerance accounts for the two chained 3x3 convs running on bf16 MXU
    # inputs (activations + weights) with f32 accumulation.
    assert err < 5e-2, f"max |kernel - reference| = {err}"

    print("KERNEL_OK")
</pallas_src>

<mosaic_0001>
module attributes {stable_mosaic.version = 11 : i64} {
  func.func @_unet_block_kernel(%arg0: i32, %arg1: memref<1x64x64xf32, #tpu.memory_space<vmem>>, %arg2: memref<1x384x32xf32, #tpu.memory_space<vmem>>, %arg3: memref<48x32xbf16, #tpu.memory_space<vmem>>, %arg4: memref<64x128xf32, #tpu.memory_space<vmem>>, %arg5: memref<32x32xf32, #tpu.memory_space<vmem>>, %arg6: memref<3x192x64xbf16, #tpu.memory_space<vmem>>, %arg7: memref<3x192x64xbf16, #tpu.memory_space<vmem>>, %arg8: memref<3x64xf32, #tpu.memory_space<vmem>>, %arg9: memref<384x1xf32, #tpu.memory_space<vmem>>, %arg10: memref<1x384x64xf32, #tpu.memory_space<vmem>>, %arg11: memref<448x64xbf16, #tpu.memory_space<vmem>>, %arg12: memref<448x64xbf16, #tpu.memory_space<vmem>>) attributes {dimension_semantics = [#tpu.dimension_semantics<parallel>], iteration_bounds = array<i64: 2>, scalar_prefetch = 0 : i64, scratch_operands = 2 : i64, tpu.core_type = #tpu.core_type<tc>, window_params = [{transform_indices = @transform_0, window_bounds = array<i64: 1, 64, 64>}, {transform_indices = @transform_1, window_bounds = array<i64: 1, 384, 32>}, {pipeline_mode = #tpu.pipeline_mode<synchronous>, transform_indices = @transform_2, window_bounds = array<i64: 48, 32>}, {pipeline_mode = #tpu.pipeline_mode<synchronous>, transform_indices = @transform_3, window_bounds = array<i64: 64, 128>}, {pipeline_mode = #tpu.pipeline_mode<synchronous>, transform_indices = @transform_4, window_bounds = array<i64: 32, 32>}, {pipeline_mode = #tpu.pipeline_mode<synchronous>, transform_indices = @transform_5, window_bounds = array<i64: 3, 192, 64>}, {pipeline_mode = #tpu.pipeline_mode<synchronous>, transform_indices = @transform_6, window_bounds = array<i64: 3, 192, 64>}, {pipeline_mode = #tpu.pipeline_mode<synchronous>, transform_indices = @transform_7, window_bounds = array<i64: 3, 64>}, {pipeline_mode = #tpu.pipeline_mode<synchronous>, transform_indices = @transform_8, window_bounds = array<i64: 384, 1>}, {transform_indices = @transform_9, window_bounds = array<i64: 1, 384, 64>}]} {
    %cst = arith.constant 0.000000e+00 : bf16
    %0 = vector.broadcast %cst : bf16 to vector<32x64xbf16>
    %c0 = arith.constant 0 : index
    %c0_0 = arith.constant 0 : index
    %1 = vector.load %arg11[%c0, %c0_0] : memref<448x64xbf16, #tpu.memory_space<vmem>>, vector<32x64xbf16>
    tpu.vector_store %arg11[%c0, %c0_0], %0 {strides = array<i32>} : memref<448x64xbf16, #tpu.memory_space<vmem>>, vector<32x64xbf16>,
    %cst_1 = arith.constant 0.000000e+00 : bf16
    %2 = vector.broadcast %cst_1 : bf16 to vector<32x64xbf16>
    %c0_2 = arith.constant 0 : index
    %c0_3 = arith.constant 0 : index
    %3 = vector.load %arg12[%c0_2, %c0_3] : memref<448x64xbf16, #tpu.memory_space<vmem>>, vector<32x64xbf16>
    tpu.vector_store %arg12[%c0_2, %c0_3], %2 {strides = array<i32>} : memref<448x64xbf16, #tpu.memory_space<vmem>>, vector<32x64xbf16>,
    %cst_4 = arith.constant 0.000000e+00 : bf16
    %4 = vector.broadcast %cst_4 : bf16 to vector<32x64xbf16>
    %c416 = arith.constant 416 : index
    %c0_5 = arith.constant 0 : index
    %5 = vector.load %arg11[%c416, %c0_5] : memref<448x64xbf16, #tpu.memory_space<vmem>>, vector<32x64xbf16>
    tpu.vector_store %arg11[%c416, %c0_5], %4 {strides = array<i32>} : memref<448x64xbf16, #tpu.memory_space<vmem>>, vector<32x64xbf16>,
    %cst_6 = arith.constant 0.000000e+00 : bf16
    %6 = vector.broadcast %cst_6 : bf16 to vector<32x64xbf16>
    %c416_7 = arith.constant 416 : index
    %c0_8 = arith.constant 0 : index
    %7 = vector.load %arg12[%c416_7, %c0_8] : memref<448x64xbf16, #tpu.memory_space<vmem>>, vector<32x64xbf16>
    tpu.vector_store %arg12[%c416_7, %c0_8], %6 {strides = array<i32>} : memref<448x64xbf16, #tpu.memory_space<vmem>>, vector<32x64xbf16>,
    %c0_9 = arith.constant 0 : index
    %c0_10 = arith.constant 0 : index
    %8 = vector.load %arg9[%c0_9, %c0_10] : memref<384x1xf32, #tpu.memory_space<vmem>>, vector<384x1xf32>
    %c0_11 = arith.constant 0 : index
    %c0_12 = arith.constant 0 : index
    %c0_13 = arith.constant 0 : index
    %9 = vector.load %arg1[%c0_11, %c0_12, %c0_13] : memref<1x64x64xf32, #tpu.memory_space<vmem>>, vector<1x64x64xf32>
    %10 = vector.shape_cast %9 : vector<1x64x64xf32> to vector<64x64xf32>
    %c0_14 = arith.constant 0 : index
    %c0_15 = arith.constant 0 : index
    %11 = vector.load %arg4[%c0_14, %c0_15] : memref<64x128xf32, #tpu.memory_space<vmem>>, vector<64x128xf32>
    %cst_16 = arith.constant dense<0.000000e+00> : vector<64x128xf32>
    %12 = tpu.matmul %10, %11, %cst_16 {dimension_numbers = #tpu.dot_dimension_numbers<[1], [0], [0], [1], [0, 0, 1, 1], [], []>} : vector<64x64xf32>, vector<64x128xf32>, vector<64x128xf32> -> vector<64x128xf32>
    %c0_17 = arith.constant 0 : index
    %c0_18 = arith.constant 0 : index
    %13 = vector.load %arg8[%c0_17, %c0_18] : memref<3x64xf32, #tpu.memory_space<vmem>>, vector<1x32xf32>
    %14 = vector.extract_strided_slice %12 {offsets = [0, 0], sizes = [64, 32], strides = [1, 1]} : vector<64x128xf32> to vector<64x32xf32>
    %15 = vector.broadcast %13 : vector<1x32xf32> to vector<64x32xf32>
    %16 = arith.addf %14, %15 : vector<64x32xf32>
    %cst_19 = arith.constant 0.000000e+00 : f32
    %17 = vector.broadcast %cst_19 : f32 to vector<64x32xf32>
    %18 = arith.maximumf %16, %17 : vector<64x32xf32>
    %19 = arith.truncf %18 : vector<64x32xf32> to vector<64x32xbf16>
    %20 = vector.extract_strided_slice %12 {offsets = [0, 32], sizes = [64, 32], strides = [1, 1]} : vector<64x128xf32> to vector<64x32xf32>
    %21 = vector.broadcast %13 : vector<1x32xf32> to vector<64x32xf32>
    %22 = arith.addf %20, %21 : vector<64x32xf32>
    %cst_20 = arith.constant 0.000000e+00 : f32
    %23 = vector.broadcast %cst_20 : f32 to vector<64x32xf32>
    %24 = arith.maximumf %22, %23 : vector<64x32xf32>
    %25 = arith.truncf %24 : vector<64x32xf32> to vector<64x32xbf16>
    %26 = vector.extract_strided_slice %12 {offsets = [0, 64], sizes = [64, 32], strides = [1, 1]} : vector<64x128xf32> to vector<64x32xf32>
    %27 = vector.broadcast %13 : vector<1x32xf32> to vector<64x32xf32>
    %28 = arith.addf %26, %27 : vector<64x32xf32>
    %cst_21 = arith.constant 0.000000e+00 : f32
    %29 = vector.broadcast %cst_21 : f32 to vector<64x32xf32>
    %30 = arith.maximumf %28, %29 : vector<64x32xf32>
    %31 = arith.truncf %30 : vector<64x32xf32> to vector<64x32xbf16>
    %32 = vector.extract_strided_slice %12 {offsets = [0, 96], sizes = [64, 32], strides = [1, 1]} : vector<64x128xf32> to vector<64x32xf32>
    %33 = vector.broadcast %13 : vector<1x32xf32> to vector<64x32xf32>
    %34 = arith.addf %32, %33 : vector<64x32xf32>
    %cst_22 = arith.constant 0.000000e+00 : f32
    %35 = vector.broadcast %cst_22 : f32 to vector<64x32xf32>
    %36 = arith.maximumf %34, %35 : vector<64x32xf32>
    %37 = arith.truncf %36 : vector<64x32xf32> to vector<64x32xbf16>
    %c0_23 = arith.constant 0 : index
    %c0_24 = arith.constant 0 : index
    %c0_25 = arith.constant 0 : index
    %38 = vector.load %arg2[%c0_23, %c0_24, %c0_25] : memref<1x384x32xf32, #tpu.memory_space<vmem>>, vector<1x384x32xf32>
    %39 = vector.shape_cast %38 : vector<1x384x32xf32> to vector<384x32xf32>
    %c0_26 = arith.constant 0 : index
    %c0_27 = arith.constant 0 : index
    %40 = vector.load %arg5[%c0_26, %c0_27] : memref<32x32xf32, #tpu.memory_space<vmem>>, vector<32x32xf32>
    %cst_28 = arith.constant dense<0.000000e+00> : vector<384x32xf32>
    %41 = tpu.matmul %39, %40, %cst_28 {dimension_numbers = #tpu.dot_dimension_numbers<[1], [0], [0], [1], [0, 0, 1, 1], [], []>} : vector<384x32xf32>, vector<32x32xf32>, vector<384x32xf32> -> vector<384x32xf32>
    %c0_29 = arith.constant 0 : index
    %c32 = arith.constant 32 : index
    %42 = vector.load %arg8[%c0_29, %c32] : memref<3x64xf32, #tpu.memory_space<vmem>>, vector<1x32xf32>
    %43 = vector.broadcast %42 : vector<1x32xf32> to vector<384x32xf32>
    %44 = arith.addf %41, %43 : vector<384x32xf32>
    %cst_30 = arith.constant 0.000000e+00 : f32
    %45 = vector.broadcast %cst_30 : f32 to vector<384x32xf32>
    %46 = arith.maximumf %44, %45 : vector<384x32xf32>
    %47 = vector.broadcast %8 : vector<384x1xf32> to vector<384x32xf32>
    %48 = arith.mulf %46, %47 : vector<384x32xf32>
    %49 = arith.truncf %48 : vector<384x32xf32> to vector<384x32xbf16>
    %c32_31 = arith.constant 32 : index
    %c32_32 = arith.constant 32 : index
    %50 = vector.load %arg11[%c32_31, %c32_32] : memref<448x64xbf16, #tpu.memory_space<vmem>>, vector<384x32xbf16>
    tpu.vector_store %arg11[%c32_31, %c32_32], %49 {strides = array<i32>} : memref<448x64xbf16, #tpu.memory_space<vmem>>, vector<384x32xbf16>,
    %c0_33 = arith.constant 0 : index
    %c0_34 = arith.constant 0 : index
    %51 = vector.load %arg3[%c0_33, %c0_34] : memref<48x32xbf16, #tpu.memory_space<vmem>>, vector<48x32xbf16>
    %52 = vector.extract_strided_slice %19 {offsets = [0, 0], sizes = [8, 32], strides = [1, 1]} : vector<64x32xbf16> to vector<8x32xbf16>
    %53 = vector.extract_strided_slice %25 {offsets = [0, 0], sizes = [8, 32], strides = [1, 1]} : vector<64x32xbf16> to vector<8x32xbf16>
    %54 = vector.extract_strided_slice %31 {offsets = [0, 0], sizes = [8, 32], strides = [1, 1]} : vector<64x32xbf16> to vector<8x32xbf16>
    %55 = vector.extract_strided_slice %37 {offsets = [0, 0], sizes = [8, 32], strides = [1, 1]} : vector<64x32xbf16> to vector<8x32xbf16>
    %56 = tpu.concatenate %52, %53, %54, %55 in 0 : vector<8x32xbf16>, vector<8x32xbf16>, vector<8x32xbf16>, vector<8x32xbf16> -> vector<32x32xbf16>
    %cst_35 = arith.constant dense<0.000000e+00> : vector<48x32xf32>
    %57 = tpu.matmul %51, %56, %cst_35 {dimension_numbers = #tpu.dot_dimension_numbers<[1], [0], [0], [1], [0, 0, 1, 1], [], []>} : vector<48x32xbf16>, vector<32x32xbf16>, vector<48x32xf32> -> vector<48x32xf32>
    %58 = arith.truncf %57 : vector<48x32xf32> to vector<48x32xbf16>
    %c32_36 = arith.constant 32 : index
    %c0_37 = arith.constant 0 : index
    %59 = vector.load %arg11[%c32_36, %c0_37] : memref<448x64xbf16, #tpu.memory_space<vmem>>, vector<48x32xbf16>
    tpu.vector_store %arg11[%c32_36, %c0_37], %58 {strides = array<i32>} : memref<448x64xbf16, #tpu.memory_space<vmem>>, vector<48x32xbf16>,
    %60 = vector.extract_strided_slice %19 {offsets = [8, 0], sizes = [8, 32], strides = [1, 1]} : vector<64x32xbf16> to vector<8x32xbf16>
    %61 = vector.extract_strided_slice %25 {offsets = [8, 0], sizes = [8, 32], strides = [1, 1]} : vector<64x32xbf16> to vector<8x32xbf16>
    %62 = vector.extract_strided_slice %31 {offsets = [8, 0], sizes = [8, 32], strides = [1, 1]} : vector<64x32xbf16> to vector<8x32xbf16>
    %63 = vector.extract_strided_slice %37 {offsets = [8, 0], sizes = [8, 32], strides = [1, 1]} : vector<64x32xbf16> to vector<8x32xbf16>
    %64 = tpu.concatenate %60, %61, %62, %63 in 0 : vector<8x32xbf16>, vector<8x32xbf16>, vector<8x32xbf16>, vector<8x32xbf16> -> vector<32x32xbf16>
    %cst_38 = arith.constant dense<0.000000e+00> : vector<48x32xf32>
    %65 = tpu.matmul %51, %64, %cst_38 {dimension_numbers = #tpu.dot_dimension_numbers<[1], [0], [0], [1], [0, 0, 1, 1], [], []>} : vector<48x32xbf16>, vector<32x32xbf16>, vector<48x32xf32> -> vector<48x32xf32>
    %66 = arith.truncf %65 : vector<48x32xf32> to vector<48x32xbf16>
    %c80 = arith.constant 80 : index
    %c0_39 = arith.constant 0 : index
    %67 = vector.load %arg11[%c80, %c0_39] : memref<448x64xbf16, #tpu.memory_space<vmem>>, vector<48x32xbf16>
    tpu.vector_store %arg11[%c80, %c0_39], %66 {strides = array<i32>} : memref<448x64xbf16, #tpu.memory_space<vmem>>, vector<48x32xbf16>,
    %68 = vector.extract_strided_slice %19 {offsets = [16, 0], sizes = [8, 32], strides = [1, 1]} : vector<64x32xbf16> to vector<8x32xbf16>
    %69 = vector.extract_strided_slice %25 {offsets = [16, 0], sizes = [8, 32], strides = [1, 1]} : vector<64x32xbf16> to vector<8x32xbf16>
    %70 = vector.extract_strided_slice %31 {offsets = [16, 0], sizes = [8, 32], strides = [1, 1]} : vector<64x32xbf16> to vector<8x32xbf16>
    %71 = vector.extract_strided_slice %37 {offsets = [16, 0], sizes = [8, 32], strides = [1, 1]} : vector<64x32xbf16> to vector<8x32xbf16>
    %72 = tpu.concatenate %68, %69, %70, %71 in 0 : vector<8x32xbf16>, vector<8x32xbf16>, vector<8x32xbf16>, vector<8x32xbf16> -> vector<32x32xbf16>
    %cst_40 = arith.constant dense<0.000000e+00> : vector<48x32xf32>
    %73 = tpu.matmul %51, %72, %cst_40 {dimension_numbers = #tpu.dot_dimension_numbers<[1], [0], [0], [1], [0, 0, 1, 1], [], []>} : vector<48x32xbf16>, vector<32x32xbf16>, vector<48x32xf32> -> vector<48x32xf32>
    %74 = arith.truncf %73 : vector<48x32xf32> to vector<48x32xbf16>
    %c128 = arith.constant 128 : index
    %c0_41 = arith.constant 0 : index
    %75 = vector.load %arg11[%c128, %c0_41] : memref<448x64xbf16, #tpu.memory_space<vmem>>, vector<48x32xbf16>
    tpu.vector_store %arg11[%c128, %c0_41], %74 {strides = array<i32>} : memref<448x64xbf16, #tpu.memory_space<vmem>>, vector<48x32xbf16>,
    %76 = vector.extract_strided_slice %19 {offsets = [24, 0], sizes = [8, 32], strides = [1, 1]} : vector<64x32xbf16> to vector<8x32xbf16>
    %77 = vector.extract_strided_slice %25 {offsets = [24, 0], sizes = [8, 32], strides = [1, 1]} : vector<64x32xbf16> to vector<8x32xbf16>
    %78 = vector.extract_strided_slice %31 {offsets = [24, 0], sizes = [8, 32], strides = [1, 1]} : vector<64x32xbf16> to vector<8x32xbf16>
    %79 = vector.extract_strided_slice %37 {offsets = [24, 0], sizes = [8, 32], strides = [1, 1]} : vector<64x32xbf16> to vector<8x32xbf16>
    %80 = tpu.concatenate %76, %77, %78, %79 in 0 : vector<8x32xbf16>, vector<8x32xbf16>, vector<8x32xbf16>, vector<8x32xbf16> -> vector<32x32xbf16>
    %cst_42 = arith.constant dense<0.000000e+00> : vector<48x32xf32>
    %81 = tpu.matmul %51, %80, %cst_42 {dimension_numbers = #tpu.dot_dimension_numbers<[1], [0], [0], [1], [0, 0, 1, 1], [], []>} : vector<48x32xbf16>, vector<32x32xbf16>, vector<48x32xf32> -> vector<48x32xf32>
    %82 = arith.truncf %81 : vector<48x32xf32> to vector<48x32xbf16>
    %c176 = arith.constant 176 : index
    %c0_43 = arith.constant 0 : index
    %83 = vector.load %arg11[%c176, %c0_43] : memref<448x64xbf16, #tpu.memory_space<vmem>>, vector<48x32xbf16>
    tpu.vector_store %arg11[%c176, %c0_43], %82 {strides = array<i32>} : memref<448x64xbf16, #tpu.memory_space<vmem>>, vector<48x32xbf16>,
    %84 = vector.extract_strided_slice %19 {offsets = [32, 0], sizes = [8, 32], strides = [1, 1]} : vector<64x32xbf16> to vector<8x32xbf16>
    %85 = vector.extract_strided_slice %25 {offsets = [32, 0], sizes = [8, 32], strides = [1, 1]} : vector<64x32xbf16> to vector<8x32xbf16>
    %86 = vector.extract_strided_slice %31 {offsets = [32, 0], sizes = [8, 32], strides = [1, 1]} : vector<64x32xbf16> to vector<8x32xbf16>
    %87 = vector.extract_strided_slice %37 {offsets = [32, 0], sizes = [8, 32], strides = [1, 1]} : vector<64x32xbf16> to vector<8x32xbf16>
    %88 = tpu.concatenate %84, %85, %86, %87 in 0 : vector<8x32xbf16>, vector<8x32xbf16>, vector<8x32xbf16>, vector<8x32xbf16> -> vector<32x32xbf16>
    %cst_44 = arith.constant dense<0.000000e+00> : vector<48x32xf32>
    %89 = tpu.matmul %51, %88, %cst_44 {dimension_numbers = #tpu.dot_dimension_numbers<[1], [0], [0], [1], [0, 0, 1, 1], [], []>} : vector<48x32xbf16>, vector<32x32xbf16>, vector<48x32xf32> -> vector<48x32xf32>
    %90 = arith.truncf %89 : vector<48x32xf32> to vector<48x32xbf16>
    %c224 = arith.constant 224 : index
    %c0_45 = arith.constant 0 : index
    %91 = vector.load %arg11[%c224, %c0_45] : memref<448x64xbf16, #tpu.memory_space<vmem>>, vector<48x32xbf16>
    tpu.vector_store %arg11[%c224, %c0_45], %90 {strides = array<i32>} : memref<448x64xbf16, #tpu.memory_space<vmem>>, vector<48x32xbf16>,
    %92 = vector.extract_strided_slice %19 {offsets = [40, 0], sizes = [8, 32], strides = [1, 1]} : vector<64x32xbf16> to vector<8x32xbf16>
    %93 = vector.extract_strided_slice %25 {offsets = [40, 0], sizes = [8, 32], strides = [1, 1]} : vector<64x32xbf16> to vector<8x32xbf16>
    %94 = vector.extract_strided_slice %31 {offsets = [40, 0], sizes = [8, 32], strides = [1, 1]} : vector<64x32xbf16> to vector<8x32xbf16>
    %95 = vector.extract_strided_slice %37 {offsets = [40, 0], sizes = [8, 32], strides = [1, 1]} : vector<64x32xbf16> to vector<8x32xbf16>
    %96 = tpu.concatenate %92, %93, %94, %95 in 0 : vector<8x32xbf16>, vector<8x32xbf16>, vector<8x32xbf16>, vector<8x32xbf16> -> vector<32x32xbf16>
    %cst_46 = arith.constant dense<0.000000e+00> : vector<48x32xf32>
    %97 = tpu.matmul %51, %96, %cst_46 {dimension_numbers = #tpu.dot_dimension_numbers<[1], [0], [0], [1], [0, 0, 1, 1], [], []>} : vector<48x32xbf16>, vector<32x32xbf16>, vector<48x32xf32> -> vector<48x32xf32>
    %98 = arith.truncf %97 : vector<48x32xf32> to vector<48x32xbf16>
    %c272 = arith.constant 272 : index
    %c0_47 = arith.constant 0 : index
    %99 = vector.load %arg11[%c272, %c0_47] : memref<448x64xbf16, #tpu.memory_space<vmem>>, vector<48x32xbf16>
    tpu.vector_store %arg11[%c272, %c0_47], %98 {strides = array<i32>} : memref<448x64xbf16, #tpu.memory_space<vmem>>, vector<48x32xbf16>,
    %100 = vector.extract_strided_slice %19 {offsets = [48, 0], sizes = [8, 32], strides = [1, 1]} : vector<64x32xbf16> to vector<8x32xbf16>
    %101 = vector.extract_strided_slice %25 {offsets = [48, 0], sizes = [8, 32], strides = [1, 1]} : vector<64x32xbf16> to vector<8x32xbf16>
    %102 = vector.extract_strided_slice %31 {offsets = [48, 0], sizes = [8, 32], strides = [1, 1]} : vector<64x32xbf16> to vector<8x32xbf16>
    %103 = vector.extract_strided_slice %37 {offsets = [48, 0], sizes = [8, 32], strides = [1, 1]} : vector<64x32xbf16> to vector<8x32xbf16>
    %104 = tpu.concatenate %100, %101, %102, %103 in 0 : vector<8x32xbf16>, vector<8x32xbf16>, vector<8x32xbf16>, vector<8x32xbf16> -> vector<32x32xbf16>
    %cst_48 = arith.constant dense<0.000000e+00> : vector<48x32xf32>
    %105 = tpu.matmul %51, %104, %cst_48 {dimension_numbers = #tpu.dot_dimension_numbers<[1], [0], [0], [1], [0, 0, 1, 1], [], []>} : vector<48x32xbf16>, vector<32x32xbf16>, vector<48x32xf32> -> vector<48x32xf32>
    %106 = arith.truncf %105 : vector<48x32xf32> to vector<48x32xbf16>
    %c320 = arith.constant 320 : index
    %c0_49 = arith.constant 0 : index
    %107 = vector.load %arg11[%c320, %c0_49] : memref<448x64xbf16, #tpu.memory_space<vmem>>, vector<48x32xbf16>
    tpu.vector_store %arg11[%c320, %c0_49], %106 {strides = array<i32>} : memref<448x64xbf16, #tpu.memory_space<vmem>>, vector<48x32xbf16>,
    %108 = vector.extract_strided_slice %19 {offsets = [56, 0], sizes = [8, 32], strides = [1, 1]} : vector<64x32xbf16> to vector<8x32xbf16>
    %109 = vector.extract_strided_slice %25 {offsets = [56, 0], sizes = [8, 32], strides = [1, 1]} : vector<64x32xbf16> to vector<8x32xbf16>
    %110 = vector.extract_strided_slice %31 {offsets = [56, 0], sizes = [8, 32], strides = [1, 1]} : vector<64x32xbf16> to vector<8x32xbf16>
    %111 = vector.extract_strided_slice %37 {offsets = [56, 0], sizes = [8, 32], strides = [1, 1]} : vector<64x32xbf16> to vector<8x32xbf16>
    %112 = tpu.concatenate %108, %109, %110, %111 in 0 : vector<8x32xbf16>, vector<8x32xbf16>, vector<8x32xbf16>, vector<8x32xbf16> -> vector<32x32xbf16>
    %cst_50 = arith.constant dense<0.000000e+00> : vector<48x32xf32>
    %113 = tpu.matmul %51, %112, %cst_50 {dimension_numbers = #tpu.dot_dimension_numbers<[1], [0], [0], [1], [0, 0, 1, 1], [], []>} : vector<48x32xbf16>, vector<32x32xbf16>, vector<48x32xf32> -> vector<48x32xf32>
    %114 = arith.truncf %113 : vector<48x32xf32> to vector<48x32xbf16>
    %c368 = arith.constant 368 : index
    %c0_51 = arith.constant 0 : index
    %115 = vector.load %arg11[%c368, %c0_51] : memref<448x64xbf16, #tpu.memory_space<vmem>>, vector<48x32xbf16>
    tpu.vector_store %arg11[%c368, %c0_51], %114 {strides = array<i32>} : memref<448x64xbf16, #tpu.memory_space<vmem>>, vector<48x32xbf16>,
    %c7 = arith.constant 7 : index
    %c0_52 = arith.constant 0 : index
    %116 = vector.load %arg11[%c7, %c0_52] : memref<448x64xbf16, #tpu.memory_space<vmem>>, vector<384x64xbf16>
    %c8 = arith.constant 8 : index
    %c0_53 = arith.constant 0 : index
    %117 = vector.load %arg11[%c8, %c0_53] : memref<448x64xbf16, #tpu.memory_space<vmem>>, vector<384x64xbf16>
    %c9 = arith.constant 9 : index
    %c0_54 = arith.constant 0 : index
    %118 = vector.load %arg11[%c9, %c0_54] : memref<448x64xbf16, #tpu.memory_space<vmem>>, vector<384x64xbf16>
    %119 = tpu.concatenate %116, %117, %118 in 1 : vector<384x64xbf16>, vector<384x64xbf16>, vector<384x64xbf16> -> vector<384x192xbf16>
    %c0_55 = arith.constant 0 : index
    %c0_56 = arith.constant 0 : index
    %c0_57 = arith.constant 0 : index
    %120 = vector.load %arg6[%c0_55, %c0_56, %c0_57] : memref<3x192x64xbf16, #tpu.memory_space<vmem>>, vector<1x192x64xbf16>
    %121 = vector.shape_cast %120 : vector<1x192x64xbf16> to vector<192x64xbf16>
    %cst_58 = arith.constant dense<0.000000e+00> : vector<384x64xf32>
    %122 = tpu.matmul %119, %121, %cst_58 {dimension_numbers = #tpu.dot_dimension_numbers<[1], [0], [0], [1], [0, 0, 1, 1], [], []>} : vector<384x192xbf16>, vector<192x64xbf16>, vector<384x64xf32> -> vector<384x64xf32>
    %c31 = arith.constant 31 : index
    %c0_59 = arith.constant 0 : index
    %123 = vector.load %arg11[%c31, %c0_59] : memref<448x64xbf16, #tpu.memory_space<vmem>>, vector<384x64xbf16>
    %c32_60 = arith.constant 32 : index
    %c0_61 = arith.constant 0 : index
    %124 = vector.load %arg11[%c32_60, %c0_61] : memref<448x64xbf16, #tpu.memory_space<vmem>>, vector<384x64xbf16>
    %c33 = arith.constant 33 : index
    %c0_62 = arith.constant 0 : index
    %125 = vector.load %arg11[%c33, %c0_62] : memref<448x64xbf16, #tpu.memory_space<vmem>>, vector<384x64xbf16>
    %126 = tpu.concatenate %123, %124, %125 in 1 : vector<384x64xbf16>, vector<384x64xbf16>, vector<384x64xbf16> -> vector<384x192xbf16>
    %c1 = arith.constant 1 : index
    %c0_63 = arith.constant 0 : index
    %c0_64 = arith.constant 0 : index
    %127 = vector.load %arg6[%c1, %c0_63, %c0_64] : memref<3x192x64xbf16, #tpu.memory_space<vmem>>, vector<1x192x64xbf16>
    %128 = vector.shape_cast %127 : vector<1x192x64xbf16> to vector<192x64xbf16>
    %cst_65 = arith.constant dense<0.000000e+00> : vector<384x64xf32>
    %129 = tpu.matmul %126, %128, %cst_65 {dimension_numbers = #tpu.dot_dimension_numbers<[1], [0], [0], [1], [0, 0, 1, 1], [], []>} : vector<384x192xbf16>, vector<192x64xbf16>, vector<384x64xf32> -> vector<384x64xf32>
    %130 = arith.addf %122, %129 : vector<384x64xf32>
    %c55 = arith.constant 55 : index
    %c0_66 = arith.constant 0 : index
    %131 = vector.load %arg11[%c55, %c0_66] : memref<448x64xbf16, #tpu.memory_space<vmem>>, vector<384x64xbf16>
    %c56 = arith.constant 56 : index
    %c0_67 = arith.constant 0 : index
    %132 = vector.load %arg11[%c56, %c0_67] : memref<448x64xbf16, #tpu.memory_space<vmem>>, vector<384x64xbf16>
    %c57 = arith.constant 57 : index
    %c0_68 = arith.constant 0 : index
    %133 = vector.load %arg11[%c57, %c0_68] : memref<448x64xbf16, #tpu.memory_space<vmem>>, vector<384x64xbf16>
    %134 = tpu.concatenate %131, %132, %133 in 1 : vector<384x64xbf16>, vector<384x64xbf16>, vector<384x64xbf16> -> vector<384x192xbf16>
    %c2 = arith.constant 2 : index
    %c0_69 = arith.constant 0 : index
    %c0_70 = arith.constant 0 : index
    %135 = vector.load %arg6[%c2, %c0_69, %c0_70] : memref<3x192x64xbf16, #tpu.memory_space<vmem>>, vector<1x192x64xbf16>
    %136 = vector.shape_cast %135 : vector<1x192x64xbf16> to vector<192x64xbf16>
    %cst_71 = arith.constant dense<0.000000e+00> : vector<384x64xf32>
    %137 = tpu.matmul %134, %136, %cst_71 {dimension_numbers = #tpu.dot_dimension_numbers<[1], [0], [0], [1], [0, 0, 1, 1], [], []>} : vector<384x192xbf16>, vector<192x64xbf16>, vector<384x64xf32> -> vector<384x64xf32>
    %138 = arith.addf %130, %137 : vector<384x64xf32>
    %c1_72 = arith.constant 1 : index
    %c0_73 = arith.constant 0 : index
    %139 = vector.load %arg8[%c1_72, %c0_73] : memref<3x64xf32, #tpu.memory_space<vmem>>, vector<1x64xf32>
    %140 = vector.broadcast %139 : vector<1x64xf32> to vector<384x64xf32>
    %141 = arith.addf %138, %140 : vector<384x64xf32>
    %cst_74 = arith.constant 0.000000e+00 : f32
    %142 = vector.broadcast %cst_74 : f32 to vector<384x64xf32>
    %143 = arith.maximumf %141, %142 : vector<384x64xf32>
    %144 = vector.broadcast %8 : vector<384x1xf32> to vector<384x64xf32>
    %145 = arith.mulf %143, %144 : vector<384x64xf32>
    %146 = arith.truncf %145 : vector<384x64xf32> to vector<384x64xbf16>
    %c32_75 = arith.constant 32 : index
    %c0_76 = arith.constant 0 : index
    %147 = vector.load %arg12[%c32_75, %c0_76] : memref<448x64xbf16, #tpu.memory_space<vmem>>, vector<384x64xbf16>
    tpu.vector_store %arg12[%c32_75, %c0_76], %146 {strides = array<i32>} : memref<448x64xbf16, #tpu.memory_space<vmem>>, vector<384x64xbf16>,
    %c7_77 = arith.constant 7 : index
    %c0_78 = arith.constant 0 : index
    %148 = vector.load %arg12[%c7_77, %c0_78] : memref<448x64xbf16, #tpu.memory_space<vmem>>, vector<384x64xbf16>
    %c8_79 = arith.constant 8 : index
    %c0_80 = arith.constant 0 : index
    %149 = vector.load %arg12[%c8_79, %c0_80] : memref<448x64xbf16, #tpu.memory_space<vmem>>, vector<384x64xbf16>
    %c9_81 = arith.constant 9 : index
    %c0_82 = arith.constant 0 : index
    %150 = vector.load %arg12[%c9_81, %c0_82] : memref<448x64xbf16, #tpu.memory_space<vmem>>, vector<384x64xbf16>
    %151 = tpu.concatenate %148, %149, %150 in 1 : vector<384x64xbf16>, vector<384x64xbf16>, vector<384x64xbf16> -> vector<384x192xbf16>
    %c0_83 = arith.constant 0 : index
    %c0_84 = arith.constant 0 : index
    %c0_85 = arith.constant 0 : index
    %152 = vector.load %arg7[%c0_83, %c0_84, %c0_85] : memref<3x192x64xbf16, #tpu.memory_space<vmem>>, vector<1x192x64xbf16>
    %153 = vector.shape_cast %152 : vector<1x192x64xbf16> to vector<192x64xbf16>
    %cst_86 = arith.constant dense<0.000000e+00> : vector<384x64xf32>
    %154 = tpu.matmul %151, %153, %cst_86 {dimension_numbers = #tpu.dot_dimension_numbers<[1], [0], [0], [1], [0, 0, 1, 1], [], []>} : vector<384x192xbf16>, vector<192x64xbf16>, vector<384x64xf32> -> vector<384x64xf32>
    %c31_87 = arith.constant 31 : index
    %c0_88 = arith.constant 0 : index
    %155 = vector.load %arg12[%c31_87, %c0_88] : memref<448x64xbf16, #tpu.memory_space<vmem>>, vector<384x64xbf16>
    %c32_89 = arith.constant 32 : index
    %c0_90 = arith.constant 0 : index
    %156 = vector.load %arg12[%c32_89, %c0_90] : memref<448x64xbf16, #tpu.memory_space<vmem>>, vector<384x64xbf16>
    %c33_91 = arith.constant 33 : index
    %c0_92 = arith.constant 0 : index
    %157 = vector.load %arg12[%c33_91, %c0_92] : memref<448x64xbf16, #tpu.memory_space<vmem>>, vector<384x64xbf16>
    %158 = tpu.concatenate %155, %156, %157 in 1 : vector<384x64xbf16>, vector<384x64xbf16>, vector<384x64xbf16> -> vector<384x192xbf16>
    %c1_93 = arith.constant 1 : index
    %c0_94 = arith.constant 0 : index
    %c0_95 = arith.constant 0 : index
    %159 = vector.load %arg7[%c1_93, %c0_94, %c0_95] : memref<3x192x64xbf16, #tpu.memory_space<vmem>>, vector<1x192x64xbf16>
    %160 = vector.shape_cast %159 : vector<1x192x64xbf16> to vector<192x64xbf16>
    %cst_96 = arith.constant dense<0.000000e+00> : vector<384x64xf32>
    %161 = tpu.matmul %158, %160, %cst_96 {dimension_numbers = #tpu.dot_dimension_numbers<[1], [0], [0], [1], [0, 0, 1, 1], [], []>} : vector<384x192xbf16>, vector<192x64xbf16>, vector<384x64xf32> -> vector<384x64xf32>
    %162 = arith.addf %154, %161 : vector<384x64xf32>
    %c55_97 = arith.constant 55 : index
    %c0_98 = arith.constant 0 : index
    %163 = vector.load %arg12[%c55_97, %c0_98] : memref<448x64xbf16, #tpu.memory_space<vmem>>, vector<384x64xbf16>
    %c56_99 = arith.constant 56 : index
    %c0_100 = arith.constant 0 : index
    %164 = vector.load %arg12[%c56_99, %c0_100] : memref<448x64xbf16, #tpu.memory_space<vmem>>, vector<384x64xbf16>
    %c57_101 = arith.constant 57 : index
    %c0_102 = arith.constant 0 : index
    %165 = vector.load %arg12[%c57_101, %c0_102] : memref<448x64xbf16, #tpu.memory_space<vmem>>, vector<384x64xbf16>
    %166 = tpu.concatenate %163, %164, %165 in 1 : vector<384x64xbf16>, vector<384x64xbf16>, vector<384x64xbf16> -> vector<384x192xbf16>
    %c2_103 = arith.constant 2 : index
    %c0_104 = arith.constant 0 : index
    %c0_105 = arith.constant 0 : index
    %167 = vector.load %arg7[%c2_103, %c0_104, %c0_105] : memref<3x192x64xbf16, #tpu.memory_space<vmem>>, vector<1x192x64xbf16>
    %168 = vector.shape_cast %167 : vector<1x192x64xbf16> to vector<192x64xbf16>
    %cst_106 = arith.constant dense<0.000000e+00> : vector<384x64xf32>
    %169 = tpu.matmul %166, %168, %cst_106 {dimension_numbers = #tpu.dot_dimension_numbers<[1], [0], [0], [1], [0, 0, 1, 1], [], []>} : vector<384x192xbf16>, vector<192x64xbf16>, vector<384x64xf32> -> vector<384x64xf32>
    %170 = arith.addf %162, %169 : vector<384x64xf32>
    %c2_107 = arith.constant 2 : index
    %c0_108 = arith.constant 0 : index
    %171 = vector.load %arg8[%c2_107, %c0_108] : memref<3x64xf32, #tpu.memory_space<vmem>>, vector<1x64xf32>
    %172 = vector.broadcast %171 : vector<1x64xf32> to vector<384x64xf32>
    %173 = arith.addf %170, %172 : vector<384x64xf32>
    %cst_109 = arith.constant 0.000000e+00 : f32
    %174 = vector.broadcast %cst_109 : f32 to vector<384x64xf32>
    %175 = arith.maximumf %173, %174 : vector<384x64xf32>
    %c0_110 = arith.constant 0 : index
    %c0_111 = arith.constant 0 : index
    %c0_112 = arith.constant 0 : index
    %176 = vector.load %arg10[%c0_110, %c0_111, %c0_112] : memref<1x384x64xf32, #tpu.memory_space<vmem>>, vector<1x384x64xf32>
    %177 = vector.shape_cast %176 : vector<1x384x64xf32> to vector<384x64xf32>
    %178 = vector.shape_cast %175 : vector<384x64xf32> to vector<1x384x64xf32>
    tpu.vector_store %arg10[%c0_110, %c0_111, %c0_112], %178 {strides = array<i32>} : memref<1x384x64xf32, #tpu.memory_space<vmem>>, vector<1x384x64xf32>,
    return
  }
  func.func @transform_0(%arg0: i32) -> (i32, i32, i32) {
    %c0_i32 = arith.constant 0 : i32
    %c0_i32_0 = arith.constant 0 : i32
    %c0_i32_1 = arith.constant 0 : i32
    return %arg0, %c0_i32, %c0_i32_0 : i32, i32, i32
  }
  func.func @transform_1(%arg0: i32) -> (i32, i32, i32) {
    %c0_i32 = arith.constant 0 : i32
    %c0_i32_0 = arith.constant 0 : i32
    %c0_i32_1 = arith.constant 0 : i32
    return %arg0, %c0_i32, %c0_i32_0 : i32, i32, i32
  }
  func.func @transform_2(%arg0: i32) -> (i32, i32) {
    %c0_i32 = arith.constant 0 : i32
    %c0_i32_0 = arith.constant 0 : i32
    %c0_i32_1 = arith.constant 0 : i32
    return %c0_i32, %c0_i32_0 : i32, i32
  }
  func.func @transform_3(%arg0: i32) -> (i32, i32) {
    %c0_i32 = arith.constant 0 : i32
    %c0_i32_0 = arith.constant 0 : i32
    %c0_i32_1 = arith.constant 0 : i32
    return %c0_i32, %c0_i32_0 : i32, i32
  }
  func.func @transform_4(%arg0: i32) -> (i32, i32) {
    %c0_i32 = arith.constant 0 : i32
    %c0_i32_0 = arith.constant 0 : i32
    %c0_i32_1 = arith.constant 0 : i32
    return %c0_i32, %c0_i32_0 : i32, i32
  }
  func.func @transform_5(%arg0: i32) -> (i32, i32, i32) {
    %c0_i32 = arith.constant 0 : i32
    %c0_i32_0 = arith.constant 0 : i32
    %c0_i32_1 = arith.constant 0 : i32
    %c0_i32_2 = arith.constant 0 : i32
    return %c0_i32, %c0_i32_0, %c0_i32_1 : i32, i32, i32
  }
  func.func @transform_6(%arg0: i32) -> (i32, i32, i32) {
    %c0_i32 = arith.constant 0 : i32
    %c0_i32_0 = arith.constant 0 : i32
    %c0_i32_1 = arith.constant 0 : i32
    %c0_i32_2 = arith.constant 0 : i32
    return %c0_i32, %c0_i32_0, %c0_i32_1 : i32, i32, i32
  }
  func.func @transform_7(%arg0: i32) -> (i32, i32) {
    %c0_i32 = arith.constant 0 : i32
    %c0_i32_0 = arith.constant 0 : i32
    %c0_i32_1 = arith.constant 0 : i32
    return %c0_i32, %c0_i32_0 : i32, i32
  }
  func.func @transform_8(%arg0: i32) -> (i32, i32) {
    %c0_i32 = arith.constant 0 : i32
    %c0_i32_0 = arith.constant 0 : i32
    %c0_i32_1 = arith.constant 0 : i32
    return %c0_i32, %c0_i32_0 : i32, i32
  }
  func.func @transform_9(%arg0: i32) -> (i32, i32, i32) {
    %c0_i32 = arith.constant 0 : i32
    %c0_i32_0 = arith.constant 0 : i32
    %c0_i32_1 = arith.constant 0 : i32
    return %arg0, %c0_i32, %c0_i32_0 : i32, i32, i32
  }
}

</mosaic_0001>

<llo_original>
// kernel: unet_block_forward.1
$region0: #{unet_block_forward.1}
  #allocation0 [shape = 'u32[]', space=smem, size = 0x4, offset = 0x4, fixed_abs, tag = 'smem constant byte address 0x4 - core index']
  #allocation1 [shape = 'u32[144,128]{1,0:T(1,128)}', space=vmem, size = 0x12000, scoped, tag = 'internal scratch']
  #allocation2 [shape = 'bf16[448,64]{1,0:T(16,128)(2,1)}', space=vmem, size = 0x1c000, scoped, tag = 'scratch operand']
  #allocation3 [shape = 'bf16[448,64]{1,0:T(16,128)(2,1)}', space=vmem, size = 0x1c000, scoped, tag = 'scratch operand']
  %s0 = inlined_call_operand.hbm [shape: f32[2,64,64], index: 0, kind: input, shape index: {}]
  %s1 = inlined_call_operand.hbm [shape: f32[2,384,32], index: 1, kind: input, shape index: {}]
  %s2 = inlined_call_operand.hbm [shape: bf16[48,32], index: 2, kind: input, shape index: {}]
  %s3 = inlined_call_operand.hbm [shape: f32[64,128], index: 3, kind: input, shape index: {}]
  %s4 = inlined_call_operand.hbm [shape: f32[32,32], index: 4, kind: input, shape index: {}]
  %s5 = inlined_call_operand.hbm [shape: bf16[3,192,64], index: 5, kind: input, shape index: {}]
  %s6 = inlined_call_operand.hbm [shape: bf16[3,192,64], index: 6, kind: input, shape index: {}]
  %s7 = inlined_call_operand.hbm [shape: f32[3,64], index: 7, kind: input, shape index: {}]
  %s8 = inlined_call_operand.hbm [shape: f32[384,1], index: 8, kind: input, shape index: {}]
  %s9 = inlined_call_operand.hbm [shape: f32[2,384,64], index: 9, kind: output, shape index: {}]
  %s10 = sld [smem:[#allocation0]]
  $region105: #{unet_block_forward.1} parent=0
    _
  %s12 = ssub.s32 1, %s10
  %s13 = scalar_select 0, %s12, %s10
  $region1: #{unet_block_forward.1} parent=0
    #allocation4 [shape = 'u8[65536]{0}', space=vmem, size = 0x10000, scoped, tag = 'input window, operand 0']
    #allocation5 [shape = 's32[2]{0}', space=sflag, size = 0x8, scoped, tag = 'scoped memory for unet_block_forward.1']
    #allocation6 [shape = 's32[2]{0}', space=sflag, size = 0x8, scoped, tag = 'scoped memory for unet_block_forward.1']
    #allocation7 [shape = 'u8[393216]{0}', space=vmem, size = 0x60000, scoped, tag = 'input window, operand 1']
    #allocation8 [shape = 's32[2]{0}', space=sflag, size = 0x8, scoped, tag = 'scoped memory for unet_block_forward.1']
    #allocation9 [shape = 'u8[12288]{0}', space=vmem, size = 0x3000, scoped, tag = 'input window, operand 2, single buffered']
    #allocation10 [shape = 'u8[32768]{0}', space=vmem, size = 0x8000, scoped, tag = 'input window, operand 3, single buffered']
    #allocation11 [shape = 's32[1]{0}', space=sflag, size = 0x4, scoped, tag = 'scoped memory for unet_block_forward.1']
    #allocation12 [shape = 'u8[16384]{0}', space=vmem, size = 0x4000, scoped, tag = 'input window, operand 4, single buffered']
    #allocation13 [shape = 'u8[147456]{0}', space=vmem, size = 0x24000, scoped, tag = 'input window, operand 5, single buffered']
    #allocation14 [shape = 's32[1]{0}', space=sflag, size = 0x4, scoped, tag = 'scoped memory for unet_block_forward.1']
    #allocation15 [shape = 'u8[147456]{0}', space=vmem, size = 0x24000, scoped, tag = 'input window, operand 6, single buffered']
    #allocation16 [shape = 'u8[2048]{0}', space=vmem, size = 0x800, scoped, tag = 'input window, operand 7, single buffered']
    #allocation17 [shape = 's32[1]{0}', space=sflag, size = 0x4, scoped, tag = 'scoped memory for unet_block_forward.1']
    #allocation18 [shape = 'u8[196608]{0}', space=vmem, size = 0x30000, scoped, tag = 'input window, operand 8, single buffered']
    #allocation19 [shape = 'u8[393216]{0}', space=vmem, size = 0x60000, scoped, tag = 'output window, operand 0']
    %14 = vsyncpa [#allocation5], 0
    %s15 = scalar_lea.sflag [#allocation5], 1
    %16 = vsyncpa %s15, 0
    %17 = vsyncpa [#allocation8], 0
    %s18 = scalar_lea.sflag [#allocation8], 1
    %19 = vsyncpa %s18, 0
    %20 = vsyncpa [#allocation11], 0
    %21 = vsyncpa [#allocation14], 0
    %22 = vsyncpa [#allocation17], 0
    %23 = vsyncpa [#allocation6], 0
    %s24 = scalar_lea.sflag [#allocation6], 1
    %25 = vsyncpa %s24, 0
    loop: start=0, step=1, limit=4
    $region2: #{unet_block_forward.1} parent=1 // loop_pre_header
      _
    $region3: #{unet_block_forward.1} parent=1 // loop_header
      %s27 = sphi 0, %s31
      %p28 = scmp.ge.s32.totalorder %s27, 4
      %s37 = sphi 0, %s39
      %s40 = sphi 0, %s37
      %s41 = sphi 0, %s40
      %s57 = sphi 0, %s41
      %s63 = sphi 0, %s65
      %s66 = sphi 0, %s63
      %s67 = sphi 0, %s66
      %s83 = sphi 0, %s67
      %s87 = sphi 0, %s87
      %s89 = sphi 0, %s87
      %s90 = sphi 0, %s89
      %s104 = sphi 0, %s90
      %s108 = sphi 0, %s108
      %s110 = sphi 0, %s108
      %s111 = sphi 0, %s110
      %s125 = sphi 0, %s111
      %s129 = sphi 0, %s129
      %s131 = sphi 0, %s129
      %s132 = sphi 0, %s131
      %s146 = sphi 0, %s132
      %s150 = sphi 0, %s150
      %s152 = sphi 0, %s150
      %s153 = sphi 0, %s152
      %s167 = sphi 0, %s153
      %s171 = sphi 0, %s171
      %s173 = sphi 0, %s171
      %s174 = sphi 0, %s173
      %s188 = sphi 0, %s174
      %s192 = sphi 0, %s192
      %s194 = sphi 0, %s192
      %s195 = sphi 0, %s194
      %s209 = sphi 0, %s195
      %s213 = sphi 0, %s213
      %s215 = sphi 0, %s213
      %s216 = sphi 0, %s215
      %s230 = sphi 0, %s216
      %s236 = sphi 0, %s238
      %s239 = sphi 0, %s236
      %s240 = sphi 0, %s239
      %s256 = sphi 0, %s240
    $region4: #{unet_block_forward.1} parent=1 // loop_header_branch
      %30 = sbr.rel (%p28) target = $region8
    $region5: #{unet_block_forward.1} parent=1 // loop_body
      %s32 = ssub.s32 %s27, 1
      %s33 = ssub.s32 %s27, 2
      %s34 = sadd.s32 %s27, 1
      %s35 = ssub.s32 %s27, %s34
      %p36 = scmp.eq.s32.totalorder %s35, 0
      %s38 = sadd.s32 %s37, 1
      %s39 = scalar_select %p36, %s37, %s38
      %p42 = pneg %p36
      %p43 = scmp.eq.s32.totalorder %s27, 1
      %p44 = por %p42, %p43
      %p45 = scmp.ne.s32.totalorder %s37, %s40
      %p46 = scmp.eq.s32.totalorder %s27, 0
      %p47 = por %p45, %p46
      %p48 = scmp.ne.s32.totalorder %s37, %s40
      %p49 = scmp.eq.s32.totalorder %s32, 1
      %p50 = por %p48, %p49
      %p51 = scmp.ne.s32.totalorder %s40, %s41
      %p52 = scmp.eq.s32.totalorder %s32, 0
      %p53 = por %p51, %p52
      %p54 = scmp.ne.s32.totalorder %s40, %s41
      %p55 = scmp.eq.s32.totalorder %s33, 1
      %p56 = por %p54, %p55
      %p58 = scmp.ne.s32.totalorder %s41, %s57
      %p59 = scmp.eq.s32.totalorder %s33, 0
      %p60 = por %p58, %p59
      %s61 = ssub.s32 %s27, %s34
      %p62 = scmp.eq.s32.totalorder %s61, 0
      %s64 = sadd.s32 %s63, 1
      %s65 = scalar_select %p62, %s63, %s64
      %p68 = pneg %p62
      %p69 = scmp.eq.s32.totalorder %s27, 1
      %p70 = por %p68, %p69
      %p71 = scmp.ne.s32.totalorder %s63, %s66
      %p72 = scmp.eq.s32.totalorder %s27, 0
      %p73 = por %p71, %p72
      %p74 = scmp.ne.s32.totalorder %s63, %s66
      %p75 = scmp.eq.s32.totalorder %s32, 1
      %p76 = por %p74, %p75
      %p77 = scmp.ne.s32.totalorder %s66, %s67
      %p78 = scmp.eq.s32.totalorder %s32, 0
      %p79 = por %p77, %p78
      %p80 = scmp.ne.s32.totalorder %s66, %s67
      %p81 = scmp.eq.s32.totalorder %s33, 1
      %p82 = por %p80, %p81
      %p84 = scmp.ne.s32.totalorder %s67, %s83
      %p85 = scmp.eq.s32.totalorder %s33, 0
      %p86 = por %p84, %p85
      %s88 = sadd.s32 %s87, 1
      %p91 = scmp.eq.s32.totalorder %s27, 1
      %p92 = scmp.ne.s32.totalorder %s87, %s89
      %p93 = scmp.eq.s32.totalorder %s27, 0
      %p94 = por %p92, %p93
      %p95 = scmp.ne.s32.totalorder %s87, %s89
      %p96 = scmp.eq.s32.totalorder %s32, 1
      %p97 = por %p95, %p96
      %p98 = scmp.ne.s32.totalorder %s89, %s90
      %p99 = scmp.eq.s32.totalorder %s32, 0
      %p100 = por %p98, %p99
      %p101 = scmp.ne.s32.totalorder %s89, %s90
      %p102 = scmp.eq.s32.totalorder %s33, 1
      %p103 = por %p101, %p102
      %p105 = scmp.ne.s32.totalorder %s90, %s104
      %p106 = scmp.eq.s32.totalorder %s33, 0
      %p107 = por %p105, %p106
      %s109 = sadd.s32 %s108, 1
      %p112 = scmp.eq.s32.totalorder %s27, 1
      %p113 = scmp.ne.s32.totalorder %s108, %s110
      %p114 = scmp.eq.s32.totalorder %s27, 0
      %p115 = por %p113, %p114
      %p116 = scmp.ne.s32.totalorder %s108, %s110
      %p117 = scmp.eq.s32.totalorder %s32, 1
      %p118 = por %p116, %p117
      %p119 = scmp.ne.s32.totalorder %s110, %s111
      %p120 = scmp.eq.s32.totalorder %s32, 0
      %p121 = por %p119, %p120
      %p122 = scmp.ne.s32.totalorder %s110, %s111
      %p123 = scmp.eq.s32.totalorder %s33, 1
      %p124 = por %p122, %p123
      %p126 = scmp.ne.s32.totalorder %s111, %s125
      %p127 = scmp.eq.s32.totalorder %s33, 0
      %p128 = por %p126, %p127
      %s130 = sadd.s32 %s129, 1
      %p133 = scmp.eq.s32.totalorder %s27, 1
      %p134 = scmp.ne.s32.totalorder %s129, %s131
      %p135 = scmp.eq.s32.totalorder %s27, 0
      %p136 = por %p134, %p135
      %p137 = scmp.ne.s32.totalorder %s129, %s131
      %p138 = scmp.eq.s32.totalorder %s32, 1
      %p139 = por %p137, %p138
      %p140 = scmp.ne.s32.totalorder %s131, %s132
      %p141 = scmp.eq.s32.totalorder %s32, 0
      %p142 = por %p140, %p141
      %p143 = scmp.ne.s32.totalorder %s131, %s132
      %p144 = scmp.eq.s32.totalorder %s33, 1
      %p145 = por %p143, %p144
      %p147 = scmp.ne.s32.totalorder %s132, %s146
      %p148 = scmp.eq.s32.totalorder %s33, 0
      %p149 = por %p147, %p148
      %s151 = sadd.s32 %s150, 1
      %p154 = scmp.eq.s32.totalorder %s27, 1
      %p155 = scmp.ne.s32.totalorder %s150, %s152
      %p156 = scmp.eq.s32.totalorder %s27, 0
      %p157 = por %p155, %p156
      %p158 = scmp.ne.s32.totalorder %s150, %s152
      %p159 = scmp.eq.s32.totalorder %s32, 1
      %p160 = por %p158, %p159
      %p161 = scmp.ne.s32.totalorder %s152, %s153
      %p162 = scmp.eq.s32.totalorder %s32, 0
      %p163 = por %p161, %p162
      %p164 = scmp.ne.s32.totalorder %s152, %s153
      %p165 = scmp.eq.s32.totalorder %s33, 1
      %p166 = por %p164, %p165
      %p168 = scmp.ne.s32.totalorder %s153, %s167
      %p169 = scmp.eq.s32.totalorder %s33, 0
      %p170 = por %p168, %p169
      %s172 = sadd.s32 %s171, 1
      %p175 = scmp.eq.s32.totalorder %s27, 1
      %p176 = scmp.ne.s32.totalorder %s171, %s173
      %p177 = scmp.eq.s32.totalorder %s27, 0
      %p178 = por %p176, %p177
      %p179 = scmp.ne.s32.totalorder %s171, %s173
      %p180 = scmp.eq.s32.totalorder %s32, 1
      %p181 = por %p179, %p180
      %p182 = scmp.ne.s32.totalorder %s173, %s174
      %p183 = scmp.eq.s32.totalorder %s32, 0
      %p184 = por %p182, %p183
      %p185 = scmp.ne.s32.totalorder %s173, %s174
      %p186 = scmp.eq.s32.totalorder %s33, 1
      %p187 = por %p185, %p186
      %p189 = scmp.ne.s32.totalorder %s174, %s188
      %p190 = scmp.eq.s32.totalorder %s33, 0
      %p191 = por %p189, %p190
      %s193 = sadd.s32 %s192, 1
      %p196 = scmp.eq.s32.totalorder %s27, 1
      %p197 = scmp.ne.s32.totalorder %s192, %s194
      %p198 = scmp.eq.s32.totalorder %s27, 0
      %p199 = por %p197, %p198
      %p200 = scmp.ne.s32.totalorder %s192, %s194
      %p201 = scmp.eq.s32.totalorder %s32, 1
      %p202 = por %p200, %p201
      %p203 = scmp.ne.s32.totalorder %s194, %s195
      %p204 = scmp.eq.s32.totalorder %s32, 0
      %p205 = por %p203, %p204
      %p206 = scmp.ne.s32.totalorder %s194, %s195
      %p207 = scmp.eq.s32.totalorder %s33, 1
      %p208 = por %p206, %p207
      %p210 = scmp.ne.s32.totalorder %s195, %s209
      %p211 = scmp.eq.s32.totalorder %s33, 0
      %p212 = por %p210, %p211
      %s214 = sadd.s32 %s213, 1
      %p217 = scmp.eq.s32.totalorder %s27, 1
      %p218 = scmp.ne.s32.totalorder %s213, %s215
      %p219 = scmp.eq.s32.totalorder %s27, 0
      %p220 = por %p218, %p219
      %p221 = scmp.ne.s32.totalorder %s213, %s215
      %p222 = scmp.eq.s32.totalorder %s32, 1
      %p223 = por %p221, %p222
      %p224 = scmp.ne.s32.totalorder %s215, %s216
      %p225 = scmp.eq.s32.totalorder %s32, 0
      %p226 = por %p224, %p225
      %p227 = scmp.ne.s32.totalorder %s215, %s216
      %p228 = scmp.eq.s32.totalorder %s33, 1
      %p229 = por %p227, %p228
      %p231 = scmp.ne.s32.totalorder %s216, %s230
      %p232 = scmp.eq.s32.totalorder %s33, 0
      %p233 = por %p231, %p232
      %s234 = ssub.s32 %s27, %s34
      %p235 = scmp.eq.s32.totalorder %s234, 0
      %s237 = sadd.s32 %s236, 1
      %s238 = scalar_select %p235, %s236, %s237
      %p241 = pneg %p235
      %p242 = scmp.eq.s32.totalorder %s27, 1
      %p243 = por %p241, %p242
      %p244 = scmp.ne.s32.totalorder %s236, %s239
      %p245 = scmp.eq.s32.totalorder %s27, 0
      %p246 = por %p244, %p245
      %p247 = scmp.ne.s32.totalorder %s236, %s239
      %p248 = scmp.eq.s32.totalorder %s32, 1
      %p249 = por %p247, %p248
      %p250 = scmp.ne.s32.totalorder %s239, %s240
      %p251 = scmp.eq.s32.totalorder %s32, 0
      %p252 = por %p250, %p251
      %p253 = scmp.ne.s32.totalorder %s239, %s240
      %p254 = scmp.eq.s32.totalorder %s33, 1
      %p255 = por %p253, %p254
      %p257 = scmp.ne.s32.totalorder %s240, %s256
      %p258 = scmp.eq.s32.totalorder %s33, 0
      %p259 = por %p257, %p258
      %p260 = scmp.le.s32.totalorder 1, %s27
      %p261 = scmp.lt.s32.totalorder %s27, 3
      %p262 = pnand %p260, %p261
      %p263 = pneg %p262
      // Predicated region
      $region9: #{unet_block_forward.1} parent=5 // pred_check
        _
      $region10: #{unet_block_forward.1} parent=5 // pred_check_branch
        %265 = sbr.rel (%p262) target = $region12
      $region11: #{unet_block_forward.1} parent=5 // pred_region
        %s266 = ssub.s32 %s27, 1
        // Predicated region
        $region13: #{unet_block_forward.1} parent=11 // pred_check
          %p267 = pneg %p100
        $region14: #{unet_block_forward.1} parent=11 // pred_check_branch
          %269 = sbr.rel (%p267) target = $region16
        $region15: #{unet_block_forward.1} parent=11 // pred_region
          %s271 = ssub.s32 384, 384
          %272 = vsyncadd [#allocation8], %s271
          %s273 = sshll.u32 [#allocation9], 4
          %s274 = int_to_ptr.vmem [resolvable:$true] %s273
          %279 = dma.hbm_to_vmem [thread:$0]  %s2, 384, %s274, [#allocation8], 64, 64, 4
        $region16: #{unet_block_forward.1} parent=11 // pred_fallthru
          _
        // Predicated region
        $region17: #{unet_block_forward.1} parent=11 // pred_check
          %p280 = pneg %p121
        $region18: #{unet_block_forward.1} parent=11 // pred_check_branch
          %282 = sbr.rel (%p280) target = $region20
        $region19: #{unet_block_forward.1} parent=11 // pred_region
          %s284 = ssub.s32 1024, 1024
          %285 = vsyncadd [#allocation11], %s284
          %s286 = sshll.u32 [#allocation10], 4
          %s287 = int_to_ptr.vmem [resolvable:$true] %s286
          %292 = dma.hbm_to_vmem [thread:$0]  %s3, 1024, %s287, [#allocation11], 128, 128, 8
        $region20: #{unet_block_forward.1} parent=11 // pred_fallthru
          _
        // Predicated region
        $region21: #{unet_block_forward.1} parent=11 // pred_check
          %p293 = pneg %p142
        $region22: #{unet_block_forward.1} parent=11 // pred_check_branch
          %295 = sbr.rel (%p293) target = $region24
        $region23: #{unet_block_forward.1} parent=11 // pred_region
          %s297 = ssub.s32 512, 512
          %298 = vsyncadd [#allocation11], %s297
          %s299 = sshll.u32 [#allocation12], 4
          %s300 = int_to_ptr.vmem [resolvable:$true] %s299
          %305 = dma.hbm_to_vmem [thread:$0]  %s4, 512, %s300, [#allocation11], 128, 128, 8
        $region24: #{unet_block_forward.1} parent=11 // pred_fallthru
          _
        // Predicated region
        $region25: #{unet_block_forward.1} parent=11 // pred_check
          %p306 = pneg %p163
        $region26: #{unet_block_forward.1} parent=11 // pred_check_branch
          %308 = sbr.rel (%p306) target = $region28
        $region27: #{unet_block_forward.1} parent=11 // pred_region
          %s310 = ssub.s32 4608, 4608
          %311 = vsyncadd [#allocation14], %s310
          %s312 = sshll.u32 [#allocation13], 4
          %s313 = int_to_ptr.vmem [resolvable:$true] %s312
          %318 = dma.hbm_to_vmem [thread:$0]  %s5, 4608, %s313, [#allocation14], 64, 64, 4
        $region28: #{unet_block_forward.1} parent=11 // pred_fallthru
          _
        // Predicated region
        $region29: #{unet_block_forward.1} parent=11 // pred_check
          %p319 = pneg %p184
        $region30: #{unet_block_forward.1} parent=11 // pred_check_branch
          %321 = sbr.rel (%p319) target = $region32
        $region31: #{unet_block_forward.1} parent=11 // pred_region
          %s323 = ssub.s32 4608, 4608
          %324 = vsyncadd [#allocation14], %s323
          %s325 = sshll.u32 [#allocation15], 4
          %s326 = int_to_ptr.vmem [resolvable:$true] %s325
          %331 = dma.hbm_to_vmem [thread:$0]  %s6, 4608, %s326, [#allocation14], 64, 64, 4
        $region32: #{unet_block_forward.1} parent=11 // pred_fallthru
          _
        // Predicated region
        $region33: #{unet_block_forward.1} parent=11 // pred_check
          %p332 = pneg %p205
        $region34: #{unet_block_forward.1} parent=11 // pred_check_branch
          %334 = sbr.rel (%p332) target = $region36
        $region35: #{unet_block_forward.1} parent=11 // pred_region
          %s336 = ssub.s32 64, 64
          %337 = vsyncadd [#allocation17], %s336
          %s339 = sshll.u32 [#allocation16], 4
          %s340 = int_to_ptr.vmem [resolvable:$true] %s339
          %342 = dma.hbm_to_vmem [thread:$0]  %s7, 64, %s340, [#allocation17]
        $region36: #{unet_block_forward.1} parent=11 // pred_fallthru
          _
        // Predicated region
        $region37: #{unet_block_forward.1} parent=11 // pred_check
          %p343 = pneg %p226
        $region38: #{unet_block_forward.1} parent=11 // pred_check_branch
          %345 = sbr.rel (%p343) target = $region40
        $region39: #{unet_block_forward.1} parent=11 // pred_region
          %s347 = ssub.s32 6144, 6144
          %348 = vsyncadd [#allocation17], %s347
          %s349 = sshll.u32 [#allocation18], 4
          %s350 = int_to_ptr.vmem [resolvable:$true] %s349
          %355 = dma.hbm_to_vmem [thread:$0]  %s8, 6144, %s350, [#allocation17], 128, 128, 8
        $region40: #{unet_block_forward.1} parent=11 // pred_fallthru
          _
      $region12: #{unet_block_forward.1} parent=5 // pred_fallthru
        _
      %p356 = scmp.lt.s32.totalorder %s27, 2
      // Predicated region
      $region41: #{unet_block_forward.1} parent=5 // pred_check
        %p357 = pneg %p356
      $region42: #{unet_block_forward.1} parent=5 // pred_check_branch
        %359 = sbr.rel (%p357) target = $region44
      $region43: #{unet_block_forward.1} parent=5 // pred_region
        // Predicated region
        $region45: #{unet_block_forward.1} parent=43 // pred_check
          %p360 = pneg %p47
        $region46: #{unet_block_forward.1} parent=43 // pred_check_branch
          %362 = sbr.rel (%p360) target = $region48
        $region47: #{unet_block_forward.1} parent=43 // pred_region
          %s363 = sand.u32 %s37, 1
          %s364 = scalar_lea.sflag [#allocation5], %s363
          %s365 = sand.u32 %s37, 1
          %s366 = smul.addr %s365, 64
          %s367 = scalar_lea.vmem [#allocation4], %s366
          %s369 = ssub.s32 1024, 1024
          %370 = vsyncadd %s364, %s369
          %s371 = smul.addr %s27, 8
          %s372 = smul.addr %s371, 128
          %s373 = scalar_lea.hbm %s0, %s372
          %s374 = sshll.u32 %s367, 4
          %s375 = int_to_ptr.vmem [resolvable:$true] %s374
          %380 = dma.hbm_to_vmem [thread:$0]  %s373, 1024, %s375, %s364, 128, 128, 8
        $region48: #{unet_block_forward.1} parent=43 // pred_fallthru
          _
        // Predicated region
        $region49: #{unet_block_forward.1} parent=43 // pred_check
          %p381 = pneg %p73
        $region50: #{unet_block_forward.1} parent=43 // pred_check_branch
          %383 = sbr.rel (%p381) target = $region52
        $region51: #{unet_block_forward.1} parent=43 // pred_region
          %s384 = sand.u32 %s27, 1
          %s385 = scalar_lea.sflag [#allocation8], %s384
          %s386 = sand.u32 %s63, 1
          %s387 = smul.addr %s386, 384
          %s388 = scalar_lea.vmem [#allocation7], %s387
          %s390 = ssub.s32 6144, 6144
          %391 = vsyncadd %s385, %s390
          %s392 = smul.addr %s27, 48
          %s393 = smul.addr %s392, 128
          %s394 = scalar_lea.hbm %s1, %s393
          %s395 = sshll.u32 %s388, 4
          %s396 = int_to_ptr.vmem [resolvable:$true] %s395
          %401 = dma.hbm_to_vmem [thread:$0]  %s394, 6144, %s396, %s385, 128, 128, 8
        $region52: #{unet_block_forward.1} parent=43 // pred_fallthru
          _
      $region44: #{unet_block_forward.1} parent=5 // pred_fallthru
        _
      %p402 = scmp.le.s32.totalorder 1, %s27
      %p403 = scmp.lt.s32.totalorder %s27, 3
      %p404 = pnand %p402, %p403
      %p405 = pneg %p404
      // Predicated region
      $region53: #{unet_block_forward.1} parent=5 // pred_check
        _
      $region54: #{unet_block_forward.1} parent=5 // pred_check_branch
        %407 = sbr.rel (%p404) target = $region56
      $region55: #{unet_block_forward.1} parent=5 // pred_region
        %s408 = ssub.s32 %s27, 1
        %s409 = sand.u32 %s40, 1
        %s410 = scalar_lea.sflag [#allocation5], %s409
        %s411 = sand.u32 %s40, 1
        %s412 = smul.addr %s411, 64
        %s413 = scalar_lea.vmem [#allocation4], %s412
        // Predicated region
        $region57: #{unet_block_forward.1} parent=55 // pred_check
          %p414 = pneg %p53
        $region58: #{unet_block_forward.1} parent=55 // pred_check_branch
          %416 = sbr.rel (%p414) target = $region60
        $region59: #{unet_block_forward.1} parent=55 // pred_region
          %417 = dma.done %s410, 1024
        $region60: #{unet_block_forward.1} parent=55 // pred_fallthru
          _
        %s418 = sand.u32 %s32, 1
        %s419 = scalar_lea.sflag [#allocation8], %s418
        %s420 = sand.u32 %s66, 1
        %s421 = smul.addr %s420, 384
        %s422 = scalar_lea.vmem [#allocation7], %s421
        // Predicated region
        $region61: #{unet_block_forward.1} parent=55 // pred_check
          %p423 = pneg %p79
        $region62: #{unet_block_forward.1} parent=55 // pred_check_branch
          %425 = sbr.rel (%p423) target = $region64
        $region63: #{unet_block_forward.1} parent=55 // pred_region
          %426 = dma.done %s419, 6144
        $region64: #{unet_block_forward.1} parent=55 // pred_fallthru
          _
        // Predicated region
        $region65: #{unet_block_forward.1} parent=55 // pred_check
          %p427 = pneg %p100
        $region66: #{unet_block_forward.1} parent=55 // pred_check_branch
          %429 = sbr.rel (%p427) target = $region68
        $region67: #{unet_block_forward.1} parent=55 // pred_region
          %430 = dma.done [#allocation8], 384
        $region68: #{unet_block_forward.1} parent=55 // pred_fallthru
          _
        // Predicated region
        $region69: #{unet_block_forward.1} parent=55 // pred_check
          %p431 = pneg %p121
        $region70: #{unet_block_forward.1} parent=55 // pred_check_branch
          %433 = sbr.rel (%p431) target = $region72
        $region71: #{unet_block_forward.1} parent=55 // pred_region
          %434 = dma.done [#allocation11], 1024
        $region72: #{unet_block_forward.1} parent=55 // pred_fallthru
          _
        // Predicated region
        $region73: #{unet_block_forward.1} parent=55 // pred_check
          %p435 = pneg %p142
        $region74: #{unet_block_forward.1} parent=55 // pred_check_branch
          %437 = sbr.rel (%p435) target = $region76
        $region75: #{unet_block_forward.1} parent=55 // pred_region
          %438 = dma.done [#allocation11], 512
        $region76: #{unet_block_forward.1} parent=55 // pred_fallthru
          _
        // Predicated region
        $region77: #{unet_block_forward.1} parent=55 // pred_check
          %p439 = pneg %p163
        $region78: #{unet_block_forward.1} parent=55 // pred_check_branch
          %441 = sbr.rel (%p439) target = $region80
        $region79: #{unet_block_forward.1} parent=55 // pred_region
          %442 = dma.done [#allocation14], 4608
        $region80: #{unet_block_forward.1} parent=55 // pred_fallthru
          _
        // Predicated region
        $region81: #{unet_block_forward.1} parent=55 // pred_check
          %p443 = pneg %p184
        $region82: #{unet_block_forward.1} parent=55 // pred_check_branch
          %445 = sbr.rel (%p443) target = $region84
        $region83: #{unet_block_forward.1} parent=55 // pred_region
          %446 = dma.done [#allocation14], 4608
        $region84: #{unet_block_forward.1} parent=55 // pred_fallthru
          _
        // Predicated region
        $region85: #{unet_block_forward.1} parent=55 // pred_check
          %p447 = pneg %p205
        $region86: #{unet_block_forward.1} parent=55 // pred_check_branch
          %449 = sbr.rel (%p447) target = $region88
        $region87: #{unet_block_forward.1} parent=55 // pred_region
          %450 = dma.done [#allocation17], 64
        $region88: #{unet_block_forward.1} parent=55 // pred_fallthru
          _
        // Predicated region
        $region89: #{unet_block_forward.1} parent=55 // pred_check
          %p451 = pneg %p226
        $region90: #{unet_block_forward.1} parent=55 // pred_check_branch
          %453 = sbr.rel (%p451) target = $region92
        $region91: #{unet_block_forward.1} parent=55 // pred_region
          %454 = dma.done [#allocation17], 6144
        $region92: #{unet_block_forward.1} parent=55 // pred_fallthru
          _
        %s455 = sand.u32 %s40, 1
        %s456 = scalar_lea.sflag [#allocation5], %s455
        %s457 = sand.u32 %s40, 1
        %s458 = smul.addr %s457, 64
        %s459 = scalar_lea.vmem [#allocation4], %s458
        %p460 = pneg %p53
        %p461 = pneg %p50
        %s462 = sand.u32 %s32, 1
        %s463 = scalar_lea.sflag [#allocation8], %s462
        %s464 = sand.u32 %s66, 1
        %s465 = smul.addr %s464, 384
        %s466 = scalar_lea.vmem [#allocation7], %s465
        %p467 = pneg %p79
        %p468 = pneg %p76
        %p469 = pneg %p100
        %p470 = pneg %p97
        %p471 = pneg %p121
        %p472 = pneg %p118
        %p473 = pneg %p142
        %p474 = pneg %p139
        %p475 = pneg %p163
        %p476 = pneg %p160
        %p477 = pneg %p184
        %p478 = pneg %p181
        %p479 = pneg %p205
        %p480 = pneg %p202
        %p481 = pneg %p226
        %p482 = pneg %p223
        %p483 = pneg %p252
        %p484 = pneg %p249
        %s485 = sand.u32 %s239, 1
        %s486 = scalar_lea.sflag [#allocation6], %s485
        %s487 = sand.u32 %s239, 1
        %s488 = smul.addr %s487, 384
        %s489 = scalar_lea.vmem [#allocation19], %s488
        %vm491 = vcmask 523264
        %492 = vst.msk [vmem:[#allocation2] sm:$0xff] %vm491, 0
        %493 = vst.msk [vmem:[#allocation2 + $0x8] sm:$0xff] %vm491, 0
        %494 = vst.msk [vmem:[#allocation3] sm:$0xff] %vm491, 0
        %495 = vst.msk [vmem:[#allocation3 + $0x8] sm:$0xff] %vm491, 0
        %496 = vst.msk [vmem:[#allocation2 + $0xd0] sm:$0xff] %vm491, 0
        %497 = vst.msk [vmem:[#allocation2 + $0xd8] sm:$0xff] %vm491, 0
        %498 = vst.msk [vmem:[#allocation3 + $0xd0] sm:$0xff] %vm491, 0
        %499 = vst.msk [vmem:[#allocation3 + $0xd8] sm:$0xff] %vm491, 0
        %v500 = vld [vmem:[#allocation18] sm:$0xff]
        %v501 = vld [vmem:[#allocation18 + $0x8] sm:$0xff]
        %v502 = vld [vmem:[#allocation18 + $0x10] sm:$0xff]
        %v503 = vld [vmem:[#allocation18 + $0x18] sm:$0xff]
        %v504 = vld [vmem:[#allocation18 + $0x20] sm:$0xff]
        %v505 = vld [vmem:[#allocation18 + $0x28] sm:$0xff]
        %v506 = vld [vmem:[#allocation18 + $0x30] sm:$0xff]
        %v507 = vld [vmem:[#allocation18 + $0x38] sm:$0xff]
        %v508 = vld [vmem:[#allocation18 + $0x40] sm:$0xff]
        %v509 = vld [vmem:[#allocation18 + $0x48] sm:$0xff]
        %v510 = vld [vmem:[#allocation18 + $0x50] sm:$0xff]
        %v511 = vld [vmem:[#allocation18 + $0x58] sm:$0xff]
        %v512 = vld [vmem:[#allocation18 + $0x60] sm:$0xff]
        %v513 = vld [vmem:[#allocation18 + $0x68] sm:$0xff]
        %v514 = vld [vmem:[#allocation18 + $0x70] sm:$0xff]
        %v515 = vld [vmem:[#allocation18 + $0x78] sm:$0xff]
        %v516 = vld [vmem:[#allocation18 + $0x80] sm:$0xff]
        %v517 = vld [vmem:[#allocation18 + $0x88] sm:$0xff]
        %v518 = vld [vmem:[#allocation18 + $0x90] sm:$0xff]
        %v519 = vld [vmem:[#allocation18 + $0x98] sm:$0xff]
        %v520 = vld [vmem:[#allocation18 + $0xa0] sm:$0xff]
        %v521 = vld [vmem:[#allocation18 + $0xa8] sm:$0xff]
        %v522 = vld [vmem:[#allocation18 + $0xb0] sm:$0xff]
        %v523 = vld [vmem:[#allocation18 + $0xb8] sm:$0xff]
        %v524 = vld [vmem:[#allocation18 + $0xc0] sm:$0xff]
        %v525 = vld [vmem:[#allocation18 + $0xc8] sm:$0xff]
        %v526 = vld [vmem:[#allocation18 + $0xd0] sm:$0xff]
        %v527 = vld [vmem:[#allocation18 + $0xd8] sm:$0xff]
        %v528 = vld [vmem:[#allocation18 + $0xe0] sm:$0xff]
        %v529 = vld [vmem:[#allocation18 + $0xe8] sm:$0xff]
        %v530 = vld [vmem:[#allocation18 + $0xf0] sm:$0xff]
        %v531 = vld [vmem:[#allocation18 + $0xf8] sm:$0xff]
        %v532 = vld [vmem:[#allocation18 + $0x100] sm:$0xff]
        %v533 = vld [vmem:[#allocation18 + $0x108] sm:$0xff]
        %v534 = vld [vmem:[#allocation18 + $0x110] sm:$0xff]
        %v535 = vld [vmem:[#allocation18 + $0x118] sm:$0xff]
        %v536 = vld [vmem:[#allocation18 + $0x120] sm:$0xff]
        %v537 = vld [vmem:[#allocation18 + $0x128] sm:$0xff]
        %v538 = vld [vmem:[#allocation18 + $0x130] sm:$0xff]
        %v539 = vld [vmem:[#allocation18 + $0x138] sm:$0xff]
        %v540 = vld [vmem:[#allocation18 + $0x140] sm:$0xff]
        %v541 = vld [vmem:[#allocation18 + $0x148] sm:$0xff]
        %v542 = vld [vmem:[#allocation18 + $0x150] sm:$0xff]
        %v543 = vld [vmem:[#allocation18 + $0x158] sm:$0xff]
        %v544 = vld [vmem:[#allocation18 + $0x160] sm:$0xff]
        %v545 = vld [vmem:[#allocation18 + $0x168] sm:$0xff]
        %v546 = vld [vmem:[#allocation18 + $0x170] sm:$0xff]
        %v547 = vld [vmem:[#allocation18 + $0x178] sm:$0xff]
        %v548 = vld [vmem:[%s413] sm:$0xff]
        %v549 = vld [vmem:[%s413 + $0x8] sm:$0xff]
        %v550 = vld [vmem:[%s413 + $0x10] sm:$0xff]
        %v551 = vld [vmem:[%s413 + $0x18] sm:$0xff]
        %v552 = vld [vmem:[%s413 + $0x20] sm:$0xff]
        %v553 = vld [vmem:[%s413 + $0x28] sm:$0xff]
        %v554 = vld [vmem:[%s413 + $0x30] sm:$0xff]
        %v555 = vld [vmem:[%s413 + $0x38] sm:$0xff]
        %v556 = vld [vmem:[#allocation10] sm:$0xff]
        %v557 = vld [vmem:[#allocation10 + $0x8] sm:$0xff]
        %v558 = vld [vmem:[#allocation10 + $0x10] sm:$0xff]
        %v559 = vld [vmem:[#allocation10 + $0x18] sm:$0xff]
        %v560 = vld [vmem:[#allocation10 + $0x20] sm:$0xff]
        %v561 = vld [vmem:[#allocation10 + $0x28] sm:$0xff]
        %v562 = vld [vmem:[#allocation10 + $0x30] sm:$0xff]
        %v563 = vld [vmem:[#allocation10 + $0x38] sm:$0xff]
        %v565 = vsel %vm491, %v548, 0
        %v568 = vsel %vm491, %v549, 0
        %v571 = vsel %vm491, %v550, 0
        %v574 = vsel %vm491, %v551, 0
        %v577 = vsel %vm491, %v552, 0
        %v580 = vsel %vm491, %v553, 0
        %v583 = vsel %vm491, %v554, 0
        %v586 = vsel %vm491, %v555, 0
        %588 = vmatprep.subr.mxu0 0.0
        %589 = vmatpush1.msra.mxu0 %v556
        %590 = vmatprep.subr.mxu0 0.0
        %591 = vmatpush1.msra.mxu0 %v557
        %592 = vmatprep.subr.mxu0 0.0
        %593 = vmatpush1.msra.mxu0 %v558
        %594 = vmatprep.subr.mxu0 0.0
        %595 = vmatpush1.msra.mxu0 %v559
        %596 = vmatprep.subr.mxu0 0.0
        %597 = vmatpush1.msra.mxu0 %v560
        %598 = vmatprep.subr.mxu0 0.0
        %599 = vmatpush1.msra.mxu0 %v561
        %600 = vmatprep.subr.mxu0 0.0
        %601 = vmatpush1.msra.mxu0 %v562
        %602 = vmatprep.subr.mxu0 0.0
        %603 = vmatpush1.msra.mxu0 %v563
        %604 = vmatprep.subr.mxu0 0.0
        %605 = vmatpush1.msra.mxu0 0.0
        %606 = vmatprep.subr.mxu0 0.0
        %607 = vmatpush1.msra.mxu0 0.0
        %608 = vmatprep.subr.mxu0 0.0
        %609 = vmatpush1.msra.mxu0 0.0
        %610 = vmatprep.subr.mxu0 0.0
        %611 = vmatpush1.msra.mxu0 0.0
        %612 = vmatprep.subr.mxu0 0.0
        %613 = vmatpush1.msra.mxu0 0.0
        %614 = vmatprep.subr.mxu0 0.0
        %615 = vmatpush1.msra.mxu0 0.0
        %616 = vmatprep.subr.mxu0 0.0
        %617 = vmatpush1.msra.mxu0 0.0
        %618 = vmatprep.subr.mxu0 0.0
        %619 = vmatpush1.msra.mxu0 0.0
        %620 = vmatprep.subr.mxu0 0.0
        %621 = vmatpush1.msra.mxu0 0.0
        %622 = vmatprep.subr.mxu0 0.0
        %623 = vmatpush1.msra.mxu0 0.0
        %624 = vmatprep.subr.mxu0 0.0
        %625 = vmatpush1.msra.mxu0 0.0
        %626 = vmatprep.subr.mxu0 0.0
        %627 = vmatpush1.msra.mxu0 0.0
        %628 = vmatprep.subr.mxu0 0.0
        %629 = vmatpush1.msra.mxu0 0.0
        %630 = vmatprep.subr.mxu0 0.0
        %631 = vmatpush1.msra.mxu0 0.0
        %632 = vmatprep.subr.mxu0 0.0
        %633 = vmatpush1.msra.mxu0 0.0
        %634 = vmatprep.subr.mxu0 0.0
        %635 = vmatpush1.msra.mxu0 0.0
        %636 = vmatprep.subr.mxu0 0.0
        %637 = vmatpush1.msra.mxu0 0.0
        %638 = vmatprep.subr.mxu0 0.0
        %639 = vmatpush1.msra.mxu0 0.0
        %640 = vmatprep.subr.mxu0 0.0
        %641 = vmatpush1.msra.mxu0 0.0
        %642 = vmatprep.subr.mxu0 0.0
        %643 = vmatpush1.msra.mxu0 0.0
        %644 = vmatprep.subr.mxu0 0.0
        %645 = vmatpush1.msra.mxu0 0.0
        %646 = vmatprep.subr.mxu0 0.0
        %647 = vmatpush1.msra.mxu0 0.0
        %648 = vmatprep.subr.mxu0 0.0
        %649 = vmatpush1.msra.mxu0 0.0
        %650 = vmatprep.subr.mxu0 0.0
        %651 = vmatpush1.msra.mxu0 0.0
        %652 = vmatprep.mubr.f32.mxu0 0.0
        %653 = vmatmul.mubr.f32.gmra.mrb[0].mxu0 %v565
        %v654 = vpop.f32.mrb[0].mxu0
        %v655 = vadd.f32 0.0, %v654
        %v656 = vpop.f32.mrb[0].mxu0
        %657 = vmatprep.mubr.f32.mxu0 0.0
        %658 = vmatmul.mubr.f32.gmra.mrb[0].mxu0 %v568
        %v659 = vpop.f32.mrb[0].mxu0
        %v660 = vadd.f32 0.0, %v659
        %v661 = vpop.f32.mrb[0].mxu0
        %662 = vmatprep.mubr.f32.mxu0 0.0
        %663 = vmatmul.mubr.f32.gmra.mrb[0].mxu0 %v571
        %v664 = vpop.f32.mrb[0].mxu0
        %v665 = vadd.f32 0.0, %v664
        %v666 = vpop.f32.mrb[0].mxu0
        %667 = vmatprep.mubr.f32.mxu0 0.0
        %668 = vmatmul.mubr.f32.gmra.mrb[0].mxu0 %v574
        %v669 = vpop.f32.mrb[0].mxu0
        %v670 = vadd.f32 0.0, %v669
        %v671 = vpop.f32.mrb[0].mxu0
        %672 = vmatprep.mubr.f32.mxu0 0.0
        %673 = vmatmul.mubr.f32.gmra.mrb[0].mxu0 %v577
        %v674 = vpop.f32.mrb[0].mxu0
        %v675 = vadd.f32 0.0, %v674
        %v676 = vpop.f32.mrb[0].mxu0
        %677 = vmatprep.mubr.f32.mxu0 0.0
        %678 = vmatmul.mubr.f32.gmra.mrb[0].mxu0 %v580
        %v679 = vpop.f32.mrb[0].mxu0
        %v680 = vadd.f32 0.0, %v679
        %v681 = vpop.f32.mrb[0].mxu0
        %682 = vmatprep.mubr.f32.mxu0 0.0
        %683 = vmatmul.mubr.f32.gmra.mrb[0].mxu0 %v583
        %v684 = vpop.f32.mrb[0].mxu0
        %v685 = vadd.f32 0.0, %v684
        %v686 = vpop.f32.mrb[0].mxu0
        %687 = vmatprep.mubr.f32.mxu0 0.0
        %688 = vmatmul.mubr.f32.gmra.mrb[0].mxu0 %v586
        %v689 = vpop.f32.mrb[0].mxu0
        %v690 = vadd.f32 0.0, %v689
        %v691 = vpop.f32.mrb[0].mxu0
        %692 = vdwg.mxu0
        %v693 = vld [vmem:[#allocation16] sm:$0x1]
        %v694 = vlaneseq
        %v695 = vshrl.u32 %v694, 7
        %v696 = vsub.s32 0, %v695
        %v697 = vrot.slane %v693, %v696
        %v698 = vadd.f32 %v655, %v697
        %v699 = vadd.f32 %v660, %v697
        %v700 = vadd.f32 %v665, %v697
        %v701 = vadd.f32 %v670, %v697
        %v702 = vadd.f32 %v675, %v697
        %v703 = vadd.f32 %v680, %v697
        %v704 = vadd.f32 %v685, %v697
        %v705 = vadd.f32 %v690, %v697
        %v706 = vmax.f32 %v698, 0.0
        %v707 = vmax.f32 %v699, 0.0
        %v708 = vmax.f32 %v700, 0.0
        %v709 = vmax.f32 %v701, 0.0
        %v710 = vmax.f32 %v702, 0.0
        %v711 = vmax.f32 %v703, 0.0
        %v712 = vmax.f32 %v704, 0.0
        %v713 = vmax.f32 %v705, 0.0
        %v714 = vpack.c.bf16 %v707, %v706
        %v715 = vpack.c.bf16 %v709, %v708
        %v716 = vpack.c.bf16 %v711, %v710
        %v717 = vpack.c.bf16 %v713, %v712
        %719 = vrot.lane.b32.xlu0 %v697, 32
        %v720 = vpop.permute.xlu0 %719
        %v722 = vadd.f32 %v655, %v720
        %v723 = vadd.f32 %v660, %v720
        %v724 = vadd.f32 %v665, %v720
        %v725 = vadd.f32 %v670, %v720
        %v726 = vadd.f32 %v675, %v720
        %v727 = vadd.f32 %v680, %v720
        %v728 = vadd.f32 %v685, %v720
        %v729 = vadd.f32 %v690, %v720
        %v730 = vmax.f32 %v722, 0.0
        %v731 = vmax.f32 %v723, 0.0
        %v732 = vmax.f32 %v724, 0.0
        %v733 = vmax.f32 %v725, 0.0
        %v734 = vmax.f32 %v726, 0.0
        %v735 = vmax.f32 %v727, 0.0
        %v736 = vmax.f32 %v728, 0.0
        %v737 = vmax.f32 %v729, 0.0
        %v738 = vpack.c.bf16 %v731, %v730
        %v739 = vpack.c.bf16 %v733, %v732
        %v740 = vpack.c.bf16 %v735, %v734
        %v741 = vpack.c.bf16 %v737, %v736
        %742 = vrot.lane.b32.xlu0 %v697, 64
        %v743 = vpop.permute.xlu0 %742
        %v745 = vadd.f32 %v655, %v743
        %v746 = vadd.f32 %v660, %v743
        %v747 = vadd.f32 %v665, %v743
        %v748 = vadd.f32 %v670, %v743
        %v749 = vadd.f32 %v675, %v743
        %v750 = vadd.f32 %v680, %v743
        %v751 = vadd.f32 %v685, %v743
        %v752 = vadd.f32 %v690, %v743
        %v753 = vmax.f32 %v745, 0.0
        %v754 = vmax.f32 %v746, 0.0
        %v755 = vmax.f32 %v747, 0.0
        %v756 = vmax.f32 %v748, 0.0
        %v757 = vmax.f32 %v749, 0.0
        %v758 = vmax.f32 %v750, 0.0
        %v759 = vmax.f32 %v751, 0.0
        %v760 = vmax.f32 %v752, 0.0
        %v761 = vpack.c.bf16 %v754, %v753
        %v762 = vpack.c.bf16 %v756, %v755
        %v763 = vpack.c.bf16 %v758, %v757
        %v764 = vpack.c.bf16 %v760, %v759
        %765 = vrot.lane.b32.xlu0 %v697, 96
        %v766 = vpop.permute.xlu0 %765
        %v768 = vadd.f32 %v655, %v766
        %v769 = vadd.f32 %v660, %v766
        %v770 = vadd.f32 %v665, %v766
        %v771 = vadd.f32 %v670, %v766
        %v772 = vadd.f32 %v675, %v766
        %v773 = vadd.f32 %v680, %v766
        %v774 = vadd.f32 %v685, %v766
        %v775 = vadd.f32 %v690, %v766
        %v776 = vmax.f32 %v768, 0.0
        %v777 = vmax.f32 %v769, 0.0
        %v778 = vmax.f32 %v770, 0.0
        %v779 = vmax.f32 %v771, 0.0
        %v780 = vmax.f32 %v772, 0.0
        %v781 = vmax.f32 %v773, 0.0
        %v782 = vmax.f32 %v774, 0.0
        %v783 = vmax.f32 %v775, 0.0
        %v784 = vpack.c.bf16 %v777, %v776
        %v785 = vpack.c.bf16 %v779, %v778
        %v786 = vpack.c.bf16 %v781, %v780
        %v787 = vpack.c.bf16 %v783, %v782
        %v788 = vld [vmem:[%s422] sm:$0xff]
        %v789 = vld [vmem:[%s422 + $0x8] sm:$0xff]
        %v790 = vld [vmem:[%s422 + $0x10] sm:$0xff]
        %v791 = vld [vmem:[%s422 + $0x18] sm:$0xff]
        %v792 = vld [vmem:[%s422 + $0x20] sm:$0xff]
        %v793 = vld [vmem:[%s422 + $0x28] sm:$0xff]
        %v794 = vld [vmem:[%s422 + $0x30] sm:$0xff]
        %v795 = vld [vmem:[%s422 + $0x38] sm:$0xff]
        %v796 = vld [vmem:[%s422 + $0x40] sm:$0xff]
        %v797 = vld [vmem:[%s422 + $0x48] sm:$0xff]
        %v798 = vld [vmem:[%s422 + $0x50] sm:$0xff]
        %v799 = vld [vmem:[%s422 + $0x58] sm:$0xff]
        %v800 = vld [vmem:[%s422 + $0x60] sm:$0xff]
        %v801 = vld [vmem:[%s422 + $0x68] sm:$0xff]
        %v802 = vld [vmem:[%s422 + $0x70] sm:$0xff]
        %v803 = vld [vmem:[%s422 + $0x78] sm:$0xff]
        %v804 = vld [vmem:[%s422 + $0x80] sm:$0xff]
        %v805 = vld [vmem:[%s422 + $0x88] sm:$0xff]
        %v806 = vld [vmem:[%s422 + $0x90] sm:$0xff]
        %v807 = vld [vmem:[%s422 + $0x98] sm:$0xff]
        %v808 = vld [vmem:[%s422 + $0xa0] sm:$0xff]
        %v809 = vld [vmem:[%s422 + $0xa8] sm:$0xff]
        %v810 = vld [vmem:[%s422 + $0xb0] sm:$0xff]
        %v811 = vld [vmem:[%s422 + $0xb8] sm:$0xff]
        %v812 = vld [vmem:[%s422 + $0xc0] sm:$0xff]
        %v813 = vld [vmem:[%s422 + $0xc8] sm:$0xff]
        %v814 = vld [vmem:[%s422 + $0xd0] sm:$0xff]
        %v815 = vld [vmem:[%s422 + $0xd8] sm:$0xff]
        %v816 = vld [vmem:[%s422 + $0xe0] sm:$0xff]
        %v817 = vld [vmem:[%s422 + $0xe8] sm:$0xff]
        %v818 = vld [vmem:[%s422 + $0xf0] sm:$0xff]
        %v819 = vld [vmem:[%s422 + $0xf8] sm:$0xff]
        %v820 = vld [vmem:[%s422 + $0x100] sm:$0xff]
        %v821 = vld [vmem:[%s422 + $0x108] sm:$0xff]
        %v822 = vld [vmem:[%s422 + $0x110] sm:$0xff]
        %v823 = vld [vmem:[%s422 + $0x118] sm:$0xff]
        %v824 = vld [vmem:[%s422 + $0x120] sm:$0xff]
        %v825 = vld [vmem:[%s422 + $0x128] sm:$0xff]
        %v826 = vld [vmem:[%s422 + $0x130] sm:$0xff]
        %v827 = vld [vmem:[%s422 + $0x138] sm:$0xff]
        %v828 = vld [vmem:[%s422 + $0x140] sm:$0xff]
        %v829 = vld [vmem:[%s422 + $0x148] sm:$0xff]
        %v830 = vld [vmem:[%s422 + $0x150] sm:$0xff]
        %v831 = vld [vmem:[%s422 + $0x158] sm:$0xff]
        %v832 = vld [vmem:[%s422 + $0x160] sm:$0xff]
        %v833 = vld [vmem:[%s422 + $0x168] sm:$0xff]
        %v834 = vld [vmem:[%s422 + $0x170] sm:$0xff]
        %v835 = vld [vmem:[%s422 + $0x178] sm:$0xff]
        %v836 = vld [vmem:[#allocation12] sm:$0xff]
        %v837 = vld [vmem:[#allocation12 + $0x8] sm:$0xff]
        %v838 = vld [vmem:[#allocation12 + $0x10] sm:$0xff]
        %v839 = vld [vmem:[#allocation12 + $0x18] sm:$0xff]
        %vm840 = vcmask 261120
        %v842 = vsel %vm840, %v788, 0
        %v845 = vsel %vm840, %v789, 0
        %v848 = vsel %vm840, %v790, 0
        %v851 = vsel %vm840, %v791, 0
        %v854 = vsel %vm840, %v792, 0
        %v857 = vsel %vm840, %v793, 0
        %v860 = vsel %vm840, %v794, 0
        %v863 = vsel %vm840, %v795, 0
        %v866 = vsel %vm840, %v796, 0
        %v869 = vsel %vm840, %v797, 0
        %v872 = vsel %vm840, %v798, 0
        %v875 = vsel %vm840, %v799, 0
        %v878 = vsel %vm840, %v800, 0
        %v881 = vsel %vm840, %v801, 0
        %v884 = vsel %vm840, %v802, 0
        %v887 = vsel %vm840, %v803, 0
        %v890 = vsel %vm840, %v804, 0
        %v893 = vsel %vm840, %v805, 0
        %v896 = vsel %vm840, %v806, 0
        %v899 = vsel %vm840, %v807, 0
        %v902 = vsel %vm840, %v808, 0
        %v905 = vsel %vm840, %v809, 0
        %v908 = vsel %vm840, %v810, 0
        %v911 = vsel %vm840, %v811, 0
        %v914 = vsel %vm840, %v812, 0
        %v917 = vsel %vm840, %v813, 0
        %v920 = vsel %vm840, %v814, 0
        %v923 = vsel %vm840, %v815, 0
        %v926 = vsel %vm840, %v816, 0
        %v929 = vsel %vm840, %v817, 0
        %v932 = vsel %vm840, %v818, 0
        %v935 = vsel %vm840, %v819, 0
        %v938 = vsel %vm840, %v820, 0
        %v941 = vsel %vm840, %v821, 0
        %v944 = vsel %vm840, %v822, 0
        %v947 = vsel %vm840, %v823, 0
        %v950 = vsel %vm840, %v824, 0
        %v953 = vsel %vm840, %v825, 0
        %v956 = vsel %vm840, %v826, 0
        %v959 = vsel %vm840, %v827, 0
        %v962 = vsel %vm840, %v828, 0
        %v965 = vsel %vm840, %v829, 0
        %v968 = vsel %vm840, %v830, 0
        %v971 = vsel %vm840, %v831, 0
        %v974 = vsel %vm840, %v832, 0
        %v977 = vsel %vm840, %v833, 0
        %v980 = vsel %vm840, %v834, 0
        %v983 = vsel %vm840, %v835, 0
        %985 = vmatprep.subr.mxu0 0.0
        %986 = vmatpush1.msra.mxu0 %v836
        %987 = vmatprep.subr.mxu0 0.0
        %988 = vmatpush1.msra.mxu0 %v837
        %989 = vmatprep.subr.mxu0 0.0
        %990 = vmatpush1.msra.mxu0 %v838
        %991 = vmatprep.subr.mxu0 0.0
        %992 = vmatpush1.msra.mxu0 %v839
        %993 = vmatprep.subr.mxu0 0.0
        %994 = vmatpush1.msra.mxu0 0.0
        %995 = vmatprep.subr.mxu0 0.0
        %996 = vmatpush1.msra.mxu0 0.0
        %997 = vmatprep.subr.mxu0 0.0
        %998 = vmatpush1.msra.mxu0 0.0
        %999 = vmatprep.subr.mxu0 0.0
        %1000 = vmatpush1.msra.mxu0 0.0
        %1001 = vmatprep.subr.mxu0 0.0
        %1002 = vmatpush1.msra.mxu0 0.0
        %1003 = vmatprep.subr.mxu0 0.0
        %1004 = vmatpush1.msra.mxu0 0.0
        %1005 = vmatprep.subr.mxu0 0.0
        %1006 = vmatpush1.msra.mxu0 0.0
        %1007 = vmatprep.subr.mxu0 0.0
        %1008 = vmatpush1.msra.mxu0 0.0
        %1009 = vmatprep.subr.mxu0 0.0
        %1010 = vmatpush1.msra.mxu0 0.0
        %1011 = vmatprep.subr.mxu0 0.0
        %1012 = vmatpush1.msra.mxu0 0.0
        %1013 = vmatprep.subr.mxu0 0.0
        %1014 = vmatpush1.msra.mxu0 0.0
        %1015 = vmatprep.subr.mxu0 0.0
        %1016 = vmatpush1.msra.mxu0 0.0
        %1017 = vmatprep.subr.mxu0 0.0
        %1018 = vmatpush1.msra.mxu0 0.0
        %1019 = vmatprep.subr.mxu0 0.0
        %1020 = vmatpush1.msra.mxu0 0.0
        %1021 = vmatprep.subr.mxu0 0.0
        %1022 = vmatpush1.msra.mxu0 0.0
        %1023 = vmatprep.subr.mxu0 0.0
        %1024 = vmatpush1.msra.mxu0 0.0
        %1025 = vmatprep.subr.mxu0 0.0
        %1026 = vmatpush1.msra.mxu0 0.0
        %1027 = vmatprep.subr.mxu0 0.0
        %1028 = vmatpush1.msra.mxu0 0.0
        %1029 = vmatprep.subr.mxu0 0.0
        %1030 = vmatpush1.msra.mxu0 0.0
        %1031 = vmatprep.subr.mxu0 0.0
        %1032 = vmatpush1.msra.mxu0 0.0
        %1033 = vmatprep.subr.mxu0 0.0
        %1034 = vmatpush1.msra.mxu0 0.0
        %1035 = vmatprep.subr.mxu0 0.0
        %1036 = vmatpush1.msra.mxu0 0.0
        %1037 = vmatprep.subr.mxu0 0.0
        %1038 = vmatpush1.msra.mxu0 0.0
        %1039 = vmatprep.subr.mxu0 0.0
        %1040 = vmatpush1.msra.mxu0 0.0
        %1041 = vmatprep.subr.mxu0 0.0
        %1042 = vmatpush1.msra.mxu0 0.0
        %1043 = vmatprep.subr.mxu0 0.0
        %1044 = vmatpush1.msra.mxu0 0.0
        %1045 = vmatprep.subr.mxu0 0.0
        %1046 = vmatpush1.msra.mxu0 0.0
        %1047 = vmatprep.subr.mxu0 0.0
        %1048 = vmatpush1.msra.mxu0 0.0
        %1049 = vmatprep.mubr.f32.mxu0 0.0
        %1050 = vmatmul.mubr.f32.gmra.mrb[0].mxu0 %v842
        %v1051 = vpop.f32.mrb[0].mxu0
        %v1052 = vadd.f32 %v766, %v1051
        %v1053 = vpop.f32.mrb[0].mxu0
        %1054 = vmatprep.mubr.f32.mxu0 0.0
        %1055 = vmatmul.mubr.f32.gmra.mrb[0].mxu0 %v845
        %v1056 = vpop.f32.mrb[0].mxu0
        %v1057 = vadd.f32 %v766, %v1056
        %v1058 = vpop.f32.mrb[0].mxu0
        %1059 = vmatprep.mubr.f32.mxu0 0.0
        %1060 = vmatmul.mubr.f32.gmra.mrb[0].mxu0 %v848
        %v1061 = vpop.f32.mrb[0].mxu0
        %v1062 = vadd.f32 %v766, %v1061
        %v1063 = vpop.f32.mrb[0].mxu0
        %1064 = vmatprep.mubr.f32.mxu0 0.0
        %1065 = vmatmul.mubr.f32.gmra.mrb[0].mxu0 %v851
        %v1066 = vpop.f32.mrb[0].mxu0
        %v1067 = vadd.f32 %v766, %v1066
        %v1068 = vpop.f32.mrb[0].mxu0
        %1069 = vmatprep.mubr.f32.mxu0 0.0
        %1070 = vmatmul.mubr.f32.gmra.mrb[0].mxu0 %v854
        %v1071 = vpop.f32.mrb[0].mxu0
        %v1072 = vadd.f32 %v766, %v1071
        %v1073 = vpop.f32.mrb[0].mxu0
        %1074 = vmatprep.mubr.f32.mxu0 0.0
        %1075 = vmatmul.mubr.f32.gmra.mrb[0].mxu0 %v857
        %v1076 = vpop.f32.mrb[0].mxu0
        %v1077 = vadd.f32 %v766, %v1076
        %v1078 = vpop.f32.mrb[0].mxu0
        %1079 = vmatprep.mubr.f32.mxu0 0.0
        %1080 = vmatmul.mubr.f32.gmra.mrb[0].mxu0 %v860
        %v1081 = vpop.f32.mrb[0].mxu0
        %v1082 = vadd.f32 %v766, %v1081
        %v1083 = vpop.f32.mrb[0].mxu0
        %1084 = vmatprep.mubr.f32.mxu0 0.0
        %1085 = vmatmul.mubr.f32.gmra.mrb[0].mxu0 %v863
        %v1086 = vpop.f32.mrb[0].mxu0
        %v1087 = vadd.f32 %v766, %v1086
        %v1088 = vpop.f32.mrb[0].mxu0
        %1089 = vmatprep.mubr.f32.mxu0 0.0
        %1090 = vmatmul.mubr.f32.gmra.mrb[0].mxu0 %v866
        %v1091 = vpop.f32.mrb[0].mxu0
        %v1092 = vadd.f32 %v766, %v1091
        %v1093 = vpop.f32.mrb[0].mxu0
        %1094 = vmatprep.mubr.f32.mxu0 0.0
        %1095 = vmatmul.mubr.f32.gmra.mrb[0].mxu0 %v869
        %v1096 = vpop.f32.mrb[0].mxu0
        %v1097 = vadd.f32 %v766, %v1096
        %v1098 = vpop.f32.mrb[0].mxu0
        %1099 = vmatprep.mubr.f32.mxu0 0.0
        %1100 = vmatmul.mubr.f32.gmra.mrb[0].mxu0 %v872
        %v1101 = vpop.f32.mrb[0].mxu0
        %v1102 = vadd.f32 %v766, %v1101
        %v1103 = vpop.f32.mrb[0].mxu0
        %1104 = vmatprep.mubr.f32.mxu0 0.0
        %1105 = vmatmul.mubr.f32.gmra.mrb[0].mxu0 %v875
        %v1106 = vpop.f32.mrb[0].mxu0
        %v1107 = vadd.f32 %v766, %v1106
        %v1108 = vpop.f32.mrb[0].mxu0
        %1109 = vmatprep.mubr.f32.mxu0 0.0
        %1110 = vmatmul.mubr.f32.gmra.mrb[0].mxu0 %v878
        %v1111 = vpop.f32.mrb[0].mxu0
        %v1112 = vadd.f32 %v766, %v1111
        %v1113 = vpop.f32.mrb[0].mxu0
        %1114 = vmatprep.mubr.f32.mxu0 0.0
        %1115 = vmatmul.mubr.f32.gmra.mrb[0].mxu0 %v881
        %v1116 = vpop.f32.mrb[0].mxu0
        %v1117 = vadd.f32 %v766, %v1116
        %v1118 = vpop.f32.mrb[0].mxu0
        %1119 = vmatprep.mubr.f32.mxu0 0.0
        %1120 = vmatmul.mubr.f32.gmra.mrb[0].mxu0 %v884
        %v1121 = vpop.f32.mrb[0].mxu0
        %v1122 = vadd.f32 %v766, %v1121
        %v1123 = vpop.f32.mrb[0].mxu0
        %1124 = vmatprep.mubr.f32.mxu0 0.0
        %1125 = vmatmul.mubr.f32.gmra.mrb[0].mxu0 %v887
        %v1126 = vpop.f32.mrb[0].mxu0
        %v1127 = vadd.f32 %v766, %v1126
        %v1128 = vpop.f32.mrb[0].mxu0
        %1129 = vmatprep.mubr.f32.mxu0 0.0
        %1130 = vmatmul.mubr.f32.gmra.mrb[0].mxu0 %v890
        %v1131 = vpop.f32.mrb[0].mxu0
        %v1132 = vadd.f32 %v766, %v1131
        %v1133 = vpop.f32.mrb[0].mxu0
        %1134 = vmatprep.mubr.f32.mxu0 0.0
        %1135 = vmatmul.mubr.f32.gmra.mrb[0].mxu0 %v893
        %v1136 = vpop.f32.mrb[0].mxu0
        %v1137 = vadd.f32 %v766, %v1136
        %v1138 = vpop.f32.mrb[0].mxu0
        %1139 = vmatprep.mubr.f32.mxu0 0.0
        %1140 = vmatmul.mubr.f32.gmra.mrb[0].mxu0 %v896
        %v1141 = vpop.f32.mrb[0].mxu0
        %v1142 = vadd.f32 %v766, %v1141
        %v1143 = vpop.f32.mrb[0].mxu0
        %1144 = vmatprep.mubr.f32.mxu0 0.0
        %1145 = vmatmul.mubr.f32.gmra.mrb[0].mxu0 %v899
        %v1146 = vpop.f32.mrb[0].mxu0
        %v1147 = vadd.f32 %v766, %v1146
        %v1148 = vpop.f32.mrb[0].mxu0
        %1149 = vmatprep.mubr.f32.mxu0 0.0
        %1150 = vmatmul.mubr.f32.gmra.mrb[0].mxu0 %v902
        %v1151 = vpop.f32.mrb[0].mxu0
        %v1152 = vadd.f32 %v766, %v1151
        %v1153 = vpop.f32.mrb[0].mxu0
        %1154 = vmatprep.mubr.f32.mxu0 0.0
        %1155 = vmatmul.mubr.f32.gmra.mrb[0].mxu0 %v905
        %v1156 = vpop.f32.mrb[0].mxu0
        %v1157 = vadd.f32 %v766, %v1156
        %v1158 = vpop.f32.mrb[0].mxu0
        %1159 = vmatprep.mubr.f32.mxu0 0.0
        %1160 = vmatmul.mubr.f32.gmra.mrb[0].mxu0 %v908
        %v1161 = vpop.f32.mrb[0].mxu0
        %v1162 = vadd.f32 %v766, %v1161
        %v1163 = vpop.f32.mrb[0].mxu0
        %1164 = vmatprep.mubr.f32.mxu0 0.0
        %1165 = vmatmul.mubr.f32.gmra.mrb[0].mxu0 %v911
        %v1166 = vpop.f32.mrb[0].mxu0
        %v1167 = vadd.f32 %v766, %v1166
        %v1168 = vpop.f32.mrb[0].mxu0
        %1169 = vmatprep.mubr.f32.mxu0 0.0
        %1170 = vmatmul.mubr.f32.gmra.mrb[0].mxu0 %v914
        %v1171 = vpop.f32.mrb[0].mxu0
        %v1172 = vadd.f32 %v766, %v1171
        %v1173 = vpop.f32.mrb[0].mxu0
        %1174 = vmatprep.mubr.f32.mxu0 0.0
        %1175 = vmatmul.mubr.f32.gmra.mrb[0].mxu0 %v917
        %v1176 = vpop.f32.mrb[0].mxu0
        %v1177 = vadd.f32 %v766, %v1176
        %v1178 = vpop.f32.mrb[0].mxu0
        %1179 = vmatprep.mubr.f32.mxu0 0.0
        %1180 = vmatmul.mubr.f32.gmra.mrb[0].mxu0 %v920
        %v1181 = vpop.f32.mrb[0].mxu0
        %v1182 = vadd.f32 %v766, %v1181
        %v1183 = vpop.f32.mrb[0].mxu0
        %1184 = vmatprep.mubr.f32.mxu0 0.0
        %1185 = vmatmul.mubr.f32.gmra.mrb[0].mxu0 %v923
        %v1186 = vpop.f32.mrb[0].mxu0
        %v1187 = vadd.f32 %v766, %v1186
        %v1188 = vpop.f32.mrb[0].mxu0
        %1189 = vmatprep.mubr.f32.mxu0 0.0
        %1190 = vmatmul.mubr.f32.gmra.mrb[0].mxu0 %v926
        %v1191 = vpop.f32.mrb[0].mxu0
        %v1192 = vadd.f32 %v766, %v1191
        %v1193 = vpop.f32.mrb[0].mxu0
        %1194 = vmatprep.mubr.f32.mxu0 0.0
        %1195 = vmatmul.mubr.f32.gmra.mrb[0].mxu0 %v929
        %v1196 = vpop.f32.mrb[0].mxu0
        %v1197 = vadd.f32 %v766, %v1196
        %v1198 = vpop.f32.mrb[0].mxu0
        %1199 = vmatprep.mubr.f32.mxu0 0.0
        %1200 = vmatmul.mubr.f32.gmra.mrb[0].mxu0 %v932
        %v1201 = vpop.f32.mrb[0].mxu0
        %v1202 = vadd.f32 %v766, %v1201
        %v1203 = vpop.f32.mrb[0].mxu0
        %1204 = vmatprep.mubr.f32.mxu0 0.0
        %1205 = vmatmul.mubr.f32.gmra.mrb[0].mxu0 %v935
        %v1206 = vpop.f32.mrb[0].mxu0
        %v1207 = vadd.f32 %v766, %v1206
        %v1208 = vpop.f32.mrb[0].mxu0
        %1209 = vmatprep.mubr.f32.mxu0 0.0
        %1210 = vmatmul.mubr.f32.gmra.mrb[0].mxu0 %v938
        %v1211 = vpop.f32.mrb[0].mxu0
        %v1212 = vadd.f32 %v766, %v1211
        %v1213 = vpop.f32.mrb[0].mxu0
        %1214 = vmatprep.mubr.f32.mxu0 0.0
        %1215 = vmatmul.mubr.f32.gmra.mrb[0].mxu0 %v941
        %v1216 = vpop.f32.mrb[0].mxu0
        %v1217 = vadd.f32 %v766, %v1216
        %v1218 = vpop.f32.mrb[0].mxu0
        %1219 = vmatprep.mubr.f32.mxu0 0.0
        %1220 = vmatmul.mubr.f32.gmra.mrb[0].mxu0 %v944
        %v1221 = vpop.f32.mrb[0].mxu0
        %v1222 = vadd.f32 %v766, %v1221
        %v1223 = vpop.f32.mrb[0].mxu0
        %1224 = vmatprep.mubr.f32.mxu0 0.0
        %1225 = vmatmul.mubr.f32.gmra.mrb[0].mxu0 %v947
        %v1226 = vpop.f32.mrb[0].mxu0
        %v1227 = vadd.f32 %v766, %v1226
        %v1228 = vpop.f32.mrb[0].mxu0
        %1229 = vmatprep.mubr.f32.mxu0 0.0
        %1230 = vmatmul.mubr.f32.gmra.mrb[0].mxu0 %v950
        %v1231 = vpop.f32.mrb[0].mxu0
        %v1232 = vadd.f32 %v766, %v1231
        %v1233 = vpop.f32.mrb[0].mxu0
        %1234 = vmatprep.mubr.f32.mxu0 0.0
        %1235 = vmatmul.mubr.f32.gmra.mrb[0].mxu0 %v953
        %v1236 = vpop.f32.mrb[0].mxu0
        %v1237 = vadd.f32 %v766, %v1236
        %v1238 = vpop.f32.mrb[0].mxu0
        %1239 = vmatprep.mubr.f32.mxu0 0.0
        %1240 = vmatmul.mubr.f32.gmra.mrb[0].mxu0 %v956
        %v1241 = vpop.f32.mrb[0].mxu0
        %v1242 = vadd.f32 %v766, %v1241
        %v1243 = vpop.f32.mrb[0].mxu0
        %1244 = vmatprep.mubr.f32.mxu0 0.0
        %1245 = vmatmul.mubr.f32.gmra.mrb[0].mxu0 %v959
        %v1246 = vpop.f32.mrb[0].mxu0
        %v1247 = vadd.f32 %v766, %v1246
        %v1248 = vpop.f32.mrb[0].mxu0
        %1249 = vmatprep.mubr.f32.mxu0 0.0
        %1250 = vmatmul.mubr.f32.gmra.mrb[0].mxu0 %v962
        %v1251 = vpop.f32.mrb[0].mxu0
        %v1252 = vadd.f32 %v766, %v1251
        %v1253 = vpop.f32.mrb[0].mxu0
        %1254 = vmatprep.mubr.f32.mxu0 0.0
        %1255 = vmatmul.mubr.f32.gmra.mrb[0].mxu0 %v965
        %v1256 = vpop.f32.mrb[0].mxu0
        %v1257 = vadd.f32 %v766, %v1256
        %v1258 = vpop.f32.mrb[0].mxu0
        %1259 = vmatprep.mubr.f32.mxu0 0.0
        %1260 = vmatmul.mubr.f32.gmra.mrb[0].mxu0 %v968
        %v1261 = vpop.f32.mrb[0].mxu0
        %v1262 = vadd.f32 %v766, %v1261
        %v1263 = vpop.f32.mrb[0].mxu0
        %1264 = vmatprep.mubr.f32.mxu0 0.0
        %1265 = vmatmul.mubr.f32.gmra.mrb[0].mxu0 %v971
        %v1266 = vpop.f32.mrb[0].mxu0
        %v1267 = vadd.f32 %v766, %v1266
        %v1268 = vpop.f32.mrb[0].mxu0
        %1269 = vmatprep.mubr.f32.mxu0 0.0
        %1270 = vmatmul.mubr.f32.gmra.mrb[0].mxu0 %v974
        %v1271 = vpop.f32.mrb[0].mxu0
        %v1272 = vadd.f32 %v766, %v1271
        %v1273 = vpop.f32.mrb[0].mxu0
        %1274 = vmatprep.mubr.f32.mxu0 0.0
        %1275 = vmatmul.mubr.f32.gmra.mrb[0].mxu0 %v977
        %v1276 = vpop.f32.mrb[0].mxu0
        %v1277 = vadd.f32 %v766, %v1276
        %v1278 = vpop.f32.mrb[0].mxu0
        %1279 = vmatprep.mubr.f32.mxu0 0.0
        %1280 = vmatmul.mubr.f32.gmra.mrb[0].mxu0 %v980
        %v1281 = vpop.f32.mrb[0].mxu0
        %v1282 = vadd.f32 %v766, %v1281
        %v1283 = vpop.f32.mrb[0].mxu0
        %1284 = vmatprep.mubr.f32.mxu0 0.0
        %1285 = vmatmul.mubr.f32.gmra.mrb[0].mxu0 %v983
        %v1286 = vpop.f32.mrb[0].mxu0
        %v1287 = vadd.f32 %v766, %v1286
        %v1288 = vpop.f32.mrb[0].mxu0
        %1289 = vdwg.mxu0
        %v1290 = vmax.f32 %v1052, 0.0
        %v1291 = vmax.f32 %v1057, 0.0
        %v1292 = vmax.f32 %v1062, 0.0
        %v1293 = vmax.f32 %v1067, 0.0
        %v1294 = vmax.f32 %v1072, 0.0
        %v1295 = vmax.f32 %v1077, 0.0
        %v1296 = vmax.f32 %v1082, 0.0
        %v1297 = vmax.f32 %v1087, 0.0
        %v1298 = vmax.f32 %v1092, 0.0
        %v1299 = vmax.f32 %v1097, 0.0
        %v1300 = vmax.f32 %v1102, 0.0
        %v1301 = vmax.f32 %v1107, 0.0
        %v1302 = vmax.f32 %v1112, 0.0
        %v1303 = vmax.f32 %v1117, 0.0
        %v1304 = vmax.f32 %v1122, 0.0
        %v1305 = vmax.f32 %v1127, 0.0
        %v1306 = vmax.f32 %v1132, 0.0
        %v1307 = vmax.f32 %v1137, 0.0
        %v1308 = vmax.f32 %v1142, 0.0
        %v1309 = vmax.f32 %v1147, 0.0
        %v1310 = vmax.f32 %v1152, 0.0
        %v1311 = vmax.f32 %v1157, 0.0
        %v1312 = vmax.f32 %v1162, 0.0
        %v1313 = vmax.f32 %v1167, 0.0
        %v1314 = vmax.f32 %v1172, 0.0
        %v1315 = vmax.f32 %v1177, 0.0
        %v1316 = vmax.f32 %v1182, 0.0
        %v1317 = vmax.f32 %v1187, 0.0
        %v1318 = vmax.f32 %v1192, 0.0
        %v1319 = vmax.f32 %v1197, 0.0
        %v1320 = vmax.f32 %v1202, 0.0
        %v1321 = vmax.f32 %v1207, 0.0
        %v1322 = vmax.f32 %v1212, 0.0
        %v1323 = vmax.f32 %v1217, 0.0
        %v1324 = vmax.f32 %v1222, 0.0
        %v1325 = vmax.f32 %v1227, 0.0
        %v1326 = vmax.f32 %v1232, 0.0
        %v1327 = vmax.f32 %v1237, 0.0
        %v1328 = vmax.f32 %v1242, 0.0
        %v1329 = vmax.f32 %v1247, 0.0
        %v1330 = vmax.f32 %v1252, 0.0
        %v1331 = vmax.f32 %v1257, 0.0
        %v1332 = vmax.f32 %v1262, 0.0
        %v1333 = vmax.f32 %v1267, 0.0
        %v1334 = vmax.f32 %v1272, 0.0
        %v1335 = vmax.f32 %v1277, 0.0
        %v1336 = vmax.f32 %v1282, 0.0
        %v1337 = vmax.f32 %v1287, 0.0
        %1339 = vset.pattern.permute.xlu0 0
        %1340 = vperm.xlu0 %1339, %v500
        %v1341 = vpop.permute.xlu0 %1340
        %1344 = vset.pattern.permute.xlu0 0
        %1345 = vperm.xlu0 %1344, %v501
        %v1346 = vpop.permute.xlu0 %1345
        %1349 = vset.pattern.permute.xlu0 0
        %1350 = vperm.xlu0 %1349, %v502
        %v1351 = vpop.permute.xlu0 %1350
        %1354 = vset.pattern.permute.xlu0 0
        %1355 = vperm.xlu0 %1354, %v503
        %v1356 = vpop.permute.xlu0 %1355
        %1359 = vset.pattern.permute.xlu0 0
        %1360 = vperm.xlu0 %1359, %v504
        %v1361 = vpop.permute.xlu0 %1360
        %1364 = vset.pattern.permute.xlu0 0
        %1365 = vperm.xlu0 %1364, %v505
        %v1366 = vpop.permute.xlu0 %1365
        %1369 = vset.pattern.permute.xlu0 0
        %1370 = vperm.xlu0 %1369, %v506
        %v1371 = vpop.permute.xlu0 %1370
        %1374 = vset.pattern.permute.xlu0 0
        %1375 = vperm.xlu0 %1374, %v507
        %v1376 = vpop.permute.xlu0 %1375
        %1379 = vset.pattern.permute.xlu0 0
        %1380 = vperm.xlu0 %1379, %v508
        %v1381 = vpop.permute.xlu0 %1380
        %1384 = vset.pattern.permute.xlu0 0
        %1385 = vperm.xlu0 %1384, %v509
        %v1386 = vpop.permute.xlu0 %1385
        %1389 = vset.pattern.permute.xlu0 0
        %1390 = vperm.xlu0 %1389, %v510
        %v1391 = vpop.permute.xlu0 %1390
        %1394 = vset.pattern.permute.xlu0 0
        %1395 = vperm.xlu0 %1394, %v511
        %v1396 = vpop.permute.xlu0 %1395
        %1399 = vset.pattern.permute.xlu0 0
        %1400 = vperm.xlu0 %1399, %v512
        %v1401 = vpop.permute.xlu0 %1400
        %1404 = vset.pattern.permute.xlu0 0
        %1405 = vperm.xlu0 %1404, %v513
        %v1406 = vpop.permute.xlu0 %1405
        %1409 = vset.pattern.permute.xlu0 0
        %1410 = vperm.xlu0 %1409, %v514
        %v1411 = vpop.permute.xlu0 %1410
        %1414 = vset.pattern.permute.xlu0 0
        %1415 = vperm.xlu0 %1414, %v515
        %v1416 = vpop.permute.xlu0 %1415
        %1419 = vset.pattern.permute.xlu0 0
        %1420 = vperm.xlu0 %1419, %v516
        %v1421 = vpop.permute.xlu0 %1420
        %1424 = vset.pattern.permute.xlu0 0
        %1425 = vperm.xlu0 %1424, %v517
        %v1426 = vpop.permute.xlu0 %1425
        %1429 = vset.pattern.permute.xlu0 0
        %1430 = vperm.xlu0 %1429, %v518
        %v1431 = vpop.permute.xlu0 %1430
        %1434 = vset.pattern.permute.xlu0 0
        %1435 = vperm.xlu0 %1434, %v519
        %v1436 = vpop.permute.xlu0 %1435
        %1439 = vset.pattern.permute.xlu0 0
        %1440 = vperm.xlu0 %1439, %v520
        %v1441 = vpop.permute.xlu0 %1440
        %1444 = vset.pattern.permute.xlu0 0
        %1445 = vperm.xlu0 %1444, %v521
        %v1446 = vpop.permute.xlu0 %1445
        %1449 = vset.pattern.permute.xlu0 0
        %1450 = vperm.xlu0 %1449, %v522
        %v1451 = vpop.permute.xlu0 %1450
        %1454 = vset.pattern.permute.xlu0 0
        %1455 = vperm.xlu0 %1454, %v523
        %v1456 = vpop.permute.xlu0 %1455
        %1459 = vset.pattern.permute.xlu0 0
        %1460 = vperm.xlu0 %1459, %v524
        %v1461 = vpop.permute.xlu0 %1460
        %1464 = vset.pattern.permute.xlu0 0
        %1465 = vperm.xlu0 %1464, %v525
        %v1466 = vpop.permute.xlu0 %1465
        %1469 = vset.pattern.permute.xlu0 0
        %1470 = vperm.xlu0 %1469, %v526
        %v1471 = vpop.permute.xlu0 %1470
        %1474 = vset.pattern.permute.xlu0 0
        %1475 = vperm.xlu0 %1474, %v527
        %v1476 = vpop.permute.xlu0 %1475
        %1479 = vset.pattern.permute.xlu0 0
        %1480 = vperm.xlu0 %1479, %v528
        %v1481 = vpop.permute.xlu0 %1480
        %1484 = vset.pattern.permute.xlu0 0
        %1485 = vperm.xlu0 %1484, %v529
        %v1486 = vpop.permute.xlu0 %1485
        %1489 = vset.pattern.permute.xlu0 0
        %1490 = vperm.xlu0 %1489, %v530
        %v1491 = vpop.permute.xlu0 %1490
        %1494 = vset.pattern.permute.xlu0 0
        %1495 = vperm.xlu0 %1494, %v531
        %v1496 = vpop.permute.xlu0 %1495
        %1499 = vset.pattern.permute.xlu0 0
        %1500 = vperm.xlu0 %1499, %v532
        %v1501 = vpop.permute.xlu0 %1500
        %1504 = vset.pattern.permute.xlu0 0
        %1505 = vperm.xlu0 %1504, %v533
        %v1506 = vpop.permute.xlu0 %1505
        %1509 = vset.pattern.permute.xlu0 0
        %1510 = vperm.xlu0 %1509, %v534
        %v1511 = vpop.permute.xlu0 %1510
        %1514 = vset.pattern.permute.xlu0 0
        %1515 = vperm.xlu0 %1514, %v535
        %v1516 = vpop.permute.xlu0 %1515
        %1519 = vset.pattern.permute.xlu0 0
        %1520 = vperm.xlu0 %1519, %v536
        %v1521 = vpop.permute.xlu0 %1520
        %1524 = vset.pattern.permute.xlu0 0
        %1525 = vperm.xlu0 %1524, %v537
        %v1526 = vpop.permute.xlu0 %1525
        %1529 = vset.pattern.permute.xlu0 0
        %1530 = vperm.xlu0 %1529, %v538
        %v1531 = vpop.permute.xlu0 %1530
        %1534 = vset.pattern.permute.xlu0 0
        %1535 = vperm.xlu0 %1534, %v539
        %v1536 = vpop.permute.xlu0 %1535
        %1539 = vset.pattern.permute.xlu0 0
        %1540 = vperm.xlu0 %1539, %v540
        %v1541 = vpop.permute.xlu0 %1540
        %1544 = vset.pattern.permute.xlu0 0
        %1545 = vperm.xlu0 %1544, %v541
        %v1546 = vpop.permute.xlu0 %1545
        %1549 = vset.pattern.permute.xlu0 0
        %1550 = vperm.xlu0 %1549, %v542
        %v1551 = vpop.permute.xlu0 %1550
        %1554 = vset.pattern.permute.xlu0 0
        %1555 = vperm.xlu0 %1554, %v543
        %v1556 = vpop.permute.xlu0 %1555
        %1559 = vset.pattern.permute.xlu0 0
        %1560 = vperm.xlu0 %1559, %v544
        %v1561 = vpop.permute.xlu0 %1560
        %1564 = vset.pattern.permute.xlu0 0
        %1565 = vperm.xlu0 %1564, %v545
        %v1566 = vpop.permute.xlu0 %1565
        %1569 = vset.pattern.permute.xlu0 0
        %1570 = vperm.xlu0 %1569, %v546
        %v1571 = vpop.permute.xlu0 %1570
        %1574 = vset.pattern.permute.xlu0 0
        %1575 = vperm.xlu0 %1574, %v547
        %v1576 = vpop.permute.xlu0 %1575
        %v1578 = vmul.f32 %v1290, %v1341
        %v1579 = vmul.f32 %v1291, %v1346
        %v1580 = vmul.f32 %v1292, %v1351
        %v1581 = vmul.f32 %v1293, %v1356
        %v1582 = vmul.f32 %v1294, %v1361
        %v1583 = vmul.f32 %v1295, %v1366
        %v1584 = vmul.f32 %v1296, %v1371
        %v1585 = vmul.f32 %v1297, %v1376
        %v1586 = vmul.f32 %v1298, %v1381
        %v1587 = vmul.f32 %v1299, %v1386
        %v1588 = vmul.f32 %v1300, %v1391
        %v1589 = vmul.f32 %v1301, %v1396
        %v1590 = vmul.f32 %v1302, %v1401
        %v1591 = vmul.f32 %v1303, %v1406
        %v1592 = vmul.f32 %v1304, %v1411
        %v1593 = vmul.f32 %v1305, %v1416
        %v1594 = vmul.f32 %v1306, %v1421
        %v1595 = vmul.f32 %v1307, %v1426
        %v1596 = vmul.f32 %v1308, %v1431
        %v1597 = vmul.f32 %v1309, %v1436
        %v1598 = vmul.f32 %v1310, %v1441
        %v1599 = vmul.f32 %v1311, %v1446
        %v1600 = vmul.f32 %v1312, %v1451
        %v1601 = vmul.f32 %v1313, %v1456
        %v1602 = vmul.f32 %v1314, %v1461
        %v1603 = vmul.f32 %v1315, %v1466
        %v1604 = vmul.f32 %v1316, %v1471
        %v1605 = vmul.f32 %v1317, %v1476
        %v1606 = vmul.f32 %v1318, %v1481
        %v1607 = vmul.f32 %v1319, %v1486
        %v1608 = vmul.f32 %v1320, %v1491
        %v1609 = vmul.f32 %v1321, %v1496
        %v1610 = vmul.f32 %v1322, %v1501
        %v1611 = vmul.f32 %v1323, %v1506
        %v1612 = vmul.f32 %v1324, %v1511
        %v1613 = vmul.f32 %v1325, %v1516
        %v1614 = vmul.f32 %v1326, %v1521
        %v1615 = vmul.f32 %v1327, %v1526
        %v1616 = vmul.f32 %v1328, %v1531
        %v1617 = vmul.f32 %v1329, %v1536
        %v1618 = vmul.f32 %v1330, %v1541
        %v1619 = vmul.f32 %v1331, %v1546
        %v1620 = vmul.f32 %v1332, %v1551
        %v1621 = vmul.f32 %v1333, %v1556
        %v1622 = vmul.f32 %v1334, %v1561
        %v1623 = vmul.f32 %v1335, %v1566
        %v1624 = vmul.f32 %v1336, %v1571
        %v1625 = vmul.f32 %v1337, %v1576
        %v1626 = vpack.c.bf16 %v1579, %v1578
        %v1627 = vpack.c.bf16 %v1581, %v1580
        %v1628 = vpack.c.bf16 %v1583, %v1582
        %v1629 = vpack.c.bf16 %v1585, %v1584
        %v1630 = vpack.c.bf16 %v1587, %v1586
        %v1631 = vpack.c.bf16 %v1589, %v1588
        %v1632 = vpack.c.bf16 %v1591, %v1590
        %v1633 = vpack.c.bf16 %v1593, %v1592
        %v1634 = vpack.c.bf16 %v1595, %v1594
        %v1635 = vpack.c.bf16 %v1597, %v1596
        %v1636 = vpack.c.bf16 %v1599, %v1598
        %v1637 = vpack.c.bf16 %v1601, %v1600
        %v1638 = vpack.c.bf16 %v1603, %v1602
        %v1639 = vpack.c.bf16 %v1605, %v1604
        %v1640 = vpack.c.bf16 %v1607, %v1606
        %v1641 = vpack.c.bf16 %v1609, %v1608
        %v1642 = vpack.c.bf16 %v1611, %v1610
        %v1643 = vpack.c.bf16 %v1613, %v1612
        %v1644 = vpack.c.bf16 %v1615, %v1614
        %v1645 = vpack.c.bf16 %v1617, %v1616
        %v1646 = vpack.c.bf16 %v1619, %v1618
        %v1647 = vpack.c.bf16 %v1621, %v1620
        %v1648 = vpack.c.bf16 %v1623, %v1622
        %v1649 = vpack.c.bf16 %v1625, %v1624
        %1674 = vrot.lane.b32.xlu0 %v1626, 32
        %v1675 = vpop.permute.xlu0 %1674
        %1676 = vrot.lane.b32.xlu0 %v1627, 32
        %v1677 = vpop.permute.xlu0 %1676
        %1678 = vrot.lane.b32.xlu0 %v1628, 32
        %v1679 = vpop.permute.xlu0 %1678
        %1680 = vrot.lane.b32.xlu0 %v1629, 32
        %v1681 = vpop.permute.xlu0 %1680
        %1682 = vrot.lane.b32.xlu0 %v1630, 32
        %v1683 = vpop.permute.xlu0 %1682
        %1684 = vrot.lane.b32.xlu0 %v1631, 32
        %v1685 = vpop.permute.xlu0 %1684
        %1686 = vrot.lane.b32.xlu0 %v1632, 32
        %v1687 = vpop.permute.xlu0 %1686
        %1688 = vrot.lane.b32.xlu0 %v1633, 32
        %v1689 = vpop.permute.xlu0 %1688
        %1690 = vrot.lane.b32.xlu0 %v1634, 32
        %v1691 = vpop.permute.xlu0 %1690
        %1692 = vrot.lane.b32.xlu0 %v1635, 32
        %v1693 = vpop.permute.xlu0 %1692
        %1694 = vrot.lane.b32.xlu0 %v1636, 32
        %v1695 = vpop.permute.xlu0 %1694
        %1696 = vrot.lane.b32.xlu0 %v1637, 32
        %v1697 = vpop.permute.xlu0 %1696
        %1698 = vrot.lane.b32.xlu0 %v1638, 32
        %v1699 = vpop.permute.xlu0 %1698
        %1700 = vrot.lane.b32.xlu0 %v1639, 32
        %v1701 = vpop.permute.xlu0 %1700
        %1702 = vrot.lane.b32.xlu0 %v1640, 32
        %v1703 = vpop.permute.xlu0 %1702
        %1704 = vrot.lane.b32.xlu0 %v1641, 32
        %v1705 = vpop.permute.xlu0 %1704
        %1706 = vrot.lane.b32.xlu0 %v1642, 32
        %v1707 = vpop.permute.xlu0 %1706
        %1708 = vrot.lane.b32.xlu0 %v1643, 32
        %v1709 = vpop.permute.xlu0 %1708
        %1710 = vrot.lane.b32.xlu0 %v1644, 32
        %v1711 = vpop.permute.xlu0 %1710
        %1712 = vrot.lane.b32.xlu0 %v1645, 32
        %v1713 = vpop.permute.xlu0 %1712
        %1714 = vrot.lane.b32.xlu0 %v1646, 32
        %v1715 = vpop.permute.xlu0 %1714
        %1716 = vrot.lane.b32.xlu0 %v1647, 32
        %v1717 = vpop.permute.xlu0 %1716
        %1718 = vrot.lane.b32.xlu0 %v1648, 32
        %v1719 = vpop.permute.xlu0 %1718
        %1720 = vrot.lane.b32.xlu0 %v1649, 32
        %v1721 = vpop.permute.xlu0 %1720
        %vm1746 = vcmask 523520
        %1747 = vst.msk [vmem:[#allocation2 + $0x10] sm:$0xff] %vm1746, %v1675
        %1748 = vst.msk [vmem:[#allocation2 + $0x18] sm:$0xff] %vm1746, %v1677
        %1749 = vst.msk [vmem:[#allocation2 + $0x20] sm:$0xff] %vm1746, %v1679
        %1750 = vst.msk [vmem:[#allocation2 + $0x28] sm:$0xff] %vm1746, %v1681
        %1751 = vst.msk [vmem:[#allocation2 + $0x30] sm:$0xff] %vm1746, %v1683
        %1752 = vst.msk [vmem:[#allocation2 + $0x38] sm:$0xff] %vm1746, %v1685
        %1753 = vst.msk [vmem:[#allocation2 + $0x40] sm:$0xff] %vm1746, %v1687
        %1754 = vst.msk [vmem:[#allocation2 + $0x48] sm:$0xff] %vm1746, %v1689
        %1755 = vst.msk [vmem:[#allocation2 + $0x50] sm:$0xff] %vm1746, %v1691
        %1756 = vst.msk [vmem:[#allocation2 + $0x58] sm:$0xff] %vm1746, %v1693
        %1757 = vst.msk [vmem:[#allocation2 + $0x60] sm:$0xff] %vm1746, %v1695
        %1758 = vst.msk [vmem:[#allocation2 + $0x68] sm:$0xff] %vm1746, %v1697
        %1759 = vst.msk [vmem:[#allocation2 + $0x70] sm:$0xff] %vm1746, %v1699
        %1760 = vst.msk [vmem:[#allocation2 + $0x78] sm:$0xff] %vm1746, %v1701
        %1761 = vst.msk [vmem:[#allocation2 + $0x80] sm:$0xff] %vm1746, %v1703
        %1762 = vst.msk [vmem:[#allocation2 + $0x88] sm:$0xff] %vm1746, %v1705
        %1763 = vst.msk [vmem:[#allocation2 + $0x90] sm:$0xff] %vm1746, %v1707
        %1764 = vst.msk [vmem:[#allocation2 + $0x98] sm:$0xff] %vm1746, %v1709
        %1765 = vst.msk [vmem:[#allocation2 + $0xa0] sm:$0xff] %vm1746, %v1711
        %1766 = vst.msk [vmem:[#allocation2 + $0xa8] sm:$0xff] %vm1746, %v1713
        %1767 = vst.msk [vmem:[#allocation2 + $0xb0] sm:$0xff] %vm1746, %v1715
        %1768 = vst.msk [vmem:[#allocation2 + $0xb8] sm:$0xff] %vm1746, %v1717
        %1769 = vst.msk [vmem:[#allocation2 + $0xc0] sm:$0xff] %vm1746, %v1719
        %1770 = vst.msk [vmem:[#allocation2 + $0xc8] sm:$0xff] %vm1746, %v1721
        %v1771 = vld [vmem:[#allocation9] sm:$0xf]
        %v1772 = vld [vmem:[#allocation9 + $0x4] sm:$0xf]
        %v1773 = vld [vmem:[#allocation9 + $0x8] sm:$0xf]
        %v1774 = vld [vmem:[#allocation9 + $0xc] sm:$0xf]
        %v1775 = vld [vmem:[#allocation9 + $0x10] sm:$0xf]
        %v1776 = vld [vmem:[#allocation9 + $0x14] sm:$0xf]
        %v1778 = vrot.slane %v738, 4
        %1779 = vrot.lane.b32.xlu0 %v1778, 96
        %v1780 = vpop.permute.xlu0 %1779
        %1782 = vrot.lane.b32.xlu0 %v761, 64
        %v1783 = vpop.permute.xlu0 %1782
        %v1785 = vrot.slane %v784, 4
        %1786 = vrot.lane.b32.xlu0 %v1785, 32
        %v1787 = vpop.permute.xlu0 %1786
        %vm1788 = vcmask 1043456
        %v1791 = vsel %vm1788, %v714, %v1780
        %v1795 = vsel %vm1788, %v1783, %v1787
        %v1803 = vunpack.c.l.b16 %v1771
        %v1804 = vunpack.c.l.b16 %v1772
        %v1805 = vunpack.c.l.b16 %v1773
        %v1806 = vunpack.c.l.b16 %v1774
        %v1807 = vunpack.c.l.b16 %v1775
        %v1808 = vunpack.c.l.b16 %v1776
        %v1809 = vpack.c.b16 %v1804, %v1803
        %v1810 = vpack.c.b16 %v1806, %v1805
        %v1811 = vpack.c.b16 %v1808, %v1807
        %v1813 = vsel %vm840, %v1809, 0
        %v1816 = vsel %vm840, %v1810, 0
        %v1819 = vsel %vm840, %v1811, 0
        %1821 = vmatprep.subr.bf16.mxu0 0
        %1822 = vmatpush1.bf16.msra.mxu0 %v1791
        %1823 = vmatprep.subr.bf16.mxu0 0
        %1824 = vmatpush1.bf16.msra.mxu0 %v1795
        %1825 = vmatprep.subr.bf16.mxu0 0
        %1826 = vmatpush1.bf16.msra.mxu0 0
        %1827 = vmatprep.subr.bf16.mxu0 0
        %1828 = vmatpush1.bf16.msra.mxu0 0
        %1829 = vmatprep.subr.bf16.mxu0 0
        %1830 = vmatpush1.bf16.msra.mxu0 0
        %1831 = vmatprep.subr.bf16.mxu0 0
        %1832 = vmatpush1.bf16.msra.mxu0 0
        %1833 = vmatprep.subr.bf16.mxu0 0
        %1834 = vmatpush1.bf16.msra.mxu0 0
        %1835 = vmatprep.subr.bf16.mxu0 0
        %1836 = vmatpush1.bf16.msra.mxu0 0
        %1837 = vmatprep.subr.bf16.mxu0 0
        %1838 = vmatpush1.bf16.msra.mxu0 0
        %1839 = vmatprep.subr.bf16.mxu0 0
        %1840 = vmatpush1.bf16.msra.mxu0 0
        %1841 = vmatprep.subr.bf16.mxu0 0
        %1842 = vmatpush1.bf16.msra.mxu0 0
        %1843 = vmatprep.subr.bf16.mxu0 0
        %1844 = vmatpush1.bf16.msra.mxu0 0
        %1845 = vmatprep.subr.bf16.mxu0 0
        %1846 = vmatpush1.bf16.msra.mxu0 0
        %1847 = vmatprep.subr.bf16.mxu0 0
        %1848 = vmatpush1.bf16.msra.mxu0 0
        %1849 = vmatprep.subr.bf16.mxu0 0
        %1850 = vmatpush1.bf16.msra.mxu0 0
        %1851 = vmatprep.subr.bf16.mxu0 0
        %1852 = vmatpush1.bf16.msra.mxu0 0
        %1853 = vmatprep.mubr.bf16.mxu0 0
        %1854 = vmatmul.mubr.bf16.gmra.mrb[0].mxu0 %v1813
        %v1855 = vpop.f32.mrb[0].mxu0
        %v1856 = vadd.f32 0.0, %v1855
        %v1857 = vpop.f32.mrb[0].mxu0
        %v1858 = vpop.f32.mrb[0].mxu0
        %v1859 = vadd.f32 0.0, %v1858
        %v1860 = vpop.f32.mrb[0].mxu0
        %1861 = vmatprep.mubr.bf16.mxu0 0
        %1862 = vmatmul.mubr.bf16.gmra.mrb[0].mxu0 %v1816
        %v1863 = vpop.f32.mrb[0].mxu0
        %v1864 = vadd.f32 0.0, %v1863
        %v1865 = vpop.f32.mrb[0].mxu0
        %v1866 = vpop.f32.mrb[0].mxu0
        %v1867 = vadd.f32 0.0, %v1866
        %v1868 = vpop.f32.mrb[0].mxu0
        %1869 = vmatprep.mubr.bf16.mxu0 0
        %1870 = vmatmul.mubr.bf16.gmra.mrb[0].mxu0 %v1819
        %v1871 = vpop.f32.mrb[0].mxu0
        %v1872 = vadd.f32 0.0, %v1871
        %v1873 = vpop.f32.mrb[0].mxu0
        %v1874 = vpop.f32.mrb[0].mxu0
        %v1875 = vadd.f32 0.0, %v1874
        %v1876 = vpop.f32.mrb[0].mxu0
        %1877 = vdwg.mxu0
        %v1878 = vpack.c.bf16 %v1859, %v1856
        %v1879 = vpack.c.bf16 %v1867, %v1864
        %v1880 = vpack.c.bf16 %v1875, %v1872
        %1881 = vst.msk [vmem:[#allocation2 + $0x10] sm:$0xff] %vm840, %v1878
        %1882 = vst.msk [vmem:[#allocation2 + $0x18] sm:$0xff] %vm840, %v1879
        %1883 = vst.msk [vmem:[#allocation2 + $0x20] sm:$0xff] %vm840, %v1880
        %v1885 = vrot.slane %v714, 4
        %1886 = vrot.lane.b32.xlu0 %v738, 96
        %v1887 = vpop.permute.xlu0 %1886
        %v1888 = vrot.slane %v761, 4
        %1889 = vrot.lane.b32.xlu0 %v1888, 64
        %v1890 = vpop.permute.xlu0 %1889
        %1891 = vrot.lane.b32.xlu0 %v784, 32
        %v1892 = vpop.permute.xlu0 %1891
        %v1895 = vsel %vm1788, %v1885, %v1887
        %v1899 = vsel %vm1788, %v1890, %v1892
        %1901 = vmatprep.subr.bf16.mxu0 0
        %1902 = vmatpush1.bf16.msra.mxu0 %v1895
        %1903 = vmatprep.subr.bf16.mxu0 0
        %1904 = vmatpush1.bf16.msra.mxu0 %v1899
        %1905 = vmatprep.subr.bf16.mxu0 0
        %1906 = vmatpush1.bf16.msra.mxu0 0
        %1907 = vmatprep.subr.bf16.mxu0 0
        %1908 = vmatpush1.bf16.msra.mxu0 0
        %1909 = vmatprep.subr.bf16.mxu0 0
        %1910 = vmatpush1.bf16.msra.mxu0 0
        %1911 = vmatprep.subr.bf16.mxu0 0
        %1912 = vmatpush1.bf16.msra.mxu0 0
        %1913 = vmatprep.subr.bf16.mxu0 0
        %1914 = vmatpush1.bf16.msra.mxu0 0
        %1915 = vmatprep.subr.bf16.mxu0 0
        %1916 = vmatpush1.bf16.msra.mxu0 0
        %1917 = vmatprep.subr.bf16.mxu0 0
        %1918 = vmatpush1.bf16.msra.mxu0 0
        %1919 = vmatprep.subr.bf16.mxu0 0
        %1920 = vmatpush1.bf16.msra.mxu0 0
        %1921 = vmatprep.subr.bf16.mxu0 0
        %1922 = vmatpush1.bf16.msra.mxu0 0
        %1923 = vmatprep.subr.bf16.mxu0 0
        %1924 = vmatpush1.bf16.msra.mxu0 0
        %1925 = vmatprep.subr.bf16.mxu0 0
        %1926 = vmatpush1.bf16.msra.mxu0 0
        %1927 = vmatprep.subr.bf16.mxu0 0
        %1928 = vmatpush1.bf16.msra.mxu0 0
        %1929 = vmatprep.subr.bf16.mxu0 0
        %1930 = vmatpush1.bf16.msra.mxu0 0
        %1931 = vmatprep.subr.bf16.mxu0 0
        %1932 = vmatpush1.bf16.msra.mxu0 0
        %1933 = vmatprep.mubr.bf16.mxu0 0
        %1934 = vmatmul.mubr.bf16.gmra.mrb[0].mxu0 %v1813
        %v1935 = vpop.f32.mrb[0].mxu0
        %v1936 = vadd.f32 0.0, %v1935
        %v1937 = vpop.f32.mrb[0].mxu0
        %v1938 = vpop.f32.mrb[0].mxu0
        %v1939 = vadd.f32 0.0, %v1938
        %v1940 = vpop.f32.mrb[0].mxu0
        %1941 = vmatprep.mubr.bf16.mxu0 0
        %1942 = vmatmul.mubr.bf16.gmra.mrb[0].mxu0 %v1816
        %v1943 = vpop.f32.mrb[0].mxu0
        %v1944 = vadd.f32 0.0, %v1943
        %v1945 = vpop.f32.mrb[0].mxu0
        %v1946 = vpop.f32.mrb[0].mxu0
        %v1947 = vadd.f32 0.0, %v1946
        %v1948 = vpop.f32.mrb[0].mxu0
        %1949 = vmatprep.mubr.bf16.mxu0 0
        %1950 = vmatmul.mubr.bf16.gmra.mrb[0].mxu0 %v1819
        %v1951 = vpop.f32.mrb[0].mxu0
        %v1952 = vadd.f32 0.0, %v1951
        %v1953 = vpop.f32.mrb[0].mxu0
        %v1954 = vpop.f32.mrb[0].mxu0
        %v1955 = vadd.f32 0.0, %v1954
        %v1956 = vpop.f32.mrb[0].mxu0
        %1957 = vdwg.mxu0
        %v1958 = vpack.c.bf16 %v1939, %v1936
        %v1959 = vpack.c.bf16 %v1947, %v1944
        %v1960 = vpack.c.bf16 %v1955, %v1952
        %1961 = vst.msk [vmem:[#allocation2 + $0x28] sm:$0xff] %vm840, %v1958
        %1962 = vst.msk [vmem:[#allocation2 + $0x30] sm:$0xff] %vm840, %v1959
        %1963 = vst.msk [vmem:[#allocation2 + $0x38] sm:$0xff] %vm840, %v1960
        %v1965 = vrot.slane %v739, 4
        %1966 = vrot.lane.b32.xlu0 %v1965, 96
        %v1967 = vpop.permute.xlu0 %1966
        %1969 = vrot.lane.b32.xlu0 %v762, 64
        %v1970 = vpop.permute.xlu0 %1969
        %v1972 = vrot.slane %v785, 4
        %1973 = vrot.lane.b32.xlu0 %v1972, 32
        %v1974 = vpop.permute.xlu0 %1973
        %v1977 = vsel %vm1788, %v715, %v1967
        %v1981 = vsel %vm1788, %v1970, %v1974
        %1983 = vmatprep.subr.bf16.mxu0 0
        %1984 = vmatpush1.bf16.msra.mxu0 %v1977
        %1985 = vmatprep.subr.bf16.mxu0 0
        %1986 = vmatpush1.bf16.msra.mxu0 %v1981
        %1987 = vmatprep.subr.bf16.mxu0 0
        %1988 = vmatpush1.bf16.msra.mxu0 0
        %1989 = vmatprep.subr.bf16.mxu0 0
        %1990 = vmatpush1.bf16.msra.mxu0 0
        %1991 = vmatprep.subr.bf16.mxu0 0
        %1992 = vmatpush1.bf16.msra.mxu0 0
        %1993 = vmatprep.subr.bf16.mxu0 0
        %1994 = vmatpush1.bf16.msra.mxu0 0
        %1995 = vmatprep.subr.bf16.mxu0 0
        %1996 = vmatpush1.bf16.msra.mxu0 0
        %1997 = vmatprep.subr.bf16.mxu0 0
        %1998 = vmatpush1.bf16.msra.mxu0 0
        %1999 = vmatprep.subr.bf16.mxu0 0
        %2000 = vmatpush1.bf16.msra.mxu0 0
        %2001 = vmatprep.subr.bf16.mxu0 0
        %2002 = vmatpush1.bf16.msra.mxu0 0
        %2003 = vmatprep.subr.bf16.mxu0 0
        %2004 = vmatpush1.bf16.msra.mxu0 0
        %2005 = vmatprep.subr.bf16.mxu0 0
        %2006 = vmatpush1.bf16.msra.mxu0 0
        %2007 = vmatprep.subr.bf16.mxu0 0
        %2008 = vmatpush1.bf16.msra.mxu0 0
        %2009 = vmatprep.subr.bf16.mxu0 0
        %2010 = vmatpush1.bf16.msra.mxu0 0
        %2011 = vmatprep.subr.bf16.mxu0 0
        %2012 = vmatpush1.bf16.msra.mxu0 0
        %2013 = vmatprep.subr.bf16.mxu0 0
        %2014 = vmatpush1.bf16.msra.mxu0 0
        %2015 = vmatprep.mubr.bf16.mxu0 0
        %2016 = vmatmul.mubr.bf16.gmra.mrb[0].mxu0 %v1813
        %v2017 = vpop.f32.mrb[0].mxu0
        %v2018 = vadd.f32 0.0, %v2017
        %v2019 = vpop.f32.mrb[0].mxu0
        %v2020 = vpop.f32.mrb[0].mxu0
        %v2021 = vadd.f32 0.0, %v2020
        %v2022 = vpop.f32.mrb[0].mxu0
        %2023 = vmatprep.mubr.bf16.mxu0 0
        %2024 = vmatmul.mubr.bf16.gmra.mrb[0].mxu0 %v1816
        %v2025 = vpop.f32.mrb[0].mxu0
        %v2026 = vadd.f32 0.0, %v2025
        %v2027 = vpop.f32.mrb[0].mxu0
        %v2028 = vpop.f32.mrb[0].mxu0
        %v2029 = vadd.f32 0.0, %v2028
        %v2030 = vpop.f32.mrb[0].mxu0
        %2031 = vmatprep.mubr.bf16.mxu0 0
        %2032 = vmatmul.mubr.bf16.gmra.mrb[0].mxu0 %v1819
        %v2033 = vpop.f32.mrb[0].mxu0
        %v2034 = vadd.f32 0.0, %v2033
        %v2035 = vpop.f32.mrb[0].mxu0
        %v2036 = vpop.f32.mrb[0].mxu0
        %v2037 = vadd.f32 0.0, %v2036
        %v2038 = vpop.f32.mrb[0].mxu0
        %2039 = vdwg.mxu0
        %v2040 = vpack.c.bf16 %v2021, %v2018
        %v2041 = vpack.c.bf16 %v2029, %v2026
        %v2042 = vpack.c.bf16 %v2037, %v2034
        %2043 = vst.msk [vmem:[#allocation2 + $0x40] sm:$0xff] %vm840, %v2040
        %2044 = vst.msk [vmem:[#allocation2 + $0x48] sm:$0xff] %vm840, %v2041
        %2045 = vst.msk [vmem:[#allocation2 + $0x50] sm:$0xff] %vm840, %v2042
        %v2047 = vrot.slane %v715, 4
        %2048 = vrot.lane.b32.xlu0 %v739, 96
        %v2049 = vpop.permute.xlu0 %2048
        %v2050 = vrot.slane %v762, 4
        %2051 = vrot.lane.b32.xlu0 %v2050, 64
        %v2052 = vpop.permute.xlu0 %2051
        %2053 = vrot.lane.b32.xlu0 %v785, 32
        %v2054 = vpop.permute.xlu0 %2053
        %v2057 = vsel %vm1788, %v2047, %v2049
        %v2061 = vsel %vm1788, %v2052, %v2054
        %2063 = vmatprep.subr.bf16.mxu0 0
        %2064 = vmatpush1.bf16.msra.mxu0 %v2057
        %2065 = vmatprep.subr.bf16.mxu0 0
        %2066 = vmatpush1.bf16.msra.mxu0 %v2061
        %2067 = vmatprep.subr.bf16.mxu0 0
        %2068 = vmatpush1.bf16.msra.mxu0 0
        %2069 = vmatprep.subr.bf16.mxu0 0
        %2070 = vmatpush1.bf16.msra.mxu0 0
        %2071 = vmatprep.subr.bf16.mxu0 0
        %2072 = vmatpush1.bf16.msra.mxu0 0
        %2073 = vmatprep.subr.bf16.mxu0 0
        %2074 = vmatpush1.bf16.msra.mxu0 0
        %2075 = vmatprep.subr.bf16.mxu0 0
        %2076 = vmatpush1.bf16.msra.mxu0 0
        %2077 = vmatprep.subr.bf16.mxu0 0
        %2078 = vmatpush1.bf16.msra.mxu0 0
        %2079 = vmatprep.subr.bf16.mxu0 0
        %2080 = vmatpush1.bf16.msra.mxu0 0
        %2081 = vmatprep.subr.bf16.mxu0 0
        %2082 = vmatpush1.bf16.msra.mxu0 0
        %2083 = vmatprep.subr.bf16.mxu0 0
        %2084 = vmatpush1.bf16.msra.mxu0 0
        %2085 = vmatprep.subr.bf16.mxu0 0
        %2086 = vmatpush1.bf16.msra.mxu0 0
        %2087 = vmatprep.subr.bf16.mxu0 0
        %2088 = vmatpush1.bf16.msra.mxu0 0
        %2089 = vmatprep.subr.bf16.mxu0 0
        %2090 = vmatpush1.bf16.msra.mxu0 0
        %2091 = vmatprep.subr.bf16.mxu0 0
        %2092 = vmatpush1.bf16.msra.mxu0 0
        %2093 = vmatprep.subr.bf16.mxu0 0
        %2094 = vmatpush1.bf16.msra.mxu0 0
        %2095 = vmatprep.mubr.bf16.mxu0 0
        %2096 = vmatmul.mubr.bf16.gmra.mrb[0].mxu0 %v1813
        %v2097 = vpop.f32.mrb[0].mxu0
        %v2098 = vadd.f32 0.0, %v2097
        %v2099 = vpop.f32.mrb[0].mxu0
        %v2100 = vpop.f32.mrb[0].mxu0
        %v2101 = vadd.f32 0.0, %v2100
        %v2102 = vpop.f32.mrb[0].mxu0
        %2103 = vmatprep.mubr.bf16.mxu0 0
        %2104 = vmatmul.mubr.bf16.gmra.mrb[0].mxu0 %v1816
        %v2105 = vpop.f32.mrb[0].mxu0
        %v2106 = vadd.f32 0.0, %v2105
        %v2107 = vpop.f32.mrb[0].mxu0
        %v2108 = vpop.f32.mrb[0].mxu0
        %v2109 = vadd.f32 0.0, %v2108
        %v2110 = vpop.f32.mrb[0].mxu0
        %2111 = vmatprep.mubr.bf16.mxu0 0
        %2112 = vmatmul.mubr.bf16.gmra.mrb[0].mxu0 %v1819
        %v2113 = vpop.f32.mrb[0].mxu0
        %v2114 = vadd.f32 0.0, %v2113
        %v2115 = vpop.f32.mrb[0].mxu0
        %v2116 = vpop.f32.mrb[0].mxu0
        %v2117 = vadd.f32 0.0, %v2116
        %v2118 = vpop.f32.mrb[0].mxu0
        %2119 = vdwg.mxu0
        %v2120 = vpack.c.bf16 %v2101, %v2098
        %v2121 = vpack.c.bf16 %v2109, %v2106
        %v2122 = vpack.c.bf16 %v2117, %v2114
        %2123 = vst.msk [vmem:[#allocation2 + $0x58] sm:$0xff] %vm840, %v2120
        %2124 = vst.msk [vmem:[#allocation2 + $0x60] sm:$0xff] %vm840, %v2121
        %2125 = vst.msk [vmem:[#allocation2 + $0x68] sm:$0xff] %vm840, %v2122
        %v2127 = vrot.slane %v740, 4
        %2128 = vrot.lane.b32.xlu0 %v2127, 96
        %v2129 = vpop.permute.xlu0 %2128
        %2131 = vrot.lane.b32.xlu0 %v763, 64
        %v2132 = vpop.permute.xlu0 %2131
        %v2134 = vrot.slane %v786, 4
        %2135 = vrot.lane.b32.xlu0 %v2134, 32
        %v2136 = vpop.permute.xlu0 %2135
        %v2139 = vsel %vm1788, %v716, %v2129
        %v2143 = vsel %vm1788, %v2132, %v2136
        %2145 = vmatprep.subr.bf16.mxu0 0
        %2146 = vmatpush1.bf16.msra.mxu0 %v2139
        %2147 = vmatprep.subr.bf16.mxu0 0
        %2148 = vmatpush1.bf16.msra.mxu0 %v2143
        %2149 = vmatprep.subr.bf16.mxu0 0
        %2150 = vmatpush1.bf16.msra.mxu0 0
        %2151 = vmatprep.subr.bf16.mxu0 0
        %2152 = vmatpush1.bf16.msra.mxu0 0
        %2153 = vmatprep.subr.bf16.mxu0 0
        %2154 = vmatpush1.bf16.msra.mxu0 0
        %2155 = vmatprep.subr.bf16.mxu0 0
        %2156 = vmatpush1.bf16.msra.mxu0 0
        %2157 = vmatprep.subr.bf16.mxu0 0
        %2158 = vmatpush1.bf16.msra.mxu0 0
        %2159 = vmatprep.subr.bf16.mxu0 0
        %2160 = vmatpush1.bf16.msra.mxu0 0
        %2161 = vmatprep.subr.bf16.mxu0 0
        %2162 = vmatpush1.bf16.msra.mxu0 0
        %2163 = vmatprep.subr.bf16.mxu0 0
        %2164 = vmatpush1.bf16.msra.mxu0 0
        %2165 = vmatprep.subr.bf16.mxu0 0
        %2166 = vmatpush1.bf16.msra.mxu0 0
        %2167 = vmatprep.subr.bf16.mxu0 0
        %2168 = vmatpush1.bf16.msra.mxu0 0
        %2169 = vmatprep.subr.bf16.mxu0 0
        %2170 = vmatpush1.bf16.msra.mxu0 0
        %2171 = vmatprep.subr.bf16.mxu0 0
        %2172 = vmatpush1.bf16.msra.mxu0 0
        %2173 = vmatprep.subr.bf16.mxu0 0
        %2174 = vmatpush1.bf16.msra.mxu0 0
        %2175 = vmatprep.subr.bf16.mxu0 0
        %2176 = vmatpush1.bf16.msra.mxu0 0
        %2177 = vmatprep.mubr.bf16.mxu0 0
        %2178 = vmatmul.mubr.bf16.gmra.mrb[0].mxu0 %v1813
        %v2179 = vpop.f32.mrb[0].mxu0
        %v2180 = vadd.f32 0.0, %v2179
        %v2181 = vpop.f32.mrb[0].mxu0
        %v2182 = vpop.f32.mrb[0].mxu0
        %v2183 = vadd.f32 0.0, %v2182
        %v2184 = vpop.f32.mrb[0].mxu0
        %2185 = vmatprep.mubr.bf16.mxu0 0
        %2186 = vmatmul.mubr.bf16.gmra.mrb[0].mxu0 %v1816
        %v2187 = vpop.f32.mrb[0].mxu0
        %v2188 = vadd.f32 0.0, %v2187
        %v2189 = vpop.f32.mrb[0].mxu0
        %v2190 = vpop.f32.mrb[0].mxu0
        %v2191 = vadd.f32 0.0, %v2190
        %v2192 = vpop.f32.mrb[0].mxu0
        %2193 = vmatprep.mubr.bf16.mxu0 0
        %2194 = vmatmul.mubr.bf16.gmra.mrb[0].mxu0 %v1819
        %v2195 = vpop.f32.mrb[0].mxu0
        %v2196 = vadd.f32 0.0, %v2195
        %v2197 = vpop.f32.mrb[0].mxu0
        %v2198 = vpop.f32.mrb[0].mxu0
        %v2199 = vadd.f32 0.0, %v2198
        %v2200 = vpop.f32.mrb[0].mxu0
        %2201 = vdwg.mxu0
        %v2202 = vpack.c.bf16 %v2183, %v2180
        %v2203 = vpack.c.bf16 %v2191, %v2188
        %v2204 = vpack.c.bf16 %v2199, %v2196
        %2205 = vst.msk [vmem:[#allocation2 + $0x70] sm:$0xff] %vm840, %v2202
        %2206 = vst.msk [vmem:[#allocation2 + $0x78] sm:$0xff] %vm840, %v2203
        %2207 = vst.msk [vmem:[#allocation2 + $0x80] sm:$0xff] %vm840, %v2204
        %v2209 = vrot.slane %v716, 4
        %2210 = vrot.lane.b32.xlu0 %v740, 96
        %v2211 = vpop.permute.xlu0 %2210
        %v2212 = vrot.slane %v763, 4
        %2213 = vrot.lane.b32.xlu0 %v2212, 64
        %v2214 = vpop.permute.xlu0 %2213
        %2215 = vrot.lane.b32.xlu0 %v786, 32
        %v2216 = vpop.permute.xlu0 %2215
        %v2219 = vsel %vm1788, %v2209, %v2211
        %v2223 = vsel %vm1788, %v2214, %v2216
        %2225 = vmatprep.subr.bf16.mxu0 0
        %2226 = vmatpush1.bf16.msra.mxu0 %v2219
        %2227 = vmatprep.subr.bf16.mxu0 0
        %2228 = vmatpush1.bf16.msra.mxu0 %v2223
        %2229 = vmatprep.subr.bf16.mxu0 0
        %2230 = vmatpush1.bf16.msra.mxu0 0
        %2231 = vmatprep.subr.bf16.mxu0 0
        %2232 = vmatpush1.bf16.msra.mxu0 0
        %2233 = vmatprep.subr.bf16.mxu0 0
        %2234 = vmatpush1.bf16.msra.mxu0 0
        %2235 = vmatprep.subr.bf16.mxu0 0
        %2236 = vmatpush1.bf16.msra.mxu0 0
        %2237 = vmatprep.subr.bf16.mxu0 0
        %2238 = vmatpush1.bf16.msra.mxu0 0
        %2239 = vmatprep.subr.bf16.mxu0 0
        %2240 = vmatpush1.bf16.msra.mxu0 0
        %2241 = vmatprep.subr.bf16.mxu0 0
        %2242 = vmatpush1.bf16.msra.mxu0 0
        %2243 = vmatprep.subr.bf16.mxu0 0
        %2244 = vmatpush1.bf16.msra.mxu0 0
        %2245 = vmatprep.subr.bf16.mxu0 0
        %2246 = vmatpush1.bf16.msra.mxu0 0
        %2247 = vmatprep.subr.bf16.mxu0 0
        %2248 = vmatpush1.bf16.msra.mxu0 0
        %2249 = vmatprep.subr.bf16.mxu0 0
        %2250 = vmatpush1.bf16.msra.mxu0 0
        %2251 = vmatprep.subr.bf16.mxu0 0
        %2252 = vmatpush1.bf16.msra.mxu0 0
        %2253 = vmatprep.subr.bf16.mxu0 0
        %2254 = vmatpush1.bf16.msra.mxu0 0
        %2255 = vmatprep.subr.bf16.mxu0 0
        %2256 = vmatpush1.bf16.msra.mxu0 0
        %2257 = vmatprep.mubr.bf16.mxu0 0
        %2258 = vmatmul.mubr.bf16.gmra.mrb[0].mxu0 %v1813
        %v2259 = vpop.f32.mrb[0].mxu0
        %v2260 = vadd.f32 0.0, %v2259
        %v2261 = vpop.f32.mrb[0].mxu0
        %v2262 = vpop.f32.mrb[0].mxu0
        %v2263 = vadd.f32 0.0, %v2262
        %v2264 = vpop.f32.mrb[0].mxu0
        %2265 = vmatprep.mubr.bf16.mxu0 0
        %2266 = vmatmul.mubr.bf16.gmra.mrb[0].mxu0 %v1816
        %v2267 = vpop.f32.mrb[0].mxu0
        %v2268 = vadd.f32 0.0, %v2267
        %v2269 = vpop.f32.mrb[0].mxu0
        %v2270 = vpop.f32.mrb[0].mxu0
        %v2271 = vadd.f32 0.0, %v2270
        %v2272 = vpop.f32.mrb[0].mxu0
        %2273 = vmatprep.mubr.bf16.mxu0 0
        %2274 = vmatmul.mubr.bf16.gmra.mrb[0].mxu0 %v1819
        %v2275 = vpop.f32.mrb[0].mxu0
        %v2276 = vadd.f32 0.0, %v2275
        %v2277 = vpop.f32.mrb[0].mxu0
        %v2278 = vpop.f32.mrb[0].mxu0
        %v2279 = vadd.f32 0.0, %v2278
        %v2280 = vpop.f32.mrb[0].mxu0
        %2281 = vdwg.mxu0
        %v2282 = vpack.c.bf16 %v2263, %v2260
        %v2283 = vpack.c.bf16 %v2271, %v2268
        %v2284 = vpack.c.bf16 %v2279, %v2276
        %2285 = vst.msk [vmem:[#allocation2 + $0x88] sm:$0xff] %vm840, %v2282
        %2286 = vst.msk [vmem:[#allocation2 + $0x90] sm:$0xff] %vm840, %v2283
        %2287 = vst.msk [vmem:[#allocation2 + $0x98] sm:$0xff] %vm840, %v2284
        %v2289 = vrot.slane %v741, 4
        %2290 = vrot.lane.b32.xlu0 %v2289, 96
        %v2291 = vpop.permute.xlu0 %2290
        %2293 = vrot.lane.b32.xlu0 %v764, 64
        %v2294 = vpop.permute.xlu0 %2293
        %v2296 = vrot.slane %v787, 4
        %2297 = vrot.lane.b32.xlu0 %v2296, 32
        %v2298 = vpop.permute.xlu0 %2297
        %v2301 = vsel %vm1788, %v717, %v2291
        %v2305 = vsel %vm1788, %v2294, %v2298
        %2307 = vmatprep.subr.bf16.mxu0 0
        %2308 = vmatpush1.bf16.msra.mxu0 %v2301
        %2309 = vmatprep.subr.bf16.mxu0 0
        %2310 = vmatpush1.bf16.msra.mxu0 %v2305
        %2311 = vmatprep.subr.bf16.mxu0 0
        %2312 = vmatpush1.bf16.msra.mxu0 0
        %2313 = vmatprep.subr.bf16.mxu0 0
        %2314 = vmatpush1.bf16.msra.mxu0 0
        %2315 = vmatprep.subr.bf16.mxu0 0
        %2316 = vmatpush1.bf16.msra.mxu0 0
        %2317 = vmatprep.subr.bf16.mxu0 0
        %2318 = vmatpush1.bf16.msra.mxu0 0
        %2319 = vmatprep.subr.bf16.mxu0 0
        %2320 = vmatpush1.bf16.msra.mxu0 0
        %2321 = vmatprep.subr.bf16.mxu0 0
        %2322 = vmatpush1.bf16.msra.mxu0 0
        %2323 = vmatprep.subr.bf16.mxu0 0
        %2324 = vmatpush1.bf16.msra.mxu0 0
        %2325 = vmatprep.subr.bf16.mxu0 0
        %2326 = vmatpush1.bf16.msra.mxu0 0
        %2327 = vmatprep.subr.bf16.mxu0 0
        %2328 = vmatpush1.bf16.msra.mxu0 0
        %2329 = vmatprep.subr.bf16.mxu0 0
        %2330 = vmatpush1.bf16.msra.mxu0 0
        %2331 = vmatprep.subr.bf16.mxu0 0
        %2332 = vmatpush1.bf16.msra.mxu0 0
        %2333 = vmatprep.subr.bf16.mxu0 0
        %2334 = vmatpush1.bf16.msra.mxu0 0
        %2335 = vmatprep.subr.bf16.mxu0 0
        %2336 = vmatpush1.bf16.msra.mxu0 0
        %2337 = vmatprep.subr.bf16.mxu0 0
        %2338 = vmatpush1.bf16.msra.mxu0 0
        %2339 = vmatprep.mubr.bf16.mxu0 0
        %2340 = vmatmul.mubr.bf16.gmra.mrb[0].mxu0 %v1813
        %v2341 = vpop.f32.mrb[0].mxu0
        %v2342 = vadd.f32 0.0, %v2341
        %v2343 = vpop.f32.mrb[0].mxu0
        %v2344 = vpop.f32.mrb[0].mxu0
        %v2345 = vadd.f32 0.0, %v2344
        %v2346 = vpop.f32.mrb[0].mxu0
        %2347 = vmatprep.mubr.bf16.mxu0 0
        %2348 = vmatmul.mubr.bf16.gmra.mrb[0].mxu0 %v1816
        %v2349 = vpop.f32.mrb[0].mxu0
        %v2350 = vadd.f32 0.0, %v2349
        %v2351 = vpop.f32.mrb[0].mxu0
        %v2352 = vpop.f32.mrb[0].mxu0
        %v2353 = vadd.f32 0.0, %v2352
        %v2354 = vpop.f32.mrb[0].mxu0
        %2355 = vmatprep.mubr.bf16.mxu0 0
        %2356 = vmatmul.mubr.bf16.gmra.mrb[0].mxu0 %v1819
        %v2357 = vpop.f32.mrb[0].mxu0
        %v2358 = vadd.f32 0.0, %v2357
        %v2359 = vpop.f32.mrb[0].mxu0
        %v2360 = vpop.f32.mrb[0].mxu0
        %v2361 = vadd.f32 0.0, %v2360
        %v2362 = vpop.f32.mrb[0].mxu0
        %2363 = vdwg.mxu0
        %v2364 = vpack.c.bf16 %v2345, %v2342
        %v2365 = vpack.c.bf16 %v2353, %v2350
        %v2366 = vpack.c.bf16 %v2361, %v2358
        %2367 = vst.msk [vmem:[#allocation2 + $0xa0] sm:$0xff] %vm840, %v2364
        %2368 = vst.msk [vmem:[#allocation2 + $0xa8] sm:$0xff] %vm840, %v2365
        %2369 = vst.msk [vmem:[#allocation2 + $0xb0] sm:$0xff] %vm840, %v2366
        %v2371 = vrot.slane %v717, 4
        %2372 = vrot.lane.b32.xlu0 %v741, 96
        %v2373 = vpop.permute.xlu0 %2372
        %v2374 = vrot.slane %v764, 4
        %2375 = vrot.lane.b32.xlu0 %v2374, 64
        %v2376 = vpop.permute.xlu0 %2375
        %2377 = vrot.lane.b32.xlu0 %v787, 32
        %v2378 = vpop.permute.xlu0 %2377
        %v2381 = vsel %vm1788, %v2371, %v2373
        %v2385 = vsel %vm1788, %v2376, %v2378
        %2387 = vmatprep.subr.bf16.mxu0 0
        %2388 = vmatpush1.bf16.msra.mxu0 %v2381
        %2389 = vmatprep.subr.bf16.mxu0 0
        %2390 = vmatpush1.bf16.msra.mxu0 %v2385
        %2391 = vmatprep.subr.bf16.mxu0 0
        %2392 = vmatpush1.bf16.msra.mxu0 0
        %2393 = vmatprep.subr.bf16.mxu0 0
        %2394 = vmatpush1.bf16.msra.mxu0 0
        %2395 = vmatprep.subr.bf16.mxu0 0
        %2396 = vmatpush1.bf16.msra.mxu0 0
        %2397 = vmatprep.subr.bf16.mxu0 0
        %2398 = vmatpush1.bf16.msra.mxu0 0
        %2399 = vmatprep.subr.bf16.mxu0 0
        %2400 = vmatpush1.bf16.msra.mxu0 0
        %2401 = vmatprep.subr.bf16.mxu0 0
        %2402 = vmatpush1.bf16.msra.mxu0 0
        %2403 = vmatprep.subr.bf16.mxu0 0
        %2404 = vmatpush1.bf16.msra.mxu0 0
        %2405 = vmatprep.subr.bf16.mxu0 0
        %2406 = vmatpush1.bf16.msra.mxu0 0
        %2407 = vmatprep.subr.bf16.mxu0 0
        %2408 = vmatpush1.bf16.msra.mxu0 0
        %2409 = vmatprep.subr.bf16.mxu0 0
        %2410 = vmatpush1.bf16.msra.mxu0 0
        %2411 = vmatprep.subr.bf16.mxu0 0
        %2412 = vmatpush1.bf16.msra.mxu0 0
        %2413 = vmatprep.subr.bf16.mxu0 0
        %2414 = vmatpush1.bf16.msra.mxu0 0
        %2415 = vmatprep.subr.bf16.mxu0 0
        %2416 = vmatpush1.bf16.msra.mxu0 0
        %2417 = vmatprep.subr.bf16.mxu0 0
        %2418 = vmatpush1.bf16.msra.mxu0 0
        %2419 = vmatprep.mubr.bf16.mxu0 0
        %2420 = vmatmul.mubr.bf16.gmra.mrb[0].mxu0 %v1813
        %v2421 = vpop.f32.mrb[0].mxu0
        %v2422 = vadd.f32 0.0, %v2421
        %v2423 = vpop.f32.mrb[0].mxu0
        %v2424 = vpop.f32.mrb[0].mxu0
        %v2425 = vadd.f32 0.0, %v2424
        %v2426 = vpop.f32.mrb[0].mxu0
        %2427 = vmatprep.mubr.bf16.mxu0 0
        %2428 = vmatmul.mubr.bf16.gmra.mrb[0].mxu0 %v1816
        %v2429 = vpop.f32.mrb[0].mxu0
        %v2430 = vadd.f32 0.0, %v2429
        %v2431 = vpop.f32.mrb[0].mxu0
        %v2432 = vpop.f32.mrb[0].mxu0
        %v2433 = vadd.f32 0.0, %v2432
        %v2434 = vpop.f32.mrb[0].mxu0
        %2435 = vmatprep.mubr.bf16.mxu0 0
        %2436 = vmatmul.mubr.bf16.gmra.mrb[0].mxu0 %v1819
        %v2437 = vpop.f32.mrb[0].mxu0
        %v2438 = vadd.f32 0.0, %v2437
        %v2439 = vpop.f32.mrb[0].mxu0
        %v2440 = vpop.f32.mrb[0].mxu0
        %v2441 = vadd.f32 0.0, %v2440
        %v2442 = vpop.f32.mrb[0].mxu0
        %2443 = vdwg.mxu0
        %v2444 = vpack.c.bf16 %v2425, %v2422
        %v2445 = vpack.c.bf16 %v2433, %v2430
        %v2446 = vpack.c.bf16 %v2441, %v2438
        %2447 = vst.msk [vmem:[#allocation2 + $0xb8] sm:$0xff] %vm840, %v2444
        %2448 = vst.msk [vmem:[#allocation2 + $0xc0] sm:$0xff] %vm840, %v2445
        %2449 = vst.msk [vmem:[#allocation2 + $0xc8] sm:$0xff] %vm840, %v2446
        %v2450 = vld [vmem:[#allocation2] sm:$0xf8]
        %v2451 = vld [vmem:[#allocation2 + $0x8] sm:$0xff]
        %v2452 = vld [vmem:[#allocation2 + $0x10] sm:$0xff]
        %v2453 = vld [vmem:[#allocation2 + $0x18] sm:$0xff]
        %v2454 = vld [vmem:[#allocation2 + $0x20] sm:$0xff]
        %v2455 = vld [vmem:[#allocation2 + $0x28] sm:$0xff]
        %v2456 = vld [vmem:[#allocation2 + $0x30] sm:$0xff]
        %v2457 = vld [vmem:[#allocation2 + $0x38] sm:$0xff]
        %v2458 = vld [vmem:[#allocation2 + $0x40] sm:$0xff]
        %v2459 = vld [vmem:[#allocation2 + $0x48] sm:$0xff]
        %v2460 = vld [vmem:[#allocation2 + $0x50] sm:$0xff]
        %v2461 = vld [vmem:[#allocation2 + $0x58] sm:$0xff]
        %v2462 = vld [vmem:[#allocation2 + $0x60] sm:$0xff]
        %v2463 = vld [vmem:[#allocation2 + $0x68] sm:$0xff]
        %v2464 = vld [vmem:[#allocation2 + $0x70] sm:$0xff]
        %v2465 = vld [vmem:[#allocation2 + $0x78] sm:$0xff]
        %v2466 = vld [vmem:[#allocation2 + $0x80] sm:$0xff]
        %v2467 = vld [vmem:[#allocation2 + $0x88] sm:$0xff]
        %v2468 = vld [vmem:[#allocation2 + $0x90] sm:$0xff]
        %v2469 = vld [vmem:[#allocation2 + $0x98] sm:$0xff]
        %v2470 = vld [vmem:[#allocation2 + $0xa0] sm:$0xff]
        %v2471 = vld [vmem:[#allocation2 + $0xa8] sm:$0xff]
        %v2472 = vld [vmem:[#allocation2 + $0xb0] sm:$0xff]
        %v2473 = vld [vmem:[#allocation2 + $0xb8] sm:$0xff]
        %v2474 = vld [vmem:[#allocation2 + $0xc0] sm:$0xf]
        %v2475 = vld [vmem:[#allocation2] sm:$0xf0]
        %v2476 = vld [vmem:[#allocation2 + $0xc0] sm:$0x1f]
        %vm2477 = vsmask.f32 7424
        %v2479 = vshrl.u32 %v2475, 16
        %v2481 = vshll.u32 %v2475, 16
        %v2483 = vrot.slane %v2481, 1
        %v2484 = vor.u32 %v2479, %v2483
        %v2486 = vshll.u32 %v2451, 16
        %v2488 = vrot.slane %v2486, 1
        %v2489 = vsel %vm2477, %v2484, %v2488
        %v2490 = vshrl.u32 %v2451, 16
        %v2492 = vor.u32 %v2490, %v2488
        %v2494 = vshll.u32 %v2452, 16
        %v2496 = vrot.slane %v2494, 1
        %v2497 = vsel %vm2477, %v2492, %v2496
        %v2498 = vshrl.u32 %v2452, 16
        %v2500 = vor.u32 %v2498, %v2496
        %v2502 = vshll.u32 %v2453, 16
        %v2504 = vrot.slane %v2502, 1
        %v2505 = vsel %vm2477, %v2500, %v2504
        %v2506 = vshrl.u32 %v2453, 16
        %v2508 = vor.u32 %v2506, %v2504
        %v2510 = vshll.u32 %v2454, 16
        %v2512 = vrot.slane %v2510, 1
        %v2513 = vsel %vm2477, %v2508, %v2512
        %v2514 = vshrl.u32 %v2454, 16
        %v2516 = vor.u32 %v2514, %v2512
        %v2518 = vshll.u32 %v2455, 16
        %v2520 = vrot.slane %v2518, 1
        %v2521 = vsel %vm2477, %v2516, %v2520
        %v2522 = vshrl.u32 %v2455, 16
        %v2524 = vor.u32 %v2522, %v2520
        %v2526 = vshll.u32 %v2456, 16
        %v2528 = vrot.slane %v2526, 1
        %v2529 = vsel %vm2477, %v2524, %v2528
        %v2530 = vshrl.u32 %v2456, 16
        %v2532 = vor.u32 %v2530, %v2528
        %v2534 = vshll.u32 %v2457, 16
        %v2536 = vrot.slane %v2534, 1
        %v2537 = vsel %vm2477, %v2532, %v2536
        %v2538 = vshrl.u32 %v2457, 16
        %v2540 = vor.u32 %v2538, %v2536
        %v2542 = vshll.u32 %v2458, 16
        %v2544 = vrot.slane %v2542, 1
        %v2545 = vsel %vm2477, %v2540, %v2544
        %v2546 = vshrl.u32 %v2458, 16
        %v2548 = vor.u32 %v2546, %v2544
        %v2550 = vshll.u32 %v2459, 16
        %v2552 = vrot.slane %v2550, 1
        %v2553 = vsel %vm2477, %v2548, %v2552
        %v2554 = vshrl.u32 %v2459, 16
        %v2556 = vor.u32 %v2554, %v2552
        %v2558 = vshll.u32 %v2460, 16
        %v2560 = vrot.slane %v2558, 1
        %v2561 = vsel %vm2477, %v2556, %v2560
        %v2562 = vshrl.u32 %v2460, 16
        %v2564 = vor.u32 %v2562, %v2560
        %v2566 = vshll.u32 %v2461, 16
        %v2568 = vrot.slane %v2566, 1
        %v2569 = vsel %vm2477, %v2564, %v2568
        %v2570 = vshrl.u32 %v2461, 16
        %v2572 = vor.u32 %v2570, %v2568
        %v2574 = vshll.u32 %v2462, 16
        %v2576 = vrot.slane %v2574, 1
        %v2577 = vsel %vm2477, %v2572, %v2576
        %v2578 = vshrl.u32 %v2462, 16
        %v2580 = vor.u32 %v2578, %v2576
        %v2582 = vshll.u32 %v2463, 16
        %v2584 = vrot.slane %v2582, 1
        %v2585 = vsel %vm2477, %v2580, %v2584
        %v2586 = vshrl.u32 %v2463, 16
        %v2588 = vor.u32 %v2586, %v2584
        %v2590 = vshll.u32 %v2464, 16
        %v2592 = vrot.slane %v2590, 1
        %v2593 = vsel %vm2477, %v2588, %v2592
        %v2594 = vshrl.u32 %v2464, 16
        %v2596 = vor.u32 %v2594, %v2592
        %v2598 = vshll.u32 %v2465, 16
        %v2600 = vrot.slane %v2598, 1
        %v2601 = vsel %vm2477, %v2596, %v2600
        %v2602 = vshrl.u32 %v2465, 16
        %v2604 = vor.u32 %v2602, %v2600
        %v2606 = vshll.u32 %v2466, 16
        %v2608 = vrot.slane %v2606, 1
        %v2609 = vsel %vm2477, %v2604, %v2608
        %v2610 = vshrl.u32 %v2466, 16
        %v2612 = vor.u32 %v2610, %v2608
        %v2614 = vshll.u32 %v2467, 16
        %v2616 = vrot.slane %v2614, 1
        %v2617 = vsel %vm2477, %v2612, %v2616
        %v2618 = vshrl.u32 %v2467, 16
        %v2620 = vor.u32 %v2618, %v2616
        %v2622 = vshll.u32 %v2468, 16
        %v2624 = vrot.slane %v2622, 1
        %v2625 = vsel %vm2477, %v2620, %v2624
        %v2626 = vshrl.u32 %v2468, 16
        %v2628 = vor.u32 %v2626, %v2624
        %v2630 = vshll.u32 %v2469, 16
        %v2632 = vrot.slane %v2630, 1
        %v2633 = vsel %vm2477, %v2628, %v2632
        %v2634 = vshrl.u32 %v2469, 16
        %v2636 = vor.u32 %v2634, %v2632
        %v2638 = vshll.u32 %v2470, 16
        %v2640 = vrot.slane %v2638, 1
        %v2641 = vsel %vm2477, %v2636, %v2640
        %v2642 = vshrl.u32 %v2470, 16
        %v2644 = vor.u32 %v2642, %v2640
        %v2646 = vshll.u32 %v2471, 16
        %v2648 = vrot.slane %v2646, 1
        %v2649 = vsel %vm2477, %v2644, %v2648
        %v2650 = vshrl.u32 %v2471, 16
        %v2652 = vor.u32 %v2650, %v2648
        %v2654 = vshll.u32 %v2472, 16
        %v2656 = vrot.slane %v2654, 1
        %v2657 = vsel %vm2477, %v2652, %v2656
        %v2658 = vshrl.u32 %v2472, 16
        %v2660 = vor.u32 %v2658, %v2656
        %v2662 = vshll.u32 %v2473, 16
        %v2664 = vrot.slane %v2662, 1
        %v2665 = vsel %vm2477, %v2660, %v2664
        %v2666 = vshrl.u32 %v2473, 16
        %v2668 = vor.u32 %v2666, %v2664
        %v2670 = vshll.u32 %v2474, 16
        %v2672 = vrot.slane %v2670, 1
        %v2673 = vsel %vm2477, %v2668, %v2672
        %v2674 = vshrl.u32 %v2474, 16
        %v2676 = vor.u32 %v2674, %v2672
        %2677 = vrot.lane.b32.xlu0 %v2489, 64
        %v2678 = vpop.permute.xlu0 %2677
        %2679 = vrot.lane.b32.xlu0 %v2497, 64
        %v2680 = vpop.permute.xlu0 %2679
        %2681 = vrot.lane.b32.xlu0 %v2505, 64
        %v2682 = vpop.permute.xlu0 %2681
        %2683 = vrot.lane.b32.xlu0 %v2513, 64
        %v2684 = vpop.permute.xlu0 %2683
        %2685 = vrot.lane.b32.xlu0 %v2521, 64
        %v2686 = vpop.permute.xlu0 %2685
        %2687 = vrot.lane.b32.xlu0 %v2529, 64
        %v2688 = vpop.permute.xlu0 %2687
        %2689 = vrot.lane.b32.xlu0 %v2537, 64
        %v2690 = vpop.permute.xlu0 %2689
        %2691 = vrot.lane.b32.xlu0 %v2545, 64
        %v2692 = vpop.permute.xlu0 %2691
        %2693 = vrot.lane.b32.xlu0 %v2553, 64
        %v2694 = vpop.permute.xlu0 %2693
        %2695 = vrot.lane.b32.xlu0 %v2561, 64
        %v2696 = vpop.permute.xlu0 %2695
        %2697 = vrot.lane.b32.xlu0 %v2569, 64
        %v2698 = vpop.permute.xlu0 %2697
        %2699 = vrot.lane.b32.xlu0 %v2577, 64
        %v2700 = vpop.permute.xlu0 %2699
        %2701 = vrot.lane.b32.xlu0 %v2585, 64
        %v2702 = vpop.permute.xlu0 %2701
        %2703 = vrot.lane.b32.xlu0 %v2593, 64
        %v2704 = vpop.permute.xlu0 %2703
        %2705 = vrot.lane.b32.xlu0 %v2601, 64
        %v2706 = vpop.permute.xlu0 %2705
        %2707 = vrot.lane.b32.xlu0 %v2609, 64
        %v2708 = vpop.permute.xlu0 %2707
        %2709 = vrot.lane.b32.xlu0 %v2617, 64
        %v2710 = vpop.permute.xlu0 %2709
        %2711 = vrot.lane.b32.xlu0 %v2625, 64
        %v2712 = vpop.permute.xlu0 %2711
        %2713 = vrot.lane.b32.xlu0 %v2633, 64
        %v2714 = vpop.permute.xlu0 %2713
        %2715 = vrot.lane.b32.xlu0 %v2641, 64
        %v2716 = vpop.permute.xlu0 %2715
        %2717 = vrot.lane.b32.xlu0 %v2649, 64
        %v2718 = vpop.permute.xlu0 %2717
        %2719 = vrot.lane.b32.xlu0 %v2657, 64
        %v2720 = vpop.permute.xlu0 %2719
        %2721 = vrot.lane.b32.xlu0 %v2665, 64
        %v2722 = vpop.permute.xlu0 %2721
        %2723 = vrot.lane.b32.xlu0 %v2673, 64
        %v2724 = vpop.permute.xlu0 %2723
        %2725 = vrot.lane.b32.xlu0 %v2676, 64
        %v2726 = vpop.permute.xlu0 %2725
        %vm2752 = vcmask 1046528
        %v2753 = vrot.slane %v2475, 1
        %v2754 = vrot.slane %v2451, 1
        %v2755 = vsel %vm2752, %v2753, %v2754
        %v2756 = vrot.slane %v2452, 1
        %v2757 = vsel %vm2752, %v2754, %v2756
        %v2758 = vrot.slane %v2453, 1
        %v2759 = vsel %vm2752, %v2756, %v2758
        %v2760 = vrot.slane %v2454, 1
        %v2761 = vsel %vm2752, %v2758, %v2760
        %v2762 = vrot.slane %v2455, 1
        %v2763 = vsel %vm2752, %v2760, %v2762
        %v2764 = vrot.slane %v2456, 1
        %v2765 = vsel %vm2752, %v2762, %v2764
        %v2766 = vrot.slane %v2457, 1
        %v2767 = vsel %vm2752, %v2764, %v2766
        %v2768 = vrot.slane %v2458, 1
        %v2769 = vsel %vm2752, %v2766, %v2768
        %v2770 = vrot.slane %v2459, 1
        %v2771 = vsel %vm2752, %v2768, %v2770
        %v2772 = vrot.slane %v2460, 1
        %v2773 = vsel %vm2752, %v2770, %v2772
        %v2774 = vrot.slane %v2461, 1
        %v2775 = vsel %vm2752, %v2772, %v2774
        %v2776 = vrot.slane %v2462, 1
        %v2777 = vsel %vm2752, %v2774, %v2776
        %v2778 = vrot.slane %v2463, 1
        %v2779 = vsel %vm2752, %v2776, %v2778
        %v2780 = vrot.slane %v2464, 1
        %v2781 = vsel %vm2752, %v2778, %v2780
        %v2782 = vrot.slane %v2465, 1
        %v2783 = vsel %vm2752, %v2780, %v2782
        %v2784 = vrot.slane %v2466, 1
        %v2785 = vsel %vm2752, %v2782, %v2784
        %v2786 = vrot.slane %v2467, 1
        %v2787 = vsel %vm2752, %v2784, %v2786
        %v2788 = vrot.slane %v2468, 1
        %v2789 = vsel %vm2752, %v2786, %v2788
        %v2790 = vrot.slane %v2469, 1
        %v2791 = vsel %vm2752, %v2788, %v2790
        %v2792 = vrot.slane %v2470, 1
        %v2793 = vsel %vm2752, %v2790, %v2792
        %v2794 = vrot.slane %v2471, 1
        %v2795 = vsel %vm2752, %v2792, %v2794
        %v2796 = vrot.slane %v2472, 1
        %v2797 = vsel %vm2752, %v2794, %v2796
        %v2798 = vrot.slane %v2473, 1
        %v2799 = vsel %vm2752, %v2796, %v2798
        %v2800 = vrot.slane %v2476, 1
        %v2801 = vsel %vm2752, %v2798, %v2800
        %v2804 = vsel %vm491, %v2450, %v2678
        %v2806 = vsel %vm491, %v2451, %v2680
        %v2808 = vsel %vm491, %v2452, %v2682
        %v2810 = vsel %vm491, %v2453, %v2684
        %v2812 = vsel %vm491, %v2454, %v2686
        %v2814 = vsel %vm491, %v2455, %v2688
        %v2816 = vsel %vm491, %v2456, %v2690
        %v2818 = vsel %vm491, %v2457, %v2692
        %v2820 = vsel %vm491, %v2458, %v2694
        %v2822 = vsel %vm491, %v2459, %v2696
        %v2824 = vsel %vm491, %v2460, %v2698
        %v2826 = vsel %vm491, %v2461, %v2700
        %v2828 = vsel %vm491, %v2462, %v2702
        %v2830 = vsel %vm491, %v2463, %v2704
        %v2832 = vsel %vm491, %v2464, %v2706
        %v2834 = vsel %vm491, %v2465, %v2708
        %v2836 = vsel %vm491, %v2466, %v2710
        %v2838 = vsel %vm491, %v2467, %v2712
        %v2840 = vsel %vm491, %v2468, %v2714
        %v2842 = vsel %vm491, %v2469, %v2716
        %v2844 = vsel %vm491, %v2470, %v2718
        %v2846 = vsel %vm491, %v2471, %v2720
        %v2848 = vsel %vm491, %v2472, %v2722
        %v2850 = vsel %vm491, %v2473, %v2724
        %v2852 = vsel %vm491, %v2474, %v2726
        %v2853 = vld [vmem:[#allocation13] sm:$0xf]
        %v2854 = vld [vmem:[#allocation13 + $0x4] sm:$0xf]
        %v2855 = vld [vmem:[#allocation13 + $0x8] sm:$0xf]
        %v2856 = vld [vmem:[#allocation13 + $0xc] sm:$0xf]
        %v2857 = vld [vmem:[#allocation13 + $0x10] sm:$0xf]
        %v2858 = vld [vmem:[#allocation13 + $0x14] sm:$0xf]
        %v2859 = vld [vmem:[#allocation13 + $0x18] sm:$0xf]
        %v2860 = vld [vmem:[#allocation13 + $0x1c] sm:$0xf]
        %v2861 = vld [vmem:[#allocation13 + $0x20] sm:$0xf]
        %v2862 = vld [vmem:[#allocation13 + $0x24] sm:$0xf]
        %v2863 = vld [vmem:[#allocation13 + $0x28] sm:$0xf]
        %v2864 = vld [vmem:[#allocation13 + $0x2c] sm:$0xf]
        %v2865 = vld [vmem:[#allocation13 + $0x30] sm:$0xf]
        %v2866 = vld [vmem:[#allocation13 + $0x34] sm:$0xf]
        %v2867 = vld [vmem:[#allocation13 + $0x38] sm:$0xf]
        %v2868 = vld [vmem:[#allocation13 + $0x3c] sm:$0xf]
        %v2869 = vld [vmem:[#allocation13 + $0x40] sm:$0xf]
        %v2870 = vld [vmem:[#allocation13 + $0x44] sm:$0xf]
        %v2871 = vld [vmem:[#allocation13 + $0x48] sm:$0xf]
        %v2872 = vld [vmem:[#allocation13 + $0x4c] sm:$0xf]
        %v2873 = vld [vmem:[#allocation13 + $0x50] sm:$0xf]
        %v2874 = vld [vmem:[#allocation13 + $0x54] sm:$0xf]
        %v2875 = vld [vmem:[#allocation13 + $0x58] sm:$0xf]
        %v2876 = vld [vmem:[#allocation13 + $0x5c] sm:$0xf]
        %v2877 = vld [vmem:[#allocation2 + $0x8] sm:$0x80]
        %v2878 = vld [vmem:[#allocation2 + $0xc0] sm:$0xff]
        %v2879 = vld [vmem:[#allocation2 + $0xc8] sm:$0xff]
        %v2880 = vld [vmem:[#allocation2 + $0xd0] sm:$0x1]
        %v2882 = vshll.u32 %v2878, 16
        %v2884 = vrot.slane %v2882, 1
        %v2885 = vsel %vm2477, %v2668, %v2884
        %v2886 = vshrl.u32 %v2878, 16
        %v2888 = vor.u32 %v2886, %v2884
        %v2890 = vshll.u32 %v2879, 16
        %v2892 = vrot.slane %v2890, 1
        %v2893 = vsel %vm2477, %v2888, %v2892
        %v2894 = vshrl.u32 %v2879, 16
        %v2896 = vor.u32 %v2894, %v2892
        %2897 = vrot.lane.b32.xlu0 %v2496, 64
        %v2898 = vpop.permute.xlu0 %2897
        %2899 = vrot.lane.b32.xlu0 %v2885, 64
        %v2900 = vpop.permute.xlu0 %2899
        %2901 = vrot.lane.b32.xlu0 %v2893, 64
        %v2902 = vpop.permute.xlu0 %2901
        %2903 = vrot.lane.b32.xlu0 %v2896, 64
        %v2904 = vpop.permute.xlu0 %2903
        %v2908 = vrot.slane %v2878, 1
        %v2909 = vsel %vm2752, %v2798, %v2908
        %v2910 = vrot.slane %v2879, 1
        %v2911 = vsel %vm2752, %v2908, %v2910
        %v2912 = vrot.slane %v2880, 1
        %v2913 = vsel %vm2752, %v2910, %v2912
        %v2916 = vsel %vm491, %v2877, %v2898
        %v2918 = vsel %vm491, %v2473, %v2900
        %v2920 = vsel %vm491, %v2878, %v2902
        %v2922 = vsel %vm491, %v2879, %v2904
        %s2923 = scalar_lea.vmem [#allocation13], 96
        %v2924 = vld [vmem:[%s2923] sm:$0xf]
        %v2925 = vld [vmem:[%s2923 + $0x4] sm:$0xf]
        %v2926 = vld [vmem:[%s2923 + $0x8] sm:$0xf]
        %v2927 = vld [vmem:[%s2923 + $0xc] sm:$0xf]
        %v2928 = vld [vmem:[%s2923 + $0x10] sm:$0xf]
        %v2929 = vld [vmem:[%s2923 + $0x14] sm:$0xf]
        %v2930 = vld [vmem:[%s2923 + $0x18] sm:$0xf]
        %v2931 = vld [vmem:[%s2923 + $0x1c] sm:$0xf]
        %v2932 = vld [vmem:[%s2923 + $0x20] sm:$0xf]
        %v2933 = vld [vmem:[%s2923 + $0x24] sm:$0xf]
        %v2934 = vld [vmem:[%s2923 + $0x28] sm:$0xf]
        %v2935 = vld [vmem:[%s2923 + $0x2c] sm:$0xf]
        %v2936 = vld [vmem:[%s2923 + $0x30] sm:$0xf]
        %v2937 = vld [vmem:[%s2923 + $0x34] sm:$0xf]
        %v2938 = vld [vmem:[%s2923 + $0x38] sm:$0xf]
        %v2939 = vld [vmem:[%s2923 + $0x3c] sm:$0xf]
        %v2940 = vld [vmem:[%s2923 + $0x40] sm:$0xf]
        %v2941 = vld [vmem:[%s2923 + $0x44] sm:$0xf]
        %v2942 = vld [vmem:[%s2923 + $0x48] sm:$0xf]
        %v2943 = vld [vmem:[%s2923 + $0x4c] sm:$0xf]
        %v2944 = vld [vmem:[%s2923 + $0x50] sm:$0xf]
        %v2945 = vld [vmem:[%s2923 + $0x54] sm:$0xf]
        %v2946 = vld [vmem:[%s2923 + $0x58] sm:$0xf]
        %v2947 = vld [vmem:[%s2923 + $0x5c] sm:$0xf]
        %vm2948 = vsmask.f32 256
        %v2949 = vshrl.u32 %v2916, 16
        %v2951 = vrot.slane %v2949, 7
        %v2952 = vshrl.u32 %v2808, 16
        %v2954 = vrot.slane %v2952, 7
        %v2955 = vshll.u32 %v2808, 16
        %v2957 = vor.u32 %v2954, %v2955
        %v2958 = vsel %vm2948, %v2951, %v2957
        %v2960 = vshrl.u32 %v2756, 16
        %v2962 = vrot.slane %v2960, 7
        %v2964 = vshrl.u32 %v2759, 16
        %v2966 = vrot.slane %v2964, 7
        %v2967 = vshll.u32 %v2759, 16
        %v2969 = vor.u32 %v2966, %v2967
        %v2970 = vsel %vm2948, %v2962, %v2969
        %v2971 = vshrl.u32 %v2810, 16
        %v2973 = vrot.slane %v2971, 7
        %v2974 = vshll.u32 %v2810, 16
        %v2976 = vor.u32 %v2973, %v2974
        %v2977 = vsel %vm2948, %v2954, %v2976
        %v2979 = vshrl.u32 %v2761, 16
        %v2981 = vrot.slane %v2979, 7
        %v2982 = vshll.u32 %v2761, 16
        %v2984 = vor.u32 %v2981, %v2982
        %v2985 = vsel %vm2948, %v2966, %v2984
        %v2986 = vshrl.u32 %v2812, 16
        %v2988 = vrot.slane %v2986, 7
        %v2989 = vshll.u32 %v2812, 16
        %v2991 = vor.u32 %v2988, %v2989
        %v2992 = vsel %vm2948, %v2973, %v2991
        %v2994 = vshrl.u32 %v2763, 16
        %v2996 = vrot.slane %v2994, 7
        %v2997 = vshll.u32 %v2763, 16
        %v2999 = vor.u32 %v2996, %v2997
        %v3000 = vsel %vm2948, %v2981, %v2999
        %v3001 = vshrl.u32 %v2814, 16
        %v3003 = vrot.slane %v3001, 7
        %v3004 = vshll.u32 %v2814, 16
        %v3006 = vor.u32 %v3003, %v3004
        %v3007 = vsel %vm2948, %v2988, %v3006
        %v3009 = vshrl.u32 %v2765, 16
        %v3011 = vrot.slane %v3009, 7
        %v3012 = vshll.u32 %v2765, 16
        %v3014 = vor.u32 %v3011, %v3012
        %v3015 = vsel %vm2948, %v2996, %v3014
        %v3016 = vshrl.u32 %v2816, 16
        %v3018 = vrot.slane %v3016, 7
        %v3019 = vshll.u32 %v2816, 16
        %v3021 = vor.u32 %v3018, %v3019
        %v3022 = vsel %vm2948, %v3003, %v3021
        %v3024 = vshrl.u32 %v2767, 16
        %v3026 = vrot.slane %v3024, 7
        %v3027 = vshll.u32 %v2767, 16
        %v3029 = vor.u32 %v3026, %v3027
        %v3030 = vsel %vm2948, %v3011, %v3029
        %v3031 = vshrl.u32 %v2818, 16
        %v3033 = vrot.slane %v3031, 7
        %v3034 = vshll.u32 %v2818, 16
        %v3036 = vor.u32 %v3033, %v3034
        %v3037 = vsel %vm2948, %v3018, %v3036
        %v3039 = vshrl.u32 %v2769, 16
        %v3041 = vrot.slane %v3039, 7
        %v3042 = vshll.u32 %v2769, 16
        %v3044 = vor.u32 %v3041, %v3042
        %v3045 = vsel %vm2948, %v3026, %v3044
        %v3046 = vshrl.u32 %v2820, 16
        %v3048 = vrot.slane %v3046, 7
        %v3049 = vshll.u32 %v2820, 16
        %v3051 = vor.u32 %v3048, %v3049
        %v3052 = vsel %vm2948, %v3033, %v3051
        %v3054 = vshrl.u32 %v2771, 16
        %v3056 = vrot.slane %v3054, 7
        %v3057 = vshll.u32 %v2771, 16
        %v3059 = vor.u32 %v3056, %v3057
        %v3060 = vsel %vm2948, %v3041, %v3059
        %v3061 = vshrl.u32 %v2822, 16
        %v3063 = vrot.slane %v3061, 7
        %v3064 = vshll.u32 %v2822, 16
        %v3066 = vor.u32 %v3063, %v3064
        %v3067 = vsel %vm2948, %v3048, %v3066
        %v3069 = vshrl.u32 %v2773, 16
        %v3071 = vrot.slane %v3069, 7
        %v3072 = vshll.u32 %v2773, 16
        %v3074 = vor.u32 %v3071, %v3072
        %v3075 = vsel %vm2948, %v3056, %v3074
        %v3076 = vshrl.u32 %v2824, 16
        %v3078 = vrot.slane %v3076, 7
        %v3079 = vshll.u32 %v2824, 16
        %v3081 = vor.u32 %v3078, %v3079
        %v3082 = vsel %vm2948, %v3063, %v3081
        %v3084 = vshrl.u32 %v2775, 16
        %v3086 = vrot.slane %v3084, 7
        %v3087 = vshll.u32 %v2775, 16
        %v3089 = vor.u32 %v3086, %v3087
        %v3090 = vsel %vm2948, %v3071, %v3089
        %v3091 = vshrl.u32 %v2826, 16
        %v3093 = vrot.slane %v3091, 7
        %v3094 = vshll.u32 %v2826, 16
        %v3096 = vor.u32 %v3093, %v3094
        %v3097 = vsel %vm2948, %v3078, %v3096
        %v3099 = vshrl.u32 %v2777, 16
        %v3101 = vrot.slane %v3099, 7
        %v3102 = vshll.u32 %v2777, 16
        %v3104 = vor.u32 %v3101, %v3102
        %v3105 = vsel %vm2948, %v3086, %v3104
        %v3106 = vshrl.u32 %v2828, 16
        %v3108 = vrot.slane %v3106, 7
        %v3109 = vshll.u32 %v2828, 16
        %v3111 = vor.u32 %v3108, %v3109
        %v3112 = vsel %vm2948, %v3093, %v3111
        %v3114 = vshrl.u32 %v2779, 16
        %v3116 = vrot.slane %v3114, 7
        %v3117 = vshll.u32 %v2779, 16
        %v3119 = vor.u32 %v3116, %v3117
        %v3120 = vsel %vm2948, %v3101, %v3119
        %v3121 = vshrl.u32 %v2830, 16
        %v3123 = vrot.slane %v3121, 7
        %v3124 = vshll.u32 %v2830, 16
        %v3126 = vor.u32 %v3123, %v3124
        %v3127 = vsel %vm2948, %v3108, %v3126
        %v3129 = vshrl.u32 %v2781, 16
        %v3131 = vrot.slane %v3129, 7
        %v3132 = vshll.u32 %v2781, 16
        %v3134 = vor.u32 %v3131, %v3132
        %v3135 = vsel %vm2948, %v3116, %v3134
        %v3136 = vshrl.u32 %v2832, 16
        %v3138 = vrot.slane %v3136, 7
        %v3139 = vshll.u32 %v2832, 16
        %v3141 = vor.u32 %v3138, %v3139
        %v3142 = vsel %vm2948, %v3123, %v3141
        %v3144 = vshrl.u32 %v2783, 16
        %v3146 = vrot.slane %v3144, 7
        %v3147 = vshll.u32 %v2783, 16
        %v3149 = vor.u32 %v3146, %v3147
        %v3150 = vsel %vm2948, %v3131, %v3149
        %v3151 = vshrl.u32 %v2834, 16
        %v3153 = vrot.slane %v3151, 7
        %v3154 = vshll.u32 %v2834, 16
        %v3156 = vor.u32 %v3153, %v3154
        %v3157 = vsel %vm2948, %v3138, %v3156
        %v3159 = vshrl.u32 %v2785, 16
        %v3161 = vrot.slane %v3159, 7
        %v3162 = vshll.u32 %v2785, 16
        %v3164 = vor.u32 %v3161, %v3162
        %v3165 = vsel %vm2948, %v3146, %v3164
        %v3166 = vshrl.u32 %v2836, 16
        %v3168 = vrot.slane %v3166, 7
        %v3169 = vshll.u32 %v2836, 16
        %v3171 = vor.u32 %v3168, %v3169
        %v3172 = vsel %vm2948, %v3153, %v3171
        %v3174 = vshrl.u32 %v2787, 16
        %v3176 = vrot.slane %v3174, 7
        %v3177 = vshll.u32 %v2787, 16
        %v3179 = vor.u32 %v3176, %v3177
        %v3180 = vsel %vm2948, %v3161, %v3179
        %v3181 = vshrl.u32 %v2838, 16
        %v3183 = vrot.slane %v3181, 7
        %v3184 = vshll.u32 %v2838, 16
        %v3186 = vor.u32 %v3183, %v3184
        %v3187 = vsel %vm2948, %v3168, %v3186
        %v3189 = vshrl.u32 %v2789, 16
        %v3191 = vrot.slane %v3189, 7
        %v3192 = vshll.u32 %v2789, 16
        %v3194 = vor.u32 %v3191, %v3192
        %v3195 = vsel %vm2948, %v3176, %v3194
        %v3196 = vshrl.u32 %v2840, 16
        %v3198 = vrot.slane %v3196, 7
        %v3199 = vshll.u32 %v2840, 16
        %v3201 = vor.u32 %v3198, %v3199
        %v3202 = vsel %vm2948, %v3183, %v3201
        %v3204 = vshrl.u32 %v2791, 16
        %v3206 = vrot.slane %v3204, 7
        %v3207 = vshll.u32 %v2791, 16
        %v3209 = vor.u32 %v3206, %v3207
        %v3210 = vsel %vm2948, %v3191, %v3209
        %v3211 = vshrl.u32 %v2842, 16
        %v3213 = vrot.slane %v3211, 7
        %v3214 = vshll.u32 %v2842, 16
        %v3216 = vor.u32 %v3213, %v3214
        %v3217 = vsel %vm2948, %v3198, %v3216
        %v3219 = vshrl.u32 %v2793, 16
        %v3221 = vrot.slane %v3219, 7
        %v3222 = vshll.u32 %v2793, 16
        %v3224 = vor.u32 %v3221, %v3222
        %v3225 = vsel %vm2948, %v3206, %v3224
        %v3226 = vshrl.u32 %v2844, 16
        %v3228 = vrot.slane %v3226, 7
        %v3229 = vshll.u32 %v2844, 16
        %v3231 = vor.u32 %v3228, %v3229
        %v3232 = vsel %vm2948, %v3213, %v3231
        %v3234 = vshrl.u32 %v2795, 16
        %v3236 = vrot.slane %v3234, 7
        %v3237 = vshll.u32 %v2795, 16
        %v3239 = vor.u32 %v3236, %v3237
        %v3240 = vsel %vm2948, %v3221, %v3239
        %v3241 = vshrl.u32 %v2846, 16
        %v3243 = vrot.slane %v3241, 7
        %v3244 = vshll.u32 %v2846, 16
        %v3246 = vor.u32 %v3243, %v3244
        %v3247 = vsel %vm2948, %v3228, %v3246
        %v3249 = vshrl.u32 %v2797, 16
        %v3251 = vrot.slane %v3249, 7
        %v3252 = vshll.u32 %v2797, 16
        %v3254 = vor.u32 %v3251, %v3252
        %v3255 = vsel %vm2948, %v3236, %v3254
        %v3256 = vshrl.u32 %v2848, 16
        %v3258 = vrot.slane %v3256, 7
        %v3259 = vshll.u32 %v2848, 16
        %v3261 = vor.u32 %v3258, %v3259
        %v3262 = vsel %vm2948, %v3243, %v3261
        %v3264 = vshrl.u32 %v2799, 16
        %v3266 = vrot.slane %v3264, 7
        %v3267 = vshll.u32 %v2799, 16
        %v3269 = vor.u32 %v3266, %v3267
        %v3270 = vsel %vm2948, %v3251, %v3269
        %v3271 = vshrl.u32 %v2918, 16
        %v3273 = vrot.slane %v3271, 7
        %v3274 = vshll.u32 %v2918, 16
        %v3276 = vor.u32 %v3273, %v3274
        %v3277 = vsel %vm2948, %v3258, %v3276
        %v3279 = vshrl.u32 %v2909, 16
        %v3281 = vrot.slane %v3279, 7
        %v3282 = vshll.u32 %v2909, 16
        %v3284 = vor.u32 %v3281, %v3282
        %v3285 = vsel %vm2948, %v3266, %v3284
        %v3286 = vshrl.u32 %v2920, 16
        %v3288 = vrot.slane %v3286, 7
        %v3289 = vshll.u32 %v2920, 16
        %v3291 = vor.u32 %v3288, %v3289
        %v3292 = vsel %vm2948, %v3273, %v3291
        %v3294 = vshrl.u32 %v2911, 16
        %v3296 = vrot.slane %v3294, 7
        %v3297 = vshll.u32 %v2911, 16
        %v3299 = vor.u32 %v3296, %v3297
        %v3300 = vsel %vm2948, %v3281, %v3299
        %v3301 = vshrl.u32 %v2922, 16
        %v3303 = vrot.slane %v3301, 7
        %v3304 = vshll.u32 %v2922, 16
        %v3306 = vor.u32 %v3303, %v3304
        %v3307 = vsel %vm2948, %v3288, %v3306
        %v3309 = vshrl.u32 %v2913, 16
        %v3311 = vrot.slane %v3309, 7
        %v3312 = vshll.u32 %v2913, 16
        %v3314 = vor.u32 %v3311, %v3312
        %v3315 = vsel %vm2948, %v3296, %v3314
        %v3364 = vunpack.c.l.b16 %v2924
        %v3365 = vunpack.c.l.b16 %v2925
        %v3366 = vunpack.c.l.b16 %v2926
        %v3367 = vunpack.c.l.b16 %v2927
        %v3368 = vunpack.c.l.b16 %v2928
        %v3369 = vunpack.c.l.b16 %v2929
        %v3370 = vunpack.c.l.b16 %v2930
        %v3371 = vunpack.c.l.b16 %v2931
        %v3372 = vunpack.c.l.b16 %v2932
        %v3373 = vunpack.c.l.b16 %v2933
        %v3374 = vunpack.c.l.b16 %v2934
        %v3375 = vunpack.c.l.b16 %v2935
        %v3376 = vunpack.c.l.b16 %v2936
        %v3377 = vunpack.c.l.b16 %v2937
        %v3378 = vunpack.c.l.b16 %v2938
        %v3379 = vunpack.c.l.b16 %v2939
        %v3380 = vunpack.c.l.b16 %v2940
        %v3381 = vunpack.c.l.b16 %v2941
        %v3382 = vunpack.c.l.b16 %v2942
        %v3383 = vunpack.c.l.b16 %v2943
        %v3384 = vunpack.c.l.b16 %v2944
        %v3385 = vunpack.c.l.b16 %v2945
        %v3386 = vunpack.c.l.b16 %v2946
        %v3387 = vunpack.c.l.b16 %v2947
        %v3388 = vpack.c.b16 %v3365, %v3364
        %v3389 = vpack.c.b16 %v3367, %v3366
        %v3390 = vpack.c.b16 %v3369, %v3368
        %v3391 = vpack.c.b16 %v3371, %v3370
        %v3392 = vpack.c.b16 %v3373, %v3372
        %v3393 = vpack.c.b16 %v3375, %v3374
        %v3394 = vpack.c.b16 %v3377, %v3376
        %v3395 = vpack.c.b16 %v3379, %v3378
        %v3396 = vpack.c.b16 %v3381, %v3380
        %v3397 = vpack.c.b16 %v3383, %v3382
        %v3398 = vpack.c.b16 %v3385, %v3384
        %v3399 = vpack.c.b16 %v3387, %v3386
        %v3413 = vsel %vm491, %v2970, 0
        %v3416 = vsel %vm491, %v2985, 0
        %v3419 = vsel %vm491, %v3000, 0
        %v3422 = vsel %vm491, %v3015, 0
        %v3425 = vsel %vm491, %v3030, 0
        %v3428 = vsel %vm491, %v3045, 0
        %v3431 = vsel %vm491, %v3060, 0
        %v3434 = vsel %vm491, %v3075, 0
        %v3437 = vsel %vm491, %v3090, 0
        %v3440 = vsel %vm491, %v3105, 0
        %v3443 = vsel %vm491, %v3120, 0
        %v3446 = vsel %vm491, %v3135, 0
        %v3449 = vsel %vm491, %v3150, 0
        %v3452 = vsel %vm491, %v3165, 0
        %v3455 = vsel %vm491, %v3180, 0
        %v3458 = vsel %vm491, %v3195, 0
        %v3461 = vsel %vm491, %v3210, 0
        %v3464 = vsel %vm491, %v3225, 0
        %v3467 = vsel %vm491, %v3240, 0
        %v3470 = vsel %vm491, %v3255, 0
        %v3473 = vsel %vm491, %v3270, 0
        %v3476 = vsel %vm491, %v3285, 0
        %v3479 = vsel %vm491, %v3300, 0
        %v3482 = vsel %vm491, %v3315, 0
        %3484 = vmatprep.subr.bf16.mxu0 0
        %3485 = vmatpush1.bf16.msra.mxu0 %v3388
        %3486 = vmatprep.subr.bf16.mxu0 0
        %3487 = vmatpush1.bf16.msra.mxu0 %v3389
        %3488 = vmatprep.subr.bf16.mxu0 0
        %3489 = vmatpush1.bf16.msra.mxu0 %v3390
        %3490 = vmatprep.subr.bf16.mxu0 0
        %3491 = vmatpush1.bf16.msra.mxu0 %v3391
        %3492 = vmatprep.subr.bf16.mxu0 0
        %3493 = vmatpush1.bf16.msra.mxu0 %v3392
        %3494 = vmatprep.subr.bf16.mxu0 0
        %3495 = vmatpush1.bf16.msra.mxu0 %v3393
        %3496 = vmatprep.subr.bf16.mxu0 0
        %3497 = vmatpush1.bf16.msra.mxu0 %v3394
        %3498 = vmatprep.subr.bf16.mxu0 0
        %3499 = vmatpush1.bf16.msra.mxu0 %v3395
        %3500 = vmatprep.subr.bf16.mxu0 0
        %3501 = vmatpush1.bf16.msra.mxu0 %v3396
        %3502 = vmatprep.subr.bf16.mxu0 0
        %3503 = vmatpush1.bf16.msra.mxu0 %v3397
        %3504 = vmatprep.subr.bf16.mxu0 0
        %3505 = vmatpush1.bf16.msra.mxu0 %v3398
        %3506 = vmatprep.subr.bf16.mxu0 0
        %3507 = vmatpush1.bf16.msra.mxu0 %v3399
        %3508 = vmatprep.subr.bf16.mxu0 0
        %3509 = vmatpush1.bf16.msra.mxu0 0
        %3510 = vmatprep.subr.bf16.mxu0 0
        %3511 = vmatpush1.bf16.msra.mxu0 0
        %3512 = vmatprep.subr.bf16.mxu0 0
        %3513 = vmatpush1.bf16.msra.mxu0 0
        %3514 = vmatprep.subr.bf16.mxu0 0
        %3515 = vmatpush1.bf16.msra.mxu0 0
        %3516 = vmatprep.mubr.bf16.mxu0 %v3413
        %3517 = vmatmul.mubr.bf16.gmra.mrb[0].mxu0 %v2958
        %v3518 = vpop.f32.mrb[0].mxu0
        %v3519 = vadd.f32 0.0, %v3518
        %v3520 = vpop.f32.mrb[0].mxu0
        %v3521 = vpop.f32.mrb[0].mxu0
        %v3522 = vadd.f32 0.0, %v3521
        %v3523 = vpop.f32.mrb[0].mxu0
        %3524 = vmatprep.mubr.bf16.mxu0 %v3416
        %3525 = vmatmul.mubr.bf16.gmra.mrb[0].mxu0 %v2977
        %v3526 = vpop.f32.mrb[0].mxu0
        %v3527 = vadd.f32 0.0, %v3526
        %v3528 = vpop.f32.mrb[0].mxu0
        %v3529 = vpop.f32.mrb[0].mxu0
        %v3530 = vadd.f32 0.0, %v3529
        %v3531 = vpop.f32.mrb[0].mxu0
        %3532 = vmatprep.mubr.bf16.mxu0 %v3419
        %3533 = vmatmul.mubr.bf16.gmra.mrb[0].mxu0 %v2992
        %v3534 = vpop.f32.mrb[0].mxu0
        %v3535 = vadd.f32 0.0, %v3534
        %v3536 = vpop.f32.mrb[0].mxu0
        %v3537 = vpop.f32.mrb[0].mxu0
        %v3538 = vadd.f32 0.0, %v3537
        %v3539 = vpop.f32.mrb[0].mxu0
        %3540 = vmatprep.mubr.bf16.mxu0 %v3422
        %3541 = vmatmul.mubr.bf16.gmra.mrb[0].mxu0 %v3007
        %v3542 = vpop.f32.mrb[0].mxu0
        %v3543 = vadd.f32 0.0, %v3542
        %v3544 = vpop.f32.mrb[0].mxu0
        %v3545 = vpop.f32.mrb[0].mxu0
        %v3546 = vadd.f32 0.0, %v3545
        %v3547 = vpop.f32.mrb[0].mxu0
        %3548 = vmatprep.mubr.bf16.mxu0 %v3425
        %3549 = vmatmul.mubr.bf16.gmra.mrb[0].mxu0 %v3022
        %v3550 = vpop.f32.mrb[0].mxu0
        %v3551 = vadd.f32 0.0, %v3550
        %v3552 = vpop.f32.mrb[0].mxu0
        %v3553 = vpop.f32.mrb[0].mxu0
        %v3554 = vadd.f32 0.0, %v3553
        %v3555 = vpop.f32.mrb[0].mxu0
        %3556 = vmatprep.mubr.bf16.mxu0 %v3428
        %3557 = vmatmul.mubr.bf16.gmra.mrb[0].mxu0 %v3037
        %v3558 = vpop.f32.mrb[0].mxu0
        %v3559 = vadd.f32 0.0, %v3558
        %v3560 = vpop.f32.mrb[0].mxu0
        %v3561 = vpop.f32.mrb[0].mxu0
        %v3562 = vadd.f32 0.0, %v3561
        %v3563 = vpop.f32.mrb[0].mxu0
        %3564 = vmatprep.mubr.bf16.mxu0 %v3431
        %3565 = vmatmul.mubr.bf16.gmra.mrb[0].mxu0 %v3052
        %v3566 = vpop.f32.mrb[0].mxu0
        %v3567 = vadd.f32 0.0, %v3566
        %v3568 = vpop.f32.mrb[0].mxu0
        %v3569 = vpop.f32.mrb[0].mxu0
        %v3570 = vadd.f32 0.0, %v3569
        %v3571 = vpop.f32.mrb[0].mxu0
        %3572 = vmatprep.mubr.bf16.mxu0 %v3434
        %3573 = vmatmul.mubr.bf16.gmra.mrb[0].mxu0 %v3067
        %v3574 = vpop.f32.mrb[0].mxu0
        %v3575 = vadd.f32 0.0, %v3574
        %v3576 = vpop.f32.mrb[0].mxu0
        %v3577 = vpop.f32.mrb[0].mxu0
        %v3578 = vadd.f32 0.0, %v3577
        %v3579 = vpop.f32.mrb[0].mxu0
        %3580 = vmatprep.mubr.bf16.mxu0 %v3437
        %3581 = vmatmul.mubr.bf16.gmra.mrb[0].mxu0 %v3082
        %v3582 = vpop.f32.mrb[0].mxu0
        %v3583 = vadd.f32 0.0, %v3582
        %v3584 = vpop.f32.mrb[0].mxu0
        %v3585 = vpop.f32.mrb[0].mxu0
        %v3586 = vadd.f32 0.0, %v3585
        %v3587 = vpop.f32.mrb[0].mxu0
        %3588 = vmatprep.mubr.bf16.mxu0 %v3440
        %3589 = vmatmul.mubr.bf16.gmra.mrb[0].mxu0 %v3097
        %v3590 = vpop.f32.mrb[0].mxu0
        %v3591 = vadd.f32 0.0, %v3590
        %v3592 = vpop.f32.mrb[0].mxu0
        %v3593 = vpop.f32.mrb[0].mxu0
        %v3594 = vadd.f32 0.0, %v3593
        %v3595 = vpop.f32.mrb[0].mxu0
        %3596 = vmatprep.mubr.bf16.mxu0 %v3443
        %3597 = vmatmul.mubr.bf16.gmra.mrb[0].mxu0 %v3112
        %v3598 = vpop.f32.mrb[0].mxu0
        %v3599 = vadd.f32 0.0, %v3598
        %v3600 = vpop.f32.mrb[0].mxu0
        %v3601 = vpop.f32.mrb[0].mxu0
        %v3602 = vadd.f32 0.0, %v3601
        %v3603 = vpop.f32.mrb[0].mxu0
        %3604 = vmatprep.mubr.bf16.mxu0 %v3446
        %3605 = vmatmul.mubr.bf16.gmra.mrb[0].mxu0 %v3127
        %v3606 = vpop.f32.mrb[0].mxu0
        %v3607 = vadd.f32 0.0, %v3606
        %v3608 = vpop.f32.mrb[0].mxu0
        %v3609 = vpop.f32.mrb[0].mxu0
        %v3610 = vadd.f32 0.0, %v3609
        %v3611 = vpop.f32.mrb[0].mxu0
        %3612 = vmatprep.mubr.bf16.mxu0 %v3449
        %3613 = vmatmul.mubr.bf16.gmra.mrb[0].mxu0 %v3142
        %v3614 = vpop.f32.mrb[0].mxu0
        %v3615 = vadd.f32 0.0, %v3614
        %v3616 = vpop.f32.mrb[0].mxu0
        %v3617 = vpop.f32.mrb[0].mxu0
        %v3618 = vadd.f32 0.0, %v3617
        %v3619 = vpop.f32.mrb[0].mxu0
        %3620 = vmatprep.mubr.bf16.mxu0 %v3452
        %3621 = vmatmul.mubr.bf16.gmra.mrb[0].mxu0 %v3157
        %v3622 = vpop.f32.mrb[0].mxu0
        %v3623 = vadd.f32 0.0, %v3622
        %v3624 = vpop.f32.mrb[0].mxu0
        %v3625 = vpop.f32.mrb[0].mxu0
        %v3626 = vadd.f32 0.0, %v3625
        %v3627 = vpop.f32.mrb[0].mxu0
        %3628 = vmatprep.mubr.bf16.mxu0 %v3455
        %3629 = vmatmul.mubr.bf16.gmra.mrb[0].mxu0 %v3172
        %v3630 = vpop.f32.mrb[0].mxu0
        %v3631 = vadd.f32 0.0, %v3630
        %v3632 = vpop.f32.mrb[0].mxu0
        %v3633 = vpop.f32.mrb[0].mxu0
        %v3634 = vadd.f32 0.0, %v3633
        %v3635 = vpop.f32.mrb[0].mxu0
        %3636 = vmatprep.mubr.bf16.mxu0 %v3458
        %3637 = vmatmul.mubr.bf16.gmra.mrb[0].mxu0 %v3187
        %v3638 = vpop.f32.mrb[0].mxu0
        %v3639 = vadd.f32 0.0, %v3638
        %v3640 = vpop.f32.mrb[0].mxu0
        %v3641 = vpop.f32.mrb[0].mxu0
        %v3642 = vadd.f32 0.0, %v3641
        %v3643 = vpop.f32.mrb[0].mxu0
        %3644 = vmatprep.mubr.bf16.mxu0 %v3461
        %3645 = vmatmul.mubr.bf16.gmra.mrb[0].mxu0 %v3202
        %v3646 = vpop.f32.mrb[0].mxu0
        %v3647 = vadd.f32 0.0, %v3646
        %v3648 = vpop.f32.mrb[0].mxu0
        %v3649 = vpop.f32.mrb[0].mxu0
        %v3650 = vadd.f32 0.0, %v3649
        %v3651 = vpop.f32.mrb[0].mxu0
        %3652 = vmatprep.mubr.bf16.mxu0 %v3464
        %3653 = vmatmul.mubr.bf16.gmra.mrb[0].mxu0 %v3217
        %v3654 = vpop.f32.mrb[0].mxu0
        %v3655 = vadd.f32 0.0, %v3654
        %v3656 = vpop.f32.mrb[0].mxu0
        %v3657 = vpop.f32.mrb[0].mxu0
        %v3658 = vadd.f32 0.0, %v3657
        %v3659 = vpop.f32.mrb[0].mxu0
        %3660 = vmatprep.mubr.bf16.mxu0 %v3467
        %3661 = vmatmul.mubr.bf16.gmra.mrb[0].mxu0 %v3232
        %v3662 = vpop.f32.mrb[0].mxu0
        %v3663 = vadd.f32 0.0, %v3662
        %v3664 = vpop.f32.mrb[0].mxu0
        %v3665 = vpop.f32.mrb[0].mxu0
        %v3666 = vadd.f32 0.0, %v3665
        %v3667 = vpop.f32.mrb[0].mxu0
        %3668 = vmatprep.mubr.bf16.mxu0 %v3470
        %3669 = vmatmul.mubr.bf16.gmra.mrb[0].mxu0 %v3247
        %v3670 = vpop.f32.mrb[0].mxu0
        %v3671 = vadd.f32 0.0, %v3670
        %v3672 = vpop.f32.mrb[0].mxu0
        %v3673 = vpop.f32.mrb[0].mxu0
        %v3674 = vadd.f32 0.0, %v3673
        %v3675 = vpop.f32.mrb[0].mxu0
        %3676 = vmatprep.mubr.bf16.mxu0 %v3473
        %3677 = vmatmul.mubr.bf16.gmra.mrb[0].mxu0 %v3262
        %v3678 = vpop.f32.mrb[0].mxu0
        %v3679 = vadd.f32 0.0, %v3678
        %v3680 = vpop.f32.mrb[0].mxu0
        %v3681 = vpop.f32.mrb[0].mxu0
        %v3682 = vadd.f32 0.0, %v3681
        %v3683 = vpop.f32.mrb[0].mxu0
        %3684 = vmatprep.mubr.bf16.mxu0 %v3476
        %3685 = vmatmul.mubr.bf16.gmra.mrb[0].mxu0 %v3277
        %v3686 = vpop.f32.mrb[0].mxu0
        %v3687 = vadd.f32 0.0, %v3686
        %v3688 = vpop.f32.mrb[0].mxu0
        %v3689 = vpop.f32.mrb[0].mxu0
        %v3690 = vadd.f32 0.0, %v3689
        %v3691 = vpop.f32.mrb[0].mxu0
        %3692 = vmatprep.mubr.bf16.mxu0 %v3479
        %3693 = vmatmul.mubr.bf16.gmra.mrb[0].mxu0 %v3292
        %v3694 = vpop.f32.mrb[0].mxu0
        %v3695 = vadd.f32 0.0, %v3694
        %v3696 = vpop.f32.mrb[0].mxu0
        %v3697 = vpop.f32.mrb[0].mxu0
        %v3698 = vadd.f32 0.0, %v3697
        %v3699 = vpop.f32.mrb[0].mxu0
        %3700 = vmatprep.mubr.bf16.mxu0 %v3482
        %3701 = vmatmul.mubr.bf16.gmra.mrb[0].mxu0 %v3307
        %v3702 = vpop.f32.mrb[0].mxu0
        %v3703 = vadd.f32 0.0, %v3702
        %v3704 = vpop.f32.mrb[0].mxu0
        %v3705 = vpop.f32.mrb[0].mxu0
        %v3706 = vadd.f32 0.0, %v3705
        %v3707 = vpop.f32.mrb[0].mxu0
        %3708 = vdwg.mxu0
        %vm3709 = vsmask.f32 4352
        %v3710 = vshrl.u32 %v2804, 16
        %v3712 = vrot.slane %v3710, 3
        %v3713 = vshll.u32 %v2804, 16
        %v3715 = vrot.slane %v3713, 4
        %v3716 = vor.u32 %v3712, %v3715
        %v3717 = vshrl.u32 %v2806, 16
        %v3719 = vrot.slane %v3717, 3
        %v3720 = vshll.u32 %v2806, 16
        %v3722 = vrot.slane %v3720, 4
        %v3723 = vor.u32 %v3719, %v3722
        %v3724 = vsel %vm3709, %v3716, %v3723
        %v3726 = vshrl.u32 %v2755, 16
        %v3728 = vrot.slane %v3726, 3
        %v3729 = vshll.u32 %v2755, 16
        %v3731 = vrot.slane %v3729, 4
        %v3732 = vor.u32 %v3728, %v3731
        %v3734 = vshrl.u32 %v2757, 16
        %v3736 = vrot.slane %v3734, 3
        %v3737 = vshll.u32 %v2757, 16
        %v3739 = vrot.slane %v3737, 4
        %v3740 = vor.u32 %v3736, %v3739
        %v3741 = vsel %vm3709, %v3732, %v3740
        %v3742 = vrot.slane %v2952, 3
        %v3743 = vrot.slane %v2955, 4
        %v3744 = vor.u32 %v3742, %v3743
        %v3745 = vsel %vm3709, %v3723, %v3744
        %v3746 = vrot.slane %v2964, 3
        %v3747 = vrot.slane %v2967, 4
        %v3748 = vor.u32 %v3746, %v3747
        %v3749 = vsel %vm3709, %v3740, %v3748
        %v3750 = vrot.slane %v2971, 3
        %v3751 = vrot.slane %v2974, 4
        %v3752 = vor.u32 %v3750, %v3751
        %v3753 = vsel %vm3709, %v3744, %v3752
        %v3754 = vrot.slane %v2979, 3
        %v3755 = vrot.slane %v2982, 4
        %v3756 = vor.u32 %v3754, %v3755
        %v3757 = vsel %vm3709, %v3748, %v3756
        %v3758 = vrot.slane %v2986, 3
        %v3759 = vrot.slane %v2989, 4
        %v3760 = vor.u32 %v3758, %v3759
        %v3761 = vsel %vm3709, %v3752, %v3760
        %v3762 = vrot.slane %v2994, 3
        %v3763 = vrot.slane %v2997, 4
        %v3764 = vor.u32 %v3762, %v3763
        %v3765 = vsel %vm3709, %v3756, %v3764
        %v3766 = vrot.slane %v3001, 3
        %v3767 = vrot.slane %v3004, 4
        %v3768 = vor.u32 %v3766, %v3767
        %v3769 = vsel %vm3709, %v3760, %v3768
        %v3770 = vrot.slane %v3009, 3
        %v3771 = vrot.slane %v3012, 4
        %v3772 = vor.u32 %v3770, %v3771
        %v3773 = vsel %vm3709, %v3764, %v3772
        %v3774 = vrot.slane %v3016, 3
        %v3775 = vrot.slane %v3019, 4
        %v3776 = vor.u32 %v3774, %v3775
        %v3777 = vsel %vm3709, %v3768, %v3776
        %v3778 = vrot.slane %v3024, 3
        %v3779 = vrot.slane %v3027, 4
        %v3780 = vor.u32 %v3778, %v3779
        %v3781 = vsel %vm3709, %v3772, %v3780
        %v3782 = vrot.slane %v3031, 3
        %v3783 = vrot.slane %v3034, 4
        %v3784 = vor.u32 %v3782, %v3783
        %v3785 = vsel %vm3709, %v3776, %v3784
        %v3786 = vrot.slane %v3039, 3
        %v3787 = vrot.slane %v3042, 4
        %v3788 = vor.u32 %v3786, %v3787
        %v3789 = vsel %vm3709, %v3780, %v3788
        %v3790 = vrot.slane %v3046, 3
        %v3791 = vrot.slane %v3049, 4
        %v3792 = vor.u32 %v3790, %v3791
        %v3793 = vsel %vm3709, %v3784, %v3792
        %v3794 = vrot.slane %v3054, 3
        %v3795 = vrot.slane %v3057, 4
        %v3796 = vor.u32 %v3794, %v3795
        %v3797 = vsel %vm3709, %v3788, %v3796
        %v3798 = vrot.slane %v3061, 3
        %v3799 = vrot.slane %v3064, 4
        %v3800 = vor.u32 %v3798, %v3799
        %v3801 = vsel %vm3709, %v3792, %v3800
        %v3802 = vrot.slane %v3069, 3
        %v3803 = vrot.slane %v3072, 4
        %v3804 = vor.u32 %v3802, %v3803
        %v3805 = vsel %vm3709, %v3796, %v3804
        %v3806 = vrot.slane %v3076, 3
        %v3807 = vrot.slane %v3079, 4
        %v3808 = vor.u32 %v3806, %v3807
        %v3809 = vsel %vm3709, %v3800, %v3808
        %v3810 = vrot.slane %v3084, 3
        %v3811 = vrot.slane %v3087, 4
        %v3812 = vor.u32 %v3810, %v3811
        %v3813 = vsel %vm3709, %v3804, %v3812
        %v3814 = vrot.slane %v3091, 3
        %v3815 = vrot.slane %v3094, 4
        %v3816 = vor.u32 %v3814, %v3815
        %v3817 = vsel %vm3709, %v3808, %v3816
        %v3818 = vrot.slane %v3099, 3
        %v3819 = vrot.slane %v3102, 4
        %v3820 = vor.u32 %v3818, %v3819
        %v3821 = vsel %vm3709, %v3812, %v3820
        %v3822 = vrot.slane %v3106, 3
        %v3823 = vrot.slane %v3109, 4
        %v3824 = vor.u32 %v3822, %v3823
        %v3825 = vsel %vm3709, %v3816, %v3824
        %v3826 = vrot.slane %v3114, 3
        %v3827 = vrot.slane %v3117, 4
        %v3828 = vor.u32 %v3826, %v3827
        %v3829 = vsel %vm3709, %v3820, %v3828
        %v3830 = vrot.slane %v3121, 3
        %v3831 = vrot.slane %v3124, 4
        %v3832 = vor.u32 %v3830, %v3831
        %v3833 = vsel %vm3709, %v3824, %v3832
        %v3834 = vrot.slane %v3129, 3
        %v3835 = vrot.slane %v3132, 4
        %v3836 = vor.u32 %v3834, %v3835
        %v3837 = vsel %vm3709, %v3828, %v3836
        %v3838 = vrot.slane %v3136, 3
        %v3839 = vrot.slane %v3139, 4
        %v3840 = vor.u32 %v3838, %v3839
        %v3841 = vsel %vm3709, %v3832, %v3840
        %v3842 = vrot.slane %v3144, 3
        %v3843 = vrot.slane %v3147, 4
        %v3844 = vor.u32 %v3842, %v3843
        %v3845 = vsel %vm3709, %v3836, %v3844
        %v3846 = vrot.slane %v3151, 3
        %v3847 = vrot.slane %v3154, 4
        %v3848 = vor.u32 %v3846, %v3847
        %v3849 = vsel %vm3709, %v3840, %v3848
        %v3850 = vrot.slane %v3159, 3
        %v3851 = vrot.slane %v3162, 4
        %v3852 = vor.u32 %v3850, %v3851
        %v3853 = vsel %vm3709, %v3844, %v3852
        %v3854 = vrot.slane %v3166, 3
        %v3855 = vrot.slane %v3169, 4
        %v3856 = vor.u32 %v3854, %v3855
        %v3857 = vsel %vm3709, %v3848, %v3856
        %v3858 = vrot.slane %v3174, 3
        %v3859 = vrot.slane %v3177, 4
        %v3860 = vor.u32 %v3858, %v3859
        %v3861 = vsel %vm3709, %v3852, %v3860
        %v3862 = vrot.slane %v3181, 3
        %v3863 = vrot.slane %v3184, 4
        %v3864 = vor.u32 %v3862, %v3863
        %v3865 = vsel %vm3709, %v3856, %v3864
        %v3866 = vrot.slane %v3189, 3
        %v3867 = vrot.slane %v3192, 4
        %v3868 = vor.u32 %v3866, %v3867
        %v3869 = vsel %vm3709, %v3860, %v3868
        %v3870 = vrot.slane %v3196, 3
        %v3871 = vrot.slane %v3199, 4
        %v3872 = vor.u32 %v3870, %v3871
        %v3873 = vsel %vm3709, %v3864, %v3872
        %v3874 = vrot.slane %v3204, 3
        %v3875 = vrot.slane %v3207, 4
        %v3876 = vor.u32 %v3874, %v3875
        %v3877 = vsel %vm3709, %v3868, %v3876
        %v3878 = vrot.slane %v3211, 3
        %v3879 = vrot.slane %v3214, 4
        %v3880 = vor.u32 %v3878, %v3879
        %v3881 = vsel %vm3709, %v3872, %v3880
        %v3882 = vrot.slane %v3219, 3
        %v3883 = vrot.slane %v3222, 4
        %v3884 = vor.u32 %v3882, %v3883
        %v3885 = vsel %vm3709, %v3876, %v3884
        %v3886 = vrot.slane %v3226, 3
        %v3887 = vrot.slane %v3229, 4
        %v3888 = vor.u32 %v3886, %v3887
        %v3889 = vsel %vm3709, %v3880, %v3888
        %v3890 = vrot.slane %v3234, 3
        %v3891 = vrot.slane %v3237, 4
        %v3892 = vor.u32 %v3890, %v3891
        %v3893 = vsel %vm3709, %v3884, %v3892
        %v3894 = vrot.slane %v3241, 3
        %v3895 = vrot.slane %v3244, 4
        %v3896 = vor.u32 %v3894, %v3895
        %v3897 = vsel %vm3709, %v3888, %v3896
        %v3898 = vrot.slane %v3249, 3
        %v3899 = vrot.slane %v3252, 4
        %v3900 = vor.u32 %v3898, %v3899
        %v3901 = vsel %vm3709, %v3892, %v3900
        %v3902 = vrot.slane %v3256, 3
        %v3903 = vrot.slane %v3259, 4
        %v3904 = vor.u32 %v3902, %v3903
        %v3905 = vsel %vm3709, %v3896, %v3904
        %v3906 = vrot.slane %v3264, 3
        %v3907 = vrot.slane %v3267, 4
        %v3908 = vor.u32 %v3906, %v3907
        %v3909 = vsel %vm3709, %v3900, %v3908
        %v3910 = vshrl.u32 %v2850, 16
        %v3912 = vrot.slane %v3910, 3
        %v3913 = vshll.u32 %v2850, 16
        %v3915 = vrot.slane %v3913, 4
        %v3916 = vor.u32 %v3912, %v3915
        %v3917 = vsel %vm3709, %v3904, %v3916
        %v3919 = vshrl.u32 %v2801, 16
        %v3921 = vrot.slane %v3919, 3
        %v3922 = vshll.u32 %v2801, 16
        %v3924 = vrot.slane %v3922, 4
        %v3925 = vor.u32 %v3921, %v3924
        %v3926 = vsel %vm3709, %v3908, %v3925
        %v3927 = vshrl.u32 %v2852, 16
        %v3929 = vrot.slane %v3927, 3
        %v3930 = vshll.u32 %v2852, 16
        %v3932 = vrot.slane %v3930, 4
        %v3933 = vor.u32 %v3929, %v3932
        %v3934 = vsel %vm3709, %v3916, %v3933
        %v3936 = vshrl.u32 %v2800, 16
        %v3938 = vrot.slane %v3936, 3
        %v3939 = vshll.u32 %v2800, 16
        %v3941 = vrot.slane %v3939, 4
        %v3942 = vor.u32 %v3938, %v3941
        %v3943 = vsel %vm3709, %v3925, %v3942
        %v3992 = vunpack.c.l.b16 %v2853
        %v3993 = vunpack.c.l.b16 %v2854
        %v3994 = vunpack.c.l.b16 %v2855
        %v3995 = vunpack.c.l.b16 %v2856
        %v3996 = vunpack.c.l.b16 %v2857
        %v3997 = vunpack.c.l.b16 %v2858
        %v3998 = vunpack.c.l.b16 %v2859
        %v3999 = vunpack.c.l.b16 %v2860
        %v4000 = vunpack.c.l.b16 %v2861
        %v4001 = vunpack.c.l.b16 %v2862
        %v4002 = vunpack.c.l.b16 %v2863
        %v4003 = vunpack.c.l.b16 %v2864
        %v4004 = vunpack.c.l.b16 %v2865
        %v4005 = vunpack.c.l.b16 %v2866
        %v4006 = vunpack.c.l.b16 %v2867
        %v4007 = vunpack.c.l.b16 %v2868
        %v4008 = vunpack.c.l.b16 %v2869
        %v4009 = vunpack.c.l.b16 %v2870
        %v4010 = vunpack.c.l.b16 %v2871
        %v4011 = vunpack.c.l.b16 %v2872
        %v4012 = vunpack.c.l.b16 %v2873
        %v4013 = vunpack.c.l.b16 %v2874
        %v4014 = vunpack.c.l.b16 %v2875
        %v4015 = vunpack.c.l.b16 %v2876
        %v4016 = vpack.c.b16 %v3993, %v3992
        %v4017 = vpack.c.b16 %v3995, %v3994
        %v4018 = vpack.c.b16 %v3997, %v3996
        %v4019 = vpack.c.b16 %v3999, %v3998
        %v4020 = vpack.c.b16 %v4001, %v4000
        %v4021 = vpack.c.b16 %v4003, %v4002
        %v4022 = vpack.c.b16 %v4005, %v4004
        %v4023 = vpack.c.b16 %v4007, %v4006
        %v4024 = vpack.c.b16 %v4009, %v4008
        %v4025 = vpack.c.b16 %v4011, %v4010
        %v4026 = vpack.c.b16 %v4013, %v4012
        %v4027 = vpack.c.b16 %v4015, %v4014
        %v4041 = vsel %vm491, %v3741, 0
        %v4044 = vsel %vm491, %v3749, 0
        %v4047 = vsel %vm491, %v3757, 0
        %v4050 = vsel %vm491, %v3765, 0
        %v4053 = vsel %vm491, %v3773, 0
        %v4056 = vsel %vm491, %v3781, 0
        %v4059 = vsel %vm491, %v3789, 0
        %v4062 = vsel %vm491, %v3797, 0
        %v4065 = vsel %vm491, %v3805, 0
        %v4068 = vsel %vm491, %v3813, 0
        %v4071 = vsel %vm491, %v3821, 0
        %v4074 = vsel %vm491, %v3829, 0
        %v4077 = vsel %vm491, %v3837, 0
        %v4080 = vsel %vm491, %v3845, 0
        %v4083 = vsel %vm491, %v3853, 0
        %v4086 = vsel %vm491, %v3861, 0
        %v4089 = vsel %vm491, %v3869, 0
        %v4092 = vsel %vm491, %v3877, 0
        %v4095 = vsel %vm491, %v3885, 0
        %v4098 = vsel %vm491, %v3893, 0
        %v4101 = vsel %vm491, %v3901, 0
        %v4104 = vsel %vm491, %v3909, 0
        %v4107 = vsel %vm491, %v3926, 0
        %v4110 = vsel %vm491, %v3943, 0
        %4112 = vmatprep.subr.bf16.mxu0 0
        %4113 = vmatpush1.bf16.msra.mxu0 %v4016
        %4114 = vmatprep.subr.bf16.mxu0 0
        %4115 = vmatpush1.bf16.msra.mxu0 %v4017
        %4116 = vmatprep.subr.bf16.mxu0 0
        %4117 = vmatpush1.bf16.msra.mxu0 %v4018
        %4118 = vmatprep.subr.bf16.mxu0 0
        %4119 = vmatpush1.bf16.msra.mxu0 %v4019
        %4120 = vmatprep.subr.bf16.mxu0 0
        %4121 = vmatpush1.bf16.msra.mxu0 %v4020
        %4122 = vmatprep.subr.bf16.mxu0 0
        %4123 = vmatpush1.bf16.msra.mxu0 %v4021
        %4124 = vmatprep.subr.bf16.mxu0 0
        %4125 = vmatpush1.bf16.msra.mxu0 %v4022
        %4126 = vmatprep.subr.bf16.mxu0 0
        %4127 = vmatpush1.bf16.msra.mxu0 %v4023
        %4128 = vmatprep.subr.bf16.mxu0 0
        %4129 = vmatpush1.bf16.msra.mxu0 %v4024
        %4130 = vmatprep.subr.bf16.mxu0 0
        %4131 = vmatpush1.bf16.msra.mxu0 %v4025
        %4132 = vmatprep.subr.bf16.mxu0 0
        %4133 = vmatpush1.bf16.msra.mxu0 %v4026
        %4134 = vmatprep.subr.bf16.mxu0 0
        %4135 = vmatpush1.bf16.msra.mxu0 %v4027
        %4136 = vmatprep.subr.bf16.mxu0 0
        %4137 = vmatpush1.bf16.msra.mxu0 0
        %4138 = vmatprep.subr.bf16.mxu0 0
        %4139 = vmatpush1.bf16.msra.mxu0 0
        %4140 = vmatprep.subr.bf16.mxu0 0
        %4141 = vmatpush1.bf16.msra.mxu0 0
        %4142 = vmatprep.subr.bf16.mxu0 0
        %4143 = vmatpush1.bf16.msra.mxu0 0
        %4144 = vmatprep.mubr.bf16.mxu0 %v4041
        %4145 = vmatmul.mubr.bf16.gmra.mrb[0].mxu0 %v3724
        %v4146 = vpop.f32.mrb[0].mxu0
        %v4147 = vadd.f32 %v3519, %v4146
        %v4148 = vpop.f32.mrb[0].mxu0
        %v4149 = vpop.f32.mrb[0].mxu0
        %v4150 = vadd.f32 %v3522, %v4149
        %v4151 = vpop.f32.mrb[0].mxu0
        %4152 = vmatprep.mubr.bf16.mxu0 %v4044
        %4153 = vmatmul.mubr.bf16.gmra.mrb[0].mxu0 %v3745
        %v4154 = vpop.f32.mrb[0].mxu0
        %v4155 = vadd.f32 %v3527, %v4154
        %v4156 = vpop.f32.mrb[0].mxu0
        %v4157 = vpop.f32.mrb[0].mxu0
        %v4158 = vadd.f32 %v3530, %v4157
        %v4159 = vpop.f32.mrb[0].mxu0
        %4160 = vmatprep.mubr.bf16.mxu0 %v4047
        %4161 = vmatmul.mubr.bf16.gmra.mrb[0].mxu0 %v3753
        %v4162 = vpop.f32.mrb[0].mxu0
        %v4163 = vadd.f32 %v3535, %v4162
        %v4164 = vpop.f32.mrb[0].mxu0
        %v4165 = vpop.f32.mrb[0].mxu0
        %v4166 = vadd.f32 %v3538, %v4165
        %v4167 = vpop.f32.mrb[0].mxu0
        %4168 = vmatprep.mubr.bf16.mxu0 %v4050
        %4169 = vmatmul.mubr.bf16.gmra.mrb[0].mxu0 %v3761
        %v4170 = vpop.f32.mrb[0].mxu0
        %v4171 = vadd.f32 %v3543, %v4170
        %v4172 = vpop.f32.mrb[0].mxu0
        %v4173 = vpop.f32.mrb[0].mxu0
        %v4174 = vadd.f32 %v3546, %v4173
        %v4175 = vpop.f32.mrb[0].mxu0
        %4176 = vmatprep.mubr.bf16.mxu0 %v4053
        %4177 = vmatmul.mubr.bf16.gmra.mrb[0].mxu0 %v3769
        %v4178 = vpop.f32.mrb[0].mxu0
        %v4179 = vadd.f32 %v3551, %v4178
        %v4180 = vpop.f32.mrb[0].mxu0
        %v4181 = vpop.f32.mrb[0].mxu0
        %v4182 = vadd.f32 %v3554, %v4181
        %v4183 = vpop.f32.mrb[0].mxu0
        %4184 = vmatprep.mubr.bf16.mxu0 %v4056
        %4185 = vmatmul.mubr.bf16.gmra.mrb[0].mxu0 %v3777
        %v4186 = vpop.f32.mrb[0].mxu0
        %v4187 = vadd.f32 %v3559, %v4186
        %v4188 = vpop.f32.mrb[0].mxu0
        %v4189 = vpop.f32.mrb[0].mxu0
        %v4190 = vadd.f32 %v3562, %v4189
        %v4191 = vpop.f32.mrb[0].mxu0
        %4192 = vmatprep.mubr.bf16.mxu0 %v4059
        %4193 = vmatmul.mubr.bf16.gmra.mrb[0].mxu0 %v3785
        %v4194 = vpop.f32.mrb[0].mxu0
        %v4195 = vadd.f32 %v3567, %v4194
        %v4196 = vpop.f32.mrb[0].mxu0
        %v4197 = vpop.f32.mrb[0].mxu0
        %v4198 = vadd.f32 %v3570, %v4197
        %v4199 = vpop.f32.mrb[0].mxu0
        %4200 = vmatprep.mubr.bf16.mxu0 %v4062
        %4201 = vmatmul.mubr.bf16.gmra.mrb[0].mxu0 %v3793
        %v4202 = vpop.f32.mrb[0].mxu0
        %v4203 = vadd.f32 %v3575, %v4202
        %v4204 = vpop.f32.mrb[0].mxu0
        %v4205 = vpop.f32.mrb[0].mxu0
        %v4206 = vadd.f32 %v3578, %v4205
        %v4207 = vpop.f32.mrb[0].mxu0
        %4208 = vmatprep.mubr.bf16.mxu0 %v4065
        %4209 = vmatmul.mubr.bf16.gmra.mrb[0].mxu0 %v3801
        %v4210 = vpop.f32.mrb[0].mxu0
        %v4211 = vadd.f32 %v3583, %v4210
        %v4212 = vpop.f32.mrb[0].mxu0
        %v4213 = vpop.f32.mrb[0].mxu0
        %v4214 = vadd.f32 %v3586, %v4213
        %v4215 = vpop.f32.mrb[0].mxu0
        %4216 = vmatprep.mubr.bf16.mxu0 %v4068
        %4217 = vmatmul.mubr.bf16.gmra.mrb[0].mxu0 %v3809
        %v4218 = vpop.f32.mrb[0].mxu0
        %v4219 = vadd.f32 %v3591, %v4218
        %v4220 = vpop.f32.mrb[0].mxu0
        %v4221 = vpop.f32.mrb[0].mxu0
        %v4222 = vadd.f32 %v3594, %v4221
        %v4223 = vpop.f32.mrb[0].mxu0
        %4224 = vmatprep.mubr.bf16.mxu0 %v4071
        %4225 = vmatmul.mubr.bf16.gmra.mrb[0].mxu0 %v3817
        %v4226 = vpop.f32.mrb[0].mxu0
        %v4227 = vadd.f32 %v3599, %v4226
        %v4228 = vpop.f32.mrb[0].mxu0
        %v4229 = vpop.f32.mrb[0].mxu0
        %v4230 = vadd.f32 %v3602, %v4229
        %v4231 = vpop.f32.mrb[0].mxu0
        %4232 = vmatprep.mubr.bf16.mxu0 %v4074
        %4233 = vmatmul.mubr.bf16.gmra.mrb[0].mxu0 %v3825
        %v4234 = vpop.f32.mrb[0].mxu0
        %v4235 = vadd.f32 %v3607, %v4234
        %v4236 = vpop.f32.mrb[0].mxu0
        %v4237 = vpop.f32.mrb[0].mxu0
        %v4238 = vadd.f32 %v3610, %v4237
        %v4239 = vpop.f32.mrb[0].mxu0
        %4240 = vmatprep.mubr.bf16.mxu0 %v4077
        %4241 = vmatmul.mubr.bf16.gmra.mrb[0].mxu0 %v3833
        %v4242 = vpop.f32.mrb[0].mxu0
        %v4243 = vadd.f32 %v3615, %v4242
        %v4244 = vpop.f32.mrb[0].mxu0
        %v4245 = vpop.f32.mrb[0].mxu0
        %v4246 = vadd.f32 %v3618, %v4245
        %v4247 = vpop.f32.mrb[0].mxu0
        %4248 = vmatprep.mubr.bf16.mxu0 %v4080
        %4249 = vmatmul.mubr.bf16.gmra.mrb[0].mxu0 %v3841
        %v4250 = vpop.f32.mrb[0].mxu0
        %v4251 = vadd.f32 %v3623, %v4250
        %v4252 = vpop.f32.mrb[0].mxu0
        %v4253 = vpop.f32.mrb[0].mxu0
        %v4254 = vadd.f32 %v3626, %v4253
        %v4255 = vpop.f32.mrb[0].mxu0
        %4256 = vmatprep.mubr.bf16.mxu0 %v4083
        %4257 = vmatmul.mubr.bf16.gmra.mrb[0].mxu0 %v3849
        %v4258 = vpop.f32.mrb[0].mxu0
        %v4259 = vadd.f32 %v3631, %v4258
        %v4260 = vpop.f32.mrb[0].mxu0
        %v4261 = vpop.f32.mrb[0].mxu0
        %v4262 = vadd.f32 %v3634, %v4261
        %v4263 = vpop.f32.mrb[0].mxu0
        %4264 = vmatprep.mubr.bf16.mxu0 %v4086
        %4265 = vmatmul.mubr.bf16.gmra.mrb[0].mxu0 %v3857
        %v4266 = vpop.f32.mrb[0].mxu0
        %v4267 = vadd.f32 %v3639, %v4266
        %v4268 = vpop.f32.mrb[0].mxu0
        %v4269 = vpop.f32.mrb[0].mxu0
        %v4270 = vadd.f32 %v3642, %v4269
        %v4271 = vpop.f32.mrb[0].mxu0
        %4272 = vmatprep.mubr.bf16.mxu0 %v4089
        %4273 = vmatmul.mubr.bf16.gmra.mrb[0].mxu0 %v3865
        %v4274 = vpop.f32.mrb[0].mxu0
        %v4275 = vadd.f32 %v3647, %v4274
        %v4276 = vpop.f32.mrb[0].mxu0
        %v4277 = vpop.f32.mrb[0].mxu0
        %v4278 = vadd.f32 %v3650, %v4277
        %v4279 = vpop.f32.mrb[0].mxu0
        %4280 = vmatprep.mubr.bf16.mxu0 %v4092
        %4281 = vmatmul.mubr.bf16.gmra.mrb[0].mxu0 %v3873
        %v4282 = vpop.f32.mrb[0].mxu0
        %v4283 = vadd.f32 %v3655, %v4282
        %v4284 = vpop.f32.mrb[0].mxu0
        %v4285 = vpop.f32.mrb[0].mxu0
        %v4286 = vadd.f32 %v3658, %v4285
        %v4287 = vpop.f32.mrb[0].mxu0
        %4288 = vmatprep.mubr.bf16.mxu0 %v4095
        %4289 = vmatmul.mubr.bf16.gmra.mrb[0].mxu0 %v3881
        %v4290 = vpop.f32.mrb[0].mxu0
        %v4291 = vadd.f32 %v3663, %v4290
        %v4292 = vpop.f32.mrb[0].mxu0
        %v4293 = vpop.f32.mrb[0].mxu0
        %v4294 = vadd.f32 %v3666, %v4293
        %v4295 = vpop.f32.mrb[0].mxu0
        %4296 = vmatprep.mubr.bf16.mxu0 %v4098
        %4297 = vmatmul.mubr.bf16.gmra.mrb[0].mxu0 %v3889
        %v4298 = vpop.f32.mrb[0].mxu0
        %v4299 = vadd.f32 %v3671, %v4298
        %v4300 = vpop.f32.mrb[0].mxu0
        %v4301 = vpop.f32.mrb[0].mxu0
        %v4302 = vadd.f32 %v3674, %v4301
        %v4303 = vpop.f32.mrb[0].mxu0
        %4304 = vmatprep.mubr.bf16.mxu0 %v4101
        %4305 = vmatmul.mubr.bf16.gmra.mrb[0].mxu0 %v3897
        %v4306 = vpop.f32.mrb[0].mxu0
        %v4307 = vadd.f32 %v3679, %v4306
        %v4308 = vpop.f32.mrb[0].mxu0
        %v4309 = vpop.f32.mrb[0].mxu0
        %v4310 = vadd.f32 %v3682, %v4309
        %v4311 = vpop.f32.mrb[0].mxu0
        %4312 = vmatprep.mubr.bf16.mxu0 %v4104
        %4313 = vmatmul.mubr.bf16.gmra.mrb[0].mxu0 %v3905
        %v4314 = vpop.f32.mrb[0].mxu0
        %v4315 = vadd.f32 %v3687, %v4314
        %v4316 = vpop.f32.mrb[0].mxu0
        %v4317 = vpop.f32.mrb[0].mxu0
        %v4318 = vadd.f32 %v3690, %v4317
        %v4319 = vpop.f32.mrb[0].mxu0
        %4320 = vmatprep.mubr.bf16.mxu0 %v4107
        %4321 = vmatmul.mubr.bf16.gmra.mrb[0].mxu0 %v3917
        %v4322 = vpop.f32.mrb[0].mxu0
        %v4323 = vadd.f32 %v3695, %v4322
        %v4324 = vpop.f32.mrb[0].mxu0
        %v4325 = vpop.f32.mrb[0].mxu0
        %v4326 = vadd.f32 %v3698, %v4325
        %v4327 = vpop.f32.mrb[0].mxu0
        %4328 = vmatprep.mubr.bf16.mxu0 %v4110
        %4329 = vmatmul.mubr.bf16.gmra.mrb[0].mxu0 %v3934
        %v4330 = vpop.f32.mrb[0].mxu0
        %v4331 = vadd.f32 %v3703, %v4330
        %v4332 = vpop.f32.mrb[0].mxu0
        %v4333 = vpop.f32.mrb[0].mxu0
        %v4334 = vadd.f32 %v3706, %v4333
        %v4335 = vpop.f32.mrb[0].mxu0
        %4336 = vdwg.mxu0
        %v4337 = vld [vmem:[#allocation2 + $0x18] sm:$0xf8]
        %v4338 = vld [vmem:[#allocation2 + $0x20] sm:$0xff]
        %v4339 = vld [vmem:[#allocation2 + $0x28] sm:$0xff]
        %v4340 = vld [vmem:[#allocation2 + $0x30] sm:$0xff]
        %v4341 = vld [vmem:[#allocation2 + $0x38] sm:$0xff]
        %v4342 = vld [vmem:[#allocation2 + $0x40] sm:$0xff]
        %v4343 = vld [vmem:[#allocation2 + $0x48] sm:$0xff]
        %v4344 = vld [vmem:[#allocation2 + $0x50] sm:$0xff]
        %v4345 = vld [vmem:[#allocation2 + $0x58] sm:$0xff]
        %v4346 = vld [vmem:[#allocation2 + $0x60] sm:$0xff]
        %v4347 = vld [vmem:[#allocation2 + $0x68] sm:$0xff]
        %v4348 = vld [vmem:[#allocation2 + $0x70] sm:$0xff]
        %v4349 = vld [vmem:[#allocation2 + $0x78] sm:$0xff]
        %v4350 = vld [vmem:[#allocation2 + $0x80] sm:$0xff]
        %v4351 = vld [vmem:[#allocation2 + $0x88] sm:$0xff]
        %v4352 = vld [vmem:[#allocation2 + $0x90] sm:$0xff]
        %v4353 = vld [vmem:[#allocation2 + $0x98] sm:$0xff]
        %v4354 = vld [vmem:[#allocation2 + $0xa0] sm:$0xff]
        %v4355 = vld [vmem:[#allocation2 + $0xa8] sm:$0xff]
        %v4356 = vld [vmem:[#allocation2 + $0xb0] sm:$0xff]
        %v4357 = vld [vmem:[#allocation2 + $0xb8] sm:$0xff]
        %v4358 = vld [vmem:[#allocation2 + $0xc0] sm:$0xff]
        %v4359 = vld [vmem:[#allocation2 + $0xc8] sm:$0xff]
        %v4360 = vld [vmem:[#allocation2 + $0xd0] sm:$0xff]
        %v4361 = vld [vmem:[#allocation2 + $0xd8] sm:$0xf]
        %v4362 = vld [vmem:[#allocation2 + $0x18] sm:$0xf0]
        %v4363 = vld [vmem:[#allocation2 + $0xd8] sm:$0x1f]
        %v4365 = vshrl.u32 %v4362, 16
        %v4367 = vshll.u32 %v4362, 16
        %v4369 = vrot.slane %v4367, 1
        %v4370 = vor.u32 %v4365, %v4369
        %v4372 = vshll.u32 %v4338, 16
        %v4374 = vrot.slane %v4372, 1
        %v4375 = vsel %vm2477, %v4370, %v4374
        %v4376 = vshrl.u32 %v4338, 16
        %v4378 = vor.u32 %v4376, %v4374
        %v4380 = vshll.u32 %v4339, 16
        %v4382 = vrot.slane %v4380, 1
        %v4383 = vsel %vm2477, %v4378, %v4382
        %v4384 = vshrl.u32 %v4339, 16
        %v4386 = vor.u32 %v4384, %v4382
        %v4388 = vshll.u32 %v4340, 16
        %v4390 = vrot.slane %v4388, 1
        %v4391 = vsel %vm2477, %v4386, %v4390
        %v4392 = vshrl.u32 %v4340, 16
        %v4394 = vor.u32 %v4392, %v4390
        %v4396 = vshll.u32 %v4341, 16
        %v4398 = vrot.slane %v4396, 1
        %v4399 = vsel %vm2477, %v4394, %v4398
        %v4400 = vshrl.u32 %v4341, 16
        %v4402 = vor.u32 %v4400, %v4398
        %v4404 = vshll.u32 %v4342, 16
        %v4406 = vrot.slane %v4404, 1
        %v4407 = vsel %vm2477, %v4402, %v4406
        %v4408 = vshrl.u32 %v4342, 16
        %v4410 = vor.u32 %v4408, %v4406
        %v4412 = vshll.u32 %v4343, 16
        %v4414 = vrot.slane %v4412, 1
        %v4415 = vsel %vm2477, %v4410, %v4414
        %v4416 = vshrl.u32 %v4343, 16
        %v4418 = vor.u32 %v4416, %v4414
        %v4420 = vshll.u32 %v4344, 16
        %v4422 = vrot.slane %v4420, 1
        %v4423 = vsel %vm2477, %v4418, %v4422
        %v4424 = vshrl.u32 %v4344, 16
        %v4426 = vor.u32 %v4424, %v4422
        %v4428 = vshll.u32 %v4345, 16
        %v4430 = vrot.slane %v4428, 1
        %v4431 = vsel %vm2477, %v4426, %v4430
        %v4432 = vshrl.u32 %v4345, 16
        %v4434 = vor.u32 %v4432, %v4430
        %v4436 = vshll.u32 %v4346, 16
        %v4438 = vrot.slane %v4436, 1
        %v4439 = vsel %vm2477, %v4434, %v4438
        %v4440 = vshrl.u32 %v4346, 16
        %v4442 = vor.u32 %v4440, %v4438
        %v4444 = vshll.u32 %v4347, 16
        %v4446 = vrot.slane %v4444, 1
        %v4447 = vsel %vm2477, %v4442, %v4446
        %v4448 = vshrl.u32 %v4347, 16
        %v4450 = vor.u32 %v4448, %v4446
        %v4452 = vshll.u32 %v4348, 16
        %v4454 = vrot.slane %v4452, 1
        %v4455 = vsel %vm2477, %v4450, %v4454
        %v4456 = vshrl.u32 %v4348, 16
        %v4458 = vor.u32 %v4456, %v4454
        %v4460 = vshll.u32 %v4349, 16
        %v4462 = vrot.slane %v4460, 1
        %v4463 = vsel %vm2477, %v4458, %v4462
        %v4464 = vshrl.u32 %v4349, 16
        %v4466 = vor.u32 %v4464, %v4462
        %v4468 = vshll.u32 %v4350, 16
        %v4470 = vrot.slane %v4468, 1
        %v4471 = vsel %vm2477, %v4466, %v4470
        %v4472 = vshrl.u32 %v4350, 16
        %v4474 = vor.u32 %v4472, %v4470
        %v4476 = vshll.u32 %v4351, 16
        %v4478 = vrot.slane %v4476, 1
        %v4479 = vsel %vm2477, %v4474, %v4478
        %v4480 = vshrl.u32 %v4351, 16
        %v4482 = vor.u32 %v4480, %v4478
        %v4484 = vshll.u32 %v4352, 16
        %v4486 = vrot.slane %v4484, 1
        %v4487 = vsel %vm2477, %v4482, %v4486
        %v4488 = vshrl.u32 %v4352, 16
        %v4490 = vor.u32 %v4488, %v4486
        %v4492 = vshll.u32 %v4353, 16
        %v4494 = vrot.slane %v4492, 1
        %v4495 = vsel %vm2477, %v4490, %v4494
        %v4496 = vshrl.u32 %v4353, 16
        %v4498 = vor.u32 %v4496, %v4494
        %v4500 = vshll.u32 %v4354, 16
        %v4502 = vrot.slane %v4500, 1
        %v4503 = vsel %vm2477, %v4498, %v4502
        %v4504 = vshrl.u32 %v4354, 16
        %v4506 = vor.u32 %v4504, %v4502
        %v4508 = vshll.u32 %v4355, 16
        %v4510 = vrot.slane %v4508, 1
        %v4511 = vsel %vm2477, %v4506, %v4510
        %v4512 = vshrl.u32 %v4355, 16
        %v4514 = vor.u32 %v4512, %v4510
        %v4516 = vshll.u32 %v4356, 16
        %v4518 = vrot.slane %v4516, 1
        %v4519 = vsel %vm2477, %v4514, %v4518
        %v4520 = vshrl.u32 %v4356, 16
        %v4522 = vor.u32 %v4520, %v4518
        %v4524 = vshll.u32 %v4357, 16
        %v4526 = vrot.slane %v4524, 1
        %v4527 = vsel %vm2477, %v4522, %v4526
        %v4528 = vshrl.u32 %v4357, 16
        %v4530 = vor.u32 %v4528, %v4526
        %v4532 = vshll.u32 %v4358, 16
        %v4534 = vrot.slane %v4532, 1
        %v4535 = vsel %vm2477, %v4530, %v4534
        %v4536 = vshrl.u32 %v4358, 16
        %v4538 = vor.u32 %v4536, %v4534
        %v4540 = vshll.u32 %v4359, 16
        %v4542 = vrot.slane %v4540, 1
        %v4543 = vsel %vm2477, %v4538, %v4542
        %v4544 = vshrl.u32 %v4359, 16
        %v4546 = vor.u32 %v4544, %v4542
        %v4548 = vshll.u32 %v4360, 16
        %v4550 = vrot.slane %v4548, 1
        %v4551 = vsel %vm2477, %v4546, %v4550
        %v4552 = vshrl.u32 %v4360, 16
        %v4554 = vor.u32 %v4552, %v4550
        %v4556 = vshll.u32 %v4361, 16
        %v4558 = vrot.slane %v4556, 1
        %v4559 = vsel %vm2477, %v4554, %v4558
        %v4560 = vshrl.u32 %v4361, 16
        %v4562 = vor.u32 %v4560, %v4558
        %4563 = vrot.lane.b32.xlu0 %v4375, 64
        %v4564 = vpop.permute.xlu0 %4563
        %4565 = vrot.lane.b32.xlu0 %v4383, 64
        %v4566 = vpop.permute.xlu0 %4565
        %4567 = vrot.lane.b32.xlu0 %v4391, 64
        %v4568 = vpop.permute.xlu0 %4567
        %4569 = vrot.lane.b32.xlu0 %v4399, 64
        %v4570 = vpop.permute.xlu0 %4569
        %4571 = vrot.lane.b32.xlu0 %v4407, 64
        %v4572 = vpop.permute.xlu0 %4571
        %4573 = vrot.lane.b32.xlu0 %v4415, 64
        %v4574 = vpop.permute.xlu0 %4573
        %4575 = vrot.lane.b32.xlu0 %v4423, 64
        %v4576 = vpop.permute.xlu0 %4575
        %4577 = vrot.lane.b32.xlu0 %v4431, 64
        %v4578 = vpop.permute.xlu0 %4577
        %4579 = vrot.lane.b32.xlu0 %v4439, 64
        %v4580 = vpop.permute.xlu0 %4579
        %4581 = vrot.lane.b32.xlu0 %v4447, 64
        %v4582 = vpop.permute.xlu0 %4581
        %4583 = vrot.lane.b32.xlu0 %v4455, 64
        %v4584 = vpop.permute.xlu0 %4583
        %4585 = vrot.lane.b32.xlu0 %v4463, 64
        %v4586 = vpop.permute.xlu0 %4585
        %4587 = vrot.lane.b32.xlu0 %v4471, 64
        %v4588 = vpop.permute.xlu0 %4587
        %4589 = vrot.lane.b32.xlu0 %v4479, 64
        %v4590 = vpop.permute.xlu0 %4589
        %4591 = vrot.lane.b32.xlu0 %v4487, 64
        %v4592 = vpop.permute.xlu0 %4591
        %4593 = vrot.lane.b32.xlu0 %v4495, 64
        %v4594 = vpop.permute.xlu0 %4593
        %4595 = vrot.lane.b32.xlu0 %v4503, 64
        %v4596 = vpop.permute.xlu0 %4595
        %4597 = vrot.lane.b32.xlu0 %v4511, 64
        %v4598 = vpop.permute.xlu0 %4597
        %4599 = vrot.lane.b32.xlu0 %v4519, 64
        %v4600 = vpop.permute.xlu0 %4599
        %4601 = vrot.lane.b32.xlu0 %v4527, 64
        %v4602 = vpop.permute.xlu0 %4601
        %4603 = vrot.lane.b32.xlu0 %v4535, 64
        %v4604 = vpop.permute.xlu0 %4603
        %4605 = vrot.lane.b32.xlu0 %v4543, 64
        %v4606 = vpop.permute.xlu0 %4605
        %4607 = vrot.lane.b32.xlu0 %v4551, 64
        %v4608 = vpop.permute.xlu0 %4607
        %4609 = vrot.lane.b32.xlu0 %v4559, 64
        %v4610 = vpop.permute.xlu0 %4609
        %4611 = vrot.lane.b32.xlu0 %v4562, 64
        %v4612 = vpop.permute.xlu0 %4611
        %v4638 = vrot.slane %v4362, 1
        %v4639 = vrot.slane %v4338, 1
        %v4640 = vsel %vm2752, %v4638, %v4639
        %v4641 = vrot.slane %v4339, 1
        %v4642 = vsel %vm2752, %v4639, %v4641
        %v4643 = vrot.slane %v4340, 1
        %v4644 = vsel %vm2752, %v4641, %v4643
        %v4645 = vrot.slane %v4341, 1
        %v4646 = vsel %vm2752, %v4643, %v4645
        %v4647 = vrot.slane %v4342, 1
        %v4648 = vsel %vm2752, %v4645, %v4647
        %v4649 = vrot.slane %v4343, 1
        %v4650 = vsel %vm2752, %v4647, %v4649
        %v4651 = vrot.slane %v4344, 1
        %v4652 = vsel %vm2752, %v4649, %v4651
        %v4653 = vrot.slane %v4345, 1
        %v4654 = vsel %vm2752, %v4651, %v4653
        %v4655 = vrot.slane %v4346, 1
        %v4656 = vsel %vm2752, %v4653, %v4655
        %v4657 = vrot.slane %v4347, 1
        %v4658 = vsel %vm2752, %v4655, %v4657
        %v4659 = vrot.slane %v4348, 1
        %v4660 = vsel %vm2752, %v4657, %v4659
        %v4661 = vrot.slane %v4349, 1
        %v4662 = vsel %vm2752, %v4659, %v4661
        %v4663 = vrot.slane %v4350, 1
        %v4664 = vsel %vm2752, %v4661, %v4663
        %v4665 = vrot.slane %v4351, 1
        %v4666 = vsel %vm2752, %v4663, %v4665
        %v4667 = vrot.slane %v4352, 1
        %v4668 = vsel %vm2752, %v4665, %v4667
        %v4669 = vrot.slane %v4353, 1
        %v4670 = vsel %vm2752, %v4667, %v4669
        %v4671 = vrot.slane %v4354, 1
        %v4672 = vsel %vm2752, %v4669, %v4671
        %v4673 = vrot.slane %v4355, 1
        %v4674 = vsel %vm2752, %v4671, %v4673
        %v4675 = vrot.slane %v4356, 1
        %v4676 = vsel %vm2752, %v4673, %v4675
        %v4677 = vrot.slane %v4357, 1
        %v4678 = vsel %vm2752, %v4675, %v4677
        %v4679 = vrot.slane %v4358, 1
        %v4680 = vsel %vm2752, %v4677, %v4679
        %v4681 = vrot.slane %v4359, 1
        %v4682 = vsel %vm2752, %v4679, %v4681
        %v4683 = vrot.slane %v4360, 1
        %v4684 = vsel %vm2752, %v4681, %v4683
        %v4685 = vrot.slane %v4363, 1
        %v4686 = vsel %vm2752, %v4683, %v4685
        %v4689 = vsel %vm491, %v4337, %v4564
        %v4691 = vsel %vm491, %v4338, %v4566
        %v4693 = vsel %vm491, %v4339, %v4568
        %v4695 = vsel %vm491, %v4340, %v4570
        %v4697 = vsel %vm491, %v4341, %v4572
        %v4699 = vsel %vm491, %v4342, %v4574
        %v4701 = vsel %vm491, %v4343, %v4576
        %v4703 = vsel %vm491, %v4344, %v4578
        %v4705 = vsel %vm491, %v4345, %v4580
        %v4707 = vsel %vm491, %v4346, %v4582
        %v4709 = vsel %vm491, %v4347, %v4584
        %v4711 = vsel %vm491, %v4348, %v4586
        %v4713 = vsel %vm491, %v4349, %v4588
        %v4715 = vsel %vm491, %v4350, %v4590
        %v4717 = vsel %vm491, %v4351, %v4592
        %v4719 = vsel %vm491, %v4352, %v4594
        %v4721 = vsel %vm491, %v4353, %v4596
        %v4723 = vsel %vm491, %v4354, %v4598
        %v4725 = vsel %vm491, %v4355, %v4600
        %v4727 = vsel %vm491, %v4356, %v4602
        %v4729 = vsel %vm491, %v4357, %v4604
        %v4731 = vsel %vm491, %v4358, %v4606
        %v4733 = vsel %vm491, %v4359, %v4608
        %v4735 = vsel %vm491, %v4360, %v4610
        %v4737 = vsel %vm491, %v4361, %v4612
        %s4738 = scalar_lea.vmem [#allocation13], 192
        %v4739 = vld [vmem:[%s4738] sm:$0xf]
        %v4740 = vld [vmem:[%s4738 + $0x4] sm:$0xf]
        %v4741 = vld [vmem:[%s4738 + $0x8] sm:$0xf]
        %v4742 = vld [vmem:[%s4738 + $0xc] sm:$0xf]
        %v4743 = vld [vmem:[%s4738 + $0x10] sm:$0xf]
        %v4744 = vld [vmem:[%s4738 + $0x14] sm:$0xf]
        %v4745 = vld [vmem:[%s4738 + $0x18] sm:$0xf]
        %v4746 = vld [vmem:[%s4738 + $0x1c] sm:$0xf]
        %v4747 = vld [vmem:[%s4738 + $0x20] sm:$0xf]
        %v4748 = vld [vmem:[%s4738 + $0x24] sm:$0xf]
        %v4749 = vld [vmem:[%s4738 + $0x28] sm:$0xf]
        %v4750 = vld [vmem:[%s4738 + $0x2c] sm:$0xf]
        %v4751 = vld [vmem:[%s4738 + $0x30] sm:$0xf]
        %v4752 = vld [vmem:[%s4738 + $0x34] sm:$0xf]
        %v4753 = vld [vmem:[%s4738 + $0x38] sm:$0xf]
        %v4754 = vld [vmem:[%s4738 + $0x3c] sm:$0xf]
        %v4755 = vld [vmem:[%s4738 + $0x40] sm:$0xf]
        %v4756 = vld [vmem:[%s4738 + $0x44] sm:$0xf]
        %v4757 = vld [vmem:[%s4738 + $0x48] sm:$0xf]
        %v4758 = vld [vmem:[%s4738 + $0x4c] sm:$0xf]
        %v4759 = vld [vmem:[%s4738 + $0x50] sm:$0xf]
        %v4760 = vld [vmem:[%s4738 + $0x54] sm:$0xf]
        %v4761 = vld [vmem:[%s4738 + $0x58] sm:$0xf]
        %v4762 = vld [vmem:[%s4738 + $0x5c] sm:$0xf]
        %v4763 = vshrl.u32 %v4689, 16
        %v4765 = vrot.slane %v4763, 3
        %v4766 = vshll.u32 %v4689, 16
        %v4768 = vrot.slane %v4766, 4
        %v4769 = vor.u32 %v4765, %v4768
        %v4770 = vshrl.u32 %v4691, 16
        %v4772 = vrot.slane %v4770, 3
        %v4773 = vshll.u32 %v4691, 16
        %v4775 = vrot.slane %v4773, 4
        %v4776 = vor.u32 %v4772, %v4775
        %v4777 = vsel %vm3709, %v4769, %v4776
        %v4779 = vshrl.u32 %v4640, 16
        %v4781 = vrot.slane %v4779, 3
        %v4782 = vshll.u32 %v4640, 16
        %v4784 = vrot.slane %v4782, 4
        %v4785 = vor.u32 %v4781, %v4784
        %v4787 = vshrl.u32 %v4642, 16
        %v4789 = vrot.slane %v4787, 3
        %v4790 = vshll.u32 %v4642, 16
        %v4792 = vrot.slane %v4790, 4
        %v4793 = vor.u32 %v4789, %v4792
        %v4794 = vsel %vm3709, %v4785, %v4793
        %v4795 = vshrl.u32 %v4693, 16
        %v4797 = vrot.slane %v4795, 3
        %v4798 = vshll.u32 %v4693, 16
        %v4800 = vrot.slane %v4798, 4
        %v4801 = vor.u32 %v4797, %v4800
        %v4802 = vsel %vm3709, %v4776, %v4801
        %v4804 = vshrl.u32 %v4644, 16
        %v4806 = vrot.slane %v4804, 3
        %v4807 = vshll.u32 %v4644, 16
        %v4809 = vrot.slane %v4807, 4
        %v4810 = vor.u32 %v4806, %v4809
        %v4811 = vsel %vm3709, %v4793, %v4810
        %v4812 = vshrl.u32 %v4695, 16
        %v4814 = vrot.slane %v4812, 3
        %v4815 = vshll.u32 %v4695, 16
        %v4817 = vrot.slane %v4815, 4
        %v4818 = vor.u32 %v4814, %v4817
        %v4819 = vsel %vm3709, %v4801, %v4818
        %v4821 = vshrl.u32 %v4646, 16
        %v4823 = vrot.slane %v4821, 3
        %v4824 = vshll.u32 %v4646, 16
        %v4826 = vrot.slane %v4824, 4
        %v4827 = vor.u32 %v4823, %v4826
        %v4828 = vsel %vm3709, %v4810, %v4827
        %v4829 = vshrl.u32 %v4697, 16
        %v4831 = vrot.slane %v4829, 3
        %v4832 = vshll.u32 %v4697, 16
        %v4834 = vrot.slane %v4832, 4
        %v4835 = vor.u32 %v4831, %v4834
        %v4836 = vsel %vm3709, %v4818, %v4835
        %v4838 = vshrl.u32 %v4648, 16
        %v4840 = vrot.slane %v4838, 3
        %v4841 = vshll.u32 %v4648, 16
        %v4843 = vrot.slane %v4841, 4
        %v4844 = vor.u32 %v4840, %v4843
        %v4845 = vsel %vm3709, %v4827, %v4844
        %v4846 = vshrl.u32 %v4699, 16
        %v4848 = vrot.slane %v4846, 3
        %v4849 = vshll.u32 %v4699, 16
        %v4851 = vrot.slane %v4849, 4
        %v4852 = vor.u32 %v4848, %v4851
        %v4853 = vsel %vm3709, %v4835, %v4852
        %v4855 = vshrl.u32 %v4650, 16
        %v4857 = vrot.slane %v4855, 3
        %v4858 = vshll.u32 %v4650, 16
        %v4860 = vrot.slane %v4858, 4
        %v4861 = vor.u32 %v4857, %v4860
        %v4862 = vsel %vm3709, %v4844, %v4861
        %v4863 = vshrl.u32 %v4701, 16
        %v4865 = vrot.slane %v4863, 3
        %v4866 = vshll.u32 %v4701, 16
        %v4868 = vrot.slane %v4866, 4
        %v4869 = vor.u32 %v4865, %v4868
        %v4870 = vsel %vm3709, %v4852, %v4869
        %v4872 = vshrl.u32 %v4652, 16
        %v4874 = vrot.slane %v4872, 3
        %v4875 = vshll.u32 %v4652, 16
        %v4877 = vrot.slane %v4875, 4
        %v4878 = vor.u32 %v4874, %v4877
        %v4879 = vsel %vm3709, %v4861, %v4878
        %v4880 = vshrl.u32 %v4703, 16
        %v4882 = vrot.slane %v4880, 3
        %v4883 = vshll.u32 %v4703, 16
        %v4885 = vrot.slane %v4883, 4
        %v4886 = vor.u32 %v4882, %v4885
        %v4887 = vsel %vm3709, %v4869, %v4886
        %v4889 = vshrl.u32 %v4654, 16
        %v4891 = vrot.slane %v4889, 3
        %v4892 = vshll.u32 %v4654, 16
        %v4894 = vrot.slane %v4892, 4
        %v4895 = vor.u32 %v4891, %v4894
        %v4896 = vsel %vm3709, %v4878, %v4895
        %v4897 = vshrl.u32 %v4705, 16
        %v4899 = vrot.slane %v4897, 3
        %v4900 = vshll.u32 %v4705, 16
        %v4902 = vrot.slane %v4900, 4
        %v4903 = vor.u32 %v4899, %v4902
        %v4904 = vsel %vm3709, %v4886, %v4903
        %v4906 = vshrl.u32 %v4656, 16
        %v4908 = vrot.slane %v4906, 3
        %v4909 = vshll.u32 %v4656, 16
        %v4911 = vrot.slane %v4909, 4
        %v4912 = vor.u32 %v4908, %v4911
        %v4913 = vsel %vm3709, %v4895, %v4912
        %v4914 = vshrl.u32 %v4707, 16
        %v4916 = vrot.slane %v4914, 3
        %v4917 = vshll.u32 %v4707, 16
        %v4919 = vrot.slane %v4917, 4
        %v4920 = vor.u32 %v4916, %v4919
        %v4921 = vsel %vm3709, %v4903, %v4920
        %v4923 = vshrl.u32 %v4658, 16
        %v4925 = vrot.slane %v4923, 3
        %v4926 = vshll.u32 %v4658, 16
        %v4928 = vrot.slane %v4926, 4
        %v4929 = vor.u32 %v4925, %v4928
        %v4930 = vsel %vm3709, %v4912, %v4929
        %v4931 = vshrl.u32 %v4709, 16
        %v4933 = vrot.slane %v4931, 3
        %v4934 = vshll.u32 %v4709, 16
        %v4936 = vrot.slane %v4934, 4
        %v4937 = vor.u32 %v4933, %v4936
        %v4938 = vsel %vm3709, %v4920, %v4937
        %v4940 = vshrl.u32 %v4660, 16
        %v4942 = vrot.slane %v4940, 3
        %v4943 = vshll.u32 %v4660, 16
        %v4945 = vrot.slane %v4943, 4
        %v4946 = vor.u32 %v4942, %v4945
        %v4947 = vsel %vm3709, %v4929, %v4946
        %v4948 = vshrl.u32 %v4711, 16
        %v4950 = vrot.slane %v4948, 3
        %v4951 = vshll.u32 %v4711, 16
        %v4953 = vrot.slane %v4951, 4
        %v4954 = vor.u32 %v4950, %v4953
        %v4955 = vsel %vm3709, %v4937, %v4954
        %v4957 = vshrl.u32 %v4662, 16
        %v4959 = vrot.slane %v4957, 3
        %v4960 = vshll.u32 %v4662, 16
        %v4962 = vrot.slane %v4960, 4
        %v4963 = vor.u32 %v4959, %v4962
        %v4964 = vsel %vm3709, %v4946, %v4963
        %v4965 = vshrl.u32 %v4713, 16
        %v4967 = vrot.slane %v4965, 3
        %v4968 = vshll.u32 %v4713, 16
        %v4970 = vrot.slane %v4968, 4
        %v4971 = vor.u32 %v4967, %v4970
        %v4972 = vsel %vm3709, %v4954, %v4971
        %v4974 = vshrl.u32 %v4664, 16
        %v4976 = vrot.slane %v4974, 3
        %v4977 = vshll.u32 %v4664, 16
        %v4979 = vrot.slane %v4977, 4
        %v4980 = vor.u32 %v4976, %v4979
        %v4981 = vsel %vm3709, %v4963, %v4980
        %v4982 = vshrl.u32 %v4715, 16
        %v4984 = vrot.slane %v4982, 3
        %v4985 = vshll.u32 %v4715, 16
        %v4987 = vrot.slane %v4985, 4
        %v4988 = vor.u32 %v4984, %v4987
        %v4989 = vsel %vm3709, %v4971, %v4988
        %v4991 = vshrl.u32 %v4666, 16
        %v4993 = vrot.slane %v4991, 3
        %v4994 = vshll.u32 %v4666, 16
        %v4996 = vrot.slane %v4994, 4
        %v4997 = vor.u32 %v4993, %v4996
        %v4998 = vsel %vm3709, %v4980, %v4997
        %v4999 = vshrl.u32 %v4717, 16
        %v5001 = vrot.slane %v4999, 3
        %v5002 = vshll.u32 %v4717, 16
        %v5004 = vrot.slane %v5002, 4
        %v5005 = vor.u32 %v5001, %v5004
        %v5006 = vsel %vm3709, %v4988, %v5005
        %v5008 = vshrl.u32 %v4668, 16
        %v5010 = vrot.slane %v5008, 3
        %v5011 = vshll.u32 %v4668, 16
        %v5013 = vrot.slane %v5011, 4
        %v5014 = vor.u32 %v5010, %v5013
        %v5015 = vsel %vm3709, %v4997, %v5014
        %v5016 = vshrl.u32 %v4719, 16
        %v5018 = vrot.slane %v5016, 3
        %v5019 = vshll.u32 %v4719, 16
        %v5021 = vrot.slane %v5019, 4
        %v5022 = vor.u32 %v5018, %v5021
        %v5023 = vsel %vm3709, %v5005, %v5022
        %v5025 = vshrl.u32 %v4670, 16
        %v5027 = vrot.slane %v5025, 3
        %v5028 = vshll.u32 %v4670, 16
        %v5030 = vrot.slane %v5028, 4
        %v5031 = vor.u32 %v5027, %v5030
        %v5032 = vsel %vm3709, %v5014, %v5031
        %v5033 = vshrl.u32 %v4721, 16
        %v5035 = vrot.slane %v5033, 3
        %v5036 = vshll.u32 %v4721, 16
        %v5038 = vrot.slane %v5036, 4
        %v5039 = vor.u32 %v5035, %v5038
        %v5040 = vsel %vm3709, %v5022, %v5039
        %v5042 = vshrl.u32 %v4672, 16
        %v5044 = vrot.slane %v5042, 3
        %v5045 = vshll.u32 %v4672, 16
        %v5047 = vrot.slane %v5045, 4
        %v5048 = vor.u32 %v5044, %v5047
        %v5049 = vsel %vm3709, %v5031, %v5048
        %v5050 = vshrl.u32 %v4723, 16
        %v5052 = vrot.slane %v5050, 3
        %v5053 = vshll.u32 %v4723, 16
        %v5055 = vrot.slane %v5053, 4
        %v5056 = vor.u32 %v5052, %v5055
        %v5057 = vsel %vm3709, %v5039, %v5056
        %v5059 = vshrl.u32 %v4674, 16
        %v5061 = vrot.slane %v5059, 3
        %v5062 = vshll.u32 %v4674, 16
        %v5064 = vrot.slane %v5062, 4
        %v5065 = vor.u32 %v5061, %v5064
        %v5066 = vsel %vm3709, %v5048, %v5065
        %v5067 = vshrl.u32 %v4725, 16
        %v5069 = vrot.slane %v5067, 3
        %v5070 = vshll.u32 %v4725, 16
        %v5072 = vrot.slane %v5070, 4
        %v5073 = vor.u32 %v5069, %v5072
        %v5074 = vsel %vm3709, %v5056, %v5073
        %v5076 = vshrl.u32 %v4676, 16
        %v5078 = vrot.slane %v5076, 3
        %v5079 = vshll.u32 %v4676, 16
        %v5081 = vrot.slane %v5079, 4
        %v5082 = vor.u32 %v5078, %v5081
        %v5083 = vsel %vm3709, %v5065, %v5082
        %v5084 = vshrl.u32 %v4727, 16
        %v5086 = vrot.slane %v5084, 3
        %v5087 = vshll.u32 %v4727, 16
        %v5089 = vrot.slane %v5087, 4
        %v5090 = vor.u32 %v5086, %v5089
        %v5091 = vsel %vm3709, %v5073, %v5090
        %v5093 = vshrl.u32 %v4678, 16
        %v5095 = vrot.slane %v5093, 3
        %v5096 = vshll.u32 %v4678, 16
        %v5098 = vrot.slane %v5096, 4
        %v5099 = vor.u32 %v5095, %v5098
        %v5100 = vsel %vm3709, %v5082, %v5099
        %v5101 = vshrl.u32 %v4729, 16
        %v5103 = vrot.slane %v5101, 3
        %v5104 = vshll.u32 %v4729, 16
        %v5106 = vrot.slane %v5104, 4
        %v5107 = vor.u32 %v5103, %v5106
        %v5108 = vsel %vm3709, %v5090, %v5107
        %v5110 = vshrl.u32 %v4680, 16
        %v5112 = vrot.slane %v5110, 3
        %v5113 = vshll.u32 %v4680, 16
        %v5115 = vrot.slane %v5113, 4
        %v5116 = vor.u32 %v5112, %v5115
        %v5117 = vsel %vm3709, %v5099, %v5116
        %v5118 = vshrl.u32 %v4731, 16
        %v5120 = vrot.slane %v5118, 3
        %v5121 = vshll.u32 %v4731, 16
        %v5123 = vrot.slane %v5121, 4
        %v5124 = vor.u32 %v5120, %v5123
        %v5125 = vsel %vm3709, %v5107, %v5124
        %v5127 = vshrl.u32 %v4682, 16
        %v5129 = vrot.slane %v5127, 3
        %v5130 = vshll.u32 %v4682, 16
        %v5132 = vrot.slane %v5130, 4
        %v5133 = vor.u32 %v5129, %v5132
        %v5134 = vsel %vm3709, %v5116, %v5133
        %v5135 = vshrl.u32 %v4733, 16
        %v5137 = vrot.slane %v5135, 3
        %v5138 = vshll.u32 %v4733, 16
        %v5140 = vrot.slane %v5138, 4
        %v5141 = vor.u32 %v5137, %v5140
        %v5142 = vsel %vm3709, %v5124, %v5141
        %v5144 = vshrl.u32 %v4684, 16
        %v5146 = vrot.slane %v5144, 3
        %v5147 = vshll.u32 %v4684, 16
        %v5149 = vrot.slane %v5147, 4
        %v5150 = vor.u32 %v5146, %v5149
        %v5151 = vsel %vm3709, %v5133, %v5150
        %v5152 = vshrl.u32 %v4735, 16
        %v5154 = vrot.slane %v5152, 3
        %v5155 = vshll.u32 %v4735, 16
        %v5157 = vrot.slane %v5155, 4
        %v5158 = vor.u32 %v5154, %v5157
        %v5159 = vsel %vm3709, %v5141, %v5158
        %v5161 = vshrl.u32 %v4686, 16
        %v5163 = vrot.slane %v5161, 3
        %v5164 = vshll.u32 %v4686, 16
        %v5166 = vrot.slane %v5164, 4
        %v5167 = vor.u32 %v5163, %v5166
        %v5168 = vsel %vm3709, %v5150, %v5167
        %v5169 = vshrl.u32 %v4737, 16
        %v5171 = vrot.slane %v5169, 3
        %v5172 = vshll.u32 %v4737, 16
        %v5174 = vrot.slane %v5172, 4
        %v5175 = vor.u32 %v5171, %v5174
        %v5176 = vsel %vm3709, %v5158, %v5175
        %v5178 = vshrl.u32 %v4685, 16
        %v5180 = vrot.slane %v5178, 3
        %v5181 = vshll.u32 %v4685, 16
        %v5183 = vrot.slane %v5181, 4
        %v5184 = vor.u32 %v5180, %v5183
        %v5185 = vsel %vm3709, %v5167, %v5184
        %v5234 = vunpack.c.l.b16 %v4739
        %v5235 = vunpack.c.l.b16 %v4740
        %v5236 = vunpack.c.l.b16 %v4741
        %v5237 = vunpack.c.l.b16 %v4742
        %v5238 = vunpack.c.l.b16 %v4743
        %v5239 = vunpack.c.l.b16 %v4744
        %v5240 = vunpack.c.l.b16 %v4745
        %v5241 = vunpack.c.l.b16 %v4746
        %v5242 = vunpack.c.l.b16 %v4747
        %v5243 = vunpack.c.l.b16 %v4748
        %v5244 = vunpack.c.l.b16 %v4749
        %v5245 = vunpack.c.l.b16 %v4750
        %v5246 = vunpack.c.l.b16 %v4751
        %v5247 = vunpack.c.l.b16 %v4752
        %v5248 = vunpack.c.l.b16 %v4753
        %v5249 = vunpack.c.l.b16 %v4754
        %v5250 = vunpack.c.l.b16 %v4755
        %v5251 = vunpack.c.l.b16 %v4756
        %v5252 = vunpack.c.l.b16 %v4757
        %v5253 = vunpack.c.l.b16 %v4758
        %v5254 = vunpack.c.l.b16 %v4759
        %v5255 = vunpack.c.l.b16 %v4760
        %v5256 = vunpack.c.l.b16 %v4761
        %v5257 = vunpack.c.l.b16 %v4762
        %v5258 = vpack.c.b16 %v5235, %v5234
        %v5259 = vpack.c.b16 %v5237, %v5236
        %v5260 = vpack.c.b16 %v5239, %v5238
        %v5261 = vpack.c.b16 %v5241, %v5240
        %v5262 = vpack.c.b16 %v5243, %v5242
        %v5263 = vpack.c.b16 %v5245, %v5244
        %v5264 = vpack.c.b16 %v5247, %v5246
        %v5265 = vpack.c.b16 %v5249, %v5248
        %v5266 = vpack.c.b16 %v5251, %v5250
        %v5267 = vpack.c.b16 %v5253, %v5252
        %v5268 = vpack.c.b16 %v5255, %v5254
        %v5269 = vpack.c.b16 %v5257, %v5256
        %v5283 = vsel %vm491, %v4794, 0
        %v5286 = vsel %vm491, %v4811, 0
        %v5289 = vsel %vm491, %v4828, 0
        %v5292 = vsel %vm491, %v4845, 0
        %v5295 = vsel %vm491, %v4862, 0
        %v5298 = vsel %vm491, %v4879, 0
        %v5301 = vsel %vm491, %v4896, 0
        %v5304 = vsel %vm491, %v4913, 0
        %v5307 = vsel %vm491, %v4930, 0
        %v5310 = vsel %vm491, %v4947, 0
        %v5313 = vsel %vm491, %v4964, 0
        %v5316 = vsel %vm491, %v4981, 0
        %v5319 = vsel %vm491, %v4998, 0
        %v5322 = vsel %vm491, %v5015, 0
        %v5325 = vsel %vm491, %v5032, 0
        %v5328 = vsel %vm491, %v5049, 0
        %v5331 = vsel %vm491, %v5066, 0
        %v5334 = vsel %vm491, %v5083, 0
        %v5337 = vsel %vm491, %v5100, 0
        %v5340 = vsel %vm491, %v5117, 0
        %v5343 = vsel %vm491, %v5134, 0
        %v5346 = vsel %vm491, %v5151, 0
        %v5349 = vsel %vm491, %v5168, 0
        %v5352 = vsel %vm491, %v5185, 0
        %5354 = vmatprep.subr.bf16.mxu0 0
        %5355 = vmatpush1.bf16.msra.mxu0 %v5258
        %5356 = vmatprep.subr.bf16.mxu0 0
        %5357 = vmatpush1.bf16.msra.mxu0 %v5259
        %5358 = vmatprep.subr.bf16.mxu0 0
        %5359 = vmatpush1.bf16.msra.mxu0 %v5260
        %5360 = vmatprep.subr.bf16.mxu0 0
        %5361 = vmatpush1.bf16.msra.mxu0 %v5261
        %5362 = vmatprep.subr.bf16.mxu0 0
        %5363 = vmatpush1.bf16.msra.mxu0 %v5262
        %5364 = vmatprep.subr.bf16.mxu0 0
        %5365 = vmatpush1.bf16.msra.mxu0 %v5263
        %5366 = vmatprep.subr.bf16.mxu0 0
        %5367 = vmatpush1.bf16.msra.mxu0 %v5264
        %5368 = vmatprep.subr.bf16.mxu0 0
        %5369 = vmatpush1.bf16.msra.mxu0 %v5265
        %5370 = vmatprep.subr.bf16.mxu0 0
        %5371 = vmatpush1.bf16.msra.mxu0 %v5266
        %5372 = vmatprep.subr.bf16.mxu0 0
        %5373 = vmatpush1.bf16.msra.mxu0 %v5267
        %5374 = vmatprep.subr.bf16.mxu0 0
        %5375 = vmatpush1.bf16.msra.mxu0 %v5268
        %5376 = vmatprep.subr.bf16.mxu0 0
        %5377 = vmatpush1.bf16.msra.mxu0 %v5269
        %5378 = vmatprep.subr.bf16.mxu0 0
        %5379 = vmatpush1.bf16.msra.mxu0 0
        %5380 = vmatprep.subr.bf16.mxu0 0
        %5381 = vmatpush1.bf16.msra.mxu0 0
        %5382 = vmatprep.subr.bf16.mxu0 0
        %5383 = vmatpush1.bf16.msra.mxu0 0
        %5384 = vmatprep.subr.bf16.mxu0 0
        %5385 = vmatpush1.bf16.msra.mxu0 0
        %5386 = vmatprep.mubr.bf16.mxu0 %v5283
        %5387 = vmatmul.mubr.bf16.gmra.mrb[0].mxu0 %v4777
        %v5388 = vpop.f32.mrb[0].mxu0
        %v5389 = vadd.f32 0.0, %v5388
        %v5390 = vpop.f32.mrb[0].mxu0
        %v5391 = vpop.f32.mrb[0].mxu0
        %v5392 = vadd.f32 0.0, %v5391
        %v5393 = vpop.f32.mrb[0].mxu0
        %5394 = vmatprep.mubr.bf16.mxu0 %v5286
        %5395 = vmatmul.mubr.bf16.gmra.mrb[0].mxu0 %v4802
        %v5396 = vpop.f32.mrb[0].mxu0
        %v5397 = vadd.f32 0.0, %v5396
        %v5398 = vpop.f32.mrb[0].mxu0
        %v5399 = vpop.f32.mrb[0].mxu0
        %v5400 = vadd.f32 0.0, %v5399
        %v5401 = vpop.f32.mrb[0].mxu0
        %5402 = vmatprep.mubr.bf16.mxu0 %v5289
        %5403 = vmatmul.mubr.bf16.gmra.mrb[0].mxu0 %v4819
        %v5404 = vpop.f32.mrb[0].mxu0
        %v5405 = vadd.f32 0.0, %v5404
        %v5406 = vpop.f32.mrb[0].mxu0
        %v5407 = vpop.f32.mrb[0].mxu0
        %v5408 = vadd.f32 0.0, %v5407
        %v5409 = vpop.f32.mrb[0].mxu0
        %5410 = vmatprep.mubr.bf16.mxu0 %v5292
        %5411 = vmatmul.mubr.bf16.gmra.mrb[0].mxu0 %v4836
        %v5412 = vpop.f32.mrb[0].mxu0
        %v5413 = vadd.f32 0.0, %v5412
        %v5414 = vpop.f32.mrb[0].mxu0
        %v5415 = vpop.f32.mrb[0].mxu0
        %v5416 = vadd.f32 0.0, %v5415
        %v5417 = vpop.f32.mrb[0].mxu0
        %5418 = vmatprep.mubr.bf16.mxu0 %v5295
        %5419 = vmatmul.mubr.bf16.gmra.mrb[0].mxu0 %v4853
        %v5420 = vpop.f32.mrb[0].mxu0
        %v5421 = vadd.f32 0.0, %v5420
        %v5422 = vpop.f32.mrb[0].mxu0
        %v5423 = vpop.f32.mrb[0].mxu0
        %v5424 = vadd.f32 0.0, %v5423
        %v5425 = vpop.f32.mrb[0].mxu0
        %5426 = vmatprep.mubr.bf16.mxu0 %v5298
        %5427 = vmatmul.mubr.bf16.gmra.mrb[0].mxu0 %v4870
        %v5428 = vpop.f32.mrb[0].mxu0
        %v5429 = vadd.f32 0.0, %v5428
        %v5430 = vpop.f32.mrb[0].mxu0
        %v5431 = vpop.f32.mrb[0].mxu0
        %v5432 = vadd.f32 0.0, %v5431
        %v5433 = vpop.f32.mrb[0].mxu0
        %5434 = vmatprep.mubr.bf16.mxu0 %v5301
        %5435 = vmatmul.mubr.bf16.gmra.mrb[0].mxu0 %v4887
        %v5436 = vpop.f32.mrb[0].mxu0
        %v5437 = vadd.f32 0.0, %v5436
        %v5438 = vpop.f32.mrb[0].mxu0
        %v5439 = vpop.f32.mrb[0].mxu0
        %v5440 = vadd.f32 0.0, %v5439
        %v5441 = vpop.f32.mrb[0].mxu0
        %5442 = vmatprep.mubr.bf16.mxu0 %v5304
        %5443 = vmatmul.mubr.bf16.gmra.mrb[0].mxu0 %v4904
        %v5444 = vpop.f32.mrb[0].mxu0
        %v5445 = vadd.f32 0.0, %v5444
        %v5446 = vpop.f32.mrb[0].mxu0
        %v5447 = vpop.f32.mrb[0].mxu0
        %v5448 = vadd.f32 0.0, %v5447
        %v5449 = vpop.f32.mrb[0].mxu0
        %5450 = vmatprep.mubr.bf16.mxu0 %v5307
        %5451 = vmatmul.mubr.bf16.gmra.mrb[0].mxu0 %v4921
        %v5452 = vpop.f32.mrb[0].mxu0
        %v5453 = vadd.f32 0.0, %v5452
        %v5454 = vpop.f32.mrb[0].mxu0
        %v5455 = vpop.f32.mrb[0].mxu0
        %v5456 = vadd.f32 0.0, %v5455
        %v5457 = vpop.f32.mrb[0].mxu0
        %5458 = vmatprep.mubr.bf16.mxu0 %v5310
        %5459 = vmatmul.mubr.bf16.gmra.mrb[0].mxu0 %v4938
        %v5460 = vpop.f32.mrb[0].mxu0
        %v5461 = vadd.f32 0.0, %v5460
        %v5462 = vpop.f32.mrb[0].mxu0
        %v5463 = vpop.f32.mrb[0].mxu0
        %v5464 = vadd.f32 0.0, %v5463
        %v5465 = vpop.f32.mrb[0].mxu0
        %5466 = vmatprep.mubr.bf16.mxu0 %v5313
        %5467 = vmatmul.mubr.bf16.gmra.mrb[0].mxu0 %v4955
        %v5468 = vpop.f32.mrb[0].mxu0
        %v5469 = vadd.f32 0.0, %v5468
        %v5470 = vpop.f32.mrb[0].mxu0
        %v5471 = vpop.f32.mrb[0].mxu0
        %v5472 = vadd.f32 0.0, %v5471
        %v5473 = vpop.f32.mrb[0].mxu0
        %5474 = vmatprep.mubr.bf16.mxu0 %v5316
        %5475 = vmatmul.mubr.bf16.gmra.mrb[0].mxu0 %v4972
        %v5476 = vpop.f32.mrb[0].mxu0
        %v5477 = vadd.f32 0.0, %v5476
        %v5478 = vpop.f32.mrb[0].mxu0
        %v5479 = vpop.f32.mrb[0].mxu0
        %v5480 = vadd.f32 0.0, %v5479
        %v5481 = vpop.f32.mrb[0].mxu0
        %5482 = vmatprep.mubr.bf16.mxu0 %v5319
        %5483 = vmatmul.mubr.bf16.gmra.mrb[0].mxu0 %v4989
        %v5484 = vpop.f32.mrb[0].mxu0
        %v5485 = vadd.f32 0.0, %v5484
        %v5486 = vpop.f32.mrb[0].mxu0
        %v5487 = vpop.f32.mrb[0].mxu0
        %v5488 = vadd.f32 0.0, %v5487
        %v5489 = vpop.f32.mrb[0].mxu0
        %5490 = vmatprep.mubr.bf16.mxu0 %v5322
        %5491 = vmatmul.mubr.bf16.gmra.mrb[0].mxu0 %v5006
        %v5492 = vpop.f32.mrb[0].mxu0
        %v5493 = vadd.f32 0.0, %v5492
        %v5494 = vpop.f32.mrb[0].mxu0
        %v5495 = vpop.f32.mrb[0].mxu0
        %v5496 = vadd.f32 0.0, %v5495
        %v5497 = vpop.f32.mrb[0].mxu0
        %5498 = vmatprep.mubr.bf16.mxu0 %v5325
        %5499 = vmatmul.mubr.bf16.gmra.mrb[0].mxu0 %v5023
        %v5500 = vpop.f32.mrb[0].mxu0
        %v5501 = vadd.f32 0.0, %v5500
        %v5502 = vpop.f32.mrb[0].mxu0
        %v5503 = vpop.f32.mrb[0].mxu0
        %v5504 = vadd.f32 0.0, %v5503
        %v5505 = vpop.f32.mrb[0].mxu0
        %5506 = vmatprep.mubr.bf16.mxu0 %v5328
        %5507 = vmatmul.mubr.bf16.gmra.mrb[0].mxu0 %v5040
        %v5508 = vpop.f32.mrb[0].mxu0
        %v5509 = vadd.f32 0.0, %v5508
        %v5510 = vpop.f32.mrb[0].mxu0
        %v5511 = vpop.f32.mrb[0].mxu0
        %v5512 = vadd.f32 0.0, %v5511
        %v5513 = vpop.f32.mrb[0].mxu0
        %5514 = vmatprep.mubr.bf16.mxu0 %v5331
        %5515 = vmatmul.mubr.bf16.gmra.mrb[0].mxu0 %v5057
        %v5516 = vpop.f32.mrb[0].mxu0
        %v5517 = vadd.f32 0.0, %v5516
        %v5518 = vpop.f32.mrb[0].mxu0
        %v5519 = vpop.f32.mrb[0].mxu0
        %v5520 = vadd.f32 0.0, %v5519
        %v5521 = vpop.f32.mrb[0].mxu0
        %5522 = vmatprep.mubr.bf16.mxu0 %v5334
        %5523 = vmatmul.mubr.bf16.gmra.mrb[0].mxu0 %v5074
        %v5524 = vpop.f32.mrb[0].mxu0
        %v5525 = vadd.f32 0.0, %v5524
        %v5526 = vpop.f32.mrb[0].mxu0
        %v5527 = vpop.f32.mrb[0].mxu0
        %v5528 = vadd.f32 0.0, %v5527
        %v5529 = vpop.f32.mrb[0].mxu0
        %5530 = vmatprep.mubr.bf16.mxu0 %v5337
        %5531 = vmatmul.mubr.bf16.gmra.mrb[0].mxu0 %v5091
        %v5532 = vpop.f32.mrb[0].mxu0
        %v5533 = vadd.f32 0.0, %v5532
        %v5534 = vpop.f32.mrb[0].mxu0
        %v5535 = vpop.f32.mrb[0].mxu0
        %v5536 = vadd.f32 0.0, %v5535
        %v5537 = vpop.f32.mrb[0].mxu0
        %5538 = vmatprep.mubr.bf16.mxu0 %v5340
        %5539 = vmatmul.mubr.bf16.gmra.mrb[0].mxu0 %v5108
        %v5540 = vpop.f32.mrb[0].mxu0
        %v5541 = vadd.f32 0.0, %v5540
        %v5542 = vpop.f32.mrb[0].mxu0
        %v5543 = vpop.f32.mrb[0].mxu0
        %v5544 = vadd.f32 0.0, %v5543
        %v5545 = vpop.f32.mrb[0].mxu0
        %5546 = vmatprep.mubr.bf16.mxu0 %v5343
        %5547 = vmatmul.mubr.bf16.gmra.mrb[0].mxu0 %v5125
        %v5548 = vpop.f32.mrb[0].mxu0
        %v5549 = vadd.f32 0.0, %v5548
        %v5550 = vpop.f32.mrb[0].mxu0
        %v5551 = vpop.f32.mrb[0].mxu0
        %v5552 = vadd.f32 0.0, %v5551
        %v5553 = vpop.f32.mrb[0].mxu0
        %5554 = vmatprep.mubr.bf16.mxu0 %v5346
        %5555 = vmatmul.mubr.bf16.gmra.mrb[0].mxu0 %v5142
        %v5556 = vpop.f32.mrb[0].mxu0
        %v5557 = vadd.f32 0.0, %v5556
        %v5558 = vpop.f32.mrb[0].mxu0
        %v5559 = vpop.f32.mrb[0].mxu0
        %v5560 = vadd.f32 0.0, %v5559
        %v5561 = vpop.f32.mrb[0].mxu0
        %5562 = vmatprep.mubr.bf16.mxu0 %v5349
        %5563 = vmatmul.mubr.bf16.gmra.mrb[0].mxu0 %v5159
        %v5564 = vpop.f32.mrb[0].mxu0
        %v5565 = vadd.f32 0.0, %v5564
        %v5566 = vpop.f32.mrb[0].mxu0
        %v5567 = vpop.f32.mrb[0].mxu0
        %v5568 = vadd.f32 0.0, %v5567
        %v5569 = vpop.f32.mrb[0].mxu0
        %5570 = vmatprep.mubr.bf16.mxu0 %v5352
        %5571 = vmatmul.mubr.bf16.gmra.mrb[0].mxu0 %v5176
        %v5572 = vpop.f32.mrb[0].mxu0
        %v5573 = vadd.f32 0.0, %v5572
        %v5574 = vpop.f32.mrb[0].mxu0
        %v5575 = vpop.f32.mrb[0].mxu0
        %v5576 = vadd.f32 0.0, %v5575
        %v5577 = vpop.f32.mrb[0].mxu0
        %5578 = vdwg.mxu0
        %v5579 = vadd.f32 %v4147, %v5389
        %v5580 = vadd.f32 %v4150, %v5392
        %v5581 = vadd.f32 %v4155, %v5397
        %v5582 = vadd.f32 %v4158, %v5400
        %v5583 = vadd.f32 %v4163, %v5405
        %v5584 = vadd.f32 %v4166, %v5408
        %v5585 = vadd.f32 %v4171, %v5413
        %v5586 = vadd.f32 %v4174, %v5416
        %v5587 = vadd.f32 %v4179, %v5421
        %v5588 = vadd.f32 %v4182, %v5424
        %v5589 = vadd.f32 %v4187, %v5429
        %v5590 = vadd.f32 %v4190, %v5432
        %v5591 = vadd.f32 %v4195, %v5437
        %v5592 = vadd.f32 %v4198, %v5440
        %v5593 = vadd.f32 %v4203, %v5445
        %v5594 = vadd.f32 %v4206, %v5448
        %v5595 = vadd.f32 %v4211, %v5453
        %v5596 = vadd.f32 %v4214, %v5456
        %v5597 = vadd.f32 %v4219, %v5461
        %v5598 = vadd.f32 %v4222, %v5464
        %v5599 = vadd.f32 %v4227, %v5469
        %v5600 = vadd.f32 %v4230, %v5472
        %v5601 = vadd.f32 %v4235, %v5477
        %v5602 = vadd.f32 %v4238, %v5480
        %v5603 = vadd.f32 %v4243, %v5485
        %v5604 = vadd.f32 %v4246, %v5488
        %v5605 = vadd.f32 %v4251, %v5493
        %v5606 = vadd.f32 %v4254, %v5496
        %v5607 = vadd.f32 %v4259, %v5501
        %v5608 = vadd.f32 %v4262, %v5504
        %v5609 = vadd.f32 %v4267, %v5509
        %v5610 = vadd.f32 %v4270, %v5512
        %v5611 = vadd.f32 %v4275, %v5517
        %v5612 = vadd.f32 %v4278, %v5520
        %v5613 = vadd.f32 %v4283, %v5525
        %v5614 = vadd.f32 %v4286, %v5528
        %v5615 = vadd.f32 %v4291, %v5533
        %v5616 = vadd.f32 %v4294, %v5536
        %v5617 = vadd.f32 %v4299, %v5541
        %v5618 = vadd.f32 %v4302, %v5544
        %v5619 = vadd.f32 %v4307, %v5549
        %v5620 = vadd.f32 %v4310, %v5552
        %v5621 = vadd.f32 %v4315, %v5557
        %v5622 = vadd.f32 %v4318, %v5560
        %v5623 = vadd.f32 %v4323, %v5565
        %v5624 = vadd.f32 %v4326, %v5568
        %v5625 = vadd.f32 %v4331, %v5573
        %v5626 = vadd.f32 %v4334, %v5576
        %v5627 = vld [vmem:[#allocation16 + $0x1] sm:$0x1]
        %v5628 = vlaneseq
        %v5629 = vshrl.u32 %v5628, 7
        %v5630 = vsub.s32 0, %v5629
        %v5631 = vrot.slane %v5627, %v5630
        %v5632 = vadd.f32 %v5579, %v5631
        %v5633 = vadd.f32 %v5580, %v5631
        %v5634 = vadd.f32 %v5581, %v5631
        %v5635 = vadd.f32 %v5582, %v5631
        %v5636 = vadd.f32 %v5583, %v5631
        %v5637 = vadd.f32 %v5584, %v5631
        %v5638 = vadd.f32 %v5585, %v5631
        %v5639 = vadd.f32 %v5586, %v5631
        %v5640 = vadd.f32 %v5587, %v5631
        %v5641 = vadd.f32 %v5588, %v5631
        %v5642 = vadd.f32 %v5589, %v5631
        %v5643 = vadd.f32 %v5590, %v5631
        %v5644 = vadd.f32 %v5591, %v5631
        %v5645 = vadd.f32 %v5592, %v5631
        %v5646 = vadd.f32 %v5593, %v5631
        %v5647 = vadd.f32 %v5594, %v5631
        %v5648 = vadd.f32 %v5595, %v5631
        %v5649 = vadd.f32 %v5596, %v5631
        %v5650 = vadd.f32 %v5597, %v5631
        %v5651 = vadd.f32 %v5598, %v5631
        %v5652 = vadd.f32 %v5599, %v5631
        %v5653 = vadd.f32 %v5600, %v5631
        %v5654 = vadd.f32 %v5601, %v5631
        %v5655 = vadd.f32 %v5602, %v5631
        %v5656 = vadd.f32 %v5603, %v5631
        %v5657 = vadd.f32 %v5604, %v5631
        %v5658 = vadd.f32 %v5605, %v5631
        %v5659 = vadd.f32 %v5606, %v5631
        %v5660 = vadd.f32 %v5607, %v5631
        %v5661 = vadd.f32 %v5608, %v5631
        %v5662 = vadd.f32 %v5609, %v5631
        %v5663 = vadd.f32 %v5610, %v5631
        %v5664 = vadd.f32 %v5611, %v5631
        %v5665 = vadd.f32 %v5612, %v5631
        %v5666 = vadd.f32 %v5613, %v5631
        %v5667 = vadd.f32 %v5614, %v5631
        %v5668 = vadd.f32 %v5615, %v5631
        %v5669 = vadd.f32 %v5616, %v5631
        %v5670 = vadd.f32 %v5617, %v5631
        %v5671 = vadd.f32 %v5618, %v5631
        %v5672 = vadd.f32 %v5619, %v5631
        %v5673 = vadd.f32 %v5620, %v5631
        %v5674 = vadd.f32 %v5621, %v5631
        %v5675 = vadd.f32 %v5622, %v5631
        %v5676 = vadd.f32 %v5623, %v5631
        %v5677 = vadd.f32 %v5624, %v5631
        %v5678 = vadd.f32 %v5625, %v5631
        %v5679 = vadd.f32 %v5626, %v5631
        %v5680 = vmax.f32 %v5632, 0.0
        %v5681 = vmax.f32 %v5633, 0.0
        %v5682 = vmax.f32 %v5634, 0.0
        %v5683 = vmax.f32 %v5635, 0.0
        %v5684 = vmax.f32 %v5636, 0.0
        %v5685 = vmax.f32 %v5637, 0.0
        %v5686 = vmax.f32 %v5638, 0.0
        %v5687 = vmax.f32 %v5639, 0.0
        %v5688 = vmax.f32 %v5640, 0.0
        %v5689 = vmax.f32 %v5641, 0.0
        %v5690 = vmax.f32 %v5642, 0.0
        %v5691 = vmax.f32 %v5643, 0.0
        %v5692 = vmax.f32 %v5644, 0.0
        %v5693 = vmax.f32 %v5645, 0.0
        %v5694 = vmax.f32 %v5646, 0.0
        %v5695 = vmax.f32 %v5647, 0.0
        %v5696 = vmax.f32 %v5648, 0.0
        %v5697 = vmax.f32 %v5649, 0.0
        %v5698 = vmax.f32 %v5650, 0.0
        %v5699 = vmax.f32 %v5651, 0.0
        %v5700 = vmax.f32 %v5652, 0.0
        %v5701 = vmax.f32 %v5653, 0.0
        %v5702 = vmax.f32 %v5654, 0.0
        %v5703 = vmax.f32 %v5655, 0.0
        %v5704 = vmax.f32 %v5656, 0.0
        %v5705 = vmax.f32 %v5657, 0.0
        %v5706 = vmax.f32 %v5658, 0.0
        %v5707 = vmax.f32 %v5659, 0.0
        %v5708 = vmax.f32 %v5660, 0.0
        %v5709 = vmax.f32 %v5661, 0.0
        %v5710 = vmax.f32 %v5662, 0.0
        %v5711 = vmax.f32 %v5663, 0.0
        %v5712 = vmax.f32 %v5664, 0.0
        %v5713 = vmax.f32 %v5665, 0.0
        %v5714 = vmax.f32 %v5666, 0.0
        %v5715 = vmax.f32 %v5667, 0.0
        %v5716 = vmax.f32 %v5668, 0.0
        %v5717 = vmax.f32 %v5669, 0.0
        %v5718 = vmax.f32 %v5670, 0.0
        %v5719 = vmax.f32 %v5671, 0.0
        %v5720 = vmax.f32 %v5672, 0.0
        %v5721 = vmax.f32 %v5673, 0.0
        %v5722 = vmax.f32 %v5674, 0.0
        %v5723 = vmax.f32 %v5675, 0.0
        %v5724 = vmax.f32 %v5676, 0.0
        %v5725 = vmax.f32 %v5677, 0.0
        %v5726 = vmax.f32 %v5678, 0.0
        %v5727 = vmax.f32 %v5679, 0.0
        %v5728 = vmul.f32 %v5680, %v1341
        %v5729 = vmul.f32 %v5681, %v1346
        %v5730 = vmul.f32 %v5682, %v1351
        %v5731 = vmul.f32 %v5683, %v1356
        %v5732 = vmul.f32 %v5684, %v1361
        %v5733 = vmul.f32 %v5685, %v1366
        %v5734 = vmul.f32 %v5686, %v1371
        %v5735 = vmul.f32 %v5687, %v1376
        %v5736 = vmul.f32 %v5688, %v1381
        %v5737 = vmul.f32 %v5689, %v1386
        %v5738 = vmul.f32 %v5690, %v1391
        %v5739 = vmul.f32 %v5691, %v1396
        %v5740 = vmul.f32 %v5692, %v1401
        %v5741 = vmul.f32 %v5693, %v1406
        %v5742 = vmul.f32 %v5694, %v1411
        %v5743 = vmul.f32 %v5695, %v1416
        %v5744 = vmul.f32 %v5696, %v1421
        %v5745 = vmul.f32 %v5697, %v1426
        %v5746 = vmul.f32 %v5698, %v1431
        %v5747 = vmul.f32 %v5699, %v1436
        %v5748 = vmul.f32 %v5700, %v1441
        %v5749 = vmul.f32 %v5701, %v1446
        %v5750 = vmul.f32 %v5702, %v1451
        %v5751 = vmul.f32 %v5703, %v1456
        %v5752 = vmul.f32 %v5704, %v1461
        %v5753 = vmul.f32 %v5705, %v1466
        %v5754 = vmul.f32 %v5706, %v1471
        %v5755 = vmul.f32 %v5707, %v1476
        %v5756 = vmul.f32 %v5708, %v1481
        %v5757 = vmul.f32 %v5709, %v1486
        %v5758 = vmul.f32 %v5710, %v1491
        %v5759 = vmul.f32 %v5711, %v1496
        %v5760 = vmul.f32 %v5712, %v1501
        %v5761 = vmul.f32 %v5713, %v1506
        %v5762 = vmul.f32 %v5714, %v1511
        %v5763 = vmul.f32 %v5715, %v1516
        %v5764 = vmul.f32 %v5716, %v1521
        %v5765 = vmul.f32 %v5717, %v1526
        %v5766 = vmul.f32 %v5718, %v1531
        %v5767 = vmul.f32 %v5719, %v1536
        %v5768 = vmul.f32 %v5720, %v1541
        %v5769 = vmul.f32 %v5721, %v1546
        %v5770 = vmul.f32 %v5722, %v1551
        %v5771 = vmul.f32 %v5723, %v1556
        %v5772 = vmul.f32 %v5724, %v1561
        %v5773 = vmul.f32 %v5725, %v1566
        %v5774 = vmul.f32 %v5726, %v1571
        %v5775 = vmul.f32 %v5727, %v1576
        %v5776 = vpack.c.bf16 %v5729, %v5728
        %v5777 = vpack.c.bf16 %v5731, %v5730
        %v5778 = vpack.c.bf16 %v5733, %v5732
        %v5779 = vpack.c.bf16 %v5735, %v5734
        %v5780 = vpack.c.bf16 %v5737, %v5736
        %v5781 = vpack.c.bf16 %v5739, %v5738
        %v5782 = vpack.c.bf16 %v5741, %v5740
        %v5783 = vpack.c.bf16 %v5743, %v5742
        %v5784 = vpack.c.bf16 %v5745, %v5744
        %v5785 = vpack.c.bf16 %v5747, %v5746
        %v5786 = vpack.c.bf16 %v5749, %v5748
        %v5787 = vpack.c.bf16 %v5751, %v5750
        %v5788 = vpack.c.bf16 %v5753, %v5752
        %v5789 = vpack.c.bf16 %v5755, %v5754
        %v5790 = vpack.c.bf16 %v5757, %v5756
        %v5791 = vpack.c.bf16 %v5759, %v5758
        %v5792 = vpack.c.bf16 %v5761, %v5760
        %v5793 = vpack.c.bf16 %v5763, %v5762
        %v5794 = vpack.c.bf16 %v5765, %v5764
        %v5795 = vpack.c.bf16 %v5767, %v5766
        %v5796 = vpack.c.bf16 %v5769, %v5768
        %v5797 = vpack.c.bf16 %v5771, %v5770
        %v5798 = vpack.c.bf16 %v5773, %v5772
        %v5799 = vpack.c.bf16 %v5775, %v5774
        %5800 = vst.msk [vmem:[#allocation3 + $0x10] sm:$0xff] %vm491, %v5776
        %5801 = vst.msk [vmem:[#allocation3 + $0x18] sm:$0xff] %vm491, %v5777
        %5802 = vst.msk [vmem:[#allocation3 + $0x20] sm:$0xff] %vm491, %v5778
        %5803 = vst.msk [vmem:[#allocation3 + $0x28] sm:$0xff] %vm491, %v5779
        %5804 = vst.msk [vmem:[#allocation3 + $0x30] sm:$0xff] %vm491, %v5780
        %5805 = vst.msk [vmem:[#allocation3 + $0x38] sm:$0xff] %vm491, %v5781
        %5806 = vst.msk [vmem:[#allocation3 + $0x40] sm:$0xff] %vm491, %v5782
        %5807 = vst.msk [vmem:[#allocation3 + $0x48] sm:$0xff] %vm491, %v5783
        %5808 = vst.msk [vmem:[#allocation3 + $0x50] sm:$0xff] %vm491, %v5784
        %5809 = vst.msk [vmem:[#allocation3 + $0x58] sm:$0xff] %vm491, %v5785
        %5810 = vst.msk [vmem:[#allocation3 + $0x60] sm:$0xff] %vm491, %v5786
        %5811 = vst.msk [vmem:[#allocation3 + $0x68] sm:$0xff] %vm491, %v5787
        %5812 = vst.msk [vmem:[#allocation3 + $0x70] sm:$0xff] %vm491, %v5788
        %5813 = vst.msk [vmem:[#allocation3 + $0x78] sm:$0xff] %vm491, %v5789
        %5814 = vst.msk [vmem:[#allocation3 + $0x80] sm:$0xff] %vm491, %v5790
        %5815 = vst.msk [vmem:[#allocation3 + $0x88] sm:$0xff] %vm491, %v5791
        %5816 = vst.msk [vmem:[#allocation3 + $0x90] sm:$0xff] %vm491, %v5792
        %5817 = vst.msk [vmem:[#allocation3 + $0x98] sm:$0xff] %vm491, %v5793
        %5818 = vst.msk [vmem:[#allocation3 + $0xa0] sm:$0xff] %vm491, %v5794
        %5819 = vst.msk [vmem:[#allocation3 + $0xa8] sm:$0xff] %vm491, %v5795
        %5820 = vst.msk [vmem:[#allocation3 + $0xb0] sm:$0xff] %vm491, %v5796
        %5821 = vst.msk [vmem:[#allocation3 + $0xb8] sm:$0xff] %vm491, %v5797
        %5822 = vst.msk [vmem:[#allocation3 + $0xc0] sm:$0xff] %vm491, %v5798
        %5823 = vst.msk [vmem:[#allocation3 + $0xc8] sm:$0xff] %vm491, %v5799
        %v5824 = vld [vmem:[#allocation3] sm:$0xf8]
        %v5825 = vld [vmem:[#allocation3 + $0x8] sm:$0xff]
        %v5826 = vld [vmem:[#allocation3 + $0x10] sm:$0xff]
        %v5827 = vld [vmem:[#allocation3 + $0x18] sm:$0xff]
        %v5828 = vld [vmem:[#allocation3 + $0x20] sm:$0xff]
        %v5829 = vld [vmem:[#allocation3 + $0x28] sm:$0xff]
        %v5830 = vld [vmem:[#allocation3 + $0x30] sm:$0xff]
        %v5831 = vld [vmem:[#allocation3 + $0x38] sm:$0xff]
        %v5832 = vld [vmem:[#allocation3 + $0x40] sm:$0xff]
        %v5833 = vld [vmem:[#allocation3 + $0x48] sm:$0xff]
        %v5834 = vld [vmem:[#allocation3 + $0x50] sm:$0xff]
        %v5835 = vld [vmem:[#allocation3 + $0x58] sm:$0xff]
        %v5836 = vld [vmem:[#allocation3 + $0x60] sm:$0xff]
        %v5837 = vld [vmem:[#allocation3 + $0x68] sm:$0xff]
        %v5838 = vld [vmem:[#allocation3 + $0x70] sm:$0xff]
        %v5839 = vld [vmem:[#allocation3 + $0x78] sm:$0xff]
        %v5840 = vld [vmem:[#allocation3 + $0x80] sm:$0xff]
        %v5841 = vld [vmem:[#allocation3 + $0x88] sm:$0xff]
        %v5842 = vld [vmem:[#allocation3 + $0x90] sm:$0xff]
        %v5843 = vld [vmem:[#allocation3 + $0x98] sm:$0xff]
        %v5844 = vld [vmem:[#allocation3 + $0xa0] sm:$0xff]
        %v5845 = vld [vmem:[#allocation3 + $0xa8] sm:$0xff]
        %v5846 = vld [vmem:[#allocation3 + $0xb0] sm:$0xff]
        %v5847 = vld [vmem:[#allocation3 + $0xb8] sm:$0xff]
        %v5848 = vld [vmem:[#allocation3 + $0xc0] sm:$0xf]
        %v5849 = vld [vmem:[#allocation3] sm:$0xf0]
        %v5850 = vld [vmem:[#allocation3 + $0xc0] sm:$0x1f]
        %v5852 = vshrl.u32 %v5849, 16
        %v5854 = vshll.u32 %v5849, 16
        %v5856 = vrot.slane %v5854, 1
        %v5857 = vor.u32 %v5852, %v5856
        %v5859 = vshll.u32 %v5825, 16
        %v5861 = vrot.slane %v5859, 1
        %v5862 = vsel %vm2477, %v5857, %v5861
        %v5863 = vshrl.u32 %v5825, 16
        %v5865 = vor.u32 %v5863, %v5861
        %v5867 = vshll.u32 %v5826, 16
        %v5869 = vrot.slane %v5867, 1
        %v5870 = vsel %vm2477, %v5865, %v5869
        %v5871 = vshrl.u32 %v5826, 16
        %v5873 = vor.u32 %v5871, %v5869
        %v5875 = vshll.u32 %v5827, 16
        %v5877 = vrot.slane %v5875, 1
        %v5878 = vsel %vm2477, %v5873, %v5877
        %v5879 = vshrl.u32 %v5827, 16
        %v5881 = vor.u32 %v5879, %v5877
        %v5883 = vshll.u32 %v5828, 16
        %v5885 = vrot.slane %v5883, 1
        %v5886 = vsel %vm2477, %v5881, %v5885
        %v5887 = vshrl.u32 %v5828, 16
        %v5889 = vor.u32 %v5887, %v5885
        %v5891 = vshll.u32 %v5829, 16
        %v5893 = vrot.slane %v5891, 1
        %v5894 = vsel %vm2477, %v5889, %v5893
        %v5895 = vshrl.u32 %v5829, 16
        %v5897 = vor.u32 %v5895, %v5893
        %v5899 = vshll.u32 %v5830, 16
        %v5901 = vrot.slane %v5899, 1
        %v5902 = vsel %vm2477, %v5897, %v5901
        %v5903 = vshrl.u32 %v5830, 16
        %v5905 = vor.u32 %v5903, %v5901
        %v5907 = vshll.u32 %v5831, 16
        %v5909 = vrot.slane %v5907, 1
        %v5910 = vsel %vm2477, %v5905, %v5909
        %v5911 = vshrl.u32 %v5831, 16
        %v5913 = vor.u32 %v5911, %v5909
        %v5915 = vshll.u32 %v5832, 16
        %v5917 = vrot.slane %v5915, 1
        %v5918 = vsel %vm2477, %v5913, %v5917
        %v5919 = vshrl.u32 %v5832, 16
        %v5921 = vor.u32 %v5919, %v5917
        %v5923 = vshll.u32 %v5833, 16
        %v5925 = vrot.slane %v5923, 1
        %v5926 = vsel %vm2477, %v5921, %v5925
        %v5927 = vshrl.u32 %v5833, 16
        %v5929 = vor.u32 %v5927, %v5925
        %v5931 = vshll.u32 %v5834, 16
        %v5933 = vrot.slane %v5931, 1
        %v5934 = vsel %vm2477, %v5929, %v5933
        %v5935 = vshrl.u32 %v5834, 16
        %v5937 = vor.u32 %v5935, %v5933
        %v5939 = vshll.u32 %v5835, 16
        %v5941 = vrot.slane %v5939, 1
        %v5942 = vsel %vm2477, %v5937, %v5941
        %v5943 = vshrl.u32 %v5835, 16
        %v5945 = vor.u32 %v5943, %v5941
        %v5947 = vshll.u32 %v5836, 16
        %v5949 = vrot.slane %v5947, 1
        %v5950 = vsel %vm2477, %v5945, %v5949
        %v5951 = vshrl.u32 %v5836, 16
        %v5953 = vor.u32 %v5951, %v5949
        %v5955 = vshll.u32 %v5837, 16
        %v5957 = vrot.slane %v5955, 1
        %v5958 = vsel %vm2477, %v5953, %v5957
        %v5959 = vshrl.u32 %v5837, 16
        %v5961 = vor.u32 %v5959, %v5957
        %v5963 = vshll.u32 %v5838, 16
        %v5965 = vrot.slane %v5963, 1
        %v5966 = vsel %vm2477, %v5961, %v5965
        %v5967 = vshrl.u32 %v5838, 16
        %v5969 = vor.u32 %v5967, %v5965
        %v5971 = vshll.u32 %v5839, 16
        %v5973 = vrot.slane %v5971, 1
        %v5974 = vsel %vm2477, %v5969, %v5973
        %v5975 = vshrl.u32 %v5839, 16
        %v5977 = vor.u32 %v5975, %v5973
        %v5979 = vshll.u32 %v5840, 16
        %v5981 = vrot.slane %v5979, 1
        %v5982 = vsel %vm2477, %v5977, %v5981
        %v5983 = vshrl.u32 %v5840, 16
        %v5985 = vor.u32 %v5983, %v5981
        %v5987 = vshll.u32 %v5841, 16
        %v5989 = vrot.slane %v5987, 1
        %v5990 = vsel %vm2477, %v5985, %v5989
        %v5991 = vshrl.u32 %v5841, 16
        %v5993 = vor.u32 %v5991, %v5989
        %v5995 = vshll.u32 %v5842, 16
        %v5997 = vrot.slane %v5995, 1
        %v5998 = vsel %vm2477, %v5993, %v5997
        %v5999 = vshrl.u32 %v5842, 16
        %v6001 = vor.u32 %v5999, %v5997
        %v6003 = vshll.u32 %v5843, 16
        %v6005 = vrot.slane %v6003, 1
        %v6006 = vsel %vm2477, %v6001, %v6005
        %v6007 = vshrl.u32 %v5843, 16
        %v6009 = vor.u32 %v6007, %v6005
        %v6011 = vshll.u32 %v5844, 16
        %v6013 = vrot.slane %v6011, 1
        %v6014 = vsel %vm2477, %v6009, %v6013
        %v6015 = vshrl.u32 %v5844, 16
        %v6017 = vor.u32 %v6015, %v6013
        %v6019 = vshll.u32 %v5845, 16
        %v6021 = vrot.slane %v6019, 1
        %v6022 = vsel %vm2477, %v6017, %v6021
        %v6023 = vshrl.u32 %v5845, 16
        %v6025 = vor.u32 %v6023, %v6021
        %v6027 = vshll.u32 %v5846, 16
        %v6029 = vrot.slane %v6027, 1
        %v6030 = vsel %vm2477, %v6025, %v6029
        %v6031 = vshrl.u32 %v5846, 16
        %v6033 = vor.u32 %v6031, %v6029
        %v6035 = vshll.u32 %v5847, 16
        %v6037 = vrot.slane %v6035, 1
        %v6038 = vsel %vm2477, %v6033, %v6037
        %v6039 = vshrl.u32 %v5847, 16
        %v6041 = vor.u32 %v6039, %v6037
        %v6043 = vshll.u32 %v5848, 16
        %v6045 = vrot.slane %v6043, 1
        %v6046 = vsel %vm2477, %v6041, %v6045
        %v6047 = vshrl.u32 %v5848, 16
        %v6049 = vor.u32 %v6047, %v6045
        %6050 = vrot.lane.b32.xlu0 %v5862, 64
        %v6051 = vpop.permute.xlu0 %6050
        %6052 = vrot.lane.b32.xlu0 %v5870, 64
        %v6053 = vpop.permute.xlu0 %6052
        %6054 = vrot.lane.b32.xlu0 %v5878, 64
        %v6055 = vpop.permute.xlu0 %6054
        %6056 = vrot.lane.b32.xlu0 %v5886, 64
        %v6057 = vpop.permute.xlu0 %6056
        %6058 = vrot.lane.b32.xlu0 %v5894, 64
        %v6059 = vpop.permute.xlu0 %6058
        %6060 = vrot.lane.b32.xlu0 %v5902, 64
        %v6061 = vpop.permute.xlu0 %6060
        %6062 = vrot.lane.b32.xlu0 %v5910, 64
        %v6063 = vpop.permute.xlu0 %6062
        %6064 = vrot.lane.b32.xlu0 %v5918, 64
        %v6065 = vpop.permute.xlu0 %6064
        %6066 = vrot.lane.b32.xlu0 %v5926, 64
        %v6067 = vpop.permute.xlu0 %6066
        %6068 = vrot.lane.b32.xlu0 %v5934, 64
        %v6069 = vpop.permute.xlu0 %6068
        %6070 = vrot.lane.b32.xlu0 %v5942, 64
        %v6071 = vpop.permute.xlu0 %6070
        %6072 = vrot.lane.b32.xlu0 %v5950, 64
        %v6073 = vpop.permute.xlu0 %6072
        %6074 = vrot.lane.b32.xlu0 %v5958, 64
        %v6075 = vpop.permute.xlu0 %6074
        %6076 = vrot.lane.b32.xlu0 %v5966, 64
        %v6077 = vpop.permute.xlu0 %6076
        %6078 = vrot.lane.b32.xlu0 %v5974, 64
        %v6079 = vpop.permute.xlu0 %6078
        %6080 = vrot.lane.b32.xlu0 %v5982, 64
        %v6081 = vpop.permute.xlu0 %6080
        %6082 = vrot.lane.b32.xlu0 %v5990, 64
        %v6083 = vpop.permute.xlu0 %6082
        %6084 = vrot.lane.b32.xlu0 %v5998, 64
        %v6085 = vpop.permute.xlu0 %6084
        %6086 = vrot.lane.b32.xlu0 %v6006, 64
        %v6087 = vpop.permute.xlu0 %6086
        %6088 = vrot.lane.b32.xlu0 %v6014, 64
        %v6089 = vpop.permute.xlu0 %6088
        %6090 = vrot.lane.b32.xlu0 %v6022, 64
        %v6091 = vpop.permute.xlu0 %6090
        %6092 = vrot.lane.b32.xlu0 %v6030, 64
        %v6093 = vpop.permute.xlu0 %6092
        %6094 = vrot.lane.b32.xlu0 %v6038, 64
        %v6095 = vpop.permute.xlu0 %6094
        %6096 = vrot.lane.b32.xlu0 %v6046, 64
        %v6097 = vpop.permute.xlu0 %6096
        %6098 = vrot.lane.b32.xlu0 %v6049, 64
        %v6099 = vpop.permute.xlu0 %6098
        %v6125 = vrot.slane %v5849, 1
        %v6126 = vrot.slane %v5825, 1
        %v6127 = vsel %vm2752, %v6125, %v6126
        %v6128 = vrot.slane %v5826, 1
        %v6129 = vsel %vm2752, %v6126, %v6128
        %v6130 = vrot.slane %v5827, 1
        %v6131 = vsel %vm2752, %v6128, %v6130
        %v6132 = vrot.slane %v5828, 1
        %v6133 = vsel %vm2752, %v6130, %v6132
        %v6134 = vrot.slane %v5829, 1
        %v6135 = vsel %vm2752, %v6132, %v6134
        %v6136 = vrot.slane %v5830, 1
        %v6137 = vsel %vm2752, %v6134, %v6136
        %v6138 = vrot.slane %v5831, 1
        %v6139 = vsel %vm2752, %v6136, %v6138
        %v6140 = vrot.slane %v5832, 1
        %v6141 = vsel %vm2752, %v6138, %v6140
        %v6142 = vrot.slane %v5833, 1
        %v6143 = vsel %vm2752, %v6140, %v6142
        %v6144 = vrot.slane %v5834, 1
        %v6145 = vsel %vm2752, %v6142, %v6144
        %v6146 = vrot.slane %v5835, 1
        %v6147 = vsel %vm2752, %v6144, %v6146
        %v6148 = vrot.slane %v5836, 1
        %v6149 = vsel %vm2752, %v6146, %v6148
        %v6150 = vrot.slane %v5837, 1
        %v6151 = vsel %vm2752, %v6148, %v6150
        %v6152 = vrot.slane %v5838, 1
        %v6153 = vsel %vm2752, %v6150, %v6152
        %v6154 = vrot.slane %v5839, 1
        %v6155 = vsel %vm2752, %v6152, %v6154
        %v6156 = vrot.slane %v5840, 1
        %v6157 = vsel %vm2752, %v6154, %v6156
        %v6158 = vrot.slane %v5841, 1
        %v6159 = vsel %vm2752, %v6156, %v6158
        %v6160 = vrot.slane %v5842, 1
        %v6161 = vsel %vm2752, %v6158, %v6160
        %v6162 = vrot.slane %v5843, 1
        %v6163 = vsel %vm2752, %v6160, %v6162
        %v6164 = vrot.slane %v5844, 1
        %v6165 = vsel %vm2752, %v6162, %v6164
        %v6166 = vrot.slane %v5845, 1
        %v6167 = vsel %vm2752, %v6164, %v6166
        %v6168 = vrot.slane %v5846, 1
        %v6169 = vsel %vm2752, %v6166, %v6168
        %v6170 = vrot.slane %v5847, 1
        %v6171 = vsel %vm2752, %v6168, %v6170
        %v6172 = vrot.slane %v5850, 1
        %v6173 = vsel %vm2752, %v6170, %v6172
        %v6176 = vsel %vm491, %v5824, %v6051
        %v6178 = vsel %vm491, %v5825, %v6053
        %v6180 = vsel %vm491, %v5826, %v6055
        %v6182 = vsel %vm491, %v5827, %v6057
        %v6184 = vsel %vm491, %v5828, %v6059
        %v6186 = vsel %vm491, %v5829, %v6061
        %v6188 = vsel %vm491, %v5830, %v6063
        %v6190 = vsel %vm491, %v5831, %v6065
        %v6192 = vsel %vm491, %v5832, %v6067
        %v6194 = vsel %vm491, %v5833, %v6069
        %v6196 = vsel %vm491, %v5834, %v6071
        %v6198 = vsel %vm491, %v5835, %v6073
        %v6200 = vsel %vm491, %v5836, %v6075
        %v6202 = vsel %vm491, %v5837, %v6077
        %v6204 = vsel %vm491, %v5838, %v6079
        %v6206 = vsel %vm491, %v5839, %v6081
        %v6208 = vsel %vm491, %v5840, %v6083
        %v6210 = vsel %vm491, %v5841, %v6085
        %v6212 = vsel %vm491, %v5842, %v6087
        %v6214 = vsel %vm491, %v5843, %v6089
        %v6216 = vsel %vm491, %v5844, %v6091
        %v6218 = vsel %vm491, %v5845, %v6093
        %v6220 = vsel %vm491, %v5846, %v6095
        %v6222 = vsel %vm491, %v5847, %v6097
        %v6224 = vsel %vm491, %v5848, %v6099
        %v6225 = vld [vmem:[#allocation15] sm:$0xf]
        %v6226 = vld [vmem:[#allocation15 + $0x4] sm:$0xf]
        %v6227 = vld [vmem:[#allocation15 + $0x8] sm:$0xf]
        %v6228 = vld [vmem:[#allocation15 + $0xc] sm:$0xf]
        %v6229 = vld [vmem:[#allocation15 + $0x10] sm:$0xf]
        %v6230 = vld [vmem:[#allocation15 + $0x14] sm:$0xf]
        %v6231 = vld [vmem:[#allocation15 + $0x18] sm:$0xf]
        %v6232 = vld [vmem:[#allocation15 + $0x1c] sm:$0xf]
        %v6233 = vld [vmem:[#allocation15 + $0x20] sm:$0xf]
        %v6234 = vld [vmem:[#allocation15 + $0x24] sm:$0xf]
        %v6235 = vld [vmem:[#allocation15 + $0x28] sm:$0xf]
        %v6236 = vld [vmem:[#allocation15 + $0x2c] sm:$0xf]
        %v6237 = vld [vmem:[#allocation15 + $0x30] sm:$0xf]
        %v6238 = vld [vmem:[#allocation15 + $0x34] sm:$0xf]
        %v6239 = vld [vmem:[#allocation15 + $0x38] sm:$0xf]
        %v6240 = vld [vmem:[#allocation15 + $0x3c] sm:$0xf]
        %v6241 = vld [vmem:[#allocation15 + $0x40] sm:$0xf]
        %v6242 = vld [vmem:[#allocation15 + $0x44] sm:$0xf]
        %v6243 = vld [vmem:[#allocation15 + $0x48] sm:$0xf]
        %v6244 = vld [vmem:[#allocation15 + $0x4c] sm:$0xf]
        %v6245 = vld [vmem:[#allocation15 + $0x50] sm:$0xf]
        %v6246 = vld [vmem:[#allocation15 + $0x54] sm:$0xf]
        %v6247 = vld [vmem:[#allocation15 + $0x58] sm:$0xf]
        %v6248 = vld [vmem:[#allocation15 + $0x5c] sm:$0xf]
        %v6249 = vld [vmem:[#allocation3 + $0x8] sm:$0x80]
        %v6250 = vld [vmem:[#allocation3 + $0xc0] sm:$0xff]
        %v6251 = vld [vmem:[#allocation3 + $0xc8] sm:$0xff]
        %v6252 = vld [vmem:[#allocation3 + $0xd0] sm:$0x1]
        %v6254 = vshll.u32 %v6250, 16
        %v6256 = vrot.slane %v6254, 1
        %v6257 = vsel %vm2477, %v6041, %v6256
        %v6258 = vshrl.u32 %v6250, 16
        %v6260 = vor.u32 %v6258, %v6256
        %v6262 = vshll.u32 %v6251, 16
        %v6264 = vrot.slane %v6262, 1
        %v6265 = vsel %vm2477, %v6260, %v6264
        %v6266 = vshrl.u32 %v6251, 16
        %v6268 = vor.u32 %v6266, %v6264
        %6269 = vrot.lane.b32.xlu0 %v5869, 64
        %v6270 = vpop.permute.xlu0 %6269
        %6271 = vrot.lane.b32.xlu0 %v6257, 64
        %v6272 = vpop.permute.xlu0 %6271
        %6273 = vrot.lane.b32.xlu0 %v6265, 64
        %v6274 = vpop.permute.xlu0 %6273
        %6275 = vrot.lane.b32.xlu0 %v6268, 64
        %v6276 = vpop.permute.xlu0 %6275
        %v6280 = vrot.slane %v6250, 1
        %v6281 = vsel %vm2752, %v6170, %v6280
        %v6282 = vrot.slane %v6251, 1
        %v6283 = vsel %vm2752, %v6280, %v6282
        %v6284 = vrot.slane %v6252, 1
        %v6285 = vsel %vm2752, %v6282, %v6284
        %v6288 = vsel %vm491, %v6249, %v6270
        %v6290 = vsel %vm491, %v5847, %v6272
        %v6292 = vsel %vm491, %v6250, %v6274
        %v6294 = vsel %vm491, %v6251, %v6276
        %s6295 = scalar_lea.vmem [#allocation15], 96
        %v6296 = vld [vmem:[%s6295] sm:$0xf]
        %v6297 = vld [vmem:[%s6295 + $0x4] sm:$0xf]
        %v6298 = vld [vmem:[%s6295 + $0x8] sm:$0xf]
        %v6299 = vld [vmem:[%s6295 + $0xc] sm:$0xf]
        %v6300 = vld [vmem:[%s6295 + $0x10] sm:$0xf]
        %v6301 = vld [vmem:[%s6295 + $0x14] sm:$0xf]
        %v6302 = vld [vmem:[%s6295 + $0x18] sm:$0xf]
        %v6303 = vld [vmem:[%s6295 + $0x1c] sm:$0xf]
        %v6304 = vld [vmem:[%s6295 + $0x20] sm:$0xf]
        %v6305 = vld [vmem:[%s6295 + $0x24] sm:$0xf]
        %v6306 = vld [vmem:[%s6295 + $0x28] sm:$0xf]
        %v6307 = vld [vmem:[%s6295 + $0x2c] sm:$0xf]
        %v6308 = vld [vmem:[%s6295 + $0x30] sm:$0xf]
        %v6309 = vld [vmem:[%s6295 + $0x34] sm:$0xf]
        %v6310 = vld [vmem:[%s6295 + $0x38] sm:$0xf]
        %v6311 = vld [vmem:[%s6295 + $0x3c] sm:$0xf]
        %v6312 = vld [vmem:[%s6295 + $0x40] sm:$0xf]
        %v6313 = vld [vmem:[%s6295 + $0x44] sm:$0xf]
        %v6314 = vld [vmem:[%s6295 + $0x48] sm:$0xf]
        %v6315 = vld [vmem:[%s6295 + $0x4c] sm:$0xf]
        %v6316 = vld [vmem:[%s6295 + $0x50] sm:$0xf]
        %v6317 = vld [vmem:[%s6295 + $0x54] sm:$0xf]
        %v6318 = vld [vmem:[%s6295 + $0x58] sm:$0xf]
        %v6319 = vld [vmem:[%s6295 + $0x5c] sm:$0xf]
        %v6320 = vshrl.u32 %v6288, 16
        %v6322 = vrot.slane %v6320, 7
        %v6323 = vshrl.u32 %v6180, 16
        %v6325 = vrot.slane %v6323, 7
        %v6326 = vshll.u32 %v6180, 16
        %v6328 = vor.u32 %v6325, %v6326
        %v6329 = vsel %vm2948, %v6322, %v6328
        %v6331 = vshrl.u32 %v6128, 16
        %v6333 = vrot.slane %v6331, 7
        %v6335 = vshrl.u32 %v6131, 16
        %v6337 = vrot.slane %v6335, 7
        %v6338 = vshll.u32 %v6131, 16
        %v6340 = vor.u32 %v6337, %v6338
        %v6341 = vsel %vm2948, %v6333, %v6340
        %v6342 = vshrl.u32 %v6182, 16
        %v6344 = vrot.slane %v6342, 7
        %v6345 = vshll.u32 %v6182, 16
        %v6347 = vor.u32 %v6344, %v6345
        %v6348 = vsel %vm2948, %v6325, %v6347
        %v6350 = vshrl.u32 %v6133, 16
        %v6352 = vrot.slane %v6350, 7
        %v6353 = vshll.u32 %v6133, 16
        %v6355 = vor.u32 %v6352, %v6353
        %v6356 = vsel %vm2948, %v6337, %v6355
        %v6357 = vshrl.u32 %v6184, 16
        %v6359 = vrot.slane %v6357, 7
        %v6360 = vshll.u32 %v6184, 16
        %v6362 = vor.u32 %v6359, %v6360
        %v6363 = vsel %vm2948, %v6344, %v6362
        %v6365 = vshrl.u32 %v6135, 16
        %v6367 = vrot.slane %v6365, 7
        %v6368 = vshll.u32 %v6135, 16
        %v6370 = vor.u32 %v6367, %v6368
        %v6371 = vsel %vm2948, %v6352, %v6370
        %v6372 = vshrl.u32 %v6186, 16
        %v6374 = vrot.slane %v6372, 7
        %v6375 = vshll.u32 %v6186, 16
        %v6377 = vor.u32 %v6374, %v6375
        %v6378 = vsel %vm2948, %v6359, %v6377
        %v6380 = vshrl.u32 %v6137, 16
        %v6382 = vrot.slane %v6380, 7
        %v6383 = vshll.u32 %v6137, 16
        %v6385 = vor.u32 %v6382, %v6383
        %v6386 = vsel %vm2948, %v6367, %v6385
        %v6387 = vshrl.u32 %v6188, 16
        %v6389 = vrot.slane %v6387, 7
        %v6390 = vshll.u32 %v6188, 16
        %v6392 = vor.u32 %v6389, %v6390
        %v6393 = vsel %vm2948, %v6374, %v6392
        %v6395 = vshrl.u32 %v6139, 16
        %v6397 = vrot.slane %v6395, 7
        %v6398 = vshll.u32 %v6139, 16
        %v6400 = vor.u32 %v6397, %v6398
        %v6401 = vsel %vm2948, %v6382, %v6400
        %v6402 = vshrl.u32 %v6190, 16
        %v6404 = vrot.slane %v6402, 7
        %v6405 = vshll.u32 %v6190, 16
        %v6407 = vor.u32 %v6404, %v6405
        %v6408 = vsel %vm2948, %v6389, %v6407
        %v6410 = vshrl.u32 %v6141, 16
        %v6412 = vrot.slane %v6410, 7
        %v6413 = vshll.u32 %v6141, 16
        %v6415 = vor.u32 %v6412, %v6413
        %v6416 = vsel %vm2948, %v6397, %v6415
        %v6417 = vshrl.u32 %v6192, 16
        %v6419 = vrot.slane %v6417, 7
        %v6420 = vshll.u32 %v6192, 16
        %v6422 = vor.u32 %v6419, %v6420
        %v6423 = vsel %vm2948, %v6404, %v6422
        %v6425 = vshrl.u32 %v6143, 16
        %v6427 = vrot.slane %v6425, 7
        %v6428 = vshll.u32 %v6143, 16
        %v6430 = vor.u32 %v6427, %v6428
        %v6431 = vsel %vm2948, %v6412, %v6430
        %v6432 = vshrl.u32 %v6194, 16
        %v6434 = vrot.slane %v6432, 7
        %v6435 = vshll.u32 %v6194, 16
        %v6437 = vor.u32 %v6434, %v6435
        %v6438 = vsel %vm2948, %v6419, %v6437
        %v6440 = vshrl.u32 %v6145, 16
        %v6442 = vrot.slane %v6440, 7
        %v6443 = vshll.u32 %v6145, 16
        %v6445 = vor.u32 %v6442, %v6443
        %v6446 = vsel %vm2948, %v6427, %v6445
        %v6447 = vshrl.u32 %v6196, 16
        %v6449 = vrot.slane %v6447, 7
        %v6450 = vshll.u32 %v6196, 16
        %v6452 = vor.u32 %v6449, %v6450
        %v6453 = vsel %vm2948, %v6434, %v6452
        %v6455 = vshrl.u32 %v6147, 16
        %v6457 = vrot.slane %v6455, 7
        %v6458 = vshll.u32 %v6147, 16
        %v6460 = vor.u32 %v6457, %v6458
        %v6461 = vsel %vm2948, %v6442, %v6460
        %v6462 = vshrl.u32 %v6198, 16
        %v6464 = vrot.slane %v6462, 7
        %v6465 = vshll.u32 %v6198, 16
        %v6467 = vor.u32 %v6464, %v6465
        %v6468 = vsel %vm2948, %v6449, %v6467
        %v6470 = vshrl.u32 %v6149, 16
        %v6472 = vrot.slane %v6470, 7
        %v6473 = vshll.u32 %v6149, 16
        %v6475 = vor.u32 %v6472, %v6473
        %v6476 = vsel %vm2948, %v6457, %v6475
        %v6477 = vshrl.u32 %v6200, 16
        %v6479 = vrot.slane %v6477, 7
        %v6480 = vshll.u32 %v6200, 16
        %v6482 = vor.u32 %v6479, %v6480
        %v6483 = vsel %vm2948, %v6464, %v6482
        %v6485 = vshrl.u32 %v6151, 16
        %v6487 = vrot.slane %v6485, 7
        %v6488 = vshll.u32 %v6151, 16
        %v6490 = vor.u32 %v6487, %v6488
        %v6491 = vsel %vm2948, %v6472, %v6490
        %v6492 = vshrl.u32 %v6202, 16
        %v6494 = vrot.slane %v6492, 7
        %v6495 = vshll.u32 %v6202, 16
        %v6497 = vor.u32 %v6494, %v6495
        %v6498 = vsel %vm2948, %v6479, %v6497
        %v6500 = vshrl.u32 %v6153, 16
        %v6502 = vrot.slane %v6500, 7
        %v6503 = vshll.u32 %v6153, 16
        %v6505 = vor.u32 %v6502, %v6503
        %v6506 = vsel %vm2948, %v6487, %v6505
        %v6507 = vshrl.u32 %v6204, 16
        %v6509 = vrot.slane %v6507, 7
        %v6510 = vshll.u32 %v6204, 16
        %v6512 = vor.u32 %v6509, %v6510
        %v6513 = vsel %vm2948, %v6494, %v6512
        %v6515 = vshrl.u32 %v6155, 16
        %v6517 = vrot.slane %v6515, 7
        %v6518 = vshll.u32 %v6155, 16
        %v6520 = vor.u32 %v6517, %v6518
        %v6521 = vsel %vm2948, %v6502, %v6520
        %v6522 = vshrl.u32 %v6206, 16
        %v6524 = vrot.slane %v6522, 7
        %v6525 = vshll.u32 %v6206, 16
        %v6527 = vor.u32 %v6524, %v6525
        %v6528 = vsel %vm2948, %v6509, %v6527
        %v6530 = vshrl.u32 %v6157, 16
        %v6532 = vrot.slane %v6530, 7
        %v6533 = vshll.u32 %v6157, 16
        %v6535 = vor.u32 %v6532, %v6533
        %v6536 = vsel %vm2948, %v6517, %v6535
        %v6537 = vshrl.u32 %v6208, 16
        %v6539 = vrot.slane %v6537, 7
        %v6540 = vshll.u32 %v6208, 16
        %v6542 = vor.u32 %v6539, %v6540
        %v6543 = vsel %vm2948, %v6524, %v6542
        %v6545 = vshrl.u32 %v6159, 16
        %v6547 = vrot.slane %v6545, 7
        %v6548 = vshll.u32 %v6159, 16
        %v6550 = vor.u32 %v6547, %v6548
        %v6551 = vsel %vm2948, %v6532, %v6550
        %v6552 = vshrl.u32 %v6210, 16
        %v6554 = vrot.slane %v6552, 7
        %v6555 = vshll.u32 %v6210, 16
        %v6557 = vor.u32 %v6554, %v6555
        %v6558 = vsel %vm2948, %v6539, %v6557
        %v6560 = vshrl.u32 %v6161, 16
        %v6562 = vrot.slane %v6560, 7
        %v6563 = vshll.u32 %v6161, 16
        %v6565 = vor.u32 %v6562, %v6563
        %v6566 = vsel %vm2948, %v6547, %v6565
        %v6567 = vshrl.u32 %v6212, 16
        %v6569 = vrot.slane %v6567, 7
        %v6570 = vshll.u32 %v6212, 16
        %v6572 = vor.u32 %v6569, %v6570
        %v6573 = vsel %vm2948, %v6554, %v6572
        %v6575 = vshrl.u32 %v6163, 16
        %v6577 = vrot.slane %v6575, 7
        %v6578 = vshll.u32 %v6163, 16
        %v6580 = vor.u32 %v6577, %v6578
        %v6581 = vsel %vm2948, %v6562, %v6580
        %v6582 = vshrl.u32 %v6214, 16
        %v6584 = vrot.slane %v6582, 7
        %v6585 = vshll.u32 %v6214, 16
        %v6587 = vor.u32 %v6584, %v6585
        %v6588 = vsel %vm2948, %v6569, %v6587
        %v6590 = vshrl.u32 %v6165, 16
        %v6592 = vrot.slane %v6590, 7
        %v6593 = vshll.u32 %v6165, 16
        %v6595 = vor.u32 %v6592, %v6593
        %v6596 = vsel %vm2948, %v6577, %v6595
        %v6597 = vshrl.u32 %v6216, 16
        %v6599 = vrot.slane %v6597, 7
        %v6600 = vshll.u32 %v6216, 16
        %v6602 = vor.u32 %v6599, %v6600
        %v6603 = vsel %vm2948, %v6584, %v6602
        %v6605 = vshrl.u32 %v6167, 16
        %v6607 = vrot.slane %v6605, 7
        %v6608 = vshll.u32 %v6167, 16
        %v6610 = vor.u32 %v6607, %v6608
        %v6611 = vsel %vm2948, %v6592, %v6610
        %v6612 = vshrl.u32 %v6218, 16
        %v6614 = vrot.slane %v6612, 7
        %v6615 = vshll.u32 %v6218, 16
        %v6617 = vor.u32 %v6614, %v6615
        %v6618 = vsel %vm2948, %v6599, %v6617
        %v6620 = vshrl.u32 %v6169, 16
        %v6622 = vrot.slane %v6620, 7
        %v6623 = vshll.u32 %v6169, 16
        %v6625 = vor.u32 %v6622, %v6623
        %v6626 = vsel %vm2948, %v6607, %v6625
        %v6627 = vshrl.u32 %v6220, 16
        %v6629 = vrot.slane %v6627, 7
        %v6630 = vshll.u32 %v6220, 16
        %v6632 = vor.u32 %v6629, %v6630
        %v6633 = vsel %vm2948, %v6614, %v6632
        %v6635 = vshrl.u32 %v6171, 16
        %v6637 = vrot.slane %v6635, 7
        %v6638 = vshll.u32 %v6171, 16
        %v6640 = vor.u32 %v6637, %v6638
        %v6641 = vsel %vm2948, %v6622, %v6640
        %v6642 = vshrl.u32 %v6290, 16
        %v6644 = vrot.slane %v6642, 7
        %v6645 = vshll.u32 %v6290, 16
        %v6647 = vor.u32 %v6644, %v6645
        %v6648 = vsel %vm2948, %v6629, %v6647
        %v6650 = vshrl.u32 %v6281, 16
        %v6652 = vrot.slane %v6650, 7
        %v6653 = vshll.u32 %v6281, 16
        %v6655 = vor.u32 %v6652, %v6653
        %v6656 = vsel %vm2948, %v6637, %v6655
        %v6657 = vshrl.u32 %v6292, 16
        %v6659 = vrot.slane %v6657, 7
        %v6660 = vshll.u32 %v6292, 16
        %v6662 = vor.u32 %v6659, %v6660
        %v6663 = vsel %vm2948, %v6644, %v6662
        %v6665 = vshrl.u32 %v6283, 16
        %v6667 = vrot.slane %v6665, 7
        %v6668 = vshll.u32 %v6283, 16
        %v6670 = vor.u32 %v6667, %v6668
        %v6671 = vsel %vm2948, %v6652, %v6670
        %v6672 = vshrl.u32 %v6294, 16
        %v6674 = vrot.slane %v6672, 7
        %v6675 = vshll.u32 %v6294, 16
        %v6677 = vor.u32 %v6674, %v6675
        %v6678 = vsel %vm2948, %v6659, %v6677
        %v6680 = vshrl.u32 %v6285, 16
        %v6682 = vrot.slane %v6680, 7
        %v6683 = vshll.u32 %v6285, 16
        %v6685 = vor.u32 %v6682, %v6683
        %v6686 = vsel %vm2948, %v6667, %v6685
        %v6735 = vunpack.c.l.b16 %v6296
        %v6736 = vunpack.c.l.b16 %v6297
        %v6737 = vunpack.c.l.b16 %v6298
        %v6738 = vunpack.c.l.b16 %v6299
        %v6739 = vunpack.c.l.b16 %v6300
        %v6740 = vunpack.c.l.b16 %v6301
        %v6741 = vunpack.c.l.b16 %v6302
        %v6742 = vunpack.c.l.b16 %v6303
        %v6743 = vunpack.c.l.b16 %v6304
        %v6744 = vunpack.c.l.b16 %v6305
        %v6745 = vunpack.c.l.b16 %v6306
        %v6746 = vunpack.c.l.b16 %v6307
        %v6747 = vunpack.c.l.b16 %v6308
        %v6748 = vunpack.c.l.b16 %v6309
        %v6749 = vunpack.c.l.b16 %v6310
        %v6750 = vunpack.c.l.b16 %v6311
        %v6751 = vunpack.c.l.b16 %v6312
        %v6752 = vunpack.c.l.b16 %v6313
        %v6753 = vunpack.c.l.b16 %v6314
        %v6754 = vunpack.c.l.b16 %v6315
        %v6755 = vunpack.c.l.b16 %v6316
        %v6756 = vunpack.c.l.b16 %v6317
        %v6757 = vunpack.c.l.b16 %v6318
        %v6758 = vunpack.c.l.b16 %v6319
        %v6759 = vpack.c.b16 %v6736, %v6735
        %v6760 = vpack.c.b16 %v6738, %v6737
        %v6761 = vpack.c.b16 %v6740, %v6739
        %v6762 = vpack.c.b16 %v6742, %v6741
        %v6763 = vpack.c.b16 %v6744, %v6743
        %v6764 = vpack.c.b16 %v6746, %v6745
        %v6765 = vpack.c.b16 %v6748, %v6747
        %v6766 = vpack.c.b16 %v6750, %v6749
        %v6767 = vpack.c.b16 %v6752, %v6751
        %v6768 = vpack.c.b16 %v6754, %v6753
        %v6769 = vpack.c.b16 %v6756, %v6755
        %v6770 = vpack.c.b16 %v6758, %v6757
        %v6784 = vsel %vm491, %v6341, 0
        %v6787 = vsel %vm491, %v6356, 0
        %v6790 = vsel %vm491, %v6371, 0
        %v6793 = vsel %vm491, %v6386, 0
        %v6796 = vsel %vm491, %v6401, 0
        %v6799 = vsel %vm491, %v6416, 0
        %v6802 = vsel %vm491, %v6431, 0
        %v6805 = vsel %vm491, %v6446, 0
        %v6808 = vsel %vm491, %v6461, 0
        %v6811 = vsel %vm491, %v6476, 0
        %v6814 = vsel %vm491, %v6491, 0
        %v6817 = vsel %vm491, %v6506, 0
        %v6820 = vsel %vm491, %v6521, 0
        %v6823 = vsel %vm491, %v6536, 0
        %v6826 = vsel %vm491, %v6551, 0
        %v6829 = vsel %vm491, %v6566, 0
        %v6832 = vsel %vm491, %v6581, 0
        %v6835 = vsel %vm491, %v6596, 0
        %v6838 = vsel %vm491, %v6611, 0
        %v6841 = vsel %vm491, %v6626, 0
        %v6844 = vsel %vm491, %v6641, 0
        %v6847 = vsel %vm491, %v6656, 0
        %v6850 = vsel %vm491, %v6671, 0
        %v6853 = vsel %vm491, %v6686, 0
        %6855 = vmatprep.subr.bf16.mxu0 0
        %6856 = vmatpush1.bf16.msra.mxu0 %v6759
        %6857 = vmatprep.subr.bf16.mxu0 0
        %6858 = vmatpush1.bf16.msra.mxu0 %v6760
        %6859 = vmatprep.subr.bf16.mxu0 0
        %6860 = vmatpush1.bf16.msra.mxu0 %v6761
        %6861 = vmatprep.subr.bf16.mxu0 0
        %6862 = vmatpush1.bf16.msra.mxu0 %v6762
        %6863 = vmatprep.subr.bf16.mxu0 0
        %6864 = vmatpush1.bf16.msra.mxu0 %v6763
        %6865 = vmatprep.subr.bf16.mxu0 0
        %6866 = vmatpush1.bf16.msra.mxu0 %v6764
        %6867 = vmatprep.subr.bf16.mxu0 0
        %6868 = vmatpush1.bf16.msra.mxu0 %v6765
        %6869 = vmatprep.subr.bf16.mxu0 0
        %6870 = vmatpush1.bf16.msra.mxu0 %v6766
        %6871 = vmatprep.subr.bf16.mxu0 0
        %6872 = vmatpush1.bf16.msra.mxu0 %v6767
        %6873 = vmatprep.subr.bf16.mxu0 0
        %6874 = vmatpush1.bf16.msra.mxu0 %v6768
        %6875 = vmatprep.subr.bf16.mxu0 0
        %6876 = vmatpush1.bf16.msra.mxu0 %v6769
        %6877 = vmatprep.subr.bf16.mxu0 0
        %6878 = vmatpush1.bf16.msra.mxu0 %v6770
        %6879 = vmatprep.subr.bf16.mxu0 0
        %6880 = vmatpush1.bf16.msra.mxu0 0
        %6881 = vmatprep.subr.bf16.mxu0 0
        %6882 = vmatpush1.bf16.msra.mxu0 0
        %6883 = vmatprep.subr.bf16.mxu0 0
        %6884 = vmatpush1.bf16.msra.mxu0 0
        %6885 = vmatprep.subr.bf16.mxu0 0
        %6886 = vmatpush1.bf16.msra.mxu0 0
        %6887 = vmatprep.mubr.bf16.mxu0 %v6784
        %6888 = vmatmul.mubr.bf16.gmra.mrb[0].mxu0 %v6329
        %v6889 = vpop.f32.mrb[0].mxu0
        %v6890 = vadd.f32 0.0, %v6889
        %v6891 = vpop.f32.mrb[0].mxu0
        %v6892 = vpop.f32.mrb[0].mxu0
        %v6893 = vadd.f32 0.0, %v6892
        %v6894 = vpop.f32.mrb[0].mxu0
        %6895 = vmatprep.mubr.bf16.mxu0 %v6787
        %6896 = vmatmul.mubr.bf16.gmra.mrb[0].mxu0 %v6348
        %v6897 = vpop.f32.mrb[0].mxu0
        %v6898 = vadd.f32 0.0, %v6897
        %v6899 = vpop.f32.mrb[0].mxu0
        %v6900 = vpop.f32.mrb[0].mxu0
        %v6901 = vadd.f32 0.0, %v6900
        %v6902 = vpop.f32.mrb[0].mxu0
        %6903 = vmatprep.mubr.bf16.mxu0 %v6790
        %6904 = vmatmul.mubr.bf16.gmra.mrb[0].mxu0 %v6363
        %v6905 = vpop.f32.mrb[0].mxu0
        %v6906 = vadd.f32 0.0, %v6905
        %v6907 = vpop.f32.mrb[0].mxu0
        %v6908 = vpop.f32.mrb[0].mxu0
        %v6909 = vadd.f32 0.0, %v6908
        %v6910 = vpop.f32.mrb[0].mxu0
        %6911 = vmatprep.mubr.bf16.mxu0 %v6793
        %6912 = vmatmul.mubr.bf16.gmra.mrb[0].mxu0 %v6378
        %v6913 = vpop.f32.mrb[0].mxu0
        %v6914 = vadd.f32 0.0, %v6913
        %v6915 = vpop.f32.mrb[0].mxu0
        %v6916 = vpop.f32.mrb[0].mxu0
        %v6917 = vadd.f32 0.0, %v6916
        %v6918 = vpop.f32.mrb[0].mxu0
        %6919 = vmatprep.mubr.bf16.mxu0 %v6796
        %6920 = vmatmul.mubr.bf16.gmra.mrb[0].mxu0 %v6393
        %v6921 = vpop.f32.mrb[0].mxu0
        %v6922 = vadd.f32 0.0, %v6921
        %v6923 = vpop.f32.mrb[0].mxu0
        %v6924 = vpop.f32.mrb[0].mxu0
        %v6925 = vadd.f32 0.0, %v6924
        %v6926 = vpop.f32.mrb[0].mxu0
        %6927 = vmatprep.mubr.bf16.mxu0 %v6799
        %6928 = vmatmul.mubr.bf16.gmra.mrb[0].mxu0 %v6408
        %v6929 = vpop.f32.mrb[0].mxu0
        %v6930 = vadd.f32 0.0, %v6929
        %v6931 = vpop.f32.mrb[0].mxu0
        %v6932 = vpop.f32.mrb[0].mxu0
        %v6933 = vadd.f32 0.0, %v6932
        %v6934 = vpop.f32.mrb[0].mxu0
        %6935 = vmatprep.mubr.bf16.mxu0 %v6802
        %6936 = vmatmul.mubr.bf16.gmra.mrb[0].mxu0 %v6423
        %v6937 = vpop.f32.mrb[0].mxu0
        %v6938 = vadd.f32 0.0, %v6937
        %v6939 = vpop.f32.mrb[0].mxu0
        %v6940 = vpop.f32.mrb[0].mxu0
        %v6941 = vadd.f32 0.0, %v6940
        %v6942 = vpop.f32.mrb[0].mxu0
        %6943 = vmatprep.mubr.bf16.mxu0 %v6805
        %6944 = vmatmul.mubr.bf16.gmra.mrb[0].mxu0 %v6438
        %v6945 = vpop.f32.mrb[0].mxu0
        %v6946 = vadd.f32 0.0, %v6945
        %v6947 = vpop.f32.mrb[0].mxu0
        %v6948 = vpop.f32.mrb[0].mxu0
        %v6949 = vadd.f32 0.0, %v6948
        %v6950 = vpop.f32.mrb[0].mxu0
        %6951 = vmatprep.mubr.bf16.mxu0 %v6808
        %6952 = vmatmul.mubr.bf16.gmra.mrb[0].mxu0 %v6453
        %v6953 = vpop.f32.mrb[0].mxu0
        %v6954 = vadd.f32 0.0, %v6953
        %v6955 = vpop.f32.mrb[0].mxu0
        %v6956 = vpop.f32.mrb[0].mxu0
        %v6957 = vadd.f32 0.0, %v6956
        %v6958 = vpop.f32.mrb[0].mxu0
        %6959 = vmatprep.mubr.bf16.mxu0 %v6811
        %6960 = vmatmul.mubr.bf16.gmra.mrb[0].mxu0 %v6468
        %v6961 = vpop.f32.mrb[0].mxu0
        %v6962 = vadd.f32 0.0, %v6961
        %v6963 = vpop.f32.mrb[0].mxu0
        %v6964 = vpop.f32.mrb[0].mxu0
        %v6965 = vadd.f32 0.0, %v6964
        %v6966 = vpop.f32.mrb[0].mxu0
        %6967 = vmatprep.mubr.bf16.mxu0 %v6814
        %6968 = vmatmul.mubr.bf16.gmra.mrb[0].mxu0 %v6483
        %v6969 = vpop.f32.mrb[0].mxu0
        %v6970 = vadd.f32 0.0, %v6969
        %v6971 = vpop.f32.mrb[0].mxu0
        %v6972 = vpop.f32.mrb[0].mxu0
        %v6973 = vadd.f32 0.0, %v6972
        %v6974 = vpop.f32.mrb[0].mxu0
        %6975 = vmatprep.mubr.bf16.mxu0 %v6817
        %6976 = vmatmul.mubr.bf16.gmra.mrb[0].mxu0 %v6498
        %v6977 = vpop.f32.mrb[0].mxu0
        %v6978 = vadd.f32 0.0, %v6977
        %v6979 = vpop.f32.mrb[0].mxu0
        %v6980 = vpop.f32.mrb[0].mxu0
        %v6981 = vadd.f32 0.0, %v6980
        %v6982 = vpop.f32.mrb[0].mxu0
        %6983 = vmatprep.mubr.bf16.mxu0 %v6820
        %6984 = vmatmul.mubr.bf16.gmra.mrb[0].mxu0 %v6513
        %v6985 = vpop.f32.mrb[0].mxu0
        %v6986 = vadd.f32 0.0, %v6985
        %v6987 = vpop.f32.mrb[0].mxu0
        %v6988 = vpop.f32.mrb[0].mxu0
        %v6989 = vadd.f32 0.0, %v6988
        %v6990 = vpop.f32.mrb[0].mxu0
        %6991 = vmatprep.mubr.bf16.mxu0 %v6823
        %6992 = vmatmul.mubr.bf16.gmra.mrb[0].mxu0 %v6528
        %v6993 = vpop.f32.mrb[0].mxu0
        %v6994 = vadd.f32 0.0, %v6993
        %v6995 = vpop.f32.mrb[0].mxu0
        %v6996 = vpop.f32.mrb[0].mxu0
        %v6997 = vadd.f32 0.0, %v6996
        %v6998 = vpop.f32.mrb[0].mxu0
        %6999 = vmatprep.mubr.bf16.mxu0 %v6826
        %7000 = vmatmul.mubr.bf16.gmra.mrb[0].mxu0 %v6543
        %v7001 = vpop.f32.mrb[0].mxu0
        %v7002 = vadd.f32 0.0, %v7001
        %v7003 = vpop.f32.mrb[0].mxu0
        %v7004 = vpop.f32.mrb[0].mxu0
        %v7005 = vadd.f32 0.0, %v7004
        %v7006 = vpop.f32.mrb[0].mxu0
        %7007 = vmatprep.mubr.bf16.mxu0 %v6829
        %7008 = vmatmul.mubr.bf16.gmra.mrb[0].mxu0 %v6558
        %v7009 = vpop.f32.mrb[0].mxu0
        %v7010 = vadd.f32 0.0, %v7009
        %v7011 = vpop.f32.mrb[0].mxu0
        %v7012 = vpop.f32.mrb[0].mxu0
        %v7013 = vadd.f32 0.0, %v7012
        %v7014 = vpop.f32.mrb[0].mxu0
        %7015 = vmatprep.mubr.bf16.mxu0 %v6832
        %7016 = vmatmul.mubr.bf16.gmra.mrb[0].mxu0 %v6573
        %v7017 = vpop.f32.mrb[0].mxu0
        %v7018 = vadd.f32 0.0, %v7017
        %v7019 = vpop.f32.mrb[0].mxu0
        %v7020 = vpop.f32.mrb[0].mxu0
        %v7021 = vadd.f32 0.0, %v7020
        %v7022 = vpop.f32.mrb[0].mxu0
        %7023 = vmatprep.mubr.bf16.mxu0 %v6835
        %7024 = vmatmul.mubr.bf16.gmra.mrb[0].mxu0 %v6588
        %v7025 = vpop.f32.mrb[0].mxu0
        %v7026 = vadd.f32 0.0, %v7025
        %v7027 = vpop.f32.mrb[0].mxu0
        %v7028 = vpop.f32.mrb[0].mxu0
        %v7029 = vadd.f32 0.0, %v7028
        %v7030 = vpop.f32.mrb[0].mxu0
        %7031 = vmatprep.mubr.bf16.mxu0 %v6838
        %7032 = vmatmul.mubr.bf16.gmra.mrb[0].mxu0 %v6603
        %v7033 = vpop.f32.mrb[0].mxu0
        %v7034 = vadd.f32 0.0, %v7033
        %v7035 = vpop.f32.mrb[0].mxu0
        %v7036 = vpop.f32.mrb[0].mxu0
        %v7037 = vadd.f32 0.0, %v7036
        %v7038 = vpop.f32.mrb[0].mxu0
        %7039 = vmatprep.mubr.bf16.mxu0 %v6841
        %7040 = vmatmul.mubr.bf16.gmra.mrb[0].mxu0 %v6618
        %v7041 = vpop.f32.mrb[0].mxu0
        %v7042 = vadd.f32 0.0, %v7041
        %v7043 = vpop.f32.mrb[0].mxu0
        %v7044 = vpop.f32.mrb[0].mxu0
        %v7045 = vadd.f32 0.0, %v7044
        %v7046 = vpop.f32.mrb[0].mxu0
        %7047 = vmatprep.mubr.bf16.mxu0 %v6844
        %7048 = vmatmul.mubr.bf16.gmra.mrb[0].mxu0 %v6633
        %v7049 = vpop.f32.mrb[0].mxu0
        %v7050 = vadd.f32 0.0, %v7049
        %v7051 = vpop.f32.mrb[0].mxu0
        %v7052 = vpop.f32.mrb[0].mxu0
        %v7053 = vadd.f32 0.0, %v7052
        %v7054 = vpop.f32.mrb[0].mxu0
        %7055 = vmatprep.mubr.bf16.mxu0 %v6847
        %7056 = vmatmul.mubr.bf16.gmra.mrb[0].mxu0 %v6648
        %v7057 = vpop.f32.mrb[0].mxu0
        %v7058 = vadd.f32 0.0, %v7057
        %v7059 = vpop.f32.mrb[0].mxu0
        %v7060 = vpop.f32.mrb[0].mxu0
        %v7061 = vadd.f32 0.0, %v7060
        %v7062 = vpop.f32.mrb[0].mxu0
        %7063 = vmatprep.mubr.bf16.mxu0 %v6850
        %7064 = vmatmul.mubr.bf16.gmra.mrb[0].mxu0 %v6663
        %v7065 = vpop.f32.mrb[0].mxu0
        %v7066 = vadd.f32 0.0, %v7065
        %v7067 = vpop.f32.mrb[0].mxu0
        %v7068 = vpop.f32.mrb[0].mxu0
        %v7069 = vadd.f32 0.0, %v7068
        %v7070 = vpop.f32.mrb[0].mxu0
        %7071 = vmatprep.mubr.bf16.mxu0 %v6853
        %7072 = vmatmul.mubr.bf16.gmra.mrb[0].mxu0 %v6678
        %v7073 = vpop.f32.mrb[0].mxu0
        %v7074 = vadd.f32 0.0, %v7073
        %v7075 = vpop.f32.mrb[0].mxu0
        %v7076 = vpop.f32.mrb[0].mxu0
        %v7077 = vadd.f32 0.0, %v7076
        %v7078 = vpop.f32.mrb[0].mxu0
        %7079 = vdwg.mxu0
        %v7080 = vshrl.u32 %v6176, 16
        %v7082 = vrot.slane %v7080, 3
        %v7083 = vshll.u32 %v6176, 16
        %v7085 = vrot.slane %v7083, 4
        %v7086 = vor.u32 %v7082, %v7085
        %v7087 = vshrl.u32 %v6178, 16
        %v7089 = vrot.slane %v7087, 3
        %v7090 = vshll.u32 %v6178, 16
        %v7092 = vrot.slane %v7090, 4
        %v7093 = vor.u32 %v7089, %v7092
        %v7094 = vsel %vm3709, %v7086, %v7093
        %v7096 = vshrl.u32 %v6127, 16
        %v7098 = vrot.slane %v7096, 3
        %v7099 = vshll.u32 %v6127, 16
        %v7101 = vrot.slane %v7099, 4
        %v7102 = vor.u32 %v7098, %v7101
        %v7104 = vshrl.u32 %v6129, 16
        %v7106 = vrot.slane %v7104, 3
        %v7107 = vshll.u32 %v6129, 16
        %v7109 = vrot.slane %v7107, 4
        %v7110 = vor.u32 %v7106, %v7109
        %v7111 = vsel %vm3709, %v7102, %v7110
        %v7112 = vrot.slane %v6323, 3
        %v7113 = vrot.slane %v6326, 4
        %v7114 = vor.u32 %v7112, %v7113
        %v7115 = vsel %vm3709, %v7093, %v7114
        %v7116 = vrot.slane %v6335, 3
        %v7117 = vrot.slane %v6338, 4
        %v7118 = vor.u32 %v7116, %v7117
        %v7119 = vsel %vm3709, %v7110, %v7118
        %v7120 = vrot.slane %v6342, 3
        %v7121 = vrot.slane %v6345, 4
        %v7122 = vor.u32 %v7120, %v7121
        %v7123 = vsel %vm3709, %v7114, %v7122
        %v7124 = vrot.slane %v6350, 3
        %v7125 = vrot.slane %v6353, 4
        %v7126 = vor.u32 %v7124, %v7125
        %v7127 = vsel %vm3709, %v7118, %v7126
        %v7128 = vrot.slane %v6357, 3
        %v7129 = vrot.slane %v6360, 4
        %v7130 = vor.u32 %v7128, %v7129
        %v7131 = vsel %vm3709, %v7122, %v7130
        %v7132 = vrot.slane %v6365, 3
        %v7133 = vrot.slane %v6368, 4
        %v7134 = vor.u32 %v7132, %v7133
        %v7135 = vsel %vm3709, %v7126, %v7134
        %v7136 = vrot.slane %v6372, 3
        %v7137 = vrot.slane %v6375, 4
        %v7138 = vor.u32 %v7136, %v7137
        %v7139 = vsel %vm3709, %v7130, %v7138
        %v7140 = vrot.slane %v6380, 3
        %v7141 = vrot.slane %v6383, 4
        %v7142 = vor.u32 %v7140, %v7141
        %v7143 = vsel %vm3709, %v7134, %v7142
        %v7144 = vrot.slane %v6387, 3
        %v7145 = vrot.slane %v6390, 4
        %v7146 = vor.u32 %v7144, %v7145
        %v7147 = vsel %vm3709, %v7138, %v7146
        %v7148 = vrot.slane %v6395, 3
        %v7149 = vrot.slane %v6398, 4
        %v7150 = vor.u32 %v7148, %v7149
        %v7151 = vsel %vm3709, %v7142, %v7150
        %v7152 = vrot.slane %v6402, 3
        %v7153 = vrot.slane %v6405, 4
        %v7154 = vor.u32 %v7152, %v7153
        %v7155 = vsel %vm3709, %v7146, %v7154
        %v7156 = vrot.slane %v6410, 3
        %v7157 = vrot.slane %v6413, 4
        %v7158 = vor.u32 %v7156, %v7157
        %v7159 = vsel %vm3709, %v7150, %v7158
        %v7160 = vrot.slane %v6417, 3
        %v7161 = vrot.slane %v6420, 4
        %v7162 = vor.u32 %v7160, %v7161
        %v7163 = vsel %vm3709, %v7154, %v7162
        %v7164 = vrot.slane %v6425, 3
        %v7165 = vrot.slane %v6428, 4
        %v7166 = vor.u32 %v7164, %v7165
        %v7167 = vsel %vm3709, %v7158, %v7166
        %v7168 = vrot.slane %v6432, 3
        %v7169 = vrot.slane %v6435, 4
        %v7170 = vor.u32 %v7168, %v7169
        %v7171 = vsel %vm3709, %v7162, %v7170
        %v7172 = vrot.slane %v6440, 3
        %v7173 = vrot.slane %v6443, 4
        %v7174 = vor.u32 %v7172, %v7173
        %v7175 = vsel %vm3709, %v7166, %v7174
        %v7176 = vrot.slane %v6447, 3
        %v7177 = vrot.slane %v6450, 4
        %v7178 = vor.u32 %v7176, %v7177
        %v7179 = vsel %vm3709, %v7170, %v7178
        %v7180 = vrot.slane %v6455, 3
        %v7181 = vrot.slane %v6458, 4
        %v7182 = vor.u32 %v7180, %v7181
        %v7183 = vsel %vm3709, %v7174, %v7182
        %v7184 = vrot.slane %v6462, 3
        %v7185 = vrot.slane %v6465, 4
        %v7186 = vor.u32 %v7184, %v7185
        %v7187 = vsel %vm3709, %v7178, %v7186
        %v7188 = vrot.slane %v6470, 3
        %v7189 = vrot.slane %v6473, 4
        %v7190 = vor.u32 %v7188, %v7189
        %v7191 = vsel %vm3709, %v7182, %v7190
        %v7192 = vrot.slane %v6477, 3
        %v7193 = vrot.slane %v6480, 4
        %v7194 = vor.u32 %v7192, %v7193
        %v7195 = vsel %vm3709, %v7186, %v7194
        %v7196 = vrot.slane %v6485, 3
        %v7197 = vrot.slane %v6488, 4
        %v7198 = vor.u32 %v7196, %v7197
        %v7199 = vsel %vm3709, %v7190, %v7198
        %v7200 = vrot.slane %v6492, 3
        %v7201 = vrot.slane %v6495, 4
        %v7202 = vor.u32 %v7200, %v7201
        %v7203 = vsel %vm3709, %v7194, %v7202
        %v7204 = vrot.slane %v6500, 3
        %v7205 = vrot.slane %v6503, 4
        %v7206 = vor.u32 %v7204, %v7205
        %v7207 = vsel %vm3709, %v7198, %v7206
        %v7208 = vrot.slane %v6507, 3
        %v7209 = vrot.slane %v6510, 4
        %v7210 = vor.u32 %v7208, %v7209
        %v7211 = vsel %vm3709, %v7202, %v7210
        %v7212 = vrot.slane %v6515, 3
        %v7213 = vrot.slane %v6518, 4
        %v7214 = vor.u32 %v7212, %v7213
        %v7215 = vsel %vm3709, %v7206, %v7214
        %v7216 = vrot.slane %v6522, 3
        %v7217 = vrot.slane %v6525, 4
        %v7218 = vor.u32 %v7216, %v7217
        %v7219 = vsel %vm3709, %v7210, %v7218
        %v7220 = vrot.slane %v6530, 3
        %v7221 = vrot.slane %v6533, 4
        %v7222 = vor.u32 %v7220, %v7221
        %v7223 = vsel %vm3709, %v7214, %v7222
        %v7224 = vrot.slane %v6537, 3
        %v7225 = vrot.slane %v6540, 4
        %v7226 = vor.u32 %v7224, %v7225
        %v7227 = vsel %vm3709, %v7218, %v7226
        %v7228 = vrot.slane %v6545, 3
        %v7229 = vrot.slane %v6548, 4
        %v7230 = vor.u32 %v7228, %v7229
        %v7231 = vsel %vm3709, %v7222, %v7230
        %v7232 = vrot.slane %v6552, 3
        %v7233 = vrot.slane %v6555, 4
        %v7234 = vor.u32 %v7232, %v7233
        %v7235 = vsel %vm3709, %v7226, %v7234
        %v7236 = vrot.slane %v6560, 3
        %v7237 = vrot.slane %v6563, 4
        %v7238 = vor.u32 %v7236, %v7237
        %v7239 = vsel %vm3709, %v7230, %v7238
        %v7240 = vrot.slane %v6567, 3
        %v7241 = vrot.slane %v6570, 4
        %v7242 = vor.u32 %v7240, %v7241
        %v7243 = vsel %vm3709, %v7234, %v7242
        %v7244 = vrot.slane %v6575, 3
        %v7245 = vrot.slane %v6578, 4
        %v7246 = vor.u32 %v7244, %v7245
        %v7247 = vsel %vm3709, %v7238, %v7246
        %v7248 = vrot.slane %v6582, 3
        %v7249 = vrot.slane %v6585, 4
        %v7250 = vor.u32 %v7248, %v7249
        %v7251 = vsel %vm3709, %v7242, %v7250
        %v7252 = vrot.slane %v6590, 3
        %v7253 = vrot.slane %v6593, 4
        %v7254 = vor.u32 %v7252, %v7253
        %v7255 = vsel %vm3709, %v7246, %v7254
        %v7256 = vrot.slane %v6597, 3
        %v7257 = vrot.slane %v6600, 4
        %v7258 = vor.u32 %v7256, %v7257
        %v7259 = vsel %vm3709, %v7250, %v7258
        %v7260 = vrot.slane %v6605, 3
        %v7261 = vrot.slane %v6608, 4
        %v7262 = vor.u32 %v7260, %v7261
        %v7263 = vsel %vm3709, %v7254, %v7262
        %v7264 = vrot.slane %v6612, 3
        %v7265 = vrot.slane %v6615, 4
        %v7266 = vor.u32 %v7264, %v7265
        %v7267 = vsel %vm3709, %v7258, %v7266
        %v7268 = vrot.slane %v6620, 3
        %v7269 = vrot.slane %v6623, 4
        %v7270 = vor.u32 %v7268, %v7269
        %v7271 = vsel %vm3709, %v7262, %v7270
        %v7272 = vrot.slane %v6627, 3
        %v7273 = vrot.slane %v6630, 4
        %v7274 = vor.u32 %v7272, %v7273
        %v7275 = vsel %vm3709, %v7266, %v7274
        %v7276 = vrot.slane %v6635, 3
        %v7277 = vrot.slane %v6638, 4
        %v7278 = vor.u32 %v7276, %v7277
        %v7279 = vsel %vm3709, %v7270, %v7278
        %v7280 = vshrl.u32 %v6222, 16
        %v7282 = vrot.slane %v7280, 3
        %v7283 = vshll.u32 %v6222, 16
        %v7285 = vrot.slane %v7283, 4
        %v7286 = vor.u32 %v7282, %v7285
        %v7287 = vsel %vm3709, %v7274, %v7286
        %v7289 = vshrl.u32 %v6173, 16
        %v7291 = vrot.slane %v7289, 3
        %v7292 = vshll.u32 %v6173, 16
        %v7294 = vrot.slane %v7292, 4
        %v7295 = vor.u32 %v7291, %v7294
        %v7296 = vsel %vm3709, %v7278, %v7295
        %v7297 = vshrl.u32 %v6224, 16
        %v7299 = vrot.slane %v7297, 3
        %v7300 = vshll.u32 %v6224, 16
        %v7302 = vrot.slane %v7300, 4
        %v7303 = vor.u32 %v7299, %v7302
        %v7304 = vsel %vm3709, %v7286, %v7303
        %v7306 = vshrl.u32 %v6172, 16
        %v7308 = vrot.slane %v7306, 3
        %v7309 = vshll.u32 %v6172, 16
        %v7311 = vrot.slane %v7309, 4
        %v7312 = vor.u32 %v7308, %v7311
        %v7313 = vsel %vm3709, %v7295, %v7312
        %v7362 = vunpack.c.l.b16 %v6225
        %v7363 = vunpack.c.l.b16 %v6226
        %v7364 = vunpack.c.l.b16 %v6227
        %v7365 = vunpack.c.l.b16 %v6228
        %v7366 = vunpack.c.l.b16 %v6229
        %v7367 = vunpack.c.l.b16 %v6230
        %v7368 = vunpack.c.l.b16 %v6231
        %v7369 = vunpack.c.l.b16 %v6232
        %v7370 = vunpack.c.l.b16 %v6233
        %v7371 = vunpack.c.l.b16 %v6234
        %v7372 = vunpack.c.l.b16 %v6235
        %v7373 = vunpack.c.l.b16 %v6236
        %v7374 = vunpack.c.l.b16 %v6237
        %v7375 = vunpack.c.l.b16 %v6238
        %v7376 = vunpack.c.l.b16 %v6239
        %v7377 = vunpack.c.l.b16 %v6240
        %v7378 = vunpack.c.l.b16 %v6241
        %v7379 = vunpack.c.l.b16 %v6242
        %v7380 = vunpack.c.l.b16 %v6243
        %v7381 = vunpack.c.l.b16 %v6244
        %v7382 = vunpack.c.l.b16 %v6245
        %v7383 = vunpack.c.l.b16 %v6246
        %v7384 = vunpack.c.l.b16 %v6247
        %v7385 = vunpack.c.l.b16 %v6248
        %v7386 = vpack.c.b16 %v7363, %v7362
        %v7387 = vpack.c.b16 %v7365, %v7364
        %v7388 = vpack.c.b16 %v7367, %v7366
        %v7389 = vpack.c.b16 %v7369, %v7368
        %v7390 = vpack.c.b16 %v7371, %v7370
        %v7391 = vpack.c.b16 %v7373, %v7372
        %v7392 = vpack.c.b16 %v7375, %v7374
        %v7393 = vpack.c.b16 %v7377, %v7376
        %v7394 = vpack.c.b16 %v7379, %v7378
        %v7395 = vpack.c.b16 %v7381, %v7380
        %v7396 = vpack.c.b16 %v7383, %v7382
        %v7397 = vpack.c.b16 %v7385, %v7384
        %v7411 = vsel %vm491, %v7111, 0
        %v7414 = vsel %vm491, %v7119, 0
        %v7417 = vsel %vm491, %v7127, 0
        %v7420 = vsel %vm491, %v7135, 0
        %v7423 = vsel %vm491, %v7143, 0
        %v7426 = vsel %vm491, %v7151, 0
        %v7429 = vsel %vm491, %v7159, 0
        %v7432 = vsel %vm491, %v7167, 0
        %v7435 = vsel %vm491, %v7175, 0
        %v7438 = vsel %vm491, %v7183, 0
        %v7441 = vsel %vm491, %v7191, 0
        %v7444 = vsel %vm491, %v7199, 0
        %v7447 = vsel %vm491, %v7207, 0
        %v7450 = vsel %vm491, %v7215, 0
        %v7453 = vsel %vm491, %v7223, 0
        %v7456 = vsel %vm491, %v7231, 0
        %v7459 = vsel %vm491, %v7239, 0
        %v7462 = vsel %vm491, %v7247, 0
        %v7465 = vsel %vm491, %v7255, 0
        %v7468 = vsel %vm491, %v7263, 0
        %v7471 = vsel %vm491, %v7271, 0
        %v7474 = vsel %vm491, %v7279, 0
        %v7477 = vsel %vm491, %v7296, 0
        %v7480 = vsel %vm491, %v7313, 0
        %7482 = vmatprep.subr.bf16.mxu0 0
        %7483 = vmatpush1.bf16.msra.mxu0 %v7386
        %7484 = vmatprep.subr.bf16.mxu0 0
        %7485 = vmatpush1.bf16.msra.mxu0 %v7387
        %7486 = vmatprep.subr.bf16.mxu0 0
        %7487 = vmatpush1.bf16.msra.mxu0 %v7388
        %7488 = vmatprep.subr.bf16.mxu0 0
        %7489 = vmatpush1.bf16.msra.mxu0 %v7389
        %7490 = vmatprep.subr.bf16.mxu0 0
        %7491 = vmatpush1.bf16.msra.mxu0 %v7390
        %7492 = vmatprep.subr.bf16.mxu0 0
        %7493 = vmatpush1.bf16.msra.mxu0 %v7391
        %7494 = vmatprep.subr.bf16.mxu0 0
        %7495 = vmatpush1.bf16.msra.mxu0 %v7392
        %7496 = vmatprep.subr.bf16.mxu0 0
        %7497 = vmatpush1.bf16.msra.mxu0 %v7393
        %7498 = vmatprep.subr.bf16.mxu0 0
        %7499 = vmatpush1.bf16.msra.mxu0 %v7394
        %7500 = vmatprep.subr.bf16.mxu0 0
        %7501 = vmatpush1.bf16.msra.mxu0 %v7395
        %7502 = vmatprep.subr.bf16.mxu0 0
        %7503 = vmatpush1.bf16.msra.mxu0 %v7396
        %7504 = vmatprep.subr.bf16.mxu0 0
        %7505 = vmatpush1.bf16.msra.mxu0 %v7397
        %7506 = vmatprep.subr.bf16.mxu0 0
        %7507 = vmatpush1.bf16.msra.mxu0 0
        %7508 = vmatprep.subr.bf16.mxu0 0
        %7509 = vmatpush1.bf16.msra.mxu0 0
        %7510 = vmatprep.subr.bf16.mxu0 0
        %7511 = vmatpush1.bf16.msra.mxu0 0
        %7512 = vmatprep.subr.bf16.mxu0 0
        %7513 = vmatpush1.bf16.msra.mxu0 0
        %7514 = vmatprep.mubr.bf16.mxu0 %v7411
        %7515 = vmatmul.mubr.bf16.gmra.mrb[0].mxu0 %v7094
        %v7516 = vpop.f32.mrb[0].mxu0
        %v7517 = vadd.f32 %v6890, %v7516
        %v7518 = vpop.f32.mrb[0].mxu0
        %v7519 = vpop.f32.mrb[0].mxu0
        %v7520 = vadd.f32 %v6893, %v7519
        %v7521 = vpop.f32.mrb[0].mxu0
        %7522 = vmatprep.mubr.bf16.mxu0 %v7414
        %7523 = vmatmul.mubr.bf16.gmra.mrb[0].mxu0 %v7115
        %v7524 = vpop.f32.mrb[0].mxu0
        %v7525 = vadd.f32 %v6898, %v7524
        %v7526 = vpop.f32.mrb[0].mxu0
        %v7527 = vpop.f32.mrb[0].mxu0
        %v7528 = vadd.f32 %v6901, %v7527
        %v7529 = vpop.f32.mrb[0].mxu0
        %7530 = vmatprep.mubr.bf16.mxu0 %v7417
        %7531 = vmatmul.mubr.bf16.gmra.mrb[0].mxu0 %v7123
        %v7532 = vpop.f32.mrb[0].mxu0
        %v7533 = vadd.f32 %v6906, %v7532
        %v7534 = vpop.f32.mrb[0].mxu0
        %v7535 = vpop.f32.mrb[0].mxu0
        %v7536 = vadd.f32 %v6909, %v7535
        %v7537 = vpop.f32.mrb[0].mxu0
        %7538 = vmatprep.mubr.bf16.mxu0 %v7420
        %7539 = vmatmul.mubr.bf16.gmra.mrb[0].mxu0 %v7131
        %v7540 = vpop.f32.mrb[0].mxu0
        %v7541 = vadd.f32 %v6914, %v7540
        %v7542 = vpop.f32.mrb[0].mxu0
        %v7543 = vpop.f32.mrb[0].mxu0
        %v7544 = vadd.f32 %v6917, %v7543
        %v7545 = vpop.f32.mrb[0].mxu0
        %7546 = vmatprep.mubr.bf16.mxu0 %v7423
        %7547 = vmatmul.mubr.bf16.gmra.mrb[0].mxu0 %v7139
        %v7548 = vpop.f32.mrb[0].mxu0
        %v7549 = vadd.f32 %v6922, %v7548
        %v7550 = vpop.f32.mrb[0].mxu0
        %v7551 = vpop.f32.mrb[0].mxu0
        %v7552 = vadd.f32 %v6925, %v7551
        %v7553 = vpop.f32.mrb[0].mxu0
        %7554 = vmatprep.mubr.bf16.mxu0 %v7426
        %7555 = vmatmul.mubr.bf16.gmra.mrb[0].mxu0 %v7147
        %v7556 = vpop.f32.mrb[0].mxu0
        %v7557 = vadd.f32 %v6930, %v7556
        %v7558 = vpop.f32.mrb[0].mxu0
        %v7559 = vpop.f32.mrb[0].mxu0
        %v7560 = vadd.f32 %v6933, %v7559
        %v7561 = vpop.f32.mrb[0].mxu0
        %7562 = vmatprep.mubr.bf16.mxu0 %v7429
        %7563 = vmatmul.mubr.bf16.gmra.mrb[0].mxu0 %v7155
        %v7564 = vpop.f32.mrb[0].mxu0
        %v7565 = vadd.f32 %v6938, %v7564
        %v7566 = vpop.f32.mrb[0].mxu0
        %v7567 = vpop.f32.mrb[0].mxu0
        %v7568 = vadd.f32 %v6941, %v7567
        %v7569 = vpop.f32.mrb[0].mxu0
        %7570 = vmatprep.mubr.bf16.mxu0 %v7432
        %7571 = vmatmul.mubr.bf16.gmra.mrb[0].mxu0 %v7163
        %v7572 = vpop.f32.mrb[0].mxu0
        %v7573 = vadd.f32 %v6946, %v7572
        %v7574 = vpop.f32.mrb[0].mxu0
        %v7575 = vpop.f32.mrb[0].mxu0
        %v7576 = vadd.f32 %v6949, %v7575
        %v7577 = vpop.f32.mrb[0].mxu0
        %7578 = vmatprep.mubr.bf16.mxu0 %v7435
        %7579 = vmatmul.mubr.bf16.gmra.mrb[0].mxu0 %v7171
        %v7580 = vpop.f32.mrb[0].mxu0
        %v7581 = vadd.f32 %v6954, %v7580
        %v7582 = vpop.f32.mrb[0].mxu0
        %v7583 = vpop.f32.mrb[0].mxu0
        %v7584 = vadd.f32 %v6957, %v7583
        %v7585 = vpop.f32.mrb[0].mxu0
        %7586 = vmatprep.mubr.bf16.mxu0 %v7438
        %7587 = vmatmul.mubr.bf16.gmra.mrb[0].mxu0 %v7179
        %v7588 = vpop.f32.mrb[0].mxu0
        %v7589 = vadd.f32 %v6962, %v7588
        %v7590 = vpop.f32.mrb[0].mxu0
        %v7591 = vpop.f32.mrb[0].mxu0
        %v7592 = vadd.f32 %v6965, %v7591
        %v7593 = vpop.f32.mrb[0].mxu0
        %7594 = vmatprep.mubr.bf16.mxu0 %v7441
        %7595 = vmatmul.mubr.bf16.gmra.mrb[0].mxu0 %v7187
        %v7596 = vpop.f32.mrb[0].mxu0
        %v7597 = vadd.f32 %v6970, %v7596
        %v7598 = vpop.f32.mrb[0].mxu0
        %v7599 = vpop.f32.mrb[0].mxu0
        %v7600 = vadd.f32 %v6973, %v7599
        %v7601 = vpop.f32.mrb[0].mxu0
        %7602 = vmatprep.mubr.bf16.mxu0 %v7444
        %7603 = vmatmul.mubr.bf16.gmra.mrb[0].mxu0 %v7195
        %v7604 = vpop.f32.mrb[0].mxu0
        %v7605 = vadd.f32 %v6978, %v7604
        %v7606 = vpop.f32.mrb[0].mxu0
        %v7607 = vpop.f32.mrb[0].mxu0
        %v7608 = vadd.f32 %v6981, %v7607
        %v7609 = vpop.f32.mrb[0].mxu0
        %7610 = vmatprep.mubr.bf16.mxu0 %v7447
        %7611 = vmatmul.mubr.bf16.gmra.mrb[0].mxu0 %v7203
        %v7612 = vpop.f32.mrb[0].mxu0
        %v7613 = vadd.f32 %v6986, %v7612
        %v7614 = vpop.f32.mrb[0].mxu0
        %v7615 = vpop.f32.mrb[0].mxu0
        %v7616 = vadd.f32 %v6989, %v7615
        %v7617 = vpop.f32.mrb[0].mxu0
        %7618 = vmatprep.mubr.bf16.mxu0 %v7450
        %7619 = vmatmul.mubr.bf16.gmra.mrb[0].mxu0 %v7211
        %v7620 = vpop.f32.mrb[0].mxu0
        %v7621 = vadd.f32 %v6994, %v7620
        %v7622 = vpop.f32.mrb[0].mxu0
        %v7623 = vpop.f32.mrb[0].mxu0
        %v7624 = vadd.f32 %v6997, %v7623
        %v7625 = vpop.f32.mrb[0].mxu0
        %7626 = vmatprep.mubr.bf16.mxu0 %v7453
        %7627 = vmatmul.mubr.bf16.gmra.mrb[0].mxu0 %v7219
        %v7628 = vpop.f32.mrb[0].mxu0
        %v7629 = vadd.f32 %v7002, %v7628
        %v7630 = vpop.f32.mrb[0].mxu0
        %v7631 = vpop.f32.mrb[0].mxu0
        %v7632 = vadd.f32 %v7005, %v7631
        %v7633 = vpop.f32.mrb[0].mxu0
        %7634 = vmatprep.mubr.bf16.mxu0 %v7456
        %7635 = vmatmul.mubr.bf16.gmra.mrb[0].mxu0 %v7227
        %v7636 = vpop.f32.mrb[0].mxu0
        %v7637 = vadd.f32 %v7010, %v7636
        %v7638 = vpop.f32.mrb[0].mxu0
        %v7639 = vpop.f32.mrb[0].mxu0
        %v7640 = vadd.f32 %v7013, %v7639
        %v7641 = vpop.f32.mrb[0].mxu0
        %7642 = vmatprep.mubr.bf16.mxu0 %v7459
        %7643 = vmatmul.mubr.bf16.gmra.mrb[0].mxu0 %v7235
        %v7644 = vpop.f32.mrb[0].mxu0
        %v7645 = vadd.f32 %v7018, %v7644
        %v7646 = vpop.f32.mrb[0].mxu0
        %v7647 = vpop.f32.mrb[0].mxu0
        %v7648 = vadd.f32 %v7021, %v7647
        %v7649 = vpop.f32.mrb[0].mxu0
        %7650 = vmatprep.mubr.bf16.mxu0 %v7462
        %7651 = vmatmul.mubr.bf16.gmra.mrb[0].mxu0 %v7243
        %v7652 = vpop.f32.mrb[0].mxu0
        %v7653 = vadd.f32 %v7026, %v7652
        %v7654 = vpop.f32.mrb[0].mxu0
        %v7655 = vpop.f32.mrb[0].mxu0
        %v7656 = vadd.f32 %v7029, %v7655
        %v7657 = vpop.f32.mrb[0].mxu0
        %7658 = vmatprep.mubr.bf16.mxu0 %v7465
        %7659 = vmatmul.mubr.bf16.gmra.mrb[0].mxu0 %v7251
        %v7660 = vpop.f32.mrb[0].mxu0
        %v7661 = vadd.f32 %v7034, %v7660
        %v7662 = vpop.f32.mrb[0].mxu0
        %v7663 = vpop.f32.mrb[0].mxu0
        %v7664 = vadd.f32 %v7037, %v7663
        %v7665 = vpop.f32.mrb[0].mxu0
        %7666 = vmatprep.mubr.bf16.mxu0 %v7468
        %7667 = vmatmul.mubr.bf16.gmra.mrb[0].mxu0 %v7259
        %v7668 = vpop.f32.mrb[0].mxu0
        %v7669 = vadd.f32 %v7042, %v7668
        %v7670 = vpop.f32.mrb[0].mxu0
        %v7671 = vpop.f32.mrb[0].mxu0
        %v7672 = vadd.f32 %v7045, %v7671
        %v7673 = vpop.f32.mrb[0].mxu0
        %7674 = vmatprep.mubr.bf16.mxu0 %v7471
        %7675 = vmatmul.mubr.bf16.gmra.mrb[0].mxu0 %v7267
        %v7676 = vpop.f32.mrb[0].mxu0
        %v7677 = vadd.f32 %v7050, %v7676
        %v7678 = vpop.f32.mrb[0].mxu0
        %v7679 = vpop.f32.mrb[0].mxu0
        %v7680 = vadd.f32 %v7053, %v7679
        %v7681 = vpop.f32.mrb[0].mxu0
        %7682 = vmatprep.mubr.bf16.mxu0 %v7474
        %7683 = vmatmul.mubr.bf16.gmra.mrb[0].mxu0 %v7275
        %v7684 = vpop.f32.mrb[0].mxu0
        %v7685 = vadd.f32 %v7058, %v7684
        %v7686 = vpop.f32.mrb[0].mxu0
        %v7687 = vpop.f32.mrb[0].mxu0
        %v7688 = vadd.f32 %v7061, %v7687
        %v7689 = vpop.f32.mrb[0].mxu0
        %7690 = vmatprep.mubr.bf16.mxu0 %v7477
        %7691 = vmatmul.mubr.bf16.gmra.mrb[0].mxu0 %v7287
        %v7692 = vpop.f32.mrb[0].mxu0
        %v7693 = vadd.f32 %v7066, %v7692
        %v7694 = vpop.f32.mrb[0].mxu0
        %v7695 = vpop.f32.mrb[0].mxu0
        %v7696 = vadd.f32 %v7069, %v7695
        %v7697 = vpop.f32.mrb[0].mxu0
        %7698 = vmatprep.mubr.bf16.mxu0 %v7480
        %7699 = vmatmul.mubr.bf16.gmra.mrb[0].mxu0 %v7304
        %v7700 = vpop.f32.mrb[0].mxu0
        %v7701 = vadd.f32 %v7074, %v7700
        %v7702 = vpop.f32.mrb[0].mxu0
        %v7703 = vpop.f32.mrb[0].mxu0
        %v7704 = vadd.f32 %v7077, %v7703
        %v7705 = vpop.f32.mrb[0].mxu0
        %7706 = vdwg.mxu0
        %v7707 = vld [vmem:[#allocation3 + $0x18] sm:$0xf8]
        %v7708 = vld [vmem:[#allocation3 + $0x20] sm:$0xff]
        %v7709 = vld [vmem:[#allocation3 + $0x28] sm:$0xff]
        %v7710 = vld [vmem:[#allocation3 + $0x30] sm:$0xff]
        %v7711 = vld [vmem:[#allocation3 + $0x38] sm:$0xff]
        %v7712 = vld [vmem:[#allocation3 + $0x40] sm:$0xff]
        %v7713 = vld [vmem:[#allocation3 + $0x48] sm:$0xff]
        %v7714 = vld [vmem:[#allocation3 + $0x50] sm:$0xff]
        %v7715 = vld [vmem:[#allocation3 + $0x58] sm:$0xff]
        %v7716 = vld [vmem:[#allocation3 + $0x60] sm:$0xff]
        %v7717 = vld [vmem:[#allocation3 + $0x68] sm:$0xff]
        %v7718 = vld [vmem:[#allocation3 + $0x70] sm:$0xff]
        %v7719 = vld [vmem:[#allocation3 + $0x78] sm:$0xff]
        %v7720 = vld [vmem:[#allocation3 + $0x80] sm:$0xff]
        %v7721 = vld [vmem:[#allocation3 + $0x88] sm:$0xff]
        %v7722 = vld [vmem:[#allocation3 + $0x90] sm:$0xff]
        %v7723 = vld [vmem:[#allocation3 + $0x98] sm:$0xff]
        %v7724 = vld [vmem:[#allocation3 + $0xa0] sm:$0xff]
        %v7725 = vld [vmem:[#allocation3 + $0xa8] sm:$0xff]
        %v7726 = vld [vmem:[#allocation3 + $0xb0] sm:$0xff]
        %v7727 = vld [vmem:[#allocation3 + $0xb8] sm:$0xff]
        %v7728 = vld [vmem:[#allocation3 + $0xc0] sm:$0xff]
        %v7729 = vld [vmem:[#allocation3 + $0xc8] sm:$0xff]
        %v7730 = vld [vmem:[#allocation3 + $0xd0] sm:$0xff]
        %v7731 = vld [vmem:[#allocation3 + $0xd8] sm:$0xf]
        %v7732 = vld [vmem:[#allocation3 + $0x18] sm:$0xf0]
        %v7733 = vld [vmem:[#allocation3 + $0xd8] sm:$0x1f]
        %v7735 = vshrl.u32 %v7732, 16
        %v7737 = vshll.u32 %v7732, 16
        %v7739 = vrot.slane %v7737, 1
        %v7740 = vor.u32 %v7735, %v7739
        %v7742 = vshll.u32 %v7708, 16
        %v7744 = vrot.slane %v7742, 1
        %v7745 = vsel %vm2477, %v7740, %v7744
        %v7746 = vshrl.u32 %v7708, 16
        %v7748 = vor.u32 %v7746, %v7744
        %v7750 = vshll.u32 %v7709, 16
        %v7752 = vrot.slane %v7750, 1
        %v7753 = vsel %vm2477, %v7748, %v7752
        %v7754 = vshrl.u32 %v7709, 16
        %v7756 = vor.u32 %v7754, %v7752
        %v7758 = vshll.u32 %v7710, 16
        %v7760 = vrot.slane %v7758, 1
        %v7761 = vsel %vm2477, %v7756, %v7760
        %v7762 = vshrl.u32 %v7710, 16
        %v7764 = vor.u32 %v7762, %v7760
        %v7766 = vshll.u32 %v7711, 16
        %v7768 = vrot.slane %v7766, 1
        %v7769 = vsel %vm2477, %v7764, %v7768
        %v7770 = vshrl.u32 %v7711, 16
        %v7772 = vor.u32 %v7770, %v7768
        %v7774 = vshll.u32 %v7712, 16
        %v7776 = vrot.slane %v7774, 1
        %v7777 = vsel %vm2477, %v7772, %v7776
        %v7778 = vshrl.u32 %v7712, 16
        %v7780 = vor.u32 %v7778, %v7776
        %v7782 = vshll.u32 %v7713, 16
        %v7784 = vrot.slane %v7782, 1
        %v7785 = vsel %vm2477, %v7780, %v7784
        %v7786 = vshrl.u32 %v7713, 16
        %v7788 = vor.u32 %v7786, %v7784
        %v7790 = vshll.u32 %v7714, 16
        %v7792 = vrot.slane %v7790, 1
        %v7793 = vsel %vm2477, %v7788, %v7792
        %v7794 = vshrl.u32 %v7714, 16
        %v7796 = vor.u32 %v7794, %v7792
        %v7798 = vshll.u32 %v7715, 16
        %v7800 = vrot.slane %v7798, 1
        %v7801 = vsel %vm2477, %v7796, %v7800
        %v7802 = vshrl.u32 %v7715, 16
        %v7804 = vor.u32 %v7802, %v7800
        %v7806 = vshll.u32 %v7716, 16
        %v7808 = vrot.slane %v7806, 1
        %v7809 = vsel %vm2477, %v7804, %v7808
        %v7810 = vshrl.u32 %v7716, 16
        %v7812 = vor.u32 %v7810, %v7808
        %v7814 = vshll.u32 %v7717, 16
        %v7816 = vrot.slane %v7814, 1
        %v7817 = vsel %vm2477, %v7812, %v7816
        %v7818 = vshrl.u32 %v7717, 16
        %v7820 = vor.u32 %v7818, %v7816
        %v7822 = vshll.u32 %v7718, 16
        %v7824 = vrot.slane %v7822, 1
        %v7825 = vsel %vm2477, %v7820, %v7824
        %v7826 = vshrl.u32 %v7718, 16
        %v7828 = vor.u32 %v7826, %v7824
        %v7830 = vshll.u32 %v7719, 16
        %v7832 = vrot.slane %v7830, 1
        %v7833 = vsel %vm2477, %v7828, %v7832
        %v7834 = vshrl.u32 %v7719, 16
        %v7836 = vor.u32 %v7834, %v7832
        %v7838 = vshll.u32 %v7720, 16
        %v7840 = vrot.slane %v7838, 1
        %v7841 = vsel %vm2477, %v7836, %v7840
        %v7842 = vshrl.u32 %v7720, 16
        %v7844 = vor.u32 %v7842, %v7840
        %v7846 = vshll.u32 %v7721, 16
        %v7848 = vrot.slane %v7846, 1
        %v7849 = vsel %vm2477, %v7844, %v7848
        %v7850 = vshrl.u32 %v7721, 16
        %v7852 = vor.u32 %v7850, %v7848
        %v7854 = vshll.u32 %v7722, 16
        %v7856 = vrot.slane %v7854, 1
        %v7857 = vsel %vm2477, %v7852, %v7856
        %v7858 = vshrl.u32 %v7722, 16
        %v7860 = vor.u32 %v7858, %v7856
        %v7862 = vshll.u32 %v7723, 16
        %v7864 = vrot.slane %v7862, 1
        %v7865 = vsel %vm2477, %v7860, %v7864
        %v7866 = vshrl.u32 %v7723, 16
        %v7868 = vor.u32 %v7866, %v7864
        %v7870 = vshll.u32 %v7724, 16
        %v7872 = vrot.slane %v7870, 1
        %v7873 = vsel %vm2477, %v7868, %v7872
        %v7874 = vshrl.u32 %v7724, 16
        %v7876 = vor.u32 %v7874, %v7872
        %v7878 = vshll.u32 %v7725, 16
        %v7880 = vrot.slane %v7878, 1
        %v7881 = vsel %vm2477, %v7876, %v7880
        %v7882 = vshrl.u32 %v7725, 16
        %v7884 = vor.u32 %v7882, %v7880
        %v7886 = vshll.u32 %v7726, 16
        %v7888 = vrot.slane %v7886, 1
        %v7889 = vsel %vm2477, %v7884, %v7888
        %v7890 = vshrl.u32 %v7726, 16
        %v7892 = vor.u32 %v7890, %v7888
        %v7894 = vshll.u32 %v7727, 16
        %v7896 = vrot.slane %v7894, 1
        %v7897 = vsel %vm2477, %v7892, %v7896
        %v7898 = vshrl.u32 %v7727, 16
        %v7900 = vor.u32 %v7898, %v7896
        %v7902 = vshll.u32 %v7728, 16
        %v7904 = vrot.slane %v7902, 1
        %v7905 = vsel %vm2477, %v7900, %v7904
        %v7906 = vshrl.u32 %v7728, 16
        %v7908 = vor.u32 %v7906, %v7904
        %v7910 = vshll.u32 %v7729, 16
        %v7912 = vrot.slane %v7910, 1
        %v7913 = vsel %vm2477, %v7908, %v7912
        %v7914 = vshrl.u32 %v7729, 16
        %v7916 = vor.u32 %v7914, %v7912
        %v7918 = vshll.u32 %v7730, 16
        %v7920 = vrot.slane %v7918, 1
        %v7921 = vsel %vm2477, %v7916, %v7920
        %v7922 = vshrl.u32 %v7730, 16
        %v7924 = vor.u32 %v7922, %v7920
        %v7926 = vshll.u32 %v7731, 16
        %v7928 = vrot.slane %v7926, 1
        %v7929 = vsel %vm2477, %v7924, %v7928
        %v7930 = vshrl.u32 %v7731, 16
        %v7932 = vor.u32 %v7930, %v7928
        %7933 = vrot.lane.b32.xlu0 %v7745, 64
        %v7934 = vpop.permute.xlu0 %7933
        %7935 = vrot.lane.b32.xlu0 %v7753, 64
        %v7936 = vpop.permute.xlu0 %7935
        %7937 = vrot.lane.b32.xlu0 %v7761, 64
        %v7938 = vpop.permute.xlu0 %7937
        %7939 = vrot.lane.b32.xlu0 %v7769, 64
        %v7940 = vpop.permute.xlu0 %7939
        %7941 = vrot.lane.b32.xlu0 %v7777, 64
        %v7942 = vpop.permute.xlu0 %7941
        %7943 = vrot.lane.b32.xlu0 %v7785, 64
        %v7944 = vpop.permute.xlu0 %7943
        %7945 = vrot.lane.b32.xlu0 %v7793, 64
        %v7946 = vpop.permute.xlu0 %7945
        %7947 = vrot.lane.b32.xlu0 %v7801, 64
        %v7948 = vpop.permute.xlu0 %7947
        %7949 = vrot.lane.b32.xlu0 %v7809, 64
        %v7950 = vpop.permute.xlu0 %7949
        %7951 = vrot.lane.b32.xlu0 %v7817, 64
        %v7952 = vpop.permute.xlu0 %7951
        %7953 = vrot.lane.b32.xlu0 %v7825, 64
        %v7954 = vpop.permute.xlu0 %7953
        %7955 = vrot.lane.b32.xlu0 %v7833, 64
        %v7956 = vpop.permute.xlu0 %7955
        %7957 = vrot.lane.b32.xlu0 %v7841, 64
        %v7958 = vpop.permute.xlu0 %7957
        %7959 = vrot.lane.b32.xlu0 %v7849, 64
        %v7960 = vpop.permute.xlu0 %7959
        %7961 = vrot.lane.b32.xlu0 %v7857, 64
        %v7962 = vpop.permute.xlu0 %7961
        %7963 = vrot.lane.b32.xlu0 %v7865, 64
        %v7964 = vpop.permute.xlu0 %7963
        %7965 = vrot.lane.b32.xlu0 %v7873, 64
        %v7966 = vpop.permute.xlu0 %7965
        %7967 = vrot.lane.b32.xlu0 %v7881, 64
        %v7968 = vpop.permute.xlu0 %7967
        %7969 = vrot.lane.b32.xlu0 %v7889, 64
        %v7970 = vpop.permute.xlu0 %7969
        %7971 = vrot.lane.b32.xlu0 %v7897, 64
        %v7972 = vpop.permute.xlu0 %7971
        %7973 = vrot.lane.b32.xlu0 %v7905, 64
        %v7974 = vpop.permute.xlu0 %7973
        %7975 = vrot.lane.b32.xlu0 %v7913, 64
        %v7976 = vpop.permute.xlu0 %7975
        %7977 = vrot.lane.b32.xlu0 %v7921, 64
        %v7978 = vpop.permute.xlu0 %7977
        %7979 = vrot.lane.b32.xlu0 %v7929, 64
        %v7980 = vpop.permute.xlu0 %7979
        %7981 = vrot.lane.b32.xlu0 %v7932, 64
        %v7982 = vpop.permute.xlu0 %7981
        %v8008 = vrot.slane %v7732, 1
        %v8009 = vrot.slane %v7708, 1
        %v8010 = vsel %vm2752, %v8008, %v8009
        %v8011 = vrot.slane %v7709, 1
        %v8012 = vsel %vm2752, %v8009, %v8011
        %v8013 = vrot.slane %v7710, 1
        %v8014 = vsel %vm2752, %v8011, %v8013
        %v8015 = vrot.slane %v7711, 1
        %v8016 = vsel %vm2752, %v8013, %v8015
        %v8017 = vrot.slane %v7712, 1
        %v8018 = vsel %vm2752, %v8015, %v8017
        %v8019 = vrot.slane %v7713, 1
        %v8020 = vsel %vm2752, %v8017, %v8019
        %v8021 = vrot.slane %v7714, 1
        %v8022 = vsel %vm2752, %v8019, %v8021
        %v8023 = vrot.slane %v7715, 1
        %v8024 = vsel %vm2752, %v8021, %v8023
        %v8025 = vrot.slane %v7716, 1
        %v8026 = vsel %vm2752, %v8023, %v8025
        %v8027 = vrot.slane %v7717, 1
        %v8028 = vsel %vm2752, %v8025, %v8027
        %v8029 = vrot.slane %v7718, 1
        %v8030 = vsel %vm2752, %v8027, %v8029
        %v8031 = vrot.slane %v7719, 1
        %v8032 = vsel %vm2752, %v8029, %v8031
        %v8033 = vrot.slane %v7720, 1
        %v8034 = vsel %vm2752, %v8031, %v8033
        %v8035 = vrot.slane %v7721, 1
        %v8036 = vsel %vm2752, %v8033, %v8035
        %v8037 = vrot.slane %v7722, 1
        %v8038 = vsel %vm2752, %v8035, %v8037
        %v8039 = vrot.slane %v7723, 1
        %v8040 = vsel %vm2752, %v8037, %v8039
        %v8041 = vrot.slane %v7724, 1
        %v8042 = vsel %vm2752, %v8039, %v8041
        %v8043 = vrot.slane %v7725, 1
        %v8044 = vsel %vm2752, %v8041, %v8043
        %v8045 = vrot.slane %v7726, 1
        %v8046 = vsel %vm2752, %v8043, %v8045
        %v8047 = vrot.slane %v7727, 1
        %v8048 = vsel %vm2752, %v8045, %v8047
        %v8049 = vrot.slane %v7728, 1
        %v8050 = vsel %vm2752, %v8047, %v8049
        %v8051 = vrot.slane %v7729, 1
        %v8052 = vsel %vm2752, %v8049, %v8051
        %v8053 = vrot.slane %v7730, 1
        %v8054 = vsel %vm2752, %v8051, %v8053
        %v8055 = vrot.slane %v7733, 1
        %v8056 = vsel %vm2752, %v8053, %v8055
        %v8059 = vsel %vm491, %v7707, %v7934
        %v8061 = vsel %vm491, %v7708, %v7936
        %v8063 = vsel %vm491, %v7709, %v7938
        %v8065 = vsel %vm491, %v7710, %v7940
        %v8067 = vsel %vm491, %v7711, %v7942
        %v8069 = vsel %vm491, %v7712, %v7944
        %v8071 = vsel %vm491, %v7713, %v7946
        %v8073 = vsel %vm491, %v7714, %v7948
        %v8075 = vsel %vm491, %v7715, %v7950
        %v8077 = vsel %vm491, %v7716, %v7952
        %v8079 = vsel %vm491, %v7717, %v7954
        %v8081 = vsel %vm491, %v7718, %v7956
        %v8083 = vsel %vm491, %v7719, %v7958
        %v8085 = vsel %vm491, %v7720, %v7960
        %v8087 = vsel %vm491, %v7721, %v7962
        %v8089 = vsel %vm491, %v7722, %v7964
        %v8091 = vsel %vm491, %v7723, %v7966
        %v8093 = vsel %vm491, %v7724, %v7968
        %v8095 = vsel %vm491, %v7725, %v7970
        %v8097 = vsel %vm491, %v7726, %v7972
        %v8099 = vsel %vm491, %v7727, %v7974
        %v8101 = vsel %vm491, %v7728, %v7976
        %v8103 = vsel %vm491, %v7729, %v7978
        %v8105 = vsel %vm491, %v7730, %v7980
        %v8107 = vsel %vm491, %v7731, %v7982
        %s8108 = scalar_lea.vmem [#allocation15], 192
        %v8109 = vld [vmem:[%s8108] sm:$0xf]
        %v8110 = vld [vmem:[%s8108 + $0x4] sm:$0xf]
        %v8111 = vld [vmem:[%s8108 + $0x8] sm:$0xf]
        %v8112 = vld [vmem:[%s8108 + $0xc] sm:$0xf]
        %v8113 = vld [vmem:[%s8108 + $0x10] sm:$0xf]
        %v8114 = vld [vmem:[%s8108 + $0x14] sm:$0xf]
        %v8115 = vld [vmem:[%s8108 + $0x18] sm:$0xf]
        %v8116 = vld [vmem:[%s8108 + $0x1c] sm:$0xf]
        %v8117 = vld [vmem:[%s8108 + $0x20] sm:$0xf]
        %v8118 = vld [vmem:[%s8108 + $0x24] sm:$0xf]
        %v8119 = vld [vmem:[%s8108 + $0x28] sm:$0xf]
        %v8120 = vld [vmem:[%s8108 + $0x2c] sm:$0xf]
        %v8121 = vld [vmem:[%s8108 + $0x30] sm:$0xf]
        %v8122 = vld [vmem:[%s8108 + $0x34] sm:$0xf]
        %v8123 = vld [vmem:[%s8108 + $0x38] sm:$0xf]
        %v8124 = vld [vmem:[%s8108 + $0x3c] sm:$0xf]
        %v8125 = vld [vmem:[%s8108 + $0x40] sm:$0xf]
        %v8126 = vld [vmem:[%s8108 + $0x44] sm:$0xf]
        %v8127 = vld [vmem:[%s8108 + $0x48] sm:$0xf]
        %v8128 = vld [vmem:[%s8108 + $0x4c] sm:$0xf]
        %v8129 = vld [vmem:[%s8108 + $0x50] sm:$0xf]
        %v8130 = vld [vmem:[%s8108 + $0x54] sm:$0xf]
        %v8131 = vld [vmem:[%s8108 + $0x58] sm:$0xf]
        %v8132 = vld [vmem:[%s8108 + $0x5c] sm:$0xf]
        %v8133 = vshrl.u32 %v8059, 16
        %v8135 = vrot.slane %v8133, 3
        %v8136 = vshll.u32 %v8059, 16
        %v8138 = vrot.slane %v8136, 4
        %v8139 = vor.u32 %v8135, %v8138
        %v8140 = vshrl.u32 %v8061, 16
        %v8142 = vrot.slane %v8140, 3
        %v8143 = vshll.u32 %v8061, 16
        %v8145 = vrot.slane %v8143, 4
        %v8146 = vor.u32 %v8142, %v8145
        %v8147 = vsel %vm3709, %v8139, %v8146
        %v8149 = vshrl.u32 %v8010, 16
        %v8151 = vrot.slane %v8149, 3
        %v8152 = vshll.u32 %v8010, 16
        %v8154 = vrot.slane %v8152, 4
        %v8155 = vor.u32 %v8151, %v8154
        %v8157 = vshrl.u32 %v8012, 16
        %v8159 = vrot.slane %v8157, 3
        %v8160 = vshll.u32 %v8012, 16
        %v8162 = vrot.slane %v8160, 4
        %v8163 = vor.u32 %v8159, %v8162
        %v8164 = vsel %vm3709, %v8155, %v8163
        %v8165 = vshrl.u32 %v8063, 16
        %v8167 = vrot.slane %v8165, 3
        %v8168 = vshll.u32 %v8063, 16
        %v8170 = vrot.slane %v8168, 4
        %v8171 = vor.u32 %v8167, %v8170
        %v8172 = vsel %vm3709, %v8146, %v8171
        %v8174 = vshrl.u32 %v8014, 16
        %v8176 = vrot.slane %v8174, 3
        %v8177 = vshll.u32 %v8014, 16
        %v8179 = vrot.slane %v8177, 4
        %v8180 = vor.u32 %v8176, %v8179
        %v8181 = vsel %vm3709, %v8163, %v8180
        %v8182 = vshrl.u32 %v8065, 16
        %v8184 = vrot.slane %v8182, 3
        %v8185 = vshll.u32 %v8065, 16
        %v8187 = vrot.slane %v8185, 4
        %v8188 = vor.u32 %v8184, %v8187
        %v8189 = vsel %vm3709, %v8171, %v8188
        %v8191 = vshrl.u32 %v8016, 16
        %v8193 = vrot.slane %v8191, 3
        %v8194 = vshll.u32 %v8016, 16
        %v8196 = vrot.slane %v8194, 4
        %v8197 = vor.u32 %v8193, %v8196
        %v8198 = vsel %vm3709, %v8180, %v8197
        %v8199 = vshrl.u32 %v8067, 16
        %v8201 = vrot.slane %v8199, 3
        %v8202 = vshll.u32 %v8067, 16
        %v8204 = vrot.slane %v8202, 4
        %v8205 = vor.u32 %v8201, %v8204
        %v8206 = vsel %vm3709, %v8188, %v8205
        %v8208 = vshrl.u32 %v8018, 16
        %v8210 = vrot.slane %v8208, 3
        %v8211 = vshll.u32 %v8018, 16
        %v8213 = vrot.slane %v8211, 4
        %v8214 = vor.u32 %v8210, %v8213
        %v8215 = vsel %vm3709, %v8197, %v8214
        %v8216 = vshrl.u32 %v8069, 16
        %v8218 = vrot.slane %v8216, 3
        %v8219 = vshll.u32 %v8069, 16
        %v8221 = vrot.slane %v8219, 4
        %v8222 = vor.u32 %v8218, %v8221
        %v8223 = vsel %vm3709, %v8205, %v8222
        %v8225 = vshrl.u32 %v8020, 16
        %v8227 = vrot.slane %v8225, 3
        %v8228 = vshll.u32 %v8020, 16
        %v8230 = vrot.slane %v8228, 4
        %v8231 = vor.u32 %v8227, %v8230
        %v8232 = vsel %vm3709, %v8214, %v8231
        %v8233 = vshrl.u32 %v8071, 16
        %v8235 = vrot.slane %v8233, 3
        %v8236 = vshll.u32 %v8071, 16
        %v8238 = vrot.slane %v8236, 4
        %v8239 = vor.u32 %v8235, %v8238
        %v8240 = vsel %vm3709, %v8222, %v8239
        %v8242 = vshrl.u32 %v8022, 16
        %v8244 = vrot.slane %v8242, 3
        %v8245 = vshll.u32 %v8022, 16
        %v8247 = vrot.slane %v8245, 4
        %v8248 = vor.u32 %v8244, %v8247
        %v8249 = vsel %vm3709, %v8231, %v8248
        %v8250 = vshrl.u32 %v8073, 16
        %v8252 = vrot.slane %v8250, 3
        %v8253 = vshll.u32 %v8073, 16
        %v8255 = vrot.slane %v8253, 4
        %v8256 = vor.u32 %v8252, %v8255
        %v8257 = vsel %vm3709, %v8239, %v8256
        %v8259 = vshrl.u32 %v8024, 16
        %v8261 = vrot.slane %v8259, 3
        %v8262 = vshll.u32 %v8024, 16
        %v8264 = vrot.slane %v8262, 4
        %v8265 = vor.u32 %v8261, %v8264
        %v8266 = vsel %vm3709, %v8248, %v8265
        %v8267 = vshrl.u32 %v8075, 16
        %v8269 = vrot.slane %v8267, 3
        %v8270 = vshll.u32 %v8075, 16
        %v8272 = vrot.slane %v8270, 4
        %v8273 = vor.u32 %v8269, %v8272
        %v8274 = vsel %vm3709, %v8256, %v8273
        %v8276 = vshrl.u32 %v8026, 16
        %v8278 = vrot.slane %v8276, 3
        %v8279 = vshll.u32 %v8026, 16
        %v8281 = vrot.slane %v8279, 4
        %v8282 = vor.u32 %v8278, %v8281
        %v8283 = vsel %vm3709, %v8265, %v8282
        %v8284 = vshrl.u32 %v8077, 16
        %v8286 = vrot.slane %v8284, 3
        %v8287 = vshll.u32 %v8077, 16
        %v8289 = vrot.slane %v8287, 4
        %v8290 = vor.u32 %v8286, %v8289
        %v8291 = vsel %vm3709, %v8273, %v8290
        %v8293 = vshrl.u32 %v8028, 16
        %v8295 = vrot.slane %v8293, 3
        %v8296 = vshll.u32 %v8028, 16
        %v8298 = vrot.slane %v8296, 4
        %v8299 = vor.u32 %v8295, %v8298
        %v8300 = vsel %vm3709, %v8282, %v8299
        %v8301 = vshrl.u32 %v8079, 16
        %v8303 = vrot.slane %v8301, 3
        %v8304 = vshll.u32 %v8079, 16
        %v8306 = vrot.slane %v8304, 4
        %v8307 = vor.u32 %v8303, %v8306
        %v8308 = vsel %vm3709, %v8290, %v8307
        %v8310 = vshrl.u32 %v8030, 16
        %v8312 = vrot.slane %v8310, 3
        %v8313 = vshll.u32 %v8030, 16
        %v8315 = vrot.slane %v8313, 4
        %v8316 = vor.u32 %v8312, %v8315
        %v8317 = vsel %vm3709, %v8299, %v8316
        %v8318 = vshrl.u32 %v8081, 16
        %v8320 = vrot.slane %v8318, 3
        %v8321 = vshll.u32 %v8081, 16
        %v8323 = vrot.slane %v8321, 4
        %v8324 = vor.u32 %v8320, %v8323
        %v8325 = vsel %vm3709, %v8307, %v8324
        %v8327 = vshrl.u32 %v8032, 16
        %v8329 = vrot.slane %v8327, 3
        %v8330 = vshll.u32 %v8032, 16
        %v8332 = vrot.slane %v8330, 4
        %v8333 = vor.u32 %v8329, %v8332
        %v8334 = vsel %vm3709, %v8316, %v8333
        %v8335 = vshrl.u32 %v8083, 16
        %v8337 = vrot.slane %v8335, 3
        %v8338 = vshll.u32 %v8083, 16
        %v8340 = vrot.slane %v8338, 4
        %v8341 = vor.u32 %v8337, %v8340
        %v8342 = vsel %vm3709, %v8324, %v8341
        %v8344 = vshrl.u32 %v8034, 16
        %v8346 = vrot.slane %v8344, 3
        %v8347 = vshll.u32 %v8034, 16
        %v8349 = vrot.slane %v8347, 4
        %v8350 = vor.u32 %v8346, %v8349
        %v8351 = vsel %vm3709, %v8333, %v8350
        %v8352 = vshrl.u32 %v8085, 16
        %v8354 = vrot.slane %v8352, 3
        %v8355 = vshll.u32 %v8085, 16
        %v8357 = vrot.slane %v8355, 4
        %v8358 = vor.u32 %v8354, %v8357
        %v8359 = vsel %vm3709, %v8341, %v8358
        %v8361 = vshrl.u32 %v8036, 16
        %v8363 = vrot.slane %v8361, 3
        %v8364 = vshll.u32 %v8036, 16
        %v8366 = vrot.slane %v8364, 4
        %v8367 = vor.u32 %v8363, %v8366
        %v8368 = vsel %vm3709, %v8350, %v8367
        %v8369 = vshrl.u32 %v8087, 16
        %v8371 = vrot.slane %v8369, 3
        %v8372 = vshll.u32 %v8087, 16
        %v8374 = vrot.slane %v8372, 4
        %v8375 = vor.u32 %v8371, %v8374
        %v8376 = vsel %vm3709, %v8358, %v8375
        %v8378 = vshrl.u32 %v8038, 16
        %v8380 = vrot.slane %v8378, 3
        %v8381 = vshll.u32 %v8038, 16
        %v8383 = vrot.slane %v8381, 4
        %v8384 = vor.u32 %v8380, %v8383
        %v8385 = vsel %vm3709, %v8367, %v8384
        %v8386 = vshrl.u32 %v8089, 16
        %v8388 = vrot.slane %v8386, 3
        %v8389 = vshll.u32 %v8089, 16
        %v8391 = vrot.slane %v8389, 4
        %v8392 = vor.u32 %v8388, %v8391
        %v8393 = vsel %vm3709, %v8375, %v8392
        %v8395 = vshrl.u32 %v8040, 16
        %v8397 = vrot.slane %v8395, 3
        %v8398 = vshll.u32 %v8040, 16
        %v8400 = vrot.slane %v8398, 4
        %v8401 = vor.u32 %v8397, %v8400
        %v8402 = vsel %vm3709, %v8384, %v8401
        %v8403 = vshrl.u32 %v8091, 16
        %v8405 = vrot.slane %v8403, 3
        %v8406 = vshll.u32 %v8091, 16
        %v8408 = vrot.slane %v8406, 4
        %v8409 = vor.u32 %v8405, %v8408
        %v8410 = vsel %vm3709, %v8392, %v8409
        %v8412 = vshrl.u32 %v8042, 16
        %v8414 = vrot.slane %v8412, 3
        %v8415 = vshll.u32 %v8042, 16
        %v8417 = vrot.slane %v8415, 4
        %v8418 = vor.u32 %v8414, %v8417
        %v8419 = vsel %vm3709, %v8401, %v8418
        %v8420 = vshrl.u32 %v8093, 16
        %v8422 = vrot.slane %v8420, 3
        %v8423 = vshll.u32 %v8093, 16
        %v8425 = vrot.slane %v8423, 4
        %v8426 = vor.u32 %v8422, %v8425
        %v8427 = vsel %vm3709, %v8409, %v8426
        %v8429 = vshrl.u32 %v8044, 16
        %v8431 = vrot.slane %v8429, 3
        %v8432 = vshll.u32 %v8044, 16
        %v8434 = vrot.slane %v8432, 4
        %v8435 = vor.u32 %v8431, %v8434
        %v8436 = vsel %vm3709, %v8418, %v8435
        %v8437 = vshrl.u32 %v8095, 16
        %v8439 = vrot.slane %v8437, 3
        %v8440 = vshll.u32 %v8095, 16
        %v8442 = vrot.slane %v8440, 4
        %v8443 = vor.u32 %v8439, %v8442
        %v8444 = vsel %vm3709, %v8426, %v8443
        %v8446 = vshrl.u32 %v8046, 16
        %v8448 = vrot.slane %v8446, 3
        %v8449 = vshll.u32 %v8046, 16
        %v8451 = vrot.slane %v8449, 4
        %v8452 = vor.u32 %v8448, %v8451
        %v8453 = vsel %vm3709, %v8435, %v8452
        %v8454 = vshrl.u32 %v8097, 16
        %v8456 = vrot.slane %v8454, 3
        %v8457 = vshll.u32 %v8097, 16
        %v8459 = vrot.slane %v8457, 4
        %v8460 = vor.u32 %v8456, %v8459
        %v8461 = vsel %vm3709, %v8443, %v8460
        %v8463 = vshrl.u32 %v8048, 16
        %v8465 = vrot.slane %v8463, 3
        %v8466 = vshll.u32 %v8048, 16
        %v8468 = vrot.slane %v8466, 4
        %v8469 = vor.u32 %v8465, %v8468
        %v8470 = vsel %vm3709, %v8452, %v8469
        %v8471 = vshrl.u32 %v8099, 16
        %v8473 = vrot.slane %v8471, 3
        %v8474 = vshll.u32 %v8099, 16
        %v8476 = vrot.slane %v8474, 4
        %v8477 = vor.u32 %v8473, %v8476
        %v8478 = vsel %vm3709, %v8460, %v8477
        %v8480 = vshrl.u32 %v8050, 16
        %v8482 = vrot.slane %v8480, 3
        %v8483 = vshll.u32 %v8050, 16
        %v8485 = vrot.slane %v8483, 4
        %v8486 = vor.u32 %v8482, %v8485
        %v8487 = vsel %vm3709, %v8469, %v8486
        %v8488 = vshrl.u32 %v8101, 16
        %v8490 = vrot.slane %v8488, 3
        %v8491 = vshll.u32 %v8101, 16
        %v8493 = vrot.slane %v8491, 4
        %v8494 = vor.u32 %v8490, %v8493
        %v8495 = vsel %vm3709, %v8477, %v8494
        %v8497 = vshrl.u32 %v8052, 16
        %v8499 = vrot.slane %v8497, 3
        %v8500 = vshll.u32 %v8052, 16
        %v8502 = vrot.slane %v8500, 4
        %v8503 = vor.u32 %v8499, %v8502
        %v8504 = vsel %vm3709, %v8486, %v8503
        %v8505 = vshrl.u32 %v8103, 16
        %v8507 = vrot.slane %v8505, 3
        %v8508 = vshll.u32 %v8103, 16
        %v8510 = vrot.slane %v8508, 4
        %v8511 = vor.u32 %v8507, %v8510
        %v8512 = vsel %vm3709, %v8494, %v8511
        %v8514 = vshrl.u32 %v8054, 16
        %v8516 = vrot.slane %v8514, 3
        %v8517 = vshll.u32 %v8054, 16
        %v8519 = vrot.slane %v8517, 4
        %v8520 = vor.u32 %v8516, %v8519
        %v8521 = vsel %vm3709, %v8503, %v8520
        %v8522 = vshrl.u32 %v8105, 16
        %v8524 = vrot.slane %v8522, 3
        %v8525 = vshll.u32 %v8105, 16
        %v8527 = vrot.slane %v8525, 4
        %v8528 = vor.u32 %v8524, %v8527
        %v8529 = vsel %vm3709, %v8511, %v8528
        %v8531 = vshrl.u32 %v8056, 16
        %v8533 = vrot.slane %v8531, 3
        %v8534 = vshll.u32 %v8056, 16
        %v8536 = vrot.slane %v8534, 4
        %v8537 = vor.u32 %v8533, %v8536
        %v8538 = vsel %vm3709, %v8520, %v8537
        %v8539 = vshrl.u32 %v8107, 16
        %v8541 = vrot.slane %v8539, 3
        %v8542 = vshll.u32 %v8107, 16
        %v8544 = vrot.slane %v8542, 4
        %v8545 = vor.u32 %v8541, %v8544
        %v8546 = vsel %vm3709, %v8528, %v8545
        %v8548 = vshrl.u32 %v8055, 16
        %v8550 = vrot.slane %v8548, 3
        %v8551 = vshll.u32 %v8055, 16
        %v8553 = vrot.slane %v8551, 4
        %v8554 = vor.u32 %v8550, %v8553
        %v8555 = vsel %vm3709, %v8537, %v8554
        %v8604 = vunpack.c.l.b16 %v8109
        %v8605 = vunpack.c.l.b16 %v8110
        %v8606 = vunpack.c.l.b16 %v8111
        %v8607 = vunpack.c.l.b16 %v8112
        %v8608 = vunpack.c.l.b16 %v8113
        %v8609 = vunpack.c.l.b16 %v8114
        %v8610 = vunpack.c.l.b16 %v8115
        %v8611 = vunpack.c.l.b16 %v8116
        %v8612 = vunpack.c.l.b16 %v8117
        %v8613 = vunpack.c.l.b16 %v8118
        %v8614 = vunpack.c.l.b16 %v8119
        %v8615 = vunpack.c.l.b16 %v8120
        %v8616 = vunpack.c.l.b16 %v8121
        %v8617 = vunpack.c.l.b16 %v8122
        %v8618 = vunpack.c.l.b16 %v8123
        %v8619 = vunpack.c.l.b16 %v8124
        %v8620 = vunpack.c.l.b16 %v8125
        %v8621 = vunpack.c.l.b16 %v8126
        %v8622 = vunpack.c.l.b16 %v8127
        %v8623 = vunpack.c.l.b16 %v8128
        %v8624 = vunpack.c.l.b16 %v8129
        %v8625 = vunpack.c.l.b16 %v8130
        %v8626 = vunpack.c.l.b16 %v8131
        %v8627 = vunpack.c.l.b16 %v8132
        %v8628 = vpack.c.b16 %v8605, %v8604
        %v8629 = vpack.c.b16 %v8607, %v8606
        %v8630 = vpack.c.b16 %v8609, %v8608
        %v8631 = vpack.c.b16 %v8611, %v8610
        %v8632 = vpack.c.b16 %v8613, %v8612
        %v8633 = vpack.c.b16 %v8615, %v8614
        %v8634 = vpack.c.b16 %v8617, %v8616
        %v8635 = vpack.c.b16 %v8619, %v8618
        %v8636 = vpack.c.b16 %v8621, %v8620
        %v8637 = vpack.c.b16 %v8623, %v8622
        %v8638 = vpack.c.b16 %v8625, %v8624
        %v8639 = vpack.c.b16 %v8627, %v8626
        %v8653 = vsel %vm491, %v8164, 0
        %v8656 = vsel %vm491, %v8181, 0
        %v8659 = vsel %vm491, %v8198, 0
        %v8662 = vsel %vm491, %v8215, 0
        %v8665 = vsel %vm491, %v8232, 0
        %v8668 = vsel %vm491, %v8249, 0
        %v8671 = vsel %vm491, %v8266, 0
        %v8674 = vsel %vm491, %v8283, 0
        %v8677 = vsel %vm491, %v8300, 0
        %v8680 = vsel %vm491, %v8317, 0
        %v8683 = vsel %vm491, %v8334, 0
        %v8686 = vsel %vm491, %v8351, 0
        %v8689 = vsel %vm491, %v8368, 0
        %v8692 = vsel %vm491, %v8385, 0
        %v8695 = vsel %vm491, %v8402, 0
        %v8698 = vsel %vm491, %v8419, 0
        %v8701 = vsel %vm491, %v8436, 0
        %v8704 = vsel %vm491, %v8453, 0
        %v8707 = vsel %vm491, %v8470, 0
        %v8710 = vsel %vm491, %v8487, 0
        %v8713 = vsel %vm491, %v8504, 0
        %v8716 = vsel %vm491, %v8521, 0
        %v8719 = vsel %vm491, %v8538, 0
        %v8722 = vsel %vm491, %v8555, 0
        %8724 = vmatprep.subr.bf16.mxu0 0
        %8725 = vmatpush1.bf16.msra.mxu0 %v8628
        %8726 = vmatprep.subr.bf16.mxu0 0
        %8727 = vmatpush1.bf16.msra.mxu0 %v8629
        %8728 = vmatprep.subr.bf16.mxu0 0
        %8729 = vmatpush1.bf16.msra.mxu0 %v8630
        %8730 = vmatprep.subr.bf16.mxu0 0
        %8731 = vmatpush1.bf16.msra.mxu0 %v8631
        %8732 = vmatprep.subr.bf16.mxu0 0
        %8733 = vmatpush1.bf16.msra.mxu0 %v8632
        %8734 = vmatprep.subr.bf16.mxu0 0
        %8735 = vmatpush1.bf16.msra.mxu0 %v8633
        %8736 = vmatprep.subr.bf16.mxu0 0
        %8737 = vmatpush1.bf16.msra.mxu0 %v8634
        %8738 = vmatprep.subr.bf16.mxu0 0
        %8739 = vmatpush1.bf16.msra.mxu0 %v8635
        %8740 = vmatprep.subr.bf16.mxu0 0
        %8741 = vmatpush1.bf16.msra.mxu0 %v8636
        %8742 = vmatprep.subr.bf16.mxu0 0
        %8743 = vmatpush1.bf16.msra.mxu0 %v8637
        %8744 = vmatprep.subr.bf16.mxu0 0
        %8745 = vmatpush1.bf16.msra.mxu0 %v8638
        %8746 = vmatprep.subr.bf16.mxu0 0
        %8747 = vmatpush1.bf16.msra.mxu0 %v8639
        %8748 = vmatprep.subr.bf16.mxu0 0
        %8749 = vmatpush1.bf16.msra.mxu0 0
        %8750 = vmatprep.subr.bf16.mxu0 0
        %8751 = vmatpush1.bf16.msra.mxu0 0
        %8752 = vmatprep.subr.bf16.mxu0 0
        %8753 = vmatpush1.bf16.msra.mxu0 0
        %8754 = vmatprep.subr.bf16.mxu0 0
        %8755 = vmatpush1.bf16.msra.mxu0 0
        %8756 = vmatprep.mubr.bf16.mxu0 %v8653
        %8757 = vmatmul.mubr.bf16.gmra.mrb[0].mxu0 %v8147
        %v8758 = vpop.f32.mrb[0].mxu0
        %v8759 = vadd.f32 0.0, %v8758
        %v8760 = vpop.f32.mrb[0].mxu0
        %v8761 = vpop.f32.mrb[0].mxu0
        %v8762 = vadd.f32 0.0, %v8761
        %v8763 = vpop.f32.mrb[0].mxu0
        %8764 = vmatprep.mubr.bf16.mxu0 %v8656
        %8765 = vmatmul.mubr.bf16.gmra.mrb[0].mxu0 %v8172
        %v8766 = vpop.f32.mrb[0].mxu0
        %v8767 = vadd.f32 0.0, %v8766
        %v8768 = vpop.f32.mrb[0].mxu0
        %v8769 = vpop.f32.mrb[0].mxu0
        %v8770 = vadd.f32 0.0, %v8769
        %v8771 = vpop.f32.mrb[0].mxu0
        %8772 = vmatprep.mubr.bf16.mxu0 %v8659
        %8773 = vmatmul.mubr.bf16.gmra.mrb[0].mxu0 %v8189
        %v8774 = vpop.f32.mrb[0].mxu0
        %v8775 = vadd.f32 0.0, %v8774
        %v8776 = vpop.f32.mrb[0].mxu0
        %v8777 = vpop.f32.mrb[0].mxu0
        %v8778 = vadd.f32 0.0, %v8777
        %v8779 = vpop.f32.mrb[0].mxu0
        %8780 = vmatprep.mubr.bf16.mxu0 %v8662
        %8781 = vmatmul.mubr.bf16.gmra.mrb[0].mxu0 %v8206
        %v8782 = vpop.f32.mrb[0].mxu0
        %v8783 = vadd.f32 0.0, %v8782
        %v8784 = vpop.f32.mrb[0].mxu0
        %v8785 = vpop.f32.mrb[0].mxu0
        %v8786 = vadd.f32 0.0, %v8785
        %v8787 = vpop.f32.mrb[0].mxu0
        %8788 = vmatprep.mubr.bf16.mxu0 %v8665
        %8789 = vmatmul.mubr.bf16.gmra.mrb[0].mxu0 %v8223
        %v8790 = vpop.f32.mrb[0].mxu0
        %v8791 = vadd.f32 0.0, %v8790
        %v8792 = vpop.f32.mrb[0].mxu0
        %v8793 = vpop.f32.mrb[0].mxu0
        %v8794 = vadd.f32 0.0, %v8793
        %v8795 = vpop.f32.mrb[0].mxu0
        %8796 = vmatprep.mubr.bf16.mxu0 %v8668
        %8797 = vmatmul.mubr.bf16.gmra.mrb[0].mxu0 %v8240
        %v8798 = vpop.f32.mrb[0].mxu0
        %v8799 = vadd.f32 0.0, %v8798
        %v8800 = vpop.f32.mrb[0].mxu0
        %v8801 = vpop.f32.mrb[0].mxu0
        %v8802 = vadd.f32 0.0, %v8801
        %v8803 = vpop.f32.mrb[0].mxu0
        %8804 = vmatprep.mubr.bf16.mxu0 %v8671
        %8805 = vmatmul.mubr.bf16.gmra.mrb[0].mxu0 %v8257
        %v8806 = vpop.f32.mrb[0].mxu0
        %v8807 = vadd.f32 0.0, %v8806
        %v8808 = vpop.f32.mrb[0].mxu0
        %v8809 = vpop.f32.mrb[0].mxu0
        %v8810 = vadd.f32 0.0, %v8809
        %v8811 = vpop.f32.mrb[0].mxu0
        %8812 = vmatprep.mubr.bf16.mxu0 %v8674
        %8813 = vmatmul.mubr.bf16.gmra.mrb[0].mxu0 %v8274
        %v8814 = vpop.f32.mrb[0].mxu0
        %v8815 = vadd.f32 0.0, %v8814
        %v8816 = vpop.f32.mrb[0].mxu0
        %v8817 = vpop.f32.mrb[0].mxu0
        %v8818 = vadd.f32 0.0, %v8817
        %v8819 = vpop.f32.mrb[0].mxu0
        %8820 = vmatprep.mubr.bf16.mxu0 %v8677
        %8821 = vmatmul.mubr.bf16.gmra.mrb[0].mxu0 %v8291
        %v8822 = vpop.f32.mrb[0].mxu0
        %v8823 = vadd.f32 0.0, %v8822
        %v8824 = vpop.f32.mrb[0].mxu0
        %v8825 = vpop.f32.mrb[0].mxu0
        %v8826 = vadd.f32 0.0, %v8825
        %v8827 = vpop.f32.mrb[0].mxu0
        %8828 = vmatprep.mubr.bf16.mxu0 %v8680
        %8829 = vmatmul.mubr.bf16.gmra.mrb[0].mxu0 %v8308
        %v8830 = vpop.f32.mrb[0].mxu0
        %v8831 = vadd.f32 0.0, %v8830
        %v8832 = vpop.f32.mrb[0].mxu0
        %v8833 = vpop.f32.mrb[0].mxu0
        %v8834 = vadd.f32 0.0, %v8833
        %v8835 = vpop.f32.mrb[0].mxu0
        %8836 = vmatprep.mubr.bf16.mxu0 %v8683
        %8837 = vmatmul.mubr.bf16.gmra.mrb[0].mxu0 %v8325
        %v8838 = vpop.f32.mrb[0].mxu0
        %v8839 = vadd.f32 0.0, %v8838
        %v8840 = vpop.f32.mrb[0].mxu0
        %v8841 = vpop.f32.mrb[0].mxu0
        %v8842 = vadd.f32 0.0, %v8841
        %v8843 = vpop.f32.mrb[0].mxu0
        %8844 = vmatprep.mubr.bf16.mxu0 %v8686
        %8845 = vmatmul.mubr.bf16.gmra.mrb[0].mxu0 %v8342
        %v8846 = vpop.f32.mrb[0].mxu0
        %v8847 = vadd.f32 0.0, %v8846
        %v8848 = vpop.f32.mrb[0].mxu0
        %v8849 = vpop.f32.mrb[0].mxu0
        %v8850 = vadd.f32 0.0, %v8849
        %v8851 = vpop.f32.mrb[0].mxu0
        %8852 = vmatprep.mubr.bf16.mxu0 %v8689
        %8853 = vmatmul.mubr.bf16.gmra.mrb[0].mxu0 %v8359
        %v8854 = vpop.f32.mrb[0].mxu0
        %v8855 = vadd.f32 0.0, %v8854
        %v8856 = vpop.f32.mrb[0].mxu0
        %v8857 = vpop.f32.mrb[0].mxu0
        %v8858 = vadd.f32 0.0, %v8857
        %v8859 = vpop.f32.mrb[0].mxu0
        %8860 = vmatprep.mubr.bf16.mxu0 %v8692
        %8861 = vmatmul.mubr.bf16.gmra.mrb[0].mxu0 %v8376
        %v8862 = vpop.f32.mrb[0].mxu0
        %v8863 = vadd.f32 0.0, %v8862
        %v8864 = vpop.f32.mrb[0].mxu0
        %v8865 = vpop.f32.mrb[0].mxu0
        %v8866 = vadd.f32 0.0, %v8865
        %v8867 = vpop.f32.mrb[0].mxu0
        %8868 = vmatprep.mubr.bf16.mxu0 %v8695
        %8869 = vmatmul.mubr.bf16.gmra.mrb[0].mxu0 %v8393
        %v8870 = vpop.f32.mrb[0].mxu0
        %v8871 = vadd.f32 0.0, %v8870
        %v8872 = vpop.f32.mrb[0].mxu0
        %v8873 = vpop.f32.mrb[0].mxu0
        %v8874 = vadd.f32 0.0, %v8873
        %v8875 = vpop.f32.mrb[0].mxu0
        %8876 = vmatprep.mubr.bf16.mxu0 %v8698
        %8877 = vmatmul.mubr.bf16.gmra.mrb[0].mxu0 %v8410
        %v8878 = vpop.f32.mrb[0].mxu0
        %v8879 = vadd.f32 0.0, %v8878
        %v8880 = vpop.f32.mrb[0].mxu0
        %v8881 = vpop.f32.mrb[0].mxu0
        %v8882 = vadd.f32 0.0, %v8881
        %v8883 = vpop.f32.mrb[0].mxu0
        %8884 = vmatprep.mubr.bf16.mxu0 %v8701
        %8885 = vmatmul.mubr.bf16.gmra.mrb[0].mxu0 %v8427
        %v8886 = vpop.f32.mrb[0].mxu0
        %v8887 = vadd.f32 0.0, %v8886
        %v8888 = vpop.f32.mrb[0].mxu0
        %v8889 = vpop.f32.mrb[0].mxu0
        %v8890 = vadd.f32 0.0, %v8889
        %v8891 = vpop.f32.mrb[0].mxu0
        %8892 = vmatprep.mubr.bf16.mxu0 %v8704
        %8893 = vmatmul.mubr.bf16.gmra.mrb[0].mxu0 %v8444
        %v8894 = vpop.f32.mrb[0].mxu0
        %v8895 = vadd.f32 0.0, %v8894
        %v8896 = vpop.f32.mrb[0].mxu0
        %v8897 = vpop.f32.mrb[0].mxu0
        %v8898 = vadd.f32 0.0, %v8897
        %v8899 = vpop.f32.mrb[0].mxu0
        %8900 = vmatprep.mubr.bf16.mxu0 %v8707
        %8901 = vmatmul.mubr.bf16.gmra.mrb[0].mxu0 %v8461
        %v8902 = vpop.f32.mrb[0].mxu0
        %v8903 = vadd.f32 0.0, %v8902
        %v8904 = vpop.f32.mrb[0].mxu0
        %v8905 = vpop.f32.mrb[0].mxu0
        %v8906 = vadd.f32 0.0, %v8905
        %v8907 = vpop.f32.mrb[0].mxu0
        %8908 = vmatprep.mubr.bf16.mxu0 %v8710
        %8909 = vmatmul.mubr.bf16.gmra.mrb[0].mxu0 %v8478
        %v8910 = vpop.f32.mrb[0].mxu0
        %v8911 = vadd.f32 0.0, %v8910
        %v8912 = vpop.f32.mrb[0].mxu0
        %v8913 = vpop.f32.mrb[0].mxu0
        %v8914 = vadd.f32 0.0, %v8913
        %v8915 = vpop.f32.mrb[0].mxu0
        %8916 = vmatprep.mubr.bf16.mxu0 %v8713
        %8917 = vmatmul.mubr.bf16.gmra.mrb[0].mxu0 %v8495
        %v8918 = vpop.f32.mrb[0].mxu0
        %v8919 = vadd.f32 0.0, %v8918
        %v8920 = vpop.f32.mrb[0].mxu0
        %v8921 = vpop.f32.mrb[0].mxu0
        %v8922 = vadd.f32 0.0, %v8921
        %v8923 = vpop.f32.mrb[0].mxu0
        %8924 = vmatprep.mubr.bf16.mxu0 %v8716
        %8925 = vmatmul.mubr.bf16.gmra.mrb[0].mxu0 %v8512
        %v8926 = vpop.f32.mrb[0].mxu0
        %v8927 = vadd.f32 0.0, %v8926
        %v8928 = vpop.f32.mrb[0].mxu0
        %v8929 = vpop.f32.mrb[0].mxu0
        %v8930 = vadd.f32 0.0, %v8929
        %v8931 = vpop.f32.mrb[0].mxu0
        %8932 = vmatprep.mubr.bf16.mxu0 %v8719
        %8933 = vmatmul.mubr.bf16.gmra.mrb[0].mxu0 %v8529
        %v8934 = vpop.f32.mrb[0].mxu0
        %v8935 = vadd.f32 0.0, %v8934
        %v8936 = vpop.f32.mrb[0].mxu0
        %v8937 = vpop.f32.mrb[0].mxu0
        %v8938 = vadd.f32 0.0, %v8937
        %v8939 = vpop.f32.mrb[0].mxu0
        %8940 = vmatprep.mubr.bf16.mxu0 %v8722
        %8941 = vmatmul.mubr.bf16.gmra.mrb[0].mxu0 %v8546
        %v8942 = vpop.f32.mrb[0].mxu0
        %v8943 = vadd.f32 0.0, %v8942
        %v8944 = vpop.f32.mrb[0].mxu0
        %v8945 = vpop.f32.mrb[0].mxu0
        %v8946 = vadd.f32 0.0, %v8945
        %v8947 = vpop.f32.mrb[0].mxu0
        %8948 = vdwg.mxu0
        %v8949 = vadd.f32 %v7517, %v8759
        %v8950 = vadd.f32 %v7520, %v8762
        %v8951 = vadd.f32 %v7525, %v8767
        %v8952 = vadd.f32 %v7528, %v8770
        %v8953 = vadd.f32 %v7533, %v8775
        %v8954 = vadd.f32 %v7536, %v8778
        %v8955 = vadd.f32 %v7541, %v8783
        %v8956 = vadd.f32 %v7544, %v8786
        %v8957 = vadd.f32 %v7549, %v8791
        %v8958 = vadd.f32 %v7552, %v8794
        %v8959 = vadd.f32 %v7557, %v8799
        %v8960 = vadd.f32 %v7560, %v8802
        %v8961 = vadd.f32 %v7565, %v8807
        %v8962 = vadd.f32 %v7568, %v8810
        %v8963 = vadd.f32 %v7573, %v8815
        %v8964 = vadd.f32 %v7576, %v8818
        %v8965 = vadd.f32 %v7581, %v8823
        %v8966 = vadd.f32 %v7584, %v8826
        %v8967 = vadd.f32 %v7589, %v8831
        %v8968 = vadd.f32 %v7592, %v8834
        %v8969 = vadd.f32 %v7597, %v8839
        %v8970 = vadd.f32 %v7600, %v8842
        %v8971 = vadd.f32 %v7605, %v8847
        %v8972 = vadd.f32 %v7608, %v8850
        %v8973 = vadd.f32 %v7613, %v8855
        %v8974 = vadd.f32 %v7616, %v8858
        %v8975 = vadd.f32 %v7621, %v8863
        %v8976 = vadd.f32 %v7624, %v8866
        %v8977 = vadd.f32 %v7629, %v8871
        %v8978 = vadd.f32 %v7632, %v8874
        %v8979 = vadd.f32 %v7637, %v8879
        %v8980 = vadd.f32 %v7640, %v8882
        %v8981 = vadd.f32 %v7645, %v8887
        %v8982 = vadd.f32 %v7648, %v8890
        %v8983 = vadd.f32 %v7653, %v8895
        %v8984 = vadd.f32 %v7656, %v8898
        %v8985 = vadd.f32 %v7661, %v8903
        %v8986 = vadd.f32 %v7664, %v8906
        %v8987 = vadd.f32 %v7669, %v8911
        %v8988 = vadd.f32 %v7672, %v8914
        %v8989 = vadd.f32 %v7677, %v8919
        %v8990 = vadd.f32 %v7680, %v8922
        %v8991 = vadd.f32 %v7685, %v8927
        %v8992 = vadd.f32 %v7688, %v8930
        %v8993 = vadd.f32 %v7693, %v8935
        %v8994 = vadd.f32 %v7696, %v8938
        %v8995 = vadd.f32 %v7701, %v8943
        %v8996 = vadd.f32 %v7704, %v8946
        %v8997 = vld [vmem:[#allocation16 + $0x2] sm:$0x1]
        %v8998 = vlaneseq
        %v8999 = vshrl.u32 %v8998, 7
        %v9000 = vsub.s32 0, %v8999
        %v9001 = vrot.slane %v8997, %v9000
        %v9002 = vadd.f32 %v8949, %v9001
        %v9003 = vadd.f32 %v8950, %v9001
        %v9004 = vadd.f32 %v8951, %v9001
        %v9005 = vadd.f32 %v8952, %v9001
        %v9006 = vadd.f32 %v8953, %v9001
        %v9007 = vadd.f32 %v8954, %v9001
        %v9008 = vadd.f32 %v8955, %v9001
        %v9009 = vadd.f32 %v8956, %v9001
        %v9010 = vadd.f32 %v8957, %v9001
        %v9011 = vadd.f32 %v8958, %v9001
        %v9012 = vadd.f32 %v8959, %v9001
        %v9013 = vadd.f32 %v8960, %v9001
        %v9014 = vadd.f32 %v8961, %v9001
        %v9015 = vadd.f32 %v8962, %v9001
        %v9016 = vadd.f32 %v8963, %v9001
        %v9017 = vadd.f32 %v8964, %v9001
        %v9018 = vadd.f32 %v8965, %v9001
        %v9019 = vadd.f32 %v8966, %v9001
        %v9020 = vadd.f32 %v8967, %v9001
        %v9021 = vadd.f32 %v8968, %v9001
        %v9022 = vadd.f32 %v8969, %v9001
        %v9023 = vadd.f32 %v8970, %v9001
        %v9024 = vadd.f32 %v8971, %v9001
        %v9025 = vadd.f32 %v8972, %v9001
        %v9026 = vadd.f32 %v8973, %v9001
        %v9027 = vadd.f32 %v8974, %v9001
        %v9028 = vadd.f32 %v8975, %v9001
        %v9029 = vadd.f32 %v8976, %v9001
        %v9030 = vadd.f32 %v8977, %v9001
        %v9031 = vadd.f32 %v8978, %v9001
        %v9032 = vadd.f32 %v8979, %v9001
        %v9033 = vadd.f32 %v8980, %v9001
        %v9034 = vadd.f32 %v8981, %v9001
        %v9035 = vadd.f32 %v8982, %v9001
        %v9036 = vadd.f32 %v8983, %v9001
        %v9037 = vadd.f32 %v8984, %v9001
        %v9038 = vadd.f32 %v8985, %v9001
        %v9039 = vadd.f32 %v8986, %v9001
        %v9040 = vadd.f32 %v8987, %v9001
        %v9041 = vadd.f32 %v8988, %v9001
        %v9042 = vadd.f32 %v8989, %v9001
        %v9043 = vadd.f32 %v8990, %v9001
        %v9044 = vadd.f32 %v8991, %v9001
        %v9045 = vadd.f32 %v8992, %v9001
        %v9046 = vadd.f32 %v8993, %v9001
        %v9047 = vadd.f32 %v8994, %v9001
        %v9048 = vadd.f32 %v8995, %v9001
        %v9049 = vadd.f32 %v8996, %v9001
        %v9050 = vmax.f32 %v9002, 0.0
        %v9051 = vmax.f32 %v9003, 0.0
        %v9052 = vmax.f32 %v9004, 0.0
        %v9053 = vmax.f32 %v9005, 0.0
        %v9054 = vmax.f32 %v9006, 0.0
        %v9055 = vmax.f32 %v9007, 0.0
        %v9056 = vmax.f32 %v9008, 0.0
        %v9057 = vmax.f32 %v9009, 0.0
        %v9058 = vmax.f32 %v9010, 0.0
        %v9059 = vmax.f32 %v9011, 0.0
        %v9060 = vmax.f32 %v9012, 0.0
        %v9061 = vmax.f32 %v9013, 0.0
        %v9062 = vmax.f32 %v9014, 0.0
        %v9063 = vmax.f32 %v9015, 0.0
        %v9064 = vmax.f32 %v9016, 0.0
        %v9065 = vmax.f32 %v9017, 0.0
        %v9066 = vmax.f32 %v9018, 0.0
        %v9067 = vmax.f32 %v9019, 0.0
        %v9068 = vmax.f32 %v9020, 0.0
        %v9069 = vmax.f32 %v9021, 0.0
        %v9070 = vmax.f32 %v9022, 0.0
        %v9071 = vmax.f32 %v9023, 0.0
        %v9072 = vmax.f32 %v9024, 0.0
        %v9073 = vmax.f32 %v9025, 0.0
        %v9074 = vmax.f32 %v9026, 0.0
        %v9075 = vmax.f32 %v9027, 0.0
        %v9076 = vmax.f32 %v9028, 0.0
        %v9077 = vmax.f32 %v9029, 0.0
        %v9078 = vmax.f32 %v9030, 0.0
        %v9079 = vmax.f32 %v9031, 0.0
        %v9080 = vmax.f32 %v9032, 0.0
        %v9081 = vmax.f32 %v9033, 0.0
        %v9082 = vmax.f32 %v9034, 0.0
        %v9083 = vmax.f32 %v9035, 0.0
        %v9084 = vmax.f32 %v9036, 0.0
        %v9085 = vmax.f32 %v9037, 0.0
        %v9086 = vmax.f32 %v9038, 0.0
        %v9087 = vmax.f32 %v9039, 0.0
        %v9088 = vmax.f32 %v9040, 0.0
        %v9089 = vmax.f32 %v9041, 0.0
        %v9090 = vmax.f32 %v9042, 0.0
        %v9091 = vmax.f32 %v9043, 0.0
        %v9092 = vmax.f32 %v9044, 0.0
        %v9093 = vmax.f32 %v9045, 0.0
        %v9094 = vmax.f32 %v9046, 0.0
        %v9095 = vmax.f32 %v9047, 0.0
        %v9096 = vmax.f32 %v9048, 0.0
        %v9097 = vmax.f32 %v9049, 0.0
        %9098 = vst.msk [vmem:[%s489] sm:$0xff] %vm491, %v9050
        %9099 = vst.msk [vmem:[%s489 + $0x8] sm:$0xff] %vm491, %v9051
        %9100 = vst.msk [vmem:[%s489 + $0x10] sm:$0xff] %vm491, %v9052
        %9101 = vst.msk [vmem:[%s489 + $0x18] sm:$0xff] %vm491, %v9053
        %9102 = vst.msk [vmem:[%s489 + $0x20] sm:$0xff] %vm491, %v9054
        %9103 = vst.msk [vmem:[%s489 + $0x28] sm:$0xff] %vm491, %v9055
        %9104 = vst.msk [vmem:[%s489 + $0x30] sm:$0xff] %vm491, %v9056
        %9105 = vst.msk [vmem:[%s489 + $0x38] sm:$0xff] %vm491, %v9057
        %9106 = vst.msk [vmem:[%s489 + $0x40] sm:$0xff] %vm491, %v9058
        %9107 = vst.msk [vmem:[%s489 + $0x48] sm:$0xff] %vm491, %v9059
        %9108 = vst.msk [vmem:[%s489 + $0x50] sm:$0xff] %vm491, %v9060
        %9109 = vst.msk [vmem:[%s489 + $0x58] sm:$0xff] %vm491, %v9061
        %9110 = vst.msk [vmem:[%s489 + $0x60] sm:$0xff] %vm491, %v9062
        %9111 = vst.msk [vmem:[%s489 + $0x68] sm:$0xff] %vm491, %v9063
        %9112 = vst.msk [vmem:[%s489 + $0x70] sm:$0xff] %vm491, %v9064
        %9113 = vst.msk [vmem:[%s489 + $0x78] sm:$0xff] %vm491, %v9065
        %9114 = vst.msk [vmem:[%s489 + $0x80] sm:$0xff] %vm491, %v9066
        %9115 = vst.msk [vmem:[%s489 + $0x88] sm:$0xff] %vm491, %v9067
        %9116 = vst.msk [vmem:[%s489 + $0x90] sm:$0xff] %vm491, %v9068
        %9117 = vst.msk [vmem:[%s489 + $0x98] sm:$0xff] %vm491, %v9069
        %9118 = vst.msk [vmem:[%s489 + $0xa0] sm:$0xff] %vm491, %v9070
        %9119 = vst.msk [vmem:[%s489 + $0xa8] sm:$0xff] %vm491, %v9071
        %9120 = vst.msk [vmem:[%s489 + $0xb0] sm:$0xff] %vm491, %v9072
        %9121 = vst.msk [vmem:[%s489 + $0xb8] sm:$0xff] %vm491, %v9073
        %9122 = vst.msk [vmem:[%s489 + $0xc0] sm:$0xff] %vm491, %v9074
        %9123 = vst.msk [vmem:[%s489 + $0xc8] sm:$0xff] %vm491, %v9075
        %9124 = vst.msk [vmem:[%s489 + $0xd0] sm:$0xff] %vm491, %v9076
        %9125 = vst.msk [vmem:[%s489 + $0xd8] sm:$0xff] %vm491, %v9077
        %9126 = vst.msk [vmem:[%s489 + $0xe0] sm:$0xff] %vm491, %v9078
        %9127 = vst.msk [vmem:[%s489 + $0xe8] sm:$0xff] %vm491, %v9079
        %9128 = vst.msk [vmem:[%s489 + $0xf0] sm:$0xff] %vm491, %v9080
        %9129 = vst.msk [vmem:[%s489 + $0xf8] sm:$0xff] %vm491, %v9081
        %9130 = vst.msk [vmem:[%s489 + $0x100] sm:$0xff] %vm491, %v9082
        %9131 = vst.msk [vmem:[%s489 + $0x108] sm:$0xff] %vm491, %v9083
        %9132 = vst.msk [vmem:[%s489 + $0x110] sm:$0xff] %vm491, %v9084
        %9133 = vst.msk [vmem:[%s489 + $0x118] sm:$0xff] %vm491, %v9085
        %9134 = vst.msk [vmem:[%s489 + $0x120] sm:$0xff] %vm491, %v9086
        %9135 = vst.msk [vmem:[%s489 + $0x128] sm:$0xff] %vm491, %v9087
        %9136 = vst.msk [vmem:[%s489 + $0x130] sm:$0xff] %vm491, %v9088
        %9137 = vst.msk [vmem:[%s489 + $0x138] sm:$0xff] %vm491, %v9089
        %9138 = vst.msk [vmem:[%s489 + $0x140] sm:$0xff] %vm491, %v9090
        %9139 = vst.msk [vmem:[%s489 + $0x148] sm:$0xff] %vm491, %v9091
        %9140 = vst.msk [vmem:[%s489 + $0x150] sm:$0xff] %vm491, %v9092
        %9141 = vst.msk [vmem:[%s489 + $0x158] sm:$0xff] %vm491, %v9093
        %9142 = vst.msk [vmem:[%s489 + $0x160] sm:$0xff] %vm491, %v9094
        %9143 = vst.msk [vmem:[%s489 + $0x168] sm:$0xff] %vm491, %v9095
        %9144 = vst.msk [vmem:[%s489 + $0x170] sm:$0xff] %vm491, %v9096
        %9145 = vst.msk [vmem:[%s489 + $0x178] sm:$0xff] %vm491, %v9097
        %s9146 = sand.u32 %s239, 1
        %s9147 = scalar_lea.sflag [#allocation6], %s9146
        %s9148 = sand.u32 %s239, 1
        %s9149 = smul.addr %s9148, 384
        %s9150 = scalar_lea.vmem [#allocation19], %s9149
        // Predicated region
        $region93: #{unet_block_forward.1} parent=55 // pred_check
          %p9151 = pneg %p249
        $region94: #{unet_block_forward.1} parent=55 // pred_check_branch
          %9153 = sbr.rel (%p9151) target = $region96
        $region95: #{unet_block_forward.1} parent=55 // pred_region
          %s9155 = ssub.s32 6144, 6144
          %9156 = vsyncadd %s9147, %s9155
          %s9157 = smul.addr %s32, 48
          %s9158 = smul.addr %s9157, 128
          %s9159 = scalar_lea.hbm %s9, %s9158
          %s9160 = sshll.u32 %s9150, 4
          %s9161 = int_to_ptr.vmem [resolvable:$true] %s9160
          %9166 = dma.vmem_to_hbm [thread:$0]  %s9161, 6144, %s9159, %s9147, 128, 128, 8
        $region96: #{unet_block_forward.1} parent=55 // pred_fallthru
          _
      $region56: #{unet_block_forward.1} parent=5 // pred_fallthru
        _
      %p9167 = scmp.le.s32.totalorder 2, %s27
      // Predicated region
      $region97: #{unet_block_forward.1} parent=5 // pred_check
        %p9168 = pneg %p9167
      $region98: #{unet_block_forward.1} parent=5 // pred_check_branch
        %9170 = sbr.rel (%p9168) target = $region100
      $region99: #{unet_block_forward.1} parent=5 // pred_region
        %s9171 = ssub.s32 %s27, 2
        // Predicated region
        $region101: #{unet_block_forward.1} parent=99 // pred_check
          %p9172 = pneg %p255
        $region102: #{unet_block_forward.1} parent=99 // pred_check_branch
          %9174 = sbr.rel (%p9172) target = $region104
        $region103: #{unet_block_forward.1} parent=99 // pred_region
          %s9175 = sand.u32 %s240, 1
          %s9176 = scalar_lea.sflag [#allocation6], %s9175
          %s9177 = sand.u32 %s240, 1
          %s9178 = smul.addr %s9177, 384
          %s9179 = scalar_lea.vmem [#allocation19], %s9178
          %9180 = dma.done %s9176, 6144
        $region104: #{unet_block_forward.1} parent=99 // pred_fallthru
          _
      $region100: #{unet_block_forward.1} parent=5 // pred_fallthru
        _
    $region6: #{unet_block_forward.1} parent=1 // loop_footer
      %s31 = sadd.s32 1, %s27
    $region7: #{unet_block_forward.1} parent=1 // loop_footer_branch
      %26 = sbr.rel target = $region3
    $region8: #{unet_block_forward.1} parent=1 // loop_exit
      _
    %9181 = vsyncpa [#allocation5], 1
    %s9182 = scalar_lea.sflag [#allocation5], 1
    %9183 = vsyncpa %s9182, 1
    %9184 = vsyncpa [#allocation8], 1
    %s9185 = scalar_lea.sflag [#allocation8], 1
    %9186 = vsyncpa %s9185, 1
    %9187 = vsyncpa [#allocation11], 1
    %9188 = vsyncpa [#allocation14], 1
    %9189 = vsyncpa [#allocation17], 1
    %9190 = vsyncpa [#allocation6], 1
    %s9191 = scalar_lea.sflag [#allocation6], 1
    %9192 = vsyncpa %s9191, 1

</llo_original>
